<compile_context>
chip_gen: v6e
topology: v6e:2x2x1
jax: 0.10.0
libtpu: 0.0.40
codegen_flags: <defaults>
</compile_context>

<pallas_src>
import functools

import numpy as np
import jax
import jax.numpy as jnp
from jax import lax
from jax.experimental import pallas as pl
from jax.experimental.pallas import tpu as pltpu

BN_EPS = 1e-5
ACT_DTYPE = jnp.float32            # storage dtype for activations / weights
_VMEM_NB_BUDGET = 20 * 1024 * 1024 # per-grid-step budget used to pick batch chunk


# ----------------------------------------------------------------------------
# Parameter initialization (PyTorch-equivalent structure, BN pre-folded)
# ----------------------------------------------------------------------------
def _fold_bn(key, c):
    k1, k2, k3, k4 = jax.random.split(key, 4)
    gamma = 1.0 + 0.1 * jax.random.normal(k1, (c,), jnp.float32)
    beta = 0.1 * jax.random.normal(k2, (c,), jnp.float32)
    mean = 0.1 * jax.random.normal(k3, (c,), jnp.float32)
    var = jax.random.uniform(k4, (c,), jnp.float32, minval=0.5, maxval=1.5)
    scale = gamma / jnp.sqrt(var + BN_EPS)
    bias = beta - mean * scale
    return np.asarray(scale, np.float32), np.asarray(bias, np.float32)


def init_residual(key, cin, cout, stride=1):
    ks = jax.random.split(key, 5)
    w1 = np.asarray(jax.random.normal(ks[0], (3, 3, cin, cout), jnp.float32),
                    np.float32) * (2.0 / (9 * cin)) ** 0.5
    s1, b1 = _fold_bn(ks[1], cout)
    w2 = np.asarray(jax.random.normal(ks[2], (3, 3, cout, cout), jnp.float32),
                    np.float32) * (2.0 / (9 * cout)) ** 0.5
    s2, b2 = _fold_bn(ks[3], cout)
    p = dict(stride=stride, cin=cin, cout=cout,
             w1=w1, s1=s1, b1=b1, w2=w2, s2=s2, b2=b2, skip=None)
    if stride != 1 or cin != cout:
        kk = jax.random.split(ks[4], 2)
        ws = np.asarray(jax.random.normal(kk[0], (cin, cout), jnp.float32),
                        np.float32) * (2.0 / cin) ** 0.5
        ss, bs = _fold_bn(kk[1], cout)
        p["skip"] = dict(w=ws, scale=ss, bias=bs)
    return p


def init_make_layer(key, cin, cout, modules, stride=1):
    keys = jax.random.split(key, modules)
    layers = [init_residual(keys[0], cin, cout, stride)]
    layers += [init_residual(keys[i], cout, cout) for i in range(1, modules)]
    return layers


def init_make_layer_revr(key, cin, cout, modules):
    keys = jax.random.split(key, modules)
    layers = [init_residual(keys[i], cin, cin) for i in range(modules - 1)]
    layers.append(init_residual(keys[modules - 1], cin, cout))
    return layers


def init_kp(key, n, dims, modules):
    k1, k2, k3, k4 = jax.random.split(key, 4)
    curr_mod, next_mod = modules[0], modules[1]
    curr_dim, next_dim = dims[0], dims[1]
    p = {"n": n}
    p["top"] = init_make_layer(k1, curr_dim, curr_dim, curr_mod)
    p["low1"] = init_make_layer(k2, curr_dim, next_dim, curr_mod, stride=2)
    if n > 1:
        p["low2"] = init_kp(k3, n - 1, dims[1:], modules[1:])
        p["low2_is_kp"] = True
    else:
        p["low2"] = init_make_layer(k3, next_dim, next_dim, next_mod)
        p["low2_is_kp"] = False
    p["low3"] = init_make_layer_revr(k4, next_dim, curr_dim, curr_mod)
    return p


# ----------------------------------------------------------------------------
# Plan building: fold BN/skip/taps into lane-dense "row operator" matrices
# ----------------------------------------------------------------------------
class _Collector:
    def __init__(self):
        self.arrays = []     # list of (np_array, device dtype)
        self.scratch = {}    # (rows, lane_cols) -> scratch index
        self.act_elems = 0   # rough per-sample activation working set (elements)

    def add_array(self, a, dtype):
        self.arrays.append((np.asarray(a, np.float32), dtype))
        return len(self.arrays) - 1

    def add_scratch(self, rows, cols):
        key = (int(rows), int(cols))
        if key not in self.scratch:
            self.scratch[key] = len(self.scratch)
        return self.scratch[key]


def _conv_row_ops(w, scale, stride, w_in, w_out, skip_w=None, skip_scale=None):
    """3 row-operator matrices (stacked) for a 3x3 conv in fused (W*C) layout.

    Horizontal taps, horizontal stride, horizontal zero padding and the BN
    scale are folded in.  If skip_w is given, the (BN-scaled) 1x1-conv skip is
    appended as extra output columns of the kh=1 (centre-row) operator."""
    cin, cout = w.shape[2], w.shape[3]
    ncols = w_out * cout * (2 if skip_w is not None else 1)
    bs = np.zeros((3, w_in * cin, ncols), np.float32)
    ws = w * scale[None, None, None, :]                 # fold BN scale
    for kh in range(3):
        for jo in range(w_out):
            for kw in range(3):
                ji = stride * jo + kw - 1
                if 0 <= ji < w_in:
                    bs[kh, ji * cin:(ji + 1) * cin,
                       jo * cout:(jo + 1) * cout] = ws[kh, kw]
    if skip_w is not None:
        sw = skip_w * skip_scale[None, :]
        off = w_out * cout
        for jo in range(w_out):
            ji = stride * jo
            bs[1, ji * cin:(ji + 1) * cin,
               off + jo * cout: off + (jo + 1) * cout] = sw
    return bs


def _prepare_residual(col, p, h, w):
    cin, cout, s = p["cin"], p["cout"], p["stride"]
    assert h % s == 0 and w % s == 0, "spatial dims must be divisible by stride"
    ho, wo = h // s, w // s
    has_skip = p["skip"] is not None
    skip_w = p["skip"]["w"] if has_skip else None
    skip_scale = p["skip"]["scale"] if has_skip else None
    b1_stack = _conv_row_ops(p["w1"], p["s1"], s, w, wo, skip_w, skip_scale)
    if has_skip:
        bias1 = np.concatenate([np.tile(p["b1"], wo), np.tile(p["skip"]["bias"], wo)])
    else:
        bias1 = np.tile(p["b1"], wo)
    b2_stack = _conv_row_ops(p["w2"], p["s2"], 1, wo, wo)
    bias2 = np.tile(p["b2"], wo)
    rp = dict(
        stride=s, h=h, w=w, ho=ho, wo=wo, cin=cin, cout=cout, has_skip=has_skip,
        b1=col.add_array(b1_stack, ACT_DTYPE),
        bias1=col.add_array(bias1.reshape(1, -1), jnp.float32),
        b2=col.add_array(b2_stack, ACT_DTYPE),
        bias2=col.add_array(bias2.reshape(1, -1), jnp.float32),
        scr1=col.add_scratch(h + 2, w * cin),
        scr2=col.add_scratch(ho + 2, wo * cout),
    )
    col.act_elems += 3 * h * w * cin + 8 * ho * wo * cout
    return rp, ho, wo, cout


def _prepare_seq(col, layers, h, w):
    plans, c = [], None
    for p in layers:
        rp, h, w, c = _prepare_residual(col, p, h, w)
        plans.append(rp)
    return plans, h, w, c


def _prepare_kp(col, params, h, w):
    top, th, tw, c_top = _prepare_seq(col, params["top"], h, w)
    assert (th, tw) == (h, w)
    low1, hl, wl, _ = _prepare_seq(col, params["low1"], h, w)
    if params["low2_is_kp"]:
        low2, _ = _prepare_kp(col, params["low2"], hl, wl)
    else:
        low2, _, _, _ = _prepare_seq(col, params["low2"], hl, wl)
    low3, h3, w3, c3 = _prepare_seq(col, params["low3"], hl, wl)
    assert (h3, w3) == (hl, wl) and c3 == c_top
    # Nearest-2x horizontal duplication matrix (applied on the idle MXU).
    u = np.zeros((wl * c_top, 2 * wl * c_top), np.float32)
    eye = np.eye(c_top, dtype=np.float32)
    for j in range(wl):
        u[j * c_top:(j + 1) * c_top, (2 * j) * c_top:(2 * j + 1) * c_top] = eye
        u[j * c_top:(j + 1) * c_top, (2 * j + 1) * c_top:(2 * j + 2) * c_top] = eye
    node = dict(top=top, low1=low1, low2=low2, low2_is_kp=params["low2_is_kp"],
                low3=low3, h=h, w=w, hl=hl, wl=wl, c=c_top,
                u=col.add_array(u, ACT_DTYPE))
    return node, c_top


# ----------------------------------------------------------------------------
# The single fused Pallas kernel
# ----------------------------------------------------------------------------
def _kp_kernel(*refs, plan, nb, n_weights):
    x_ref = refs[0]
    wrefs = refs[1:1 + n_weights]
    out_ref = refs[1 + n_weights]
    scratch = refs[2 + n_weights:]
    f32 = jnp.float32

    def residual(rp, xf):
        h, w, ho, wo = rp["h"], rp["w"], rp["ho"], rp["wo"]
        cin, cout, s = rp["cin"], rp["cout"], rp["stride"]
        rin, woc = w * cin, wo * cout
        m = nb * ho
        # ---- conv1 (+BN, and 1x1-conv skip folded in as extra output columns)
        scr1 = scratch[rp["scr1"]]
        b1 = wrefs[rp["b1"]]
        zrow = jnp.zeros((nb, 1, rin), dtype=scr1.dtype)
        scr1[:, 0:1, :] = zrow                           # halo rows only,
        scr1[:, h + 1:h + 2, :] = zrow                   # no full memset
        scr1[:, 1:h + 1, :] = xf.astype(scr1.dtype)      # interior
        z = None
        for kh in range(3):
            if s == 1:
                rows = scr1[:, kh:kh + ho, :]
            else:
                rows = scr1[:, pl.ds(kh, ho, s), :]      # vertical stride folded in
            t = jnp.dot(rows.reshape(m, rin), b1[kh],
                        preferred_element_type=f32)
            z = t if z is None else z + t
        z = z + wrefs[rp["bias1"]][...]                  # BN bias only (scale folded)
        if rp["has_skip"]:
            y1 = jnp.maximum(z[:, :woc], 0.0)
            skip = z[:, woc:]
        else:
            y1 = jnp.maximum(z, 0.0)
            skip = xf.reshape(nb * h, rin).astype(f32)   # identity (s==1, cin==cout)
        # ---- conv2 (+BN), add skip, relu
        scr2 = scratch[rp["scr2"]]
        b2 = wrefs[rp["b2"]]
        zrow2 = jnp.zeros((nb, 1, woc), dtype=scr2.dtype)
        scr2[:, 0:1, :] = zrow2
        scr2[:, ho + 1:ho + 2, :] = zrow2
        scr2[:, 1:ho + 1, :] = y1.reshape(nb, ho, woc).astype(scr2.dtype)
        z2 = None
        for kh in range(3):
            rows = scr2[:, kh:kh + ho, :].reshape(m, woc)
            t = jnp.dot(rows, b2[kh], preferred_element_type=f32)
            z2 = t if z2 is None else z2 + t
        z2 = z2 + wrefs[rp["bias2"]][...]
        out = jnp.maximum(z2 + skip, 0.0)
        return out.reshape(nb, ho, woc)

    def seq(plans, xf):
        for rp in plans:
            xf = residual(rp, xf)
        return xf

    def kp(node, xf):
        up1 = seq(node["top"], xf)                              # (nb, h, w*c)
        low1 = seq(node["low1"], xf)
        low2 = kp(node["low2"], low1) if node["low2_is_kp"] else seq(node["low2"], low1)
        low3 = seq(node["low3"], low2)                          # (nb, hl, wl*c)
        h, w, hl, wl, c = node["h"], node["w"], node["hl"], node["wl"], node["c"]
        # nearest-2x upsample fused with the add; never materialized in HBM.
        u = wrefs[node["u"]]
        upcols = jnp.dot(low3.reshape(nb * hl, wl * c), u[...],
                         preferred_element_type=f32)            # (nb*hl, w*c)
        up2 = jnp.broadcast_to(upcols.reshape(nb, hl, 1, w * c),
                               (nb, hl, 2, w * c)).reshape(nb, h, w * c)
        return up1 + up2

    xf0 = x_ref[...]
    y = kp(plan, xf0)
    out_ref[...] = y.astype(out_ref.dtype)


# ----------------------------------------------------------------------------
# Wrapper: build the pallas_call for a given input shape
# ----------------------------------------------------------------------------
def _pick_nb(n, per_sample_bytes, budget):
    # Keep >=2 grid steps whenever possible so both v7x TensorCores get work;
    # otherwise pick the largest divisor of N that fits the VMEM budget.
    cap = n // 2 if n >= 2 else n
    best = 1
    for d in range(1, max(cap, 1) + 1):
        if n % d == 0 and d * per_sample_bytes <= budget:
            best = d
    return best


def build_kp_forward(params, x_shape):
    n, c0, h0, w0 = x_shape                      # NCHW like the PyTorch module
    col = _Collector()
    plan, c_out = _prepare_kp(col, params, h0, w0)
    n_weights = len(col.arrays)
    weights = [jnp.asarray(a, dt) for a, dt in col.arrays]
    scratch_keys = [k for k, _ in sorted(col.scratch.items(), key=lambda kv: kv[1])]

    item = np.dtype(ACT_DTYPE).itemsize
    scr_elems = sum(r * c for (r, c) in scratch_keys)
    per_sample = item * (2 * h0 * w0 * c0 + 2 * h0 * w0 * c_out
                         + scr_elems + col.act_elems)
    weight_bytes = 2 * sum(a.size for a, _ in col.arrays) * item
    nb = _pick_nb(n, per_sample, _VMEM_NB_BUDGET)
    grid = (n // nb,)
    vmem_limit = int(min(max(4 * (nb * per_sample + weight_bytes), 32 << 20), 48 << 20))

    in_specs = [pl.BlockSpec((nb, h0, w0 * c0), lambda i: (i, 0, 0))]
    for a in weights:
        if a.ndim == 2:
            in_specs.append(pl.BlockSpec(a.shape, lambda i: (0, 0)))
        else:
            in_specs.append(pl.BlockSpec(a.shape, lambda i: (0, 0, 0)))
    out_spec = pl.BlockSpec((nb, h0, w0 * c_out), lambda i: (i, 0, 0))
    scratch_shapes = [pltpu.VMEM((nb, r, c), ACT_DTYPE) for (r, c) in scratch_keys]

    kern = functools.partial(_kp_kernel, plan=plan, nb=nb, n_weights=n_weights)
    call = pl.pallas_call(
        kern,
        grid=grid,
        in_specs=in_specs,
        out_specs=out_spec,
        out_shape=jax.ShapeDtypeStruct((n, h0, w0 * c_out), ACT_DTYPE),
        scratch_shapes=scratch_shapes,
        compiler_params=pltpu.CompilerParams(
            dimension_semantics=("parallel",),
            vmem_limit_bytes=vmem_limit),
    )

    def forward(x_nchw):
        xh = jnp.transpose(x_nchw, (0, 2, 3, 1)).astype(ACT_DTYPE)   # NCHW -> NHWC
        xf = xh.reshape(n, h0, w0 * c0)                              # lane-fused rows
        yf = call(xf, *weights)
        y = yf.reshape(n, h0, w0, c_out).astype(jnp.float32)
        return jnp.transpose(y, (0, 3, 1, 2))                        # NHWC -> NCHW

    return forward


# ----------------------------------------------------------------------------
# Pure-JAX (XLA) reference of the same math, for validation
# ----------------------------------------------------------------------------
def _ref_residual(p, x):
    s = p["stride"]
    hp = lax.Precision.HIGHEST
    y = lax.conv_general_dilated(x, jnp.asarray(p["w1"]), (s, s), ((1, 1), (1, 1)),
                                 dimension_numbers=("NHWC", "HWIO", "NHWC"),
                                 precision=hp)
    y = jnp.maximum(y * p["s1"] + p["b1"], 0.0)
    y = lax.conv_general_dilated(y, jnp.asarray(p["w2"]), (1, 1), ((1, 1), (1, 1)),
                                 dimension_numbers=("NHWC", "HWIO", "NHWC"),
                                 precision=hp)
    y = y * p["s2"] + p["b2"]
    if p["skip"] is not None:
        sk = lax.conv_general_dilated(x, jnp.asarray(p["skip"]["w"])[None, None],
                                      (s, s), "VALID",
                                      dimension_numbers=("NHWC", "HWIO", "NHWC"),
                                      precision=hp)
        sk = sk * p["skip"]["scale"] + p["skip"]["bias"]
    else:
        sk = x
    return jnp.maximum(y + sk, 0.0)


def _ref_seq(layers, x):
    for p in layers:
        x = _ref_residual(p, x)
    return x


def _ref_kp(params, x):
    up1 = _ref_seq(params["top"], x)
    low1 = _ref_seq(params["low1"], x)
    if params["low2_is_kp"]:
        low2 = _ref_kp(params["low2"], low1)
    else:
        low2 = _ref_seq(params["low2"], low1)
    low3 = _ref_seq(params["low3"], low2)
    up2 = jnp.repeat(jnp.repeat(low3, 2, axis=1), 2, axis=2)
    return up1 + up2


# ----------------------------------------------------------------------------
if __name__ == "__main__":
    key = jax.random.PRNGKey(0)
    kx, kparams = jax.random.split(key)

    # kp_module(n=2, dims=[4, 8, 16], modules=[1, 1, 1])
    n_levels = 2
    dims = [4, 8, 16]
    modules = [1, 1, 1]

    x = jax.random.normal(kx, (2, 4, 16, 16), jnp.float32)   # NCHW like PyTorch
    params = init_kp(kparams, n_levels, dims, modules)

    fwd = jax.jit(build_kp_forward(params, x.shape))
    y = fwd(x)
    jax.block_until_ready(y)
    assert y.shape == (2, 4, 16, 16), y.shape
    assert bool(jnp.all(jnp.isfinite(y)))

    # Validate against a plain-XLA reference of the same (BN-folded) math.
    y_ref = jnp.transpose(_ref_kp(params, jnp.transpose(x, (0, 2, 3, 1))), (0, 3, 1, 2))
    max_err = float(jnp.max(jnp.abs(y - y_ref)))
    ref_scale = float(jnp.max(jnp.abs(y_ref))) + 1.0
    assert max_err <= 0.05 * ref_scale, f"mismatch vs reference: {max_err} (scale {ref_scale})"

    print("KERNEL_OK")
</pallas_src>

<mosaic_0001>
module attributes {stable_mosaic.version = 11 : i64} {
  func.func @_kp_kernel(%arg0: i32, %arg1: memref<1x16x64xf32, #tpu.memory_space<vmem>>, %arg2: memref<3x64x64xf32, #tpu.memory_space<vmem>>, %arg3: memref<1x64xf32, #tpu.memory_space<vmem>>, %arg4: memref<3x64x64xf32, #tpu.memory_space<vmem>>, %arg5: memref<1x64xf32, #tpu.memory_space<vmem>>, %arg6: memref<3x64x128xf32, #tpu.memory_space<vmem>>, %arg7: memref<1x128xf32, #tpu.memory_space<vmem>>, %arg8: memref<3x64x64xf32, #tpu.memory_space<vmem>>, %arg9: memref<1x64xf32, #tpu.memory_space<vmem>>, %arg10: memref<3x64x64xf32, #tpu.memory_space<vmem>>, %arg11: memref<1x64xf32, #tpu.memory_space<vmem>>, %arg12: memref<3x64x64xf32, #tpu.memory_space<vmem>>, %arg13: memref<1x64xf32, #tpu.memory_space<vmem>>, %arg14: memref<3x64x128xf32, #tpu.memory_space<vmem>>, %arg15: memref<1x128xf32, #tpu.memory_space<vmem>>, %arg16: memref<3x64x64xf32, #tpu.memory_space<vmem>>, %arg17: memref<1x64xf32, #tpu.memory_space<vmem>>, %arg18: memref<3x64x64xf32, #tpu.memory_space<vmem>>, %arg19: memref<1x64xf32, #tpu.memory_space<vmem>>, %arg20: memref<3x64x64xf32, #tpu.memory_space<vmem>>, %arg21: memref<1x64xf32, #tpu.memory_space<vmem>>, %arg22: memref<3x64x64xf32, #tpu.memory_space<vmem>>, %arg23: memref<1x64xf32, #tpu.memory_space<vmem>>, %arg24: memref<3x32x32xf32, #tpu.memory_space<vmem>>, %arg25: memref<1x32xf32, #tpu.memory_space<vmem>>, %arg26: memref<32x64xf32, #tpu.memory_space<vmem>>, %arg27: memref<3x64x64xf32, #tpu.memory_space<vmem>>, %arg28: memref<1x64xf32, #tpu.memory_space<vmem>>, %arg29: memref<3x32x32xf32, #tpu.memory_space<vmem>>, %arg30: memref<1x32xf32, #tpu.memory_space<vmem>>, %arg31: memref<32x64xf32, #tpu.memory_space<vmem>>, %arg32: memref<1x16x64xf32, #tpu.memory_space<vmem>>, %arg33: memref<1x18x64xf32, #tpu.memory_space<vmem>>, %arg34: memref<1x10x64xf32, #tpu.memory_space<vmem>>, %arg35: memref<1x6x64xf32, #tpu.memory_space<vmem>>, %arg36: memref<1x6x32xf32, #tpu.memory_space<vmem>>, %arg37: memref<1x10x32xf32, #tpu.memory_space<vmem>>) attributes {dimension_semantics = [#tpu.dimension_semantics<parallel>], iteration_bounds = array<i64: 2>, scalar_prefetch = 0 : i64, scratch_operands = 5 : i64, tpu.core_type = #tpu.core_type<tc>, window_params = [{transform_indices = @transform_0, window_bounds = array<i64: 1, 16, 64>}, {pipeline_mode = #tpu.pipeline_mode<synchronous>, transform_indices = @transform_1, window_bounds = array<i64: 3, 64, 64>}, {pipeline_mode = #tpu.pipeline_mode<synchronous>, transform_indices = @transform_2, window_bounds = array<i64: 1, 64>}, {pipeline_mode = #tpu.pipeline_mode<synchronous>, transform_indices = @transform_3, window_bounds = array<i64: 3, 64, 64>}, {pipeline_mode = #tpu.pipeline_mode<synchronous>, transform_indices = @transform_4, window_bounds = array<i64: 1, 64>}, {pipeline_mode = #tpu.pipeline_mode<synchronous>, transform_indices = @transform_5, window_bounds = array<i64: 3, 64, 128>}, {pipeline_mode = #tpu.pipeline_mode<synchronous>, transform_indices = @transform_6, window_bounds = array<i64: 1, 128>}, {pipeline_mode = #tpu.pipeline_mode<synchronous>, transform_indices = @transform_7, window_bounds = array<i64: 3, 64, 64>}, {pipeline_mode = #tpu.pipeline_mode<synchronous>, transform_indices = @transform_8, window_bounds = array<i64: 1, 64>}, {pipeline_mode = #tpu.pipeline_mode<synchronous>, transform_indices = @transform_9, window_bounds = array<i64: 3, 64, 64>}, {pipeline_mode = #tpu.pipeline_mode<synchronous>, transform_indices = @transform_10, window_bounds = array<i64: 1, 64>}, {pipeline_mode = #tpu.pipeline_mode<synchronous>, transform_indices = @transform_11, window_bounds = array<i64: 3, 64, 64>}, {pipeline_mode = #tpu.pipeline_mode<synchronous>, transform_indices = @transform_12, window_bounds = array<i64: 1, 64>}, {pipeline_mode = #tpu.pipeline_mode<synchronous>, transform_indices = @transform_13, window_bounds = array<i64: 3, 64, 128>}, {pipeline_mode = #tpu.pipeline_mode<synchronous>, transform_indices = @transform_14, window_bounds = array<i64: 1, 128>}, {pipeline_mode = #tpu.pipeline_mode<synchronous>, transform_indices = @transform_15, window_bounds = array<i64: 3, 64, 64>}, {pipeline_mode = #tpu.pipeline_mode<synchronous>, transform_indices = @transform_16, window_bounds = array<i64: 1, 64>}, {pipeline_mode = #tpu.pipeline_mode<synchronous>, transform_indices = @transform_17, window_bounds = array<i64: 3, 64, 64>}, {pipeline_mode = #tpu.pipeline_mode<synchronous>, transform_indices = @transform_18, window_bounds = array<i64: 1, 64>}, {pipeline_mode = #tpu.pipeline_mode<synchronous>, transform_indices = @transform_19, window_bounds = array<i64: 3, 64, 64>}, {pipeline_mode = #tpu.pipeline_mode<synchronous>, transform_indices = @transform_20, window_bounds = array<i64: 1, 64>}, {pipeline_mode = #tpu.pipeline_mode<synchronous>, transform_indices = @transform_21, window_bounds = array<i64: 3, 64, 64>}, {pipeline_mode = #tpu.pipeline_mode<synchronous>, transform_indices = @transform_22, window_bounds = array<i64: 1, 64>}, {pipeline_mode = #tpu.pipeline_mode<synchronous>, transform_indices = @transform_23, window_bounds = array<i64: 3, 32, 32>}, {pipeline_mode = #tpu.pipeline_mode<synchronous>, transform_indices = @transform_24, window_bounds = array<i64: 1, 32>}, {pipeline_mode = #tpu.pipeline_mode<synchronous>, transform_indices = @transform_25, window_bounds = array<i64: 32, 64>}, {pipeline_mode = #tpu.pipeline_mode<synchronous>, transform_indices = @transform_26, window_bounds = array<i64: 3, 64, 64>}, {pipeline_mode = #tpu.pipeline_mode<synchronous>, transform_indices = @transform_27, window_bounds = array<i64: 1, 64>}, {pipeline_mode = #tpu.pipeline_mode<synchronous>, transform_indices = @transform_28, window_bounds = array<i64: 3, 32, 32>}, {pipeline_mode = #tpu.pipeline_mode<synchronous>, transform_indices = @transform_29, window_bounds = array<i64: 1, 32>}, {pipeline_mode = #tpu.pipeline_mode<synchronous>, transform_indices = @transform_30, window_bounds = array<i64: 32, 64>}, {transform_indices = @transform_31, window_bounds = array<i64: 1, 16, 64>}]} {
    %c0 = arith.constant 0 : index
    %c0_0 = arith.constant 0 : index
    %c0_1 = arith.constant 0 : index
    %0 = vector.load %arg1[%c0, %c0_0, %c0_1] : memref<1x16x64xf32, #tpu.memory_space<vmem>>, vector<1x16x64xf32>
    %cst = arith.constant 0.000000e+00 : f32
    %1 = vector.broadcast %cst : f32 to vector<1x1x64xf32>
    %c0_2 = arith.constant 0 : index
    %c0_3 = arith.constant 0 : index
    %c0_4 = arith.constant 0 : index
    %2 = vector.load %arg33[%c0_2, %c0_3, %c0_4] : memref<1x18x64xf32, #tpu.memory_space<vmem>>, vector<1x1x64xf32>
    tpu.vector_store %arg33[%c0_2, %c0_3, %c0_4], %1 {strides = array<i32>} : memref<1x18x64xf32, #tpu.memory_space<vmem>>, vector<1x1x64xf32>,
    %c0_5 = arith.constant 0 : index
    %c17 = arith.constant 17 : index
    %c0_6 = arith.constant 0 : index
    %3 = vector.load %arg33[%c0_5, %c17, %c0_6] : memref<1x18x64xf32, #tpu.memory_space<vmem>>, vector<1x1x64xf32>
    tpu.vector_store %arg33[%c0_5, %c17, %c0_6], %1 {strides = array<i32>} : memref<1x18x64xf32, #tpu.memory_space<vmem>>, vector<1x1x64xf32>,
    %c0_7 = arith.constant 0 : index
    %c1 = arith.constant 1 : index
    %c0_8 = arith.constant 0 : index
    %4 = vector.load %arg33[%c0_7, %c1, %c0_8] : memref<1x18x64xf32, #tpu.memory_space<vmem>>, vector<1x16x64xf32>
    tpu.vector_store %arg33[%c0_7, %c1, %c0_8], %0 {strides = array<i32>} : memref<1x18x64xf32, #tpu.memory_space<vmem>>, vector<1x16x64xf32>,
    %c0_9 = arith.constant 0 : index
    %c0_10 = arith.constant 0 : index
    %c0_11 = arith.constant 0 : index
    %5 = vector.load %arg33[%c0_9, %c0_10, %c0_11] : memref<1x18x64xf32, #tpu.memory_space<vmem>>, vector<1x16x64xf32>
    %6 = vector.shape_cast %5 : vector<1x16x64xf32> to vector<16x64xf32>
    %c0_12 = arith.constant 0 : index
    %c0_13 = arith.constant 0 : index
    %c0_14 = arith.constant 0 : index
    %7 = vector.load %arg2[%c0_12, %c0_13, %c0_14] : memref<3x64x64xf32, #tpu.memory_space<vmem>>, vector<1x64x64xf32>
    %8 = vector.shape_cast %7 : vector<1x64x64xf32> to vector<64x64xf32>
    %cst_15 = arith.constant dense<0.000000e+00> : vector<16x64xf32>
    %9 = tpu.matmul %6, %8, %cst_15 {dimension_numbers = #tpu.dot_dimension_numbers<[1], [0], [0], [1], [0, 0, 1, 1], [], []>} : vector<16x64xf32>, vector<64x64xf32>, vector<16x64xf32> -> vector<16x64xf32>
    %c0_16 = arith.constant 0 : index
    %c1_17 = arith.constant 1 : index
    %c0_18 = arith.constant 0 : index
    %10 = vector.load %arg33[%c0_16, %c1_17, %c0_18] : memref<1x18x64xf32, #tpu.memory_space<vmem>>, vector<1x16x64xf32>
    %11 = vector.shape_cast %10 : vector<1x16x64xf32> to vector<16x64xf32>
    %c1_19 = arith.constant 1 : index
    %c0_20 = arith.constant 0 : index
    %c0_21 = arith.constant 0 : index
    %12 = vector.load %arg2[%c1_19, %c0_20, %c0_21] : memref<3x64x64xf32, #tpu.memory_space<vmem>>, vector<1x64x64xf32>
    %13 = vector.shape_cast %12 : vector<1x64x64xf32> to vector<64x64xf32>
    %cst_22 = arith.constant dense<0.000000e+00> : vector<16x64xf32>
    %14 = tpu.matmul %11, %13, %cst_22 {dimension_numbers = #tpu.dot_dimension_numbers<[1], [0], [0], [1], [0, 0, 1, 1], [], []>} : vector<16x64xf32>, vector<64x64xf32>, vector<16x64xf32> -> vector<16x64xf32>
    %15 = arith.addf %9, %14 : vector<16x64xf32>
    %c0_23 = arith.constant 0 : index
    %c2 = arith.constant 2 : index
    %c0_24 = arith.constant 0 : index
    %16 = vector.load %arg33[%c0_23, %c2, %c0_24] : memref<1x18x64xf32, #tpu.memory_space<vmem>>, vector<1x16x64xf32>
    %17 = vector.shape_cast %16 : vector<1x16x64xf32> to vector<16x64xf32>
    %c2_25 = arith.constant 2 : index
    %c0_26 = arith.constant 0 : index
    %c0_27 = arith.constant 0 : index
    %18 = vector.load %arg2[%c2_25, %c0_26, %c0_27] : memref<3x64x64xf32, #tpu.memory_space<vmem>>, vector<1x64x64xf32>
    %19 = vector.shape_cast %18 : vector<1x64x64xf32> to vector<64x64xf32>
    %cst_28 = arith.constant dense<0.000000e+00> : vector<16x64xf32>
    %20 = tpu.matmul %17, %19, %cst_28 {dimension_numbers = #tpu.dot_dimension_numbers<[1], [0], [0], [1], [0, 0, 1, 1], [], []>} : vector<16x64xf32>, vector<64x64xf32>, vector<16x64xf32> -> vector<16x64xf32>
    %21 = arith.addf %15, %20 : vector<16x64xf32>
    %c0_29 = arith.constant 0 : index
    %c0_30 = arith.constant 0 : index
    %22 = vector.load %arg3[%c0_29, %c0_30] : memref<1x64xf32, #tpu.memory_space<vmem>>, vector<1x64xf32>
    %23 = vector.broadcast %22 : vector<1x64xf32> to vector<16x64xf32>
    %24 = arith.addf %21, %23 : vector<16x64xf32>
    %cst_31 = arith.constant 0.000000e+00 : f32
    %25 = vector.broadcast %cst_31 : f32 to vector<16x64xf32>
    %26 = arith.maximumf %24, %25 : vector<16x64xf32>
    %27 = vector.shape_cast %0 : vector<1x16x64xf32> to vector<16x64xf32>
    %cst_32 = arith.constant 0.000000e+00 : f32
    %28 = vector.broadcast %cst_32 : f32 to vector<1x1x64xf32>
    %c0_33 = arith.constant 0 : index
    %c0_34 = arith.constant 0 : index
    %c0_35 = arith.constant 0 : index
    %29 = vector.load %arg33[%c0_33, %c0_34, %c0_35] : memref<1x18x64xf32, #tpu.memory_space<vmem>>, vector<1x1x64xf32>
    tpu.vector_store %arg33[%c0_33, %c0_34, %c0_35], %28 {strides = array<i32>} : memref<1x18x64xf32, #tpu.memory_space<vmem>>, vector<1x1x64xf32>,
    %c0_36 = arith.constant 0 : index
    %c17_37 = arith.constant 17 : index
    %c0_38 = arith.constant 0 : index
    %30 = vector.load %arg33[%c0_36, %c17_37, %c0_38] : memref<1x18x64xf32, #tpu.memory_space<vmem>>, vector<1x1x64xf32>
    tpu.vector_store %arg33[%c0_36, %c17_37, %c0_38], %28 {strides = array<i32>} : memref<1x18x64xf32, #tpu.memory_space<vmem>>, vector<1x1x64xf32>,
    %31 = vector.shape_cast %26 : vector<16x64xf32> to vector<1x16x64xf32>
    %c0_39 = arith.constant 0 : index
    %c1_40 = arith.constant 1 : index
    %c0_41 = arith.constant 0 : index
    %32 = vector.load %arg33[%c0_39, %c1_40, %c0_41] : memref<1x18x64xf32, #tpu.memory_space<vmem>>, vector<1x16x64xf32>
    tpu.vector_store %arg33[%c0_39, %c1_40, %c0_41], %31 {strides = array<i32>} : memref<1x18x64xf32, #tpu.memory_space<vmem>>, vector<1x16x64xf32>,
    %c0_42 = arith.constant 0 : index
    %c0_43 = arith.constant 0 : index
    %c0_44 = arith.constant 0 : index
    %33 = vector.load %arg33[%c0_42, %c0_43, %c0_44] : memref<1x18x64xf32, #tpu.memory_space<vmem>>, vector<1x16x64xf32>
    %34 = vector.shape_cast %33 : vector<1x16x64xf32> to vector<16x64xf32>
    %c0_45 = arith.constant 0 : index
    %c0_46 = arith.constant 0 : index
    %c0_47 = arith.constant 0 : index
    %35 = vector.load %arg4[%c0_45, %c0_46, %c0_47] : memref<3x64x64xf32, #tpu.memory_space<vmem>>, vector<1x64x64xf32>
    %36 = vector.shape_cast %35 : vector<1x64x64xf32> to vector<64x64xf32>
    %cst_48 = arith.constant dense<0.000000e+00> : vector<16x64xf32>
    %37 = tpu.matmul %34, %36, %cst_48 {dimension_numbers = #tpu.dot_dimension_numbers<[1], [0], [0], [1], [0, 0, 1, 1], [], []>} : vector<16x64xf32>, vector<64x64xf32>, vector<16x64xf32> -> vector<16x64xf32>
    %c0_49 = arith.constant 0 : index
    %c1_50 = arith.constant 1 : index
    %c0_51 = arith.constant 0 : index
    %38 = vector.load %arg33[%c0_49, %c1_50, %c0_51] : memref<1x18x64xf32, #tpu.memory_space<vmem>>, vector<1x16x64xf32>
    %39 = vector.shape_cast %38 : vector<1x16x64xf32> to vector<16x64xf32>
    %c1_52 = arith.constant 1 : index
    %c0_53 = arith.constant 0 : index
    %c0_54 = arith.constant 0 : index
    %40 = vector.load %arg4[%c1_52, %c0_53, %c0_54] : memref<3x64x64xf32, #tpu.memory_space<vmem>>, vector<1x64x64xf32>
    %41 = vector.shape_cast %40 : vector<1x64x64xf32> to vector<64x64xf32>
    %cst_55 = arith.constant dense<0.000000e+00> : vector<16x64xf32>
    %42 = tpu.matmul %39, %41, %cst_55 {dimension_numbers = #tpu.dot_dimension_numbers<[1], [0], [0], [1], [0, 0, 1, 1], [], []>} : vector<16x64xf32>, vector<64x64xf32>, vector<16x64xf32> -> vector<16x64xf32>
    %43 = arith.addf %37, %42 : vector<16x64xf32>
    %c0_56 = arith.constant 0 : index
    %c2_57 = arith.constant 2 : index
    %c0_58 = arith.constant 0 : index
    %44 = vector.load %arg33[%c0_56, %c2_57, %c0_58] : memref<1x18x64xf32, #tpu.memory_space<vmem>>, vector<1x16x64xf32>
    %45 = vector.shape_cast %44 : vector<1x16x64xf32> to vector<16x64xf32>
    %c2_59 = arith.constant 2 : index
    %c0_60 = arith.constant 0 : index
    %c0_61 = arith.constant 0 : index
    %46 = vector.load %arg4[%c2_59, %c0_60, %c0_61] : memref<3x64x64xf32, #tpu.memory_space<vmem>>, vector<1x64x64xf32>
    %47 = vector.shape_cast %46 : vector<1x64x64xf32> to vector<64x64xf32>
    %cst_62 = arith.constant dense<0.000000e+00> : vector<16x64xf32>
    %48 = tpu.matmul %45, %47, %cst_62 {dimension_numbers = #tpu.dot_dimension_numbers<[1], [0], [0], [1], [0, 0, 1, 1], [], []>} : vector<16x64xf32>, vector<64x64xf32>, vector<16x64xf32> -> vector<16x64xf32>
    %49 = arith.addf %43, %48 : vector<16x64xf32>
    %c0_63 = arith.constant 0 : index
    %c0_64 = arith.constant 0 : index
    %50 = vector.load %arg5[%c0_63, %c0_64] : memref<1x64xf32, #tpu.memory_space<vmem>>, vector<1x64xf32>
    %51 = vector.broadcast %50 : vector<1x64xf32> to vector<16x64xf32>
    %52 = arith.addf %49, %51 : vector<16x64xf32>
    %53 = arith.addf %52, %27 : vector<16x64xf32>
    %cst_65 = arith.constant 0.000000e+00 : f32
    %54 = vector.broadcast %cst_65 : f32 to vector<16x64xf32>
    %55 = arith.maximumf %53, %54 : vector<16x64xf32>
    %56 = vector.shape_cast %55 : vector<16x64xf32> to vector<1x16x64xf32>
    %cst_66 = arith.constant 0.000000e+00 : f32
    %57 = vector.broadcast %cst_66 : f32 to vector<1x1x64xf32>
    %c0_67 = arith.constant 0 : index
    %c0_68 = arith.constant 0 : index
    %c0_69 = arith.constant 0 : index
    %58 = vector.load %arg33[%c0_67, %c0_68, %c0_69] : memref<1x18x64xf32, #tpu.memory_space<vmem>>, vector<1x1x64xf32>
    tpu.vector_store %arg33[%c0_67, %c0_68, %c0_69], %57 {strides = array<i32>} : memref<1x18x64xf32, #tpu.memory_space<vmem>>, vector<1x1x64xf32>,
    %c0_70 = arith.constant 0 : index
    %c17_71 = arith.constant 17 : index
    %c0_72 = arith.constant 0 : index
    %59 = vector.load %arg33[%c0_70, %c17_71, %c0_72] : memref<1x18x64xf32, #tpu.memory_space<vmem>>, vector<1x1x64xf32>
    tpu.vector_store %arg33[%c0_70, %c17_71, %c0_72], %57 {strides = array<i32>} : memref<1x18x64xf32, #tpu.memory_space<vmem>>, vector<1x1x64xf32>,
    %c0_73 = arith.constant 0 : index
    %c1_74 = arith.constant 1 : index
    %c0_75 = arith.constant 0 : index
    %60 = vector.load %arg33[%c0_73, %c1_74, %c0_75] : memref<1x18x64xf32, #tpu.memory_space<vmem>>, vector<1x16x64xf32>
    tpu.vector_store %arg33[%c0_73, %c1_74, %c0_75], %0 {strides = array<i32>} : memref<1x18x64xf32, #tpu.memory_space<vmem>>, vector<1x16x64xf32>,
    %c0_76 = arith.constant 0 : index
    %c0_77 = arith.constant 0 : index
    %c0_78 = arith.constant 0 : index
    %61 = tpu.strided_load %arg33[%c0_76, %c0_77, %c0_78] {strides = array<i32: 1, 2, 1>} : memref<1x18x64xf32, #tpu.memory_space<vmem>>, vector<1x8x64xf32>
    %62 = vector.shape_cast %61 : vector<1x8x64xf32> to vector<8x64xf32>
    %c0_79 = arith.constant 0 : index
    %c0_80 = arith.constant 0 : index
    %c0_81 = arith.constant 0 : index
    %63 = vector.load %arg6[%c0_79, %c0_80, %c0_81] : memref<3x64x128xf32, #tpu.memory_space<vmem>>, vector<1x64x128xf32>
    %64 = vector.shape_cast %63 : vector<1x64x128xf32> to vector<64x128xf32>
    %cst_82 = arith.constant dense<0.000000e+00> : vector<8x128xf32>
    %65 = tpu.matmul %62, %64, %cst_82 {dimension_numbers = #tpu.dot_dimension_numbers<[1], [0], [0], [1], [0, 0, 1, 1], [], []>} : vector<8x64xf32>, vector<64x128xf32>, vector<8x128xf32> -> vector<8x128xf32>
    %c0_83 = arith.constant 0 : index
    %c1_84 = arith.constant 1 : index
    %c0_85 = arith.constant 0 : index
    %66 = tpu.strided_load %arg33[%c0_83, %c1_84, %c0_85] {strides = array<i32: 1, 2, 1>} : memref<1x18x64xf32, #tpu.memory_space<vmem>>, vector<1x8x64xf32>
    %67 = vector.shape_cast %66 : vector<1x8x64xf32> to vector<8x64xf32>
    %c1_86 = arith.constant 1 : index
    %c0_87 = arith.constant 0 : index
    %c0_88 = arith.constant 0 : index
    %68 = vector.load %arg6[%c1_86, %c0_87, %c0_88] : memref<3x64x128xf32, #tpu.memory_space<vmem>>, vector<1x64x128xf32>
    %69 = vector.shape_cast %68 : vector<1x64x128xf32> to vector<64x128xf32>
    %cst_89 = arith.constant dense<0.000000e+00> : vector<8x128xf32>
    %70 = tpu.matmul %67, %69, %cst_89 {dimension_numbers = #tpu.dot_dimension_numbers<[1], [0], [0], [1], [0, 0, 1, 1], [], []>} : vector<8x64xf32>, vector<64x128xf32>, vector<8x128xf32> -> vector<8x128xf32>
    %71 = arith.addf %65, %70 : vector<8x128xf32>
    %c0_90 = arith.constant 0 : index
    %c2_91 = arith.constant 2 : index
    %c0_92 = arith.constant 0 : index
    %72 = tpu.strided_load %arg33[%c0_90, %c2_91, %c0_92] {strides = array<i32: 1, 2, 1>} : memref<1x18x64xf32, #tpu.memory_space<vmem>>, vector<1x8x64xf32>
    %73 = vector.shape_cast %72 : vector<1x8x64xf32> to vector<8x64xf32>
    %c2_93 = arith.constant 2 : index
    %c0_94 = arith.constant 0 : index
    %c0_95 = arith.constant 0 : index
    %74 = vector.load %arg6[%c2_93, %c0_94, %c0_95] : memref<3x64x128xf32, #tpu.memory_space<vmem>>, vector<1x64x128xf32>
    %75 = vector.shape_cast %74 : vector<1x64x128xf32> to vector<64x128xf32>
    %cst_96 = arith.constant dense<0.000000e+00> : vector<8x128xf32>
    %76 = tpu.matmul %73, %75, %cst_96 {dimension_numbers = #tpu.dot_dimension_numbers<[1], [0], [0], [1], [0, 0, 1, 1], [], []>} : vector<8x64xf32>, vector<64x128xf32>, vector<8x128xf32> -> vector<8x128xf32>
    %77 = arith.addf %71, %76 : vector<8x128xf32>
    %c0_97 = arith.constant 0 : index
    %c0_98 = arith.constant 0 : index
    %78 = vector.load %arg7[%c0_97, %c0_98] : memref<1x128xf32, #tpu.memory_space<vmem>>, vector<1x128xf32>
    %79 = vector.broadcast %78 : vector<1x128xf32> to vector<8x128xf32>
    %80 = arith.addf %77, %79 : vector<8x128xf32>
    %81 = vector.extract_strided_slice %80 {offsets = [0, 0], sizes = [8, 64], strides = [1, 1]} : vector<8x128xf32> to vector<8x64xf32>
    %cst_99 = arith.constant 0.000000e+00 : f32
    %82 = vector.broadcast %cst_99 : f32 to vector<8x64xf32>
    %83 = arith.maximumf %81, %82 : vector<8x64xf32>
    %84 = vector.extract_strided_slice %80 {offsets = [0, 64], sizes = [8, 64], strides = [1, 1]} : vector<8x128xf32> to vector<8x64xf32>
    %cst_100 = arith.constant 0.000000e+00 : f32
    %85 = vector.broadcast %cst_100 : f32 to vector<1x1x64xf32>
    %c0_101 = arith.constant 0 : index
    %c0_102 = arith.constant 0 : index
    %c0_103 = arith.constant 0 : index
    %86 = vector.load %arg34[%c0_101, %c0_102, %c0_103] : memref<1x10x64xf32, #tpu.memory_space<vmem>>, vector<1x1x64xf32>
    tpu.vector_store %arg34[%c0_101, %c0_102, %c0_103], %85 {strides = array<i32>} : memref<1x10x64xf32, #tpu.memory_space<vmem>>, vector<1x1x64xf32>,
    %c0_104 = arith.constant 0 : index
    %c9 = arith.constant 9 : index
    %c0_105 = arith.constant 0 : index
    %87 = vector.load %arg34[%c0_104, %c9, %c0_105] : memref<1x10x64xf32, #tpu.memory_space<vmem>>, vector<1x1x64xf32>
    tpu.vector_store %arg34[%c0_104, %c9, %c0_105], %85 {strides = array<i32>} : memref<1x10x64xf32, #tpu.memory_space<vmem>>, vector<1x1x64xf32>,
    %88 = vector.shape_cast %83 : vector<8x64xf32> to vector<1x8x64xf32>
    %c0_106 = arith.constant 0 : index
    %c1_107 = arith.constant 1 : index
    %c0_108 = arith.constant 0 : index
    %89 = vector.load %arg34[%c0_106, %c1_107, %c0_108] : memref<1x10x64xf32, #tpu.memory_space<vmem>>, vector<1x8x64xf32>
    tpu.vector_store %arg34[%c0_106, %c1_107, %c0_108], %88 {strides = array<i32>} : memref<1x10x64xf32, #tpu.memory_space<vmem>>, vector<1x8x64xf32>,
    %c0_109 = arith.constant 0 : index
    %c0_110 = arith.constant 0 : index
    %c0_111 = arith.constant 0 : index
    %90 = vector.load %arg34[%c0_109, %c0_110, %c0_111] : memref<1x10x64xf32, #tpu.memory_space<vmem>>, vector<1x8x64xf32>
    %91 = vector.shape_cast %90 : vector<1x8x64xf32> to vector<8x64xf32>
    %c0_112 = arith.constant 0 : index
    %c0_113 = arith.constant 0 : index
    %c0_114 = arith.constant 0 : index
    %92 = vector.load %arg8[%c0_112, %c0_113, %c0_114] : memref<3x64x64xf32, #tpu.memory_space<vmem>>, vector<1x64x64xf32>
    %93 = vector.shape_cast %92 : vector<1x64x64xf32> to vector<64x64xf32>
    %cst_115 = arith.constant dense<0.000000e+00> : vector<8x64xf32>
    %94 = tpu.matmul %91, %93, %cst_115 {dimension_numbers = #tpu.dot_dimension_numbers<[1], [0], [0], [1], [0, 0, 1, 1], [], []>} : vector<8x64xf32>, vector<64x64xf32>, vector<8x64xf32> -> vector<8x64xf32>
    %c0_116 = arith.constant 0 : index
    %c1_117 = arith.constant 1 : index
    %c0_118 = arith.constant 0 : index
    %95 = vector.load %arg34[%c0_116, %c1_117, %c0_118] : memref<1x10x64xf32, #tpu.memory_space<vmem>>, vector<1x8x64xf32>
    %96 = vector.shape_cast %95 : vector<1x8x64xf32> to vector<8x64xf32>
    %c1_119 = arith.constant 1 : index
    %c0_120 = arith.constant 0 : index
    %c0_121 = arith.constant 0 : index
    %97 = vector.load %arg8[%c1_119, %c0_120, %c0_121] : memref<3x64x64xf32, #tpu.memory_space<vmem>>, vector<1x64x64xf32>
    %98 = vector.shape_cast %97 : vector<1x64x64xf32> to vector<64x64xf32>
    %cst_122 = arith.constant dense<0.000000e+00> : vector<8x64xf32>
    %99 = tpu.matmul %96, %98, %cst_122 {dimension_numbers = #tpu.dot_dimension_numbers<[1], [0], [0], [1], [0, 0, 1, 1], [], []>} : vector<8x64xf32>, vector<64x64xf32>, vector<8x64xf32> -> vector<8x64xf32>
    %100 = arith.addf %94, %99 : vector<8x64xf32>
    %c0_123 = arith.constant 0 : index
    %c2_124 = arith.constant 2 : index
    %c0_125 = arith.constant 0 : index
    %101 = vector.load %arg34[%c0_123, %c2_124, %c0_125] : memref<1x10x64xf32, #tpu.memory_space<vmem>>, vector<1x8x64xf32>
    %102 = vector.shape_cast %101 : vector<1x8x64xf32> to vector<8x64xf32>
    %c2_126 = arith.constant 2 : index
    %c0_127 = arith.constant 0 : index
    %c0_128 = arith.constant 0 : index
    %103 = vector.load %arg8[%c2_126, %c0_127, %c0_128] : memref<3x64x64xf32, #tpu.memory_space<vmem>>, vector<1x64x64xf32>
    %104 = vector.shape_cast %103 : vector<1x64x64xf32> to vector<64x64xf32>
    %cst_129 = arith.constant dense<0.000000e+00> : vector<8x64xf32>
    %105 = tpu.matmul %102, %104, %cst_129 {dimension_numbers = #tpu.dot_dimension_numbers<[1], [0], [0], [1], [0, 0, 1, 1], [], []>} : vector<8x64xf32>, vector<64x64xf32>, vector<8x64xf32> -> vector<8x64xf32>
    %106 = arith.addf %100, %105 : vector<8x64xf32>
    %c0_130 = arith.constant 0 : index
    %c0_131 = arith.constant 0 : index
    %107 = vector.load %arg9[%c0_130, %c0_131] : memref<1x64xf32, #tpu.memory_space<vmem>>, vector<1x64xf32>
    %108 = vector.broadcast %107 : vector<1x64xf32> to vector<8x64xf32>
    %109 = arith.addf %106, %108 : vector<8x64xf32>
    %110 = arith.addf %109, %84 : vector<8x64xf32>
    %cst_132 = arith.constant 0.000000e+00 : f32
    %111 = vector.broadcast %cst_132 : f32 to vector<8x64xf32>
    %112 = arith.maximumf %110, %111 : vector<8x64xf32>
    %113 = vector.shape_cast %112 : vector<8x64xf32> to vector<1x8x64xf32>
    %cst_133 = arith.constant 0.000000e+00 : f32
    %114 = vector.broadcast %cst_133 : f32 to vector<1x1x64xf32>
    %c0_134 = arith.constant 0 : index
    %c0_135 = arith.constant 0 : index
    %c0_136 = arith.constant 0 : index
    %115 = vector.load %arg34[%c0_134, %c0_135, %c0_136] : memref<1x10x64xf32, #tpu.memory_space<vmem>>, vector<1x1x64xf32>
    tpu.vector_store %arg34[%c0_134, %c0_135, %c0_136], %114 {strides = array<i32>} : memref<1x10x64xf32, #tpu.memory_space<vmem>>, vector<1x1x64xf32>,
    %c0_137 = arith.constant 0 : index
    %c9_138 = arith.constant 9 : index
    %c0_139 = arith.constant 0 : index
    %116 = vector.load %arg34[%c0_137, %c9_138, %c0_139] : memref<1x10x64xf32, #tpu.memory_space<vmem>>, vector<1x1x64xf32>
    tpu.vector_store %arg34[%c0_137, %c9_138, %c0_139], %114 {strides = array<i32>} : memref<1x10x64xf32, #tpu.memory_space<vmem>>, vector<1x1x64xf32>,
    %c0_140 = arith.constant 0 : index
    %c1_141 = arith.constant 1 : index
    %c0_142 = arith.constant 0 : index
    %117 = vector.load %arg34[%c0_140, %c1_141, %c0_142] : memref<1x10x64xf32, #tpu.memory_space<vmem>>, vector<1x8x64xf32>
    tpu.vector_store %arg34[%c0_140, %c1_141, %c0_142], %113 {strides = array<i32>} : memref<1x10x64xf32, #tpu.memory_space<vmem>>, vector<1x8x64xf32>,
    %c0_143 = arith.constant 0 : index
    %c0_144 = arith.constant 0 : index
    %c0_145 = arith.constant 0 : index
    %118 = vector.load %arg34[%c0_143, %c0_144, %c0_145] : memref<1x10x64xf32, #tpu.memory_space<vmem>>, vector<1x8x64xf32>
    %119 = vector.shape_cast %118 : vector<1x8x64xf32> to vector<8x64xf32>
    %c0_146 = arith.constant 0 : index
    %c0_147 = arith.constant 0 : index
    %c0_148 = arith.constant 0 : index
    %120 = vector.load %arg10[%c0_146, %c0_147, %c0_148] : memref<3x64x64xf32, #tpu.memory_space<vmem>>, vector<1x64x64xf32>
    %121 = vector.shape_cast %120 : vector<1x64x64xf32> to vector<64x64xf32>
    %cst_149 = arith.constant dense<0.000000e+00> : vector<8x64xf32>
    %122 = tpu.matmul %119, %121, %cst_149 {dimension_numbers = #tpu.dot_dimension_numbers<[1], [0], [0], [1], [0, 0, 1, 1], [], []>} : vector<8x64xf32>, vector<64x64xf32>, vector<8x64xf32> -> vector<8x64xf32>
    %c0_150 = arith.constant 0 : index
    %c1_151 = arith.constant 1 : index
    %c0_152 = arith.constant 0 : index
    %123 = vector.load %arg34[%c0_150, %c1_151, %c0_152] : memref<1x10x64xf32, #tpu.memory_space<vmem>>, vector<1x8x64xf32>
    %124 = vector.shape_cast %123 : vector<1x8x64xf32> to vector<8x64xf32>
    %c1_153 = arith.constant 1 : index
    %c0_154 = arith.constant 0 : index
    %c0_155 = arith.constant 0 : index
    %125 = vector.load %arg10[%c1_153, %c0_154, %c0_155] : memref<3x64x64xf32, #tpu.memory_space<vmem>>, vector<1x64x64xf32>
    %126 = vector.shape_cast %125 : vector<1x64x64xf32> to vector<64x64xf32>
    %cst_156 = arith.constant dense<0.000000e+00> : vector<8x64xf32>
    %127 = tpu.matmul %124, %126, %cst_156 {dimension_numbers = #tpu.dot_dimension_numbers<[1], [0], [0], [1], [0, 0, 1, 1], [], []>} : vector<8x64xf32>, vector<64x64xf32>, vector<8x64xf32> -> vector<8x64xf32>
    %128 = arith.addf %122, %127 : vector<8x64xf32>
    %c0_157 = arith.constant 0 : index
    %c2_158 = arith.constant 2 : index
    %c0_159 = arith.constant 0 : index
    %129 = vector.load %arg34[%c0_157, %c2_158, %c0_159] : memref<1x10x64xf32, #tpu.memory_space<vmem>>, vector<1x8x64xf32>
    %130 = vector.shape_cast %129 : vector<1x8x64xf32> to vector<8x64xf32>
    %c2_160 = arith.constant 2 : index
    %c0_161 = arith.constant 0 : index
    %c0_162 = arith.constant 0 : index
    %131 = vector.load %arg10[%c2_160, %c0_161, %c0_162] : memref<3x64x64xf32, #tpu.memory_space<vmem>>, vector<1x64x64xf32>
    %132 = vector.shape_cast %131 : vector<1x64x64xf32> to vector<64x64xf32>
    %cst_163 = arith.constant dense<0.000000e+00> : vector<8x64xf32>
    %133 = tpu.matmul %130, %132, %cst_163 {dimension_numbers = #tpu.dot_dimension_numbers<[1], [0], [0], [1], [0, 0, 1, 1], [], []>} : vector<8x64xf32>, vector<64x64xf32>, vector<8x64xf32> -> vector<8x64xf32>
    %134 = arith.addf %128, %133 : vector<8x64xf32>
    %c0_164 = arith.constant 0 : index
    %c0_165 = arith.constant 0 : index
    %135 = vector.load %arg11[%c0_164, %c0_165] : memref<1x64xf32, #tpu.memory_space<vmem>>, vector<1x64xf32>
    %136 = vector.broadcast %135 : vector<1x64xf32> to vector<8x64xf32>
    %137 = arith.addf %134, %136 : vector<8x64xf32>
    %cst_166 = arith.constant 0.000000e+00 : f32
    %138 = vector.broadcast %cst_166 : f32 to vector<8x64xf32>
    %139 = arith.maximumf %137, %138 : vector<8x64xf32>
    %140 = vector.shape_cast %113 : vector<1x8x64xf32> to vector<8x64xf32>
    %cst_167 = arith.constant 0.000000e+00 : f32
    %141 = vector.broadcast %cst_167 : f32 to vector<1x1x64xf32>
    %c0_168 = arith.constant 0 : index
    %c0_169 = arith.constant 0 : index
    %c0_170 = arith.constant 0 : index
    %142 = vector.load %arg34[%c0_168, %c0_169, %c0_170] : memref<1x10x64xf32, #tpu.memory_space<vmem>>, vector<1x1x64xf32>
    tpu.vector_store %arg34[%c0_168, %c0_169, %c0_170], %141 {strides = array<i32>} : memref<1x10x64xf32, #tpu.memory_space<vmem>>, vector<1x1x64xf32>,
    %c0_171 = arith.constant 0 : index
    %c9_172 = arith.constant 9 : index
    %c0_173 = arith.constant 0 : index
    %143 = vector.load %arg34[%c0_171, %c9_172, %c0_173] : memref<1x10x64xf32, #tpu.memory_space<vmem>>, vector<1x1x64xf32>
    tpu.vector_store %arg34[%c0_171, %c9_172, %c0_173], %141 {strides = array<i32>} : memref<1x10x64xf32, #tpu.memory_space<vmem>>, vector<1x1x64xf32>,
    %144 = vector.shape_cast %139 : vector<8x64xf32> to vector<1x8x64xf32>
    %c0_174 = arith.constant 0 : index
    %c1_175 = arith.constant 1 : index
    %c0_176 = arith.constant 0 : index
    %145 = vector.load %arg34[%c0_174, %c1_175, %c0_176] : memref<1x10x64xf32, #tpu.memory_space<vmem>>, vector<1x8x64xf32>
    tpu.vector_store %arg34[%c0_174, %c1_175, %c0_176], %144 {strides = array<i32>} : memref<1x10x64xf32, #tpu.memory_space<vmem>>, vector<1x8x64xf32>,
    %c0_177 = arith.constant 0 : index
    %c0_178 = arith.constant 0 : index
    %c0_179 = arith.constant 0 : index
    %146 = vector.load %arg34[%c0_177, %c0_178, %c0_179] : memref<1x10x64xf32, #tpu.memory_space<vmem>>, vector<1x8x64xf32>
    %147 = vector.shape_cast %146 : vector<1x8x64xf32> to vector<8x64xf32>
    %c0_180 = arith.constant 0 : index
    %c0_181 = arith.constant 0 : index
    %c0_182 = arith.constant 0 : index
    %148 = vector.load %arg12[%c0_180, %c0_181, %c0_182] : memref<3x64x64xf32, #tpu.memory_space<vmem>>, vector<1x64x64xf32>
    %149 = vector.shape_cast %148 : vector<1x64x64xf32> to vector<64x64xf32>
    %cst_183 = arith.constant dense<0.000000e+00> : vector<8x64xf32>
    %150 = tpu.matmul %147, %149, %cst_183 {dimension_numbers = #tpu.dot_dimension_numbers<[1], [0], [0], [1], [0, 0, 1, 1], [], []>} : vector<8x64xf32>, vector<64x64xf32>, vector<8x64xf32> -> vector<8x64xf32>
    %c0_184 = arith.constant 0 : index
    %c1_185 = arith.constant 1 : index
    %c0_186 = arith.constant 0 : index
    %151 = vector.load %arg34[%c0_184, %c1_185, %c0_186] : memref<1x10x64xf32, #tpu.memory_space<vmem>>, vector<1x8x64xf32>
    %152 = vector.shape_cast %151 : vector<1x8x64xf32> to vector<8x64xf32>
    %c1_187 = arith.constant 1 : index
    %c0_188 = arith.constant 0 : index
    %c0_189 = arith.constant 0 : index
    %153 = vector.load %arg12[%c1_187, %c0_188, %c0_189] : memref<3x64x64xf32, #tpu.memory_space<vmem>>, vector<1x64x64xf32>
    %154 = vector.shape_cast %153 : vector<1x64x64xf32> to vector<64x64xf32>
    %cst_190 = arith.constant dense<0.000000e+00> : vector<8x64xf32>
    %155 = tpu.matmul %152, %154, %cst_190 {dimension_numbers = #tpu.dot_dimension_numbers<[1], [0], [0], [1], [0, 0, 1, 1], [], []>} : vector<8x64xf32>, vector<64x64xf32>, vector<8x64xf32> -> vector<8x64xf32>
    %156 = arith.addf %150, %155 : vector<8x64xf32>
    %c0_191 = arith.constant 0 : index
    %c2_192 = arith.constant 2 : index
    %c0_193 = arith.constant 0 : index
    %157 = vector.load %arg34[%c0_191, %c2_192, %c0_193] : memref<1x10x64xf32, #tpu.memory_space<vmem>>, vector<1x8x64xf32>
    %158 = vector.shape_cast %157 : vector<1x8x64xf32> to vector<8x64xf32>
    %c2_194 = arith.constant 2 : index
    %c0_195 = arith.constant 0 : index
    %c0_196 = arith.constant 0 : index
    %159 = vector.load %arg12[%c2_194, %c0_195, %c0_196] : memref<3x64x64xf32, #tpu.memory_space<vmem>>, vector<1x64x64xf32>
    %160 = vector.shape_cast %159 : vector<1x64x64xf32> to vector<64x64xf32>
    %cst_197 = arith.constant dense<0.000000e+00> : vector<8x64xf32>
    %161 = tpu.matmul %158, %160, %cst_197 {dimension_numbers = #tpu.dot_dimension_numbers<[1], [0], [0], [1], [0, 0, 1, 1], [], []>} : vector<8x64xf32>, vector<64x64xf32>, vector<8x64xf32> -> vector<8x64xf32>
    %162 = arith.addf %156, %161 : vector<8x64xf32>
    %c0_198 = arith.constant 0 : index
    %c0_199 = arith.constant 0 : index
    %163 = vector.load %arg13[%c0_198, %c0_199] : memref<1x64xf32, #tpu.memory_space<vmem>>, vector<1x64xf32>
    %164 = vector.broadcast %163 : vector<1x64xf32> to vector<8x64xf32>
    %165 = arith.addf %162, %164 : vector<8x64xf32>
    %166 = arith.addf %165, %140 : vector<8x64xf32>
    %cst_200 = arith.constant 0.000000e+00 : f32
    %167 = vector.broadcast %cst_200 : f32 to vector<8x64xf32>
    %168 = arith.maximumf %166, %167 : vector<8x64xf32>
    %169 = vector.shape_cast %168 : vector<8x64xf32> to vector<1x8x64xf32>
    %cst_201 = arith.constant 0.000000e+00 : f32
    %170 = vector.broadcast %cst_201 : f32 to vector<1x1x64xf32>
    %c0_202 = arith.constant 0 : index
    %c0_203 = arith.constant 0 : index
    %c0_204 = arith.constant 0 : index
    %171 = vector.load %arg34[%c0_202, %c0_203, %c0_204] : memref<1x10x64xf32, #tpu.memory_space<vmem>>, vector<1x1x64xf32>
    tpu.vector_store %arg34[%c0_202, %c0_203, %c0_204], %170 {strides = array<i32>} : memref<1x10x64xf32, #tpu.memory_space<vmem>>, vector<1x1x64xf32>,
    %c0_205 = arith.constant 0 : index
    %c9_206 = arith.constant 9 : index
    %c0_207 = arith.constant 0 : index
    %172 = vector.load %arg34[%c0_205, %c9_206, %c0_207] : memref<1x10x64xf32, #tpu.memory_space<vmem>>, vector<1x1x64xf32>
    tpu.vector_store %arg34[%c0_205, %c9_206, %c0_207], %170 {strides = array<i32>} : memref<1x10x64xf32, #tpu.memory_space<vmem>>, vector<1x1x64xf32>,
    %c0_208 = arith.constant 0 : index
    %c1_209 = arith.constant 1 : index
    %c0_210 = arith.constant 0 : index
    %173 = vector.load %arg34[%c0_208, %c1_209, %c0_210] : memref<1x10x64xf32, #tpu.memory_space<vmem>>, vector<1x8x64xf32>
    tpu.vector_store %arg34[%c0_208, %c1_209, %c0_210], %113 {strides = array<i32>} : memref<1x10x64xf32, #tpu.memory_space<vmem>>, vector<1x8x64xf32>,
    %c0_211 = arith.constant 0 : index
    %c0_212 = arith.constant 0 : index
    %c0_213 = arith.constant 0 : index
    %174 = tpu.strided_load %arg34[%c0_211, %c0_212, %c0_213] {strides = array<i32: 1, 2, 1>} : memref<1x10x64xf32, #tpu.memory_space<vmem>>, vector<1x4x64xf32>
    %175 = vector.shape_cast %174 : vector<1x4x64xf32> to vector<4x64xf32>
    %c0_214 = arith.constant 0 : index
    %c0_215 = arith.constant 0 : index
    %c0_216 = arith.constant 0 : index
    %176 = vector.load %arg14[%c0_214, %c0_215, %c0_216] : memref<3x64x128xf32, #tpu.memory_space<vmem>>, vector<1x64x128xf32>
    %177 = vector.shape_cast %176 : vector<1x64x128xf32> to vector<64x128xf32>
    %cst_217 = arith.constant dense<0.000000e+00> : vector<4x128xf32>
    %178 = tpu.matmul %175, %177, %cst_217 {dimension_numbers = #tpu.dot_dimension_numbers<[1], [0], [0], [1], [0, 0, 1, 1], [], []>} : vector<4x64xf32>, vector<64x128xf32>, vector<4x128xf32> -> vector<4x128xf32>
    %c0_218 = arith.constant 0 : index
    %c1_219 = arith.constant 1 : index
    %c0_220 = arith.constant 0 : index
    %179 = tpu.strided_load %arg34[%c0_218, %c1_219, %c0_220] {strides = array<i32: 1, 2, 1>} : memref<1x10x64xf32, #tpu.memory_space<vmem>>, vector<1x4x64xf32>
    %180 = vector.shape_cast %179 : vector<1x4x64xf32> to vector<4x64xf32>
    %c1_221 = arith.constant 1 : index
    %c0_222 = arith.constant 0 : index
    %c0_223 = arith.constant 0 : index
    %181 = vector.load %arg14[%c1_221, %c0_222, %c0_223] : memref<3x64x128xf32, #tpu.memory_space<vmem>>, vector<1x64x128xf32>
    %182 = vector.shape_cast %181 : vector<1x64x128xf32> to vector<64x128xf32>
    %cst_224 = arith.constant dense<0.000000e+00> : vector<4x128xf32>
    %183 = tpu.matmul %180, %182, %cst_224 {dimension_numbers = #tpu.dot_dimension_numbers<[1], [0], [0], [1], [0, 0, 1, 1], [], []>} : vector<4x64xf32>, vector<64x128xf32>, vector<4x128xf32> -> vector<4x128xf32>
    %184 = arith.addf %178, %183 : vector<4x128xf32>
    %c0_225 = arith.constant 0 : index
    %c2_226 = arith.constant 2 : index
    %c0_227 = arith.constant 0 : index
    %185 = tpu.strided_load %arg34[%c0_225, %c2_226, %c0_227] {strides = array<i32: 1, 2, 1>} : memref<1x10x64xf32, #tpu.memory_space<vmem>>, vector<1x4x64xf32>
    %186 = vector.shape_cast %185 : vector<1x4x64xf32> to vector<4x64xf32>
    %c2_228 = arith.constant 2 : index
    %c0_229 = arith.constant 0 : index
    %c0_230 = arith.constant 0 : index
    %187 = vector.load %arg14[%c2_228, %c0_229, %c0_230] : memref<3x64x128xf32, #tpu.memory_space<vmem>>, vector<1x64x128xf32>
    %188 = vector.shape_cast %187 : vector<1x64x128xf32> to vector<64x128xf32>
    %cst_231 = arith.constant dense<0.000000e+00> : vector<4x128xf32>
    %189 = tpu.matmul %186, %188, %cst_231 {dimension_numbers = #tpu.dot_dimension_numbers<[1], [0], [0], [1], [0, 0, 1, 1], [], []>} : vector<4x64xf32>, vector<64x128xf32>, vector<4x128xf32> -> vector<4x128xf32>
    %190 = arith.addf %184, %189 : vector<4x128xf32>
    %c0_232 = arith.constant 0 : index
    %c0_233 = arith.constant 0 : index
    %191 = vector.load %arg15[%c0_232, %c0_233] : memref<1x128xf32, #tpu.memory_space<vmem>>, vector<1x128xf32>
    %192 = vector.broadcast %191 : vector<1x128xf32> to vector<4x128xf32>
    %193 = arith.addf %190, %192 : vector<4x128xf32>
    %194 = vector.extract_strided_slice %193 {offsets = [0, 0], sizes = [4, 64], strides = [1, 1]} : vector<4x128xf32> to vector<4x64xf32>
    %cst_234 = arith.constant 0.000000e+00 : f32
    %195 = vector.broadcast %cst_234 : f32 to vector<4x64xf32>
    %196 = arith.maximumf %194, %195 : vector<4x64xf32>
    %197 = vector.extract_strided_slice %193 {offsets = [0, 64], sizes = [4, 64], strides = [1, 1]} : vector<4x128xf32> to vector<4x64xf32>
    %cst_235 = arith.constant 0.000000e+00 : f32
    %198 = vector.broadcast %cst_235 : f32 to vector<1x1x64xf32>
    %c0_236 = arith.constant 0 : index
    %c0_237 = arith.constant 0 : index
    %c0_238 = arith.constant 0 : index
    %199 = vector.load %arg35[%c0_236, %c0_237, %c0_238] : memref<1x6x64xf32, #tpu.memory_space<vmem>>, vector<1x1x64xf32>
    tpu.vector_store %arg35[%c0_236, %c0_237, %c0_238], %198 {strides = array<i32>} : memref<1x6x64xf32, #tpu.memory_space<vmem>>, vector<1x1x64xf32>,
    %c0_239 = arith.constant 0 : index
    %c5 = arith.constant 5 : index
    %c0_240 = arith.constant 0 : index
    %200 = vector.load %arg35[%c0_239, %c5, %c0_240] : memref<1x6x64xf32, #tpu.memory_space<vmem>>, vector<1x1x64xf32>
    tpu.vector_store %arg35[%c0_239, %c5, %c0_240], %198 {strides = array<i32>} : memref<1x6x64xf32, #tpu.memory_space<vmem>>, vector<1x1x64xf32>,
    %201 = vector.shape_cast %196 : vector<4x64xf32> to vector<1x4x64xf32>
    %c0_241 = arith.constant 0 : index
    %c1_242 = arith.constant 1 : index
    %c0_243 = arith.constant 0 : index
    %202 = vector.load %arg35[%c0_241, %c1_242, %c0_243] : memref<1x6x64xf32, #tpu.memory_space<vmem>>, vector<1x4x64xf32>
    tpu.vector_store %arg35[%c0_241, %c1_242, %c0_243], %201 {strides = array<i32>} : memref<1x6x64xf32, #tpu.memory_space<vmem>>, vector<1x4x64xf32>,
    %c0_244 = arith.constant 0 : index
    %c0_245 = arith.constant 0 : index
    %c0_246 = arith.constant 0 : index
    %203 = vector.load %arg35[%c0_244, %c0_245, %c0_246] : memref<1x6x64xf32, #tpu.memory_space<vmem>>, vector<1x4x64xf32>
    %204 = vector.shape_cast %203 : vector<1x4x64xf32> to vector<4x64xf32>
    %c0_247 = arith.constant 0 : index
    %c0_248 = arith.constant 0 : index
    %c0_249 = arith.constant 0 : index
    %205 = vector.load %arg16[%c0_247, %c0_248, %c0_249] : memref<3x64x64xf32, #tpu.memory_space<vmem>>, vector<1x64x64xf32>
    %206 = vector.shape_cast %205 : vector<1x64x64xf32> to vector<64x64xf32>
    %cst_250 = arith.constant dense<0.000000e+00> : vector<4x64xf32>
    %207 = tpu.matmul %204, %206, %cst_250 {dimension_numbers = #tpu.dot_dimension_numbers<[1], [0], [0], [1], [0, 0, 1, 1], [], []>} : vector<4x64xf32>, vector<64x64xf32>, vector<4x64xf32> -> vector<4x64xf32>
    %c0_251 = arith.constant 0 : index
    %c1_252 = arith.constant 1 : index
    %c0_253 = arith.constant 0 : index
    %208 = vector.load %arg35[%c0_251, %c1_252, %c0_253] : memref<1x6x64xf32, #tpu.memory_space<vmem>>, vector<1x4x64xf32>
    %209 = vector.shape_cast %208 : vector<1x4x64xf32> to vector<4x64xf32>
    %c1_254 = arith.constant 1 : index
    %c0_255 = arith.constant 0 : index
    %c0_256 = arith.constant 0 : index
    %210 = vector.load %arg16[%c1_254, %c0_255, %c0_256] : memref<3x64x64xf32, #tpu.memory_space<vmem>>, vector<1x64x64xf32>
    %211 = vector.shape_cast %210 : vector<1x64x64xf32> to vector<64x64xf32>
    %cst_257 = arith.constant dense<0.000000e+00> : vector<4x64xf32>
    %212 = tpu.matmul %209, %211, %cst_257 {dimension_numbers = #tpu.dot_dimension_numbers<[1], [0], [0], [1], [0, 0, 1, 1], [], []>} : vector<4x64xf32>, vector<64x64xf32>, vector<4x64xf32> -> vector<4x64xf32>
    %213 = arith.addf %207, %212 : vector<4x64xf32>
    %c0_258 = arith.constant 0 : index
    %c2_259 = arith.constant 2 : index
    %c0_260 = arith.constant 0 : index
    %214 = vector.load %arg35[%c0_258, %c2_259, %c0_260] : memref<1x6x64xf32, #tpu.memory_space<vmem>>, vector<1x4x64xf32>
    %215 = vector.shape_cast %214 : vector<1x4x64xf32> to vector<4x64xf32>
    %c2_261 = arith.constant 2 : index
    %c0_262 = arith.constant 0 : index
    %c0_263 = arith.constant 0 : index
    %216 = vector.load %arg16[%c2_261, %c0_262, %c0_263] : memref<3x64x64xf32, #tpu.memory_space<vmem>>, vector<1x64x64xf32>
    %217 = vector.shape_cast %216 : vector<1x64x64xf32> to vector<64x64xf32>
    %cst_264 = arith.constant dense<0.000000e+00> : vector<4x64xf32>
    %218 = tpu.matmul %215, %217, %cst_264 {dimension_numbers = #tpu.dot_dimension_numbers<[1], [0], [0], [1], [0, 0, 1, 1], [], []>} : vector<4x64xf32>, vector<64x64xf32>, vector<4x64xf32> -> vector<4x64xf32>
    %219 = arith.addf %213, %218 : vector<4x64xf32>
    %c0_265 = arith.constant 0 : index
    %c0_266 = arith.constant 0 : index
    %220 = vector.load %arg17[%c0_265, %c0_266] : memref<1x64xf32, #tpu.memory_space<vmem>>, vector<1x64xf32>
    %221 = vector.broadcast %220 : vector<1x64xf32> to vector<4x64xf32>
    %222 = arith.addf %219, %221 : vector<4x64xf32>
    %223 = arith.addf %222, %197 : vector<4x64xf32>
    %cst_267 = arith.constant 0.000000e+00 : f32
    %224 = vector.broadcast %cst_267 : f32 to vector<4x64xf32>
    %225 = arith.maximumf %223, %224 : vector<4x64xf32>
    %226 = vector.shape_cast %225 : vector<4x64xf32> to vector<1x4x64xf32>
    %cst_268 = arith.constant 0.000000e+00 : f32
    %227 = vector.broadcast %cst_268 : f32 to vector<1x1x64xf32>
    %c0_269 = arith.constant 0 : index
    %c0_270 = arith.constant 0 : index
    %c0_271 = arith.constant 0 : index
    %228 = vector.load %arg35[%c0_269, %c0_270, %c0_271] : memref<1x6x64xf32, #tpu.memory_space<vmem>>, vector<1x1x64xf32>
    tpu.vector_store %arg35[%c0_269, %c0_270, %c0_271], %227 {strides = array<i32>} : memref<1x6x64xf32, #tpu.memory_space<vmem>>, vector<1x1x64xf32>,
    %c0_272 = arith.constant 0 : index
    %c5_273 = arith.constant 5 : index
    %c0_274 = arith.constant 0 : index
    %229 = vector.load %arg35[%c0_272, %c5_273, %c0_274] : memref<1x6x64xf32, #tpu.memory_space<vmem>>, vector<1x1x64xf32>
    tpu.vector_store %arg35[%c0_272, %c5_273, %c0_274], %227 {strides = array<i32>} : memref<1x6x64xf32, #tpu.memory_space<vmem>>, vector<1x1x64xf32>,
    %c0_275 = arith.constant 0 : index
    %c1_276 = arith.constant 1 : index
    %c0_277 = arith.constant 0 : index
    %230 = vector.load %arg35[%c0_275, %c1_276, %c0_277] : memref<1x6x64xf32, #tpu.memory_space<vmem>>, vector<1x4x64xf32>
    tpu.vector_store %arg35[%c0_275, %c1_276, %c0_277], %226 {strides = array<i32>} : memref<1x6x64xf32, #tpu.memory_space<vmem>>, vector<1x4x64xf32>,
    %c0_278 = arith.constant 0 : index
    %c0_279 = arith.constant 0 : index
    %c0_280 = arith.constant 0 : index
    %231 = vector.load %arg35[%c0_278, %c0_279, %c0_280] : memref<1x6x64xf32, #tpu.memory_space<vmem>>, vector<1x4x64xf32>
    %232 = vector.shape_cast %231 : vector<1x4x64xf32> to vector<4x64xf32>
    %c0_281 = arith.constant 0 : index
    %c0_282 = arith.constant 0 : index
    %c0_283 = arith.constant 0 : index
    %233 = vector.load %arg18[%c0_281, %c0_282, %c0_283] : memref<3x64x64xf32, #tpu.memory_space<vmem>>, vector<1x64x64xf32>
    %234 = vector.shape_cast %233 : vector<1x64x64xf32> to vector<64x64xf32>
    %cst_284 = arith.constant dense<0.000000e+00> : vector<4x64xf32>
    %235 = tpu.matmul %232, %234, %cst_284 {dimension_numbers = #tpu.dot_dimension_numbers<[1], [0], [0], [1], [0, 0, 1, 1], [], []>} : vector<4x64xf32>, vector<64x64xf32>, vector<4x64xf32> -> vector<4x64xf32>
    %c0_285 = arith.constant 0 : index
    %c1_286 = arith.constant 1 : index
    %c0_287 = arith.constant 0 : index
    %236 = vector.load %arg35[%c0_285, %c1_286, %c0_287] : memref<1x6x64xf32, #tpu.memory_space<vmem>>, vector<1x4x64xf32>
    %237 = vector.shape_cast %236 : vector<1x4x64xf32> to vector<4x64xf32>
    %c1_288 = arith.constant 1 : index
    %c0_289 = arith.constant 0 : index
    %c0_290 = arith.constant 0 : index
    %238 = vector.load %arg18[%c1_288, %c0_289, %c0_290] : memref<3x64x64xf32, #tpu.memory_space<vmem>>, vector<1x64x64xf32>
    %239 = vector.shape_cast %238 : vector<1x64x64xf32> to vector<64x64xf32>
    %cst_291 = arith.constant dense<0.000000e+00> : vector<4x64xf32>
    %240 = tpu.matmul %237, %239, %cst_291 {dimension_numbers = #tpu.dot_dimension_numbers<[1], [0], [0], [1], [0, 0, 1, 1], [], []>} : vector<4x64xf32>, vector<64x64xf32>, vector<4x64xf32> -> vector<4x64xf32>
    %241 = arith.addf %235, %240 : vector<4x64xf32>
    %c0_292 = arith.constant 0 : index
    %c2_293 = arith.constant 2 : index
    %c0_294 = arith.constant 0 : index
    %242 = vector.load %arg35[%c0_292, %c2_293, %c0_294] : memref<1x6x64xf32, #tpu.memory_space<vmem>>, vector<1x4x64xf32>
    %243 = vector.shape_cast %242 : vector<1x4x64xf32> to vector<4x64xf32>
    %c2_295 = arith.constant 2 : index
    %c0_296 = arith.constant 0 : index
    %c0_297 = arith.constant 0 : index
    %244 = vector.load %arg18[%c2_295, %c0_296, %c0_297] : memref<3x64x64xf32, #tpu.memory_space<vmem>>, vector<1x64x64xf32>
    %245 = vector.shape_cast %244 : vector<1x64x64xf32> to vector<64x64xf32>
    %cst_298 = arith.constant dense<0.000000e+00> : vector<4x64xf32>
    %246 = tpu.matmul %243, %245, %cst_298 {dimension_numbers = #tpu.dot_dimension_numbers<[1], [0], [0], [1], [0, 0, 1, 1], [], []>} : vector<4x64xf32>, vector<64x64xf32>, vector<4x64xf32> -> vector<4x64xf32>
    %247 = arith.addf %241, %246 : vector<4x64xf32>
    %c0_299 = arith.constant 0 : index
    %c0_300 = arith.constant 0 : index
    %248 = vector.load %arg19[%c0_299, %c0_300] : memref<1x64xf32, #tpu.memory_space<vmem>>, vector<1x64xf32>
    %249 = vector.broadcast %248 : vector<1x64xf32> to vector<4x64xf32>
    %250 = arith.addf %247, %249 : vector<4x64xf32>
    %cst_301 = arith.constant 0.000000e+00 : f32
    %251 = vector.broadcast %cst_301 : f32 to vector<4x64xf32>
    %252 = arith.maximumf %250, %251 : vector<4x64xf32>
    %253 = vector.shape_cast %226 : vector<1x4x64xf32> to vector<4x64xf32>
    %cst_302 = arith.constant 0.000000e+00 : f32
    %254 = vector.broadcast %cst_302 : f32 to vector<1x1x64xf32>
    %c0_303 = arith.constant 0 : index
    %c0_304 = arith.constant 0 : index
    %c0_305 = arith.constant 0 : index
    %255 = vector.load %arg35[%c0_303, %c0_304, %c0_305] : memref<1x6x64xf32, #tpu.memory_space<vmem>>, vector<1x1x64xf32>
    tpu.vector_store %arg35[%c0_303, %c0_304, %c0_305], %254 {strides = array<i32>} : memref<1x6x64xf32, #tpu.memory_space<vmem>>, vector<1x1x64xf32>,
    %c0_306 = arith.constant 0 : index
    %c5_307 = arith.constant 5 : index
    %c0_308 = arith.constant 0 : index
    %256 = vector.load %arg35[%c0_306, %c5_307, %c0_308] : memref<1x6x64xf32, #tpu.memory_space<vmem>>, vector<1x1x64xf32>
    tpu.vector_store %arg35[%c0_306, %c5_307, %c0_308], %254 {strides = array<i32>} : memref<1x6x64xf32, #tpu.memory_space<vmem>>, vector<1x1x64xf32>,
    %257 = vector.shape_cast %252 : vector<4x64xf32> to vector<1x4x64xf32>
    %c0_309 = arith.constant 0 : index
    %c1_310 = arith.constant 1 : index
    %c0_311 = arith.constant 0 : index
    %258 = vector.load %arg35[%c0_309, %c1_310, %c0_311] : memref<1x6x64xf32, #tpu.memory_space<vmem>>, vector<1x4x64xf32>
    tpu.vector_store %arg35[%c0_309, %c1_310, %c0_311], %257 {strides = array<i32>} : memref<1x6x64xf32, #tpu.memory_space<vmem>>, vector<1x4x64xf32>,
    %c0_312 = arith.constant 0 : index
    %c0_313 = arith.constant 0 : index
    %c0_314 = arith.constant 0 : index
    %259 = vector.load %arg35[%c0_312, %c0_313, %c0_314] : memref<1x6x64xf32, #tpu.memory_space<vmem>>, vector<1x4x64xf32>
    %260 = vector.shape_cast %259 : vector<1x4x64xf32> to vector<4x64xf32>
    %c0_315 = arith.constant 0 : index
    %c0_316 = arith.constant 0 : index
    %c0_317 = arith.constant 0 : index
    %261 = vector.load %arg20[%c0_315, %c0_316, %c0_317] : memref<3x64x64xf32, #tpu.memory_space<vmem>>, vector<1x64x64xf32>
    %262 = vector.shape_cast %261 : vector<1x64x64xf32> to vector<64x64xf32>
    %cst_318 = arith.constant dense<0.000000e+00> : vector<4x64xf32>
    %263 = tpu.matmul %260, %262, %cst_318 {dimension_numbers = #tpu.dot_dimension_numbers<[1], [0], [0], [1], [0, 0, 1, 1], [], []>} : vector<4x64xf32>, vector<64x64xf32>, vector<4x64xf32> -> vector<4x64xf32>
    %c0_319 = arith.constant 0 : index
    %c1_320 = arith.constant 1 : index
    %c0_321 = arith.constant 0 : index
    %264 = vector.load %arg35[%c0_319, %c1_320, %c0_321] : memref<1x6x64xf32, #tpu.memory_space<vmem>>, vector<1x4x64xf32>
    %265 = vector.shape_cast %264 : vector<1x4x64xf32> to vector<4x64xf32>
    %c1_322 = arith.constant 1 : index
    %c0_323 = arith.constant 0 : index
    %c0_324 = arith.constant 0 : index
    %266 = vector.load %arg20[%c1_322, %c0_323, %c0_324] : memref<3x64x64xf32, #tpu.memory_space<vmem>>, vector<1x64x64xf32>
    %267 = vector.shape_cast %266 : vector<1x64x64xf32> to vector<64x64xf32>
    %cst_325 = arith.constant dense<0.000000e+00> : vector<4x64xf32>
    %268 = tpu.matmul %265, %267, %cst_325 {dimension_numbers = #tpu.dot_dimension_numbers<[1], [0], [0], [1], [0, 0, 1, 1], [], []>} : vector<4x64xf32>, vector<64x64xf32>, vector<4x64xf32> -> vector<4x64xf32>
    %269 = arith.addf %263, %268 : vector<4x64xf32>
    %c0_326 = arith.constant 0 : index
    %c2_327 = arith.constant 2 : index
    %c0_328 = arith.constant 0 : index
    %270 = vector.load %arg35[%c0_326, %c2_327, %c0_328] : memref<1x6x64xf32, #tpu.memory_space<vmem>>, vector<1x4x64xf32>
    %271 = vector.shape_cast %270 : vector<1x4x64xf32> to vector<4x64xf32>
    %c2_329 = arith.constant 2 : index
    %c0_330 = arith.constant 0 : index
    %c0_331 = arith.constant 0 : index
    %272 = vector.load %arg20[%c2_329, %c0_330, %c0_331] : memref<3x64x64xf32, #tpu.memory_space<vmem>>, vector<1x64x64xf32>
    %273 = vector.shape_cast %272 : vector<1x64x64xf32> to vector<64x64xf32>
    %cst_332 = arith.constant dense<0.000000e+00> : vector<4x64xf32>
    %274 = tpu.matmul %271, %273, %cst_332 {dimension_numbers = #tpu.dot_dimension_numbers<[1], [0], [0], [1], [0, 0, 1, 1], [], []>} : vector<4x64xf32>, vector<64x64xf32>, vector<4x64xf32> -> vector<4x64xf32>
    %275 = arith.addf %269, %274 : vector<4x64xf32>
    %c0_333 = arith.constant 0 : index
    %c0_334 = arith.constant 0 : index
    %276 = vector.load %arg21[%c0_333, %c0_334] : memref<1x64xf32, #tpu.memory_space<vmem>>, vector<1x64xf32>
    %277 = vector.broadcast %276 : vector<1x64xf32> to vector<4x64xf32>
    %278 = arith.addf %275, %277 : vector<4x64xf32>
    %279 = arith.addf %278, %253 : vector<4x64xf32>
    %cst_335 = arith.constant 0.000000e+00 : f32
    %280 = vector.broadcast %cst_335 : f32 to vector<4x64xf32>
    %281 = arith.maximumf %279, %280 : vector<4x64xf32>
    %282 = vector.shape_cast %281 : vector<4x64xf32> to vector<1x4x64xf32>
    %cst_336 = arith.constant 0.000000e+00 : f32
    %283 = vector.broadcast %cst_336 : f32 to vector<1x1x64xf32>
    %c0_337 = arith.constant 0 : index
    %c0_338 = arith.constant 0 : index
    %c0_339 = arith.constant 0 : index
    %284 = vector.load %arg35[%c0_337, %c0_338, %c0_339] : memref<1x6x64xf32, #tpu.memory_space<vmem>>, vector<1x1x64xf32>
    tpu.vector_store %arg35[%c0_337, %c0_338, %c0_339], %283 {strides = array<i32>} : memref<1x6x64xf32, #tpu.memory_space<vmem>>, vector<1x1x64xf32>,
    %c0_340 = arith.constant 0 : index
    %c5_341 = arith.constant 5 : index
    %c0_342 = arith.constant 0 : index
    %285 = vector.load %arg35[%c0_340, %c5_341, %c0_342] : memref<1x6x64xf32, #tpu.memory_space<vmem>>, vector<1x1x64xf32>
    tpu.vector_store %arg35[%c0_340, %c5_341, %c0_342], %283 {strides = array<i32>} : memref<1x6x64xf32, #tpu.memory_space<vmem>>, vector<1x1x64xf32>,
    %c0_343 = arith.constant 0 : index
    %c1_344 = arith.constant 1 : index
    %c0_345 = arith.constant 0 : index
    %286 = vector.load %arg35[%c0_343, %c1_344, %c0_345] : memref<1x6x64xf32, #tpu.memory_space<vmem>>, vector<1x4x64xf32>
    tpu.vector_store %arg35[%c0_343, %c1_344, %c0_345], %282 {strides = array<i32>} : memref<1x6x64xf32, #tpu.memory_space<vmem>>, vector<1x4x64xf32>,
    %c0_346 = arith.constant 0 : index
    %c0_347 = arith.constant 0 : index
    %c0_348 = arith.constant 0 : index
    %287 = vector.load %arg35[%c0_346, %c0_347, %c0_348] : memref<1x6x64xf32, #tpu.memory_space<vmem>>, vector<1x4x64xf32>
    %288 = vector.shape_cast %287 : vector<1x4x64xf32> to vector<4x64xf32>
    %c0_349 = arith.constant 0 : index
    %c0_350 = arith.constant 0 : index
    %c0_351 = arith.constant 0 : index
    %289 = vector.load %arg22[%c0_349, %c0_350, %c0_351] : memref<3x64x64xf32, #tpu.memory_space<vmem>>, vector<1x64x64xf32>
    %290 = vector.shape_cast %289 : vector<1x64x64xf32> to vector<64x64xf32>
    %cst_352 = arith.constant dense<0.000000e+00> : vector<4x64xf32>
    %291 = tpu.matmul %288, %290, %cst_352 {dimension_numbers = #tpu.dot_dimension_numbers<[1], [0], [0], [1], [0, 0, 1, 1], [], []>} : vector<4x64xf32>, vector<64x64xf32>, vector<4x64xf32> -> vector<4x64xf32>
    %c0_353 = arith.constant 0 : index
    %c1_354 = arith.constant 1 : index
    %c0_355 = arith.constant 0 : index
    %292 = vector.load %arg35[%c0_353, %c1_354, %c0_355] : memref<1x6x64xf32, #tpu.memory_space<vmem>>, vector<1x4x64xf32>
    %293 = vector.shape_cast %292 : vector<1x4x64xf32> to vector<4x64xf32>
    %c1_356 = arith.constant 1 : index
    %c0_357 = arith.constant 0 : index
    %c0_358 = arith.constant 0 : index
    %294 = vector.load %arg22[%c1_356, %c0_357, %c0_358] : memref<3x64x64xf32, #tpu.memory_space<vmem>>, vector<1x64x64xf32>
    %295 = vector.shape_cast %294 : vector<1x64x64xf32> to vector<64x64xf32>
    %cst_359 = arith.constant dense<0.000000e+00> : vector<4x64xf32>
    %296 = tpu.matmul %293, %295, %cst_359 {dimension_numbers = #tpu.dot_dimension_numbers<[1], [0], [0], [1], [0, 0, 1, 1], [], []>} : vector<4x64xf32>, vector<64x64xf32>, vector<4x64xf32> -> vector<4x64xf32>
    %297 = arith.addf %291, %296 : vector<4x64xf32>
    %c0_360 = arith.constant 0 : index
    %c2_361 = arith.constant 2 : index
    %c0_362 = arith.constant 0 : index
    %298 = vector.load %arg35[%c0_360, %c2_361, %c0_362] : memref<1x6x64xf32, #tpu.memory_space<vmem>>, vector<1x4x64xf32>
    %299 = vector.shape_cast %298 : vector<1x4x64xf32> to vector<4x64xf32>
    %c2_363 = arith.constant 2 : index
    %c0_364 = arith.constant 0 : index
    %c0_365 = arith.constant 0 : index
    %300 = vector.load %arg22[%c2_363, %c0_364, %c0_365] : memref<3x64x64xf32, #tpu.memory_space<vmem>>, vector<1x64x64xf32>
    %301 = vector.shape_cast %300 : vector<1x64x64xf32> to vector<64x64xf32>
    %cst_366 = arith.constant dense<0.000000e+00> : vector<4x64xf32>
    %302 = tpu.matmul %299, %301, %cst_366 {dimension_numbers = #tpu.dot_dimension_numbers<[1], [0], [0], [1], [0, 0, 1, 1], [], []>} : vector<4x64xf32>, vector<64x64xf32>, vector<4x64xf32> -> vector<4x64xf32>
    %303 = arith.addf %297, %302 : vector<4x64xf32>
    %c0_367 = arith.constant 0 : index
    %c0_368 = arith.constant 0 : index
    %304 = vector.load %arg23[%c0_367, %c0_368] : memref<1x64xf32, #tpu.memory_space<vmem>>, vector<1x64xf32>
    %305 = vector.broadcast %304 : vector<1x64xf32> to vector<4x64xf32>
    %306 = arith.addf %303, %305 : vector<4x64xf32>
    %307 = vector.extract_strided_slice %306 {offsets = [0, 0], sizes = [4, 32], strides = [1, 1]} : vector<4x64xf32> to vector<4x32xf32>
    %cst_369 = arith.constant 0.000000e+00 : f32
    %308 = vector.broadcast %cst_369 : f32 to vector<4x32xf32>
    %309 = arith.maximumf %307, %308 : vector<4x32xf32>
    %310 = vector.extract_strided_slice %306 {offsets = [0, 32], sizes = [4, 32], strides = [1, 1]} : vector<4x64xf32> to vector<4x32xf32>
    %cst_370 = arith.constant 0.000000e+00 : f32
    %311 = vector.broadcast %cst_370 : f32 to vector<1x1x32xf32>
    %c0_371 = arith.constant 0 : index
    %c0_372 = arith.constant 0 : index
    %c0_373 = arith.constant 0 : index
    %312 = vector.load %arg36[%c0_371, %c0_372, %c0_373] : memref<1x6x32xf32, #tpu.memory_space<vmem>>, vector<1x1x32xf32>
    tpu.vector_store %arg36[%c0_371, %c0_372, %c0_373], %311 {strides = array<i32>} : memref<1x6x32xf32, #tpu.memory_space<vmem>>, vector<1x1x32xf32>,
    %c0_374 = arith.constant 0 : index
    %c5_375 = arith.constant 5 : index
    %c0_376 = arith.constant 0 : index
    %313 = vector.load %arg36[%c0_374, %c5_375, %c0_376] : memref<1x6x32xf32, #tpu.memory_space<vmem>>, vector<1x1x32xf32>
    tpu.vector_store %arg36[%c0_374, %c5_375, %c0_376], %311 {strides = array<i32>} : memref<1x6x32xf32, #tpu.memory_space<vmem>>, vector<1x1x32xf32>,
    %314 = vector.shape_cast %309 : vector<4x32xf32> to vector<1x4x32xf32>
    %c0_377 = arith.constant 0 : index
    %c1_378 = arith.constant 1 : index
    %c0_379 = arith.constant 0 : index
    %315 = vector.load %arg36[%c0_377, %c1_378, %c0_379] : memref<1x6x32xf32, #tpu.memory_space<vmem>>, vector<1x4x32xf32>
    tpu.vector_store %arg36[%c0_377, %c1_378, %c0_379], %314 {strides = array<i32>} : memref<1x6x32xf32, #tpu.memory_space<vmem>>, vector<1x4x32xf32>,
    %c0_380 = arith.constant 0 : index
    %c0_381 = arith.constant 0 : index
    %c0_382 = arith.constant 0 : index
    %316 = vector.load %arg36[%c0_380, %c0_381, %c0_382] : memref<1x6x32xf32, #tpu.memory_space<vmem>>, vector<1x4x32xf32>
    %317 = vector.shape_cast %316 : vector<1x4x32xf32> to vector<4x32xf32>
    %c0_383 = arith.constant 0 : index
    %c0_384 = arith.constant 0 : index
    %c0_385 = arith.constant 0 : index
    %318 = vector.load %arg24[%c0_383, %c0_384, %c0_385] : memref<3x32x32xf32, #tpu.memory_space<vmem>>, vector<1x32x32xf32>
    %319 = vector.shape_cast %318 : vector<1x32x32xf32> to vector<32x32xf32>
    %cst_386 = arith.constant dense<0.000000e+00> : vector<4x32xf32>
    %320 = tpu.matmul %317, %319, %cst_386 {dimension_numbers = #tpu.dot_dimension_numbers<[1], [0], [0], [1], [0, 0, 1, 1], [], []>} : vector<4x32xf32>, vector<32x32xf32>, vector<4x32xf32> -> vector<4x32xf32>
    %c0_387 = arith.constant 0 : index
    %c1_388 = arith.constant 1 : index
    %c0_389 = arith.constant 0 : index
    %321 = vector.load %arg36[%c0_387, %c1_388, %c0_389] : memref<1x6x32xf32, #tpu.memory_space<vmem>>, vector<1x4x32xf32>
    %322 = vector.shape_cast %321 : vector<1x4x32xf32> to vector<4x32xf32>
    %c1_390 = arith.constant 1 : index
    %c0_391 = arith.constant 0 : index
    %c0_392 = arith.constant 0 : index
    %323 = vector.load %arg24[%c1_390, %c0_391, %c0_392] : memref<3x32x32xf32, #tpu.memory_space<vmem>>, vector<1x32x32xf32>
    %324 = vector.shape_cast %323 : vector<1x32x32xf32> to vector<32x32xf32>
    %cst_393 = arith.constant dense<0.000000e+00> : vector<4x32xf32>
    %325 = tpu.matmul %322, %324, %cst_393 {dimension_numbers = #tpu.dot_dimension_numbers<[1], [0], [0], [1], [0, 0, 1, 1], [], []>} : vector<4x32xf32>, vector<32x32xf32>, vector<4x32xf32> -> vector<4x32xf32>
    %326 = arith.addf %320, %325 : vector<4x32xf32>
    %c0_394 = arith.constant 0 : index
    %c2_395 = arith.constant 2 : index
    %c0_396 = arith.constant 0 : index
    %327 = vector.load %arg36[%c0_394, %c2_395, %c0_396] : memref<1x6x32xf32, #tpu.memory_space<vmem>>, vector<1x4x32xf32>
    %328 = vector.shape_cast %327 : vector<1x4x32xf32> to vector<4x32xf32>
    %c2_397 = arith.constant 2 : index
    %c0_398 = arith.constant 0 : index
    %c0_399 = arith.constant 0 : index
    %329 = vector.load %arg24[%c2_397, %c0_398, %c0_399] : memref<3x32x32xf32, #tpu.memory_space<vmem>>, vector<1x32x32xf32>
    %330 = vector.shape_cast %329 : vector<1x32x32xf32> to vector<32x32xf32>
    %cst_400 = arith.constant dense<0.000000e+00> : vector<4x32xf32>
    %331 = tpu.matmul %328, %330, %cst_400 {dimension_numbers = #tpu.dot_dimension_numbers<[1], [0], [0], [1], [0, 0, 1, 1], [], []>} : vector<4x32xf32>, vector<32x32xf32>, vector<4x32xf32> -> vector<4x32xf32>
    %332 = arith.addf %326, %331 : vector<4x32xf32>
    %c0_401 = arith.constant 0 : index
    %c0_402 = arith.constant 0 : index
    %333 = vector.load %arg25[%c0_401, %c0_402] : memref<1x32xf32, #tpu.memory_space<vmem>>, vector<1x32xf32>
    %334 = vector.broadcast %333 : vector<1x32xf32> to vector<4x32xf32>
    %335 = arith.addf %332, %334 : vector<4x32xf32>
    %336 = arith.addf %335, %310 : vector<4x32xf32>
    %cst_403 = arith.constant 0.000000e+00 : f32
    %337 = vector.broadcast %cst_403 : f32 to vector<4x32xf32>
    %338 = arith.maximumf %336, %337 : vector<4x32xf32>
    %339 = vector.shape_cast %338 : vector<4x32xf32> to vector<1x4x32xf32>
    %340 = vector.shape_cast %339 : vector<1x4x32xf32> to vector<4x32xf32>
    %c0_404 = arith.constant 0 : index
    %c0_405 = arith.constant 0 : index
    %341 = vector.load %arg26[%c0_404, %c0_405] : memref<32x64xf32, #tpu.memory_space<vmem>>, vector<32x64xf32>
    %cst_406 = arith.constant dense<0.000000e+00> : vector<4x64xf32>
    %342 = tpu.matmul %340, %341, %cst_406 {dimension_numbers = #tpu.dot_dimension_numbers<[1], [0], [0], [1], [0, 0, 1, 1], [], []>} : vector<4x32xf32>, vector<32x64xf32>, vector<4x64xf32> -> vector<4x64xf32>
    %343 = vector.shape_cast %342 : vector<4x64xf32> to vector<1x4x1x64xf32>
    %344 = vector.shape_cast %343 : vector<1x4x1x64xf32> to vector<1x4x1x64xf32>
    %345 = vector.broadcast %344 : vector<1x4x1x64xf32> to vector<1x4x2x64xf32>
    %346 = vector.shape_cast %345 : vector<1x4x2x64xf32> to vector<1x8x64xf32>
    %347 = arith.addf %169, %346 : vector<1x8x64xf32>
    %cst_407 = arith.constant 0.000000e+00 : f32
    %348 = vector.broadcast %cst_407 : f32 to vector<1x1x64xf32>
    %c0_408 = arith.constant 0 : index
    %c0_409 = arith.constant 0 : index
    %c0_410 = arith.constant 0 : index
    %349 = vector.load %arg34[%c0_408, %c0_409, %c0_410] : memref<1x10x64xf32, #tpu.memory_space<vmem>>, vector<1x1x64xf32>
    tpu.vector_store %arg34[%c0_408, %c0_409, %c0_410], %348 {strides = array<i32>} : memref<1x10x64xf32, #tpu.memory_space<vmem>>, vector<1x1x64xf32>,
    %c0_411 = arith.constant 0 : index
    %c9_412 = arith.constant 9 : index
    %c0_413 = arith.constant 0 : index
    %350 = vector.load %arg34[%c0_411, %c9_412, %c0_413] : memref<1x10x64xf32, #tpu.memory_space<vmem>>, vector<1x1x64xf32>
    tpu.vector_store %arg34[%c0_411, %c9_412, %c0_413], %348 {strides = array<i32>} : memref<1x10x64xf32, #tpu.memory_space<vmem>>, vector<1x1x64xf32>,
    %c0_414 = arith.constant 0 : index
    %c1_415 = arith.constant 1 : index
    %c0_416 = arith.constant 0 : index
    %351 = vector.load %arg34[%c0_414, %c1_415, %c0_416] : memref<1x10x64xf32, #tpu.memory_space<vmem>>, vector<1x8x64xf32>
    tpu.vector_store %arg34[%c0_414, %c1_415, %c0_416], %347 {strides = array<i32>} : memref<1x10x64xf32, #tpu.memory_space<vmem>>, vector<1x8x64xf32>,
    %c0_417 = arith.constant 0 : index
    %c0_418 = arith.constant 0 : index
    %c0_419 = arith.constant 0 : index
    %352 = vector.load %arg34[%c0_417, %c0_418, %c0_419] : memref<1x10x64xf32, #tpu.memory_space<vmem>>, vector<1x8x64xf32>
    %353 = vector.shape_cast %352 : vector<1x8x64xf32> to vector<8x64xf32>
    %c0_420 = arith.constant 0 : index
    %c0_421 = arith.constant 0 : index
    %c0_422 = arith.constant 0 : index
    %354 = vector.load %arg27[%c0_420, %c0_421, %c0_422] : memref<3x64x64xf32, #tpu.memory_space<vmem>>, vector<1x64x64xf32>
    %355 = vector.shape_cast %354 : vector<1x64x64xf32> to vector<64x64xf32>
    %cst_423 = arith.constant dense<0.000000e+00> : vector<8x64xf32>
    %356 = tpu.matmul %353, %355, %cst_423 {dimension_numbers = #tpu.dot_dimension_numbers<[1], [0], [0], [1], [0, 0, 1, 1], [], []>} : vector<8x64xf32>, vector<64x64xf32>, vector<8x64xf32> -> vector<8x64xf32>
    %c0_424 = arith.constant 0 : index
    %c1_425 = arith.constant 1 : index
    %c0_426 = arith.constant 0 : index
    %357 = vector.load %arg34[%c0_424, %c1_425, %c0_426] : memref<1x10x64xf32, #tpu.memory_space<vmem>>, vector<1x8x64xf32>
    %358 = vector.shape_cast %357 : vector<1x8x64xf32> to vector<8x64xf32>
    %c1_427 = arith.constant 1 : index
    %c0_428 = arith.constant 0 : index
    %c0_429 = arith.constant 0 : index
    %359 = vector.load %arg27[%c1_427, %c0_428, %c0_429] : memref<3x64x64xf32, #tpu.memory_space<vmem>>, vector<1x64x64xf32>
    %360 = vector.shape_cast %359 : vector<1x64x64xf32> to vector<64x64xf32>
    %cst_430 = arith.constant dense<0.000000e+00> : vector<8x64xf32>
    %361 = tpu.matmul %358, %360, %cst_430 {dimension_numbers = #tpu.dot_dimension_numbers<[1], [0], [0], [1], [0, 0, 1, 1], [], []>} : vector<8x64xf32>, vector<64x64xf32>, vector<8x64xf32> -> vector<8x64xf32>
    %362 = arith.addf %356, %361 : vector<8x64xf32>
    %c0_431 = arith.constant 0 : index
    %c2_432 = arith.constant 2 : index
    %c0_433 = arith.constant 0 : index
    %363 = vector.load %arg34[%c0_431, %c2_432, %c0_433] : memref<1x10x64xf32, #tpu.memory_space<vmem>>, vector<1x8x64xf32>
    %364 = vector.shape_cast %363 : vector<1x8x64xf32> to vector<8x64xf32>
    %c2_434 = arith.constant 2 : index
    %c0_435 = arith.constant 0 : index
    %c0_436 = arith.constant 0 : index
    %365 = vector.load %arg27[%c2_434, %c0_435, %c0_436] : memref<3x64x64xf32, #tpu.memory_space<vmem>>, vector<1x64x64xf32>
    %366 = vector.shape_cast %365 : vector<1x64x64xf32> to vector<64x64xf32>
    %cst_437 = arith.constant dense<0.000000e+00> : vector<8x64xf32>
    %367 = tpu.matmul %364, %366, %cst_437 {dimension_numbers = #tpu.dot_dimension_numbers<[1], [0], [0], [1], [0, 0, 1, 1], [], []>} : vector<8x64xf32>, vector<64x64xf32>, vector<8x64xf32> -> vector<8x64xf32>
    %368 = arith.addf %362, %367 : vector<8x64xf32>
    %c0_438 = arith.constant 0 : index
    %c0_439 = arith.constant 0 : index
    %369 = vector.load %arg28[%c0_438, %c0_439] : memref<1x64xf32, #tpu.memory_space<vmem>>, vector<1x64xf32>
    %370 = vector.broadcast %369 : vector<1x64xf32> to vector<8x64xf32>
    %371 = arith.addf %368, %370 : vector<8x64xf32>
    %372 = vector.extract_strided_slice %371 {offsets = [0, 0], sizes = [8, 32], strides = [1, 1]} : vector<8x64xf32> to vector<8x32xf32>
    %cst_440 = arith.constant 0.000000e+00 : f32
    %373 = vector.broadcast %cst_440 : f32 to vector<8x32xf32>
    %374 = arith.maximumf %372, %373 : vector<8x32xf32>
    %375 = vector.extract_strided_slice %371 {offsets = [0, 32], sizes = [8, 32], strides = [1, 1]} : vector<8x64xf32> to vector<8x32xf32>
    %cst_441 = arith.constant 0.000000e+00 : f32
    %376 = vector.broadcast %cst_441 : f32 to vector<1x1x32xf32>
    %c0_442 = arith.constant 0 : index
    %c0_443 = arith.constant 0 : index
    %c0_444 = arith.constant 0 : index
    %377 = vector.load %arg37[%c0_442, %c0_443, %c0_444] : memref<1x10x32xf32, #tpu.memory_space<vmem>>, vector<1x1x32xf32>
    tpu.vector_store %arg37[%c0_442, %c0_443, %c0_444], %376 {strides = array<i32>} : memref<1x10x32xf32, #tpu.memory_space<vmem>>, vector<1x1x32xf32>,
    %c0_445 = arith.constant 0 : index
    %c9_446 = arith.constant 9 : index
    %c0_447 = arith.constant 0 : index
    %378 = vector.load %arg37[%c0_445, %c9_446, %c0_447] : memref<1x10x32xf32, #tpu.memory_space<vmem>>, vector<1x1x32xf32>
    tpu.vector_store %arg37[%c0_445, %c9_446, %c0_447], %376 {strides = array<i32>} : memref<1x10x32xf32, #tpu.memory_space<vmem>>, vector<1x1x32xf32>,
    %379 = vector.shape_cast %374 : vector<8x32xf32> to vector<1x8x32xf32>
    %c0_448 = arith.constant 0 : index
    %c1_449 = arith.constant 1 : index
    %c0_450 = arith.constant 0 : index
    %380 = vector.load %arg37[%c0_448, %c1_449, %c0_450] : memref<1x10x32xf32, #tpu.memory_space<vmem>>, vector<1x8x32xf32>
    tpu.vector_store %arg37[%c0_448, %c1_449, %c0_450], %379 {strides = array<i32>} : memref<1x10x32xf32, #tpu.memory_space<vmem>>, vector<1x8x32xf32>,
    %c0_451 = arith.constant 0 : index
    %c0_452 = arith.constant 0 : index
    %c0_453 = arith.constant 0 : index
    %381 = vector.load %arg37[%c0_451, %c0_452, %c0_453] : memref<1x10x32xf32, #tpu.memory_space<vmem>>, vector<1x8x32xf32>
    %382 = vector.shape_cast %381 : vector<1x8x32xf32> to vector<8x32xf32>
    %c0_454 = arith.constant 0 : index
    %c0_455 = arith.constant 0 : index
    %c0_456 = arith.constant 0 : index
    %383 = vector.load %arg29[%c0_454, %c0_455, %c0_456] : memref<3x32x32xf32, #tpu.memory_space<vmem>>, vector<1x32x32xf32>
    %384 = vector.shape_cast %383 : vector<1x32x32xf32> to vector<32x32xf32>
    %cst_457 = arith.constant dense<0.000000e+00> : vector<8x32xf32>
    %385 = tpu.matmul %382, %384, %cst_457 {dimension_numbers = #tpu.dot_dimension_numbers<[1], [0], [0], [1], [0, 0, 1, 1], [], []>} : vector<8x32xf32>, vector<32x32xf32>, vector<8x32xf32> -> vector<8x32xf32>
    %c0_458 = arith.constant 0 : index
    %c1_459 = arith.constant 1 : index
    %c0_460 = arith.constant 0 : index
    %386 = vector.load %arg37[%c0_458, %c1_459, %c0_460] : memref<1x10x32xf32, #tpu.memory_space<vmem>>, vector<1x8x32xf32>
    %387 = vector.shape_cast %386 : vector<1x8x32xf32> to vector<8x32xf32>
    %c1_461 = arith.constant 1 : index
    %c0_462 = arith.constant 0 : index
    %c0_463 = arith.constant 0 : index
    %388 = vector.load %arg29[%c1_461, %c0_462, %c0_463] : memref<3x32x32xf32, #tpu.memory_space<vmem>>, vector<1x32x32xf32>
    %389 = vector.shape_cast %388 : vector<1x32x32xf32> to vector<32x32xf32>
    %cst_464 = arith.constant dense<0.000000e+00> : vector<8x32xf32>
    %390 = tpu.matmul %387, %389, %cst_464 {dimension_numbers = #tpu.dot_dimension_numbers<[1], [0], [0], [1], [0, 0, 1, 1], [], []>} : vector<8x32xf32>, vector<32x32xf32>, vector<8x32xf32> -> vector<8x32xf32>
    %391 = arith.addf %385, %390 : vector<8x32xf32>
    %c0_465 = arith.constant 0 : index
    %c2_466 = arith.constant 2 : index
    %c0_467 = arith.constant 0 : index
    %392 = vector.load %arg37[%c0_465, %c2_466, %c0_467] : memref<1x10x32xf32, #tpu.memory_space<vmem>>, vector<1x8x32xf32>
    %393 = vector.shape_cast %392 : vector<1x8x32xf32> to vector<8x32xf32>
    %c2_468 = arith.constant 2 : index
    %c0_469 = arith.constant 0 : index
    %c0_470 = arith.constant 0 : index
    %394 = vector.load %arg29[%c2_468, %c0_469, %c0_470] : memref<3x32x32xf32, #tpu.memory_space<vmem>>, vector<1x32x32xf32>
    %395 = vector.shape_cast %394 : vector<1x32x32xf32> to vector<32x32xf32>
    %cst_471 = arith.constant dense<0.000000e+00> : vector<8x32xf32>
    %396 = tpu.matmul %393, %395, %cst_471 {dimension_numbers = #tpu.dot_dimension_numbers<[1], [0], [0], [1], [0, 0, 1, 1], [], []>} : vector<8x32xf32>, vector<32x32xf32>, vector<8x32xf32> -> vector<8x32xf32>
    %397 = arith.addf %391, %396 : vector<8x32xf32>
    %c0_472 = arith.constant 0 : index
    %c0_473 = arith.constant 0 : index
    %398 = vector.load %arg30[%c0_472, %c0_473] : memref<1x32xf32, #tpu.memory_space<vmem>>, vector<1x32xf32>
    %399 = vector.broadcast %398 : vector<1x32xf32> to vector<8x32xf32>
    %400 = arith.addf %397, %399 : vector<8x32xf32>
    %401 = arith.addf %400, %375 : vector<8x32xf32>
    %cst_474 = arith.constant 0.000000e+00 : f32
    %402 = vector.broadcast %cst_474 : f32 to vector<8x32xf32>
    %403 = arith.maximumf %401, %402 : vector<8x32xf32>
    %404 = vector.shape_cast %403 : vector<8x32xf32> to vector<1x8x32xf32>
    %405 = vector.shape_cast %404 : vector<1x8x32xf32> to vector<8x32xf32>
    %c0_475 = arith.constant 0 : index
    %c0_476 = arith.constant 0 : index
    %406 = vector.load %arg31[%c0_475, %c0_476] : memref<32x64xf32, #tpu.memory_space<vmem>>, vector<32x64xf32>
    %cst_477 = arith.constant dense<0.000000e+00> : vector<8x64xf32>
    %407 = tpu.matmul %405, %406, %cst_477 {dimension_numbers = #tpu.dot_dimension_numbers<[1], [0], [0], [1], [0, 0, 1, 1], [], []>} : vector<8x32xf32>, vector<32x64xf32>, vector<8x64xf32> -> vector<8x64xf32>
    %408 = vector.shape_cast %407 : vector<8x64xf32> to vector<1x8x1x64xf32>
    %409 = vector.shape_cast %408 : vector<1x8x1x64xf32> to vector<1x8x1x64xf32>
    %410 = vector.broadcast %409 : vector<1x8x1x64xf32> to vector<1x8x2x64xf32>
    %411 = vector.shape_cast %410 : vector<1x8x2x64xf32> to vector<1x16x64xf32>
    %412 = arith.addf %56, %411 : vector<1x16x64xf32>
    %c0_478 = arith.constant 0 : index
    %c0_479 = arith.constant 0 : index
    %c0_480 = arith.constant 0 : index
    %413 = vector.load %arg32[%c0_478, %c0_479, %c0_480] : memref<1x16x64xf32, #tpu.memory_space<vmem>>, vector<1x16x64xf32>
    tpu.vector_store %arg32[%c0_478, %c0_479, %c0_480], %412 {strides = array<i32>} : memref<1x16x64xf32, #tpu.memory_space<vmem>>, vector<1x16x64xf32>,
    return
  }
  func.func @transform_0(%arg0: i32) -> (i32, i32, i32) {
    %c0_i32 = arith.constant 0 : i32
    %c0_i32_0 = arith.constant 0 : i32
    %c0_i32_1 = arith.constant 0 : i32
    return %arg0, %c0_i32, %c0_i32_0 : i32, i32, i32
  }
  func.func @transform_1(%arg0: i32) -> (i32, i32, i32) {
    %c0_i32 = arith.constant 0 : i32
    %c0_i32_0 = arith.constant 0 : i32
    %c0_i32_1 = arith.constant 0 : i32
    %c0_i32_2 = arith.constant 0 : i32
    return %c0_i32, %c0_i32_0, %c0_i32_1 : i32, i32, i32
  }
  func.func @transform_2(%arg0: i32) -> (i32, i32) {
    %c0_i32 = arith.constant 0 : i32
    %c0_i32_0 = arith.constant 0 : i32
    %c0_i32_1 = arith.constant 0 : i32
    return %c0_i32, %c0_i32_0 : i32, i32
  }
  func.func @transform_3(%arg0: i32) -> (i32, i32, i32) {
    %c0_i32 = arith.constant 0 : i32
    %c0_i32_0 = arith.constant 0 : i32
    %c0_i32_1 = arith.constant 0 : i32
    %c0_i32_2 = arith.constant 0 : i32
    return %c0_i32, %c0_i32_0, %c0_i32_1 : i32, i32, i32
  }
  func.func @transform_4(%arg0: i32) -> (i32, i32) {
    %c0_i32 = arith.constant 0 : i32
    %c0_i32_0 = arith.constant 0 : i32
    %c0_i32_1 = arith.constant 0 : i32
    return %c0_i32, %c0_i32_0 : i32, i32
  }
  func.func @transform_5(%arg0: i32) -> (i32, i32, i32) {
    %c0_i32 = arith.constant 0 : i32
    %c0_i32_0 = arith.constant 0 : i32
    %c0_i32_1 = arith.constant 0 : i32
    %c0_i32_2 = arith.constant 0 : i32
    return %c0_i32, %c0_i32_0, %c0_i32_1 : i32, i32, i32
  }
  func.func @transform_6(%arg0: i32) -> (i32, i32) {
    %c0_i32 = arith.constant 0 : i32
    %c0_i32_0 = arith.constant 0 : i32
    %c0_i32_1 = arith.constant 0 : i32
    return %c0_i32, %c0_i32_0 : i32, i32
  }
  func.func @transform_7(%arg0: i32) -> (i32, i32, i32) {
    %c0_i32 = arith.constant 0 : i32
    %c0_i32_0 = arith.constant 0 : i32
    %c0_i32_1 = arith.constant 0 : i32
    %c0_i32_2 = arith.constant 0 : i32
    return %c0_i32, %c0_i32_0, %c0_i32_1 : i32, i32, i32
  }
  func.func @transform_8(%arg0: i32) -> (i32, i32) {
    %c0_i32 = arith.constant 0 : i32
    %c0_i32_0 = arith.constant 0 : i32
    %c0_i32_1 = arith.constant 0 : i32
    return %c0_i32, %c0_i32_0 : i32, i32
  }
  func.func @transform_9(%arg0: i32) -> (i32, i32, i32) {
    %c0_i32 = arith.constant 0 : i32
    %c0_i32_0 = arith.constant 0 : i32
    %c0_i32_1 = arith.constant 0 : i32
    %c0_i32_2 = arith.constant 0 : i32
    return %c0_i32, %c0_i32_0, %c0_i32_1 : i32, i32, i32
  }
  func.func @transform_10(%arg0: i32) -> (i32, i32) {
    %c0_i32 = arith.constant 0 : i32
    %c0_i32_0 = arith.constant 0 : i32
    %c0_i32_1 = arith.constant 0 : i32
    return %c0_i32, %c0_i32_0 : i32, i32
  }
  func.func @transform_11(%arg0: i32) -> (i32, i32, i32) {
    %c0_i32 = arith.constant 0 : i32
    %c0_i32_0 = arith.constant 0 : i32
    %c0_i32_1 = arith.constant 0 : i32
    %c0_i32_2 = arith.constant 0 : i32
    return %c0_i32, %c0_i32_0, %c0_i32_1 : i32, i32, i32
  }
  func.func @transform_12(%arg0: i32) -> (i32, i32) {
    %c0_i32 = arith.constant 0 : i32
    %c0_i32_0 = arith.constant 0 : i32
    %c0_i32_1 = arith.constant 0 : i32
    return %c0_i32, %c0_i32_0 : i32, i32
  }
  func.func @transform_13(%arg0: i32) -> (i32, i32, i32) {
    %c0_i32 = arith.constant 0 : i32
    %c0_i32_0 = arith.constant 0 : i32
    %c0_i32_1 = arith.constant 0 : i32
    %c0_i32_2 = arith.constant 0 : i32
    return %c0_i32, %c0_i32_0, %c0_i32_1 : i32, i32, i32
  }
  func.func @transform_14(%arg0: i32) -> (i32, i32) {
    %c0_i32 = arith.constant 0 : i32
    %c0_i32_0 = arith.constant 0 : i32
    %c0_i32_1 = arith.constant 0 : i32
    return %c0_i32, %c0_i32_0 : i32, i32
  }
  func.func @transform_15(%arg0: i32) -> (i32, i32, i32) {
    %c0_i32 = arith.constant 0 : i32
    %c0_i32_0 = arith.constant 0 : i32
    %c0_i32_1 = arith.constant 0 : i32
    %c0_i32_2 = arith.constant 0 : i32
    return %c0_i32, %c0_i32_0, %c0_i32_1 : i32, i32, i32
  }
  func.func @transform_16(%arg0: i32) -> (i32, i32) {
    %c0_i32 = arith.constant 0 : i32
    %c0_i32_0 = arith.constant 0 : i32
    %c0_i32_1 = arith.constant 0 : i32
    return %c0_i32, %c0_i32_0 : i32, i32
  }
  func.func @transform_17(%arg0: i32) -> (i32, i32, i32) {
    %c0_i32 = arith.constant 0 : i32
    %c0_i32_0 = arith.constant 0 : i32
    %c0_i32_1 = arith.constant 0 : i32
    %c0_i32_2 = arith.constant 0 : i32
    return %c0_i32, %c0_i32_0, %c0_i32_1 : i32, i32, i32
  }
  func.func @transform_18(%arg0: i32) -> (i32, i32) {
    %c0_i32 = arith.constant 0 : i32
    %c0_i32_0 = arith.constant 0 : i32
    %c0_i32_1 = arith.constant 0 : i32
    return %c0_i32, %c0_i32_0 : i32, i32
  }
  func.func @transform_19(%arg0: i32) -> (i32, i32, i32) {
    %c0_i32 = arith.constant 0 : i32
    %c0_i32_0 = arith.constant 0 : i32
    %c0_i32_1 = arith.constant 0 : i32
    %c0_i32_2 = arith.constant 0 : i32
    return %c0_i32, %c0_i32_0, %c0_i32_1 : i32, i32, i32
  }
  func.func @transform_20(%arg0: i32) -> (i32, i32) {
    %c0_i32 = arith.constant 0 : i32
    %c0_i32_0 = arith.constant 0 : i32
    %c0_i32_1 = arith.constant 0 : i32
    return %c0_i32, %c0_i32_0 : i32, i32
  }
  func.func @transform_21(%arg0: i32) -> (i32, i32, i32) {
    %c0_i32 = arith.constant 0 : i32
    %c0_i32_0 = arith.constant 0 : i32
    %c0_i32_1 = arith.constant 0 : i32
    %c0_i32_2 = arith.constant 0 : i32
    return %c0_i32, %c0_i32_0, %c0_i32_1 : i32, i32, i32
  }
  func.func @transform_22(%arg0: i32) -> (i32, i32) {
    %c0_i32 = arith.constant 0 : i32
    %c0_i32_0 = arith.constant 0 : i32
    %c0_i32_1 = arith.constant 0 : i32
    return %c0_i32, %c0_i32_0 : i32, i32
  }
  func.func @transform_23(%arg0: i32) -> (i32, i32, i32) {
    %c0_i32 = arith.constant 0 : i32
    %c0_i32_0 = arith.constant 0 : i32
    %c0_i32_1 = arith.constant 0 : i32
    %c0_i32_2 = arith.constant 0 : i32
    return %c0_i32, %c0_i32_0, %c0_i32_1 : i32, i32, i32
  }
  func.func @transform_24(%arg0: i32) -> (i32, i32) {
    %c0_i32 = arith.constant 0 : i32
    %c0_i32_0 = arith.constant 0 : i32
    %c0_i32_1 = arith.constant 0 : i32
    return %c0_i32, %c0_i32_0 : i32, i32
  }
  func.func @transform_25(%arg0: i32) -> (i32, i32) {
    %c0_i32 = arith.constant 0 : i32
    %c0_i32_0 = arith.constant 0 : i32
    %c0_i32_1 = arith.constant 0 : i32
    return %c0_i32, %c0_i32_0 : i32, i32
  }
  func.func @transform_26(%arg0: i32) -> (i32, i32, i32) {
    %c0_i32 = arith.constant 0 : i32
    %c0_i32_0 = arith.constant 0 : i32
    %c0_i32_1 = arith.constant 0 : i32
    %c0_i32_2 = arith.constant 0 : i32
    return %c0_i32, %c0_i32_0, %c0_i32_1 : i32, i32, i32
  }
  func.func @transform_27(%arg0: i32) -> (i32, i32) {
    %c0_i32 = arith.constant 0 : i32
    %c0_i32_0 = arith.constant 0 : i32
    %c0_i32_1 = arith.constant 0 : i32
    return %c0_i32, %c0_i32_0 : i32, i32
  }
  func.func @transform_28(%arg0: i32) -> (i32, i32, i32) {
    %c0_i32 = arith.constant 0 : i32
    %c0_i32_0 = arith.constant 0 : i32
    %c0_i32_1 = arith.constant 0 : i32
    %c0_i32_2 = arith.constant 0 : i32
    return %c0_i32, %c0_i32_0, %c0_i32_1 : i32, i32, i32
  }
  func.func @transform_29(%arg0: i32) -> (i32, i32) {
    %c0_i32 = arith.constant 0 : i32
    %c0_i32_0 = arith.constant 0 : i32
    %c0_i32_1 = arith.constant 0 : i32
    return %c0_i32, %c0_i32_0 : i32, i32
  }
  func.func @transform_30(%arg0: i32) -> (i32, i32) {
    %c0_i32 = arith.constant 0 : i32
    %c0_i32_0 = arith.constant 0 : i32
    %c0_i32_1 = arith.constant 0 : i32
    return %c0_i32, %c0_i32_0 : i32, i32
  }
  func.func @transform_31(%arg0: i32) -> (i32, i32, i32) {
    %c0_i32 = arith.constant 0 : i32
    %c0_i32_0 = arith.constant 0 : i32
    %c0_i32_1 = arith.constant 0 : i32
    return %arg0, %c0_i32, %c0_i32_0 : i32, i32, i32
  }
}

</mosaic_0001>

<llo_original>
// kernel: forward.1
$region0: #{forward.1}
  #allocation0 [shape = 'u32[]', space=smem, size = 0x4, offset = 0x4, fixed_abs, tag = 'smem constant byte address 0x4 - core index']
  #allocation1 [shape = 'u32[144,128]{1,0:T(1,128)}', space=vmem, size = 0x12000, scoped, tag = 'internal scratch']
  #allocation2 [shape = 'f32[1,18,64]{2,1,0:T(8,128)}', space=vmem, size = 0x3000, scoped, tag = 'scratch operand']
  #allocation3 [shape = 'f32[1,10,64]{2,1,0:T(8,128)}', space=vmem, size = 0x2000, scoped, tag = 'scratch operand']
  #allocation4 [shape = 'f32[1,6,64]{2,1,0:T(8,128)}', space=vmem, size = 0x1000, scoped, tag = 'scratch operand']
  #allocation5 [shape = 'f32[1,6,32]{2,1,0:T(8,128)}', space=vmem, size = 0x1000, scoped, tag = 'scratch operand']
  #allocation6 [shape = 'f32[1,10,32]{2,1,0:T(8,128)}', space=vmem, size = 0x2000, scoped, tag = 'scratch operand']
  %s0 = inlined_call_operand.smem [shape: u32[32], index: -1, kind: input, shape index: {}]
  %s1 = sld [smem:[%s0]]
  %s2 = scalar_lea.smem %s0, 1
  %s3 = sld [smem:[%s2]]
  %s4 = scalar_lea.smem %s0, 2
  %s5 = sld [smem:[%s4]]
  %s6 = scalar_lea.smem %s0, 3
  %s7 = sld [smem:[%s6]]
  %s8 = scalar_lea.smem %s0, 4
  %s9 = sld [smem:[%s8]]
  %s10 = scalar_lea.smem %s0, 5
  %s11 = sld [smem:[%s10]]
  %s12 = scalar_lea.smem %s0, 6
  %s13 = sld [smem:[%s12]]
  %s14 = scalar_lea.smem %s0, 7
  %s15 = sld [smem:[%s14]]
  %s16 = scalar_lea.smem %s0, 8
  %s17 = sld [smem:[%s16]]
  %s18 = scalar_lea.smem %s0, 9
  %s19 = sld [smem:[%s18]]
  %s20 = scalar_lea.smem %s0, 10
  %s21 = sld [smem:[%s20]]
  %s22 = scalar_lea.smem %s0, 11
  %s23 = sld [smem:[%s22]]
  %s24 = scalar_lea.smem %s0, 12
  %s25 = sld [smem:[%s24]]
  %s26 = scalar_lea.smem %s0, 13
  %s27 = sld [smem:[%s26]]
  %s28 = scalar_lea.smem %s0, 14
  %s29 = sld [smem:[%s28]]
  %s30 = scalar_lea.smem %s0, 15
  %s31 = sld [smem:[%s30]]
  %s32 = scalar_lea.smem %s0, 16
  %s33 = sld [smem:[%s32]]
  %s34 = scalar_lea.smem %s0, 17
  %s35 = sld [smem:[%s34]]
  %s36 = scalar_lea.smem %s0, 18
  %s37 = sld [smem:[%s36]]
  %s38 = scalar_lea.smem %s0, 19
  %s39 = sld [smem:[%s38]]
  %s40 = scalar_lea.smem %s0, 20
  %s41 = sld [smem:[%s40]]
  %s42 = scalar_lea.smem %s0, 21
  %s43 = sld [smem:[%s42]]
  %s44 = scalar_lea.smem %s0, 22
  %s45 = sld [smem:[%s44]]
  %s46 = scalar_lea.smem %s0, 23
  %s47 = sld [smem:[%s46]]
  %s48 = scalar_lea.smem %s0, 24
  %s49 = sld [smem:[%s48]]
  %s50 = scalar_lea.smem %s0, 25
  %s51 = sld [smem:[%s50]]
  %s52 = scalar_lea.smem %s0, 26
  %s53 = sld [smem:[%s52]]
  %s54 = scalar_lea.smem %s0, 27
  %s55 = sld [smem:[%s54]]
  %s56 = scalar_lea.smem %s0, 28
  %s57 = sld [smem:[%s56]]
  %s58 = scalar_lea.smem %s0, 29
  %s59 = sld [smem:[%s58]]
  %s60 = scalar_lea.smem %s0, 30
  %s61 = sld [smem:[%s60]]
  %s62 = scalar_lea.smem %s0, 31
  %s63 = sld [smem:[%s62]]
  %s64 = sld [smem:[#allocation0]]
  $region241: #{forward.1} parent=0
    _
  %s66 = ssub.s32 1, %s64
  %s67 = scalar_select 0, %s66, %s64
  $region1: #{forward.1} parent=0
    #allocation7 [shape = 'u8[98304]{0}', space=vmem, size = 0x18000, scoped, tag = 'input window, operand 1, single buffered']
    #allocation8 [shape = 's32[2]{0}', space=sflag, size = 0x8, scoped, tag = 'scoped memory for forward.1']
    #allocation9 [shape = 'u8[512]{0}', space=vmem, size = 0x400, scoped, tag = 'input window, operand 2, single buffered']
    #allocation10 [shape = 's32[1]{0}', space=sflag, size = 0x4, scoped, tag = 'scoped memory for forward.1']
    #allocation11 [shape = 'u8[98304]{0}', space=vmem, size = 0x18000, scoped, tag = 'input window, operand 3, single buffered']
    #allocation12 [shape = 'u8[512]{0}', space=vmem, size = 0x400, scoped, tag = 'input window, operand 4, single buffered']
    #allocation13 [shape = 's32[1]{0}', space=sflag, size = 0x4, scoped, tag = 'scoped memory for forward.1']
    #allocation14 [shape = 'u8[98304]{0}', space=vmem, size = 0x18000, scoped, tag = 'input window, operand 5, single buffered']
    #allocation15 [shape = 'u8[512]{0}', space=vmem, size = 0x400, scoped, tag = 'input window, operand 6, single buffered']
    #allocation16 [shape = 's32[1]{0}', space=sflag, size = 0x4, scoped, tag = 'scoped memory for forward.1']
    #allocation17 [shape = 'u8[98304]{0}', space=vmem, size = 0x18000, scoped, tag = 'input window, operand 7, single buffered']
    #allocation18 [shape = 'u8[512]{0}', space=vmem, size = 0x400, scoped, tag = 'input window, operand 8, single buffered']
    #allocation19 [shape = 's32[1]{0}', space=sflag, size = 0x4, scoped, tag = 'scoped memory for forward.1']
    #allocation20 [shape = 'u8[98304]{0}', space=vmem, size = 0x18000, scoped, tag = 'input window, operand 9, single buffered']
    #allocation21 [shape = 'u8[512]{0}', space=vmem, size = 0x400, scoped, tag = 'input window, operand 10, single buffered']
    #allocation22 [shape = 's32[1]{0}', space=sflag, size = 0x4, scoped, tag = 'scoped memory for forward.1']
    #allocation23 [shape = 'u8[98304]{0}', space=vmem, size = 0x18000, scoped, tag = 'input window, operand 11, single buffered']
    #allocation24 [shape = 'u8[512]{0}', space=vmem, size = 0x400, scoped, tag = 'input window, operand 12, single buffered']
    #allocation25 [shape = 's32[1]{0}', space=sflag, size = 0x4, scoped, tag = 'scoped memory for forward.1']
    #allocation26 [shape = 'u8[98304]{0}', space=vmem, size = 0x18000, scoped, tag = 'input window, operand 13, single buffered']
    #allocation27 [shape = 'u8[512]{0}', space=vmem, size = 0x400, scoped, tag = 'input window, operand 14, single buffered']
    #allocation28 [shape = 's32[1]{0}', space=sflag, size = 0x4, scoped, tag = 'scoped memory for forward.1']
    #allocation29 [shape = 'u8[98304]{0}', space=vmem, size = 0x18000, scoped, tag = 'input window, operand 15, single buffered']
    #allocation30 [shape = 'u8[512]{0}', space=vmem, size = 0x400, scoped, tag = 'input window, operand 16, single buffered']
    #allocation31 [shape = 's32[1]{0}', space=sflag, size = 0x4, scoped, tag = 'scoped memory for forward.1']
    #allocation32 [shape = 'u8[98304]{0}', space=vmem, size = 0x18000, scoped, tag = 'input window, operand 17, single buffered']
    #allocation33 [shape = 'u8[512]{0}', space=vmem, size = 0x400, scoped, tag = 'input window, operand 18, single buffered']
    #allocation34 [shape = 's32[1]{0}', space=sflag, size = 0x4, scoped, tag = 'scoped memory for forward.1']
    #allocation35 [shape = 'u8[98304]{0}', space=vmem, size = 0x18000, scoped, tag = 'input window, operand 19, single buffered']
    #allocation36 [shape = 'u8[49152]{0}', space=vmem, size = 0xc000, scoped, tag = 'input window, operand 23, single buffered']
    #allocation37 [shape = 's32[1]{0}', space=sflag, size = 0x4, scoped, tag = 'scoped memory for forward.1']
    #allocation38 [shape = 'u8[49152]{0}', space=vmem, size = 0xc000, scoped, tag = 'input window, operand 28, single buffered']
    %68 = vsyncpa [#allocation8], 0
    %69 = vsyncpa [#allocation10], 0
    %70 = vsyncpa [#allocation13], 0
    %71 = vsyncpa [#allocation16], 0
    %72 = vsyncpa [#allocation19], 0
    %73 = vsyncpa [#allocation22], 0
    %74 = vsyncpa [#allocation25], 0
    %75 = vsyncpa [#allocation28], 0
    %76 = vsyncpa [#allocation31], 0
    %77 = vsyncpa [#allocation34], 0
    %78 = vsyncpa [#allocation37], 0
    loop: start=0, step=1, limit=4
    $region2: #{forward.1} parent=1 // loop_pre_header
      _
    $region3: #{forward.1} parent=1 // loop_header
      %s80 = sphi 0, %s84
      %p81 = scmp.ge.s32.totalorder %s80, 4
      %s90 = sphi 0, %s92
      %s93 = sphi 0, %s90
      %s94 = sphi 0, %s93
      %s110 = sphi 0, %s94
      %s114 = sphi 0, %s114
      %s116 = sphi 0, %s114
      %s117 = sphi 0, %s116
      %s131 = sphi 0, %s117
      %s135 = sphi 0, %s135
      %s137 = sphi 0, %s135
      %s138 = sphi 0, %s137
      %s152 = sphi 0, %s138
      %s156 = sphi 0, %s156
      %s158 = sphi 0, %s156
      %s159 = sphi 0, %s158
      %s173 = sphi 0, %s159
      %s177 = sphi 0, %s177
      %s179 = sphi 0, %s177
      %s180 = sphi 0, %s179
      %s194 = sphi 0, %s180
      %s198 = sphi 0, %s198
      %s200 = sphi 0, %s198
      %s201 = sphi 0, %s200
      %s215 = sphi 0, %s201
      %s219 = sphi 0, %s219
      %s221 = sphi 0, %s219
      %s222 = sphi 0, %s221
      %s236 = sphi 0, %s222
      %s240 = sphi 0, %s240
      %s242 = sphi 0, %s240
      %s243 = sphi 0, %s242
      %s257 = sphi 0, %s243
      %s261 = sphi 0, %s261
      %s263 = sphi 0, %s261
      %s264 = sphi 0, %s263
      %s278 = sphi 0, %s264
      %s282 = sphi 0, %s282
      %s284 = sphi 0, %s282
      %s285 = sphi 0, %s284
      %s299 = sphi 0, %s285
      %s303 = sphi 0, %s303
      %s305 = sphi 0, %s303
      %s306 = sphi 0, %s305
      %s320 = sphi 0, %s306
      %s324 = sphi 0, %s324
      %s326 = sphi 0, %s324
      %s327 = sphi 0, %s326
      %s341 = sphi 0, %s327
      %s345 = sphi 0, %s345
      %s347 = sphi 0, %s345
      %s348 = sphi 0, %s347
      %s362 = sphi 0, %s348
      %s366 = sphi 0, %s366
      %s368 = sphi 0, %s366
      %s369 = sphi 0, %s368
      %s383 = sphi 0, %s369
      %s387 = sphi 0, %s387
      %s389 = sphi 0, %s387
      %s390 = sphi 0, %s389
      %s404 = sphi 0, %s390
      %s408 = sphi 0, %s408
      %s410 = sphi 0, %s408
      %s411 = sphi 0, %s410
      %s425 = sphi 0, %s411
      %s429 = sphi 0, %s429
      %s431 = sphi 0, %s429
      %s432 = sphi 0, %s431
      %s446 = sphi 0, %s432
      %s450 = sphi 0, %s450
      %s452 = sphi 0, %s450
      %s453 = sphi 0, %s452
      %s467 = sphi 0, %s453
      %s471 = sphi 0, %s471
      %s473 = sphi 0, %s471
      %s474 = sphi 0, %s473
      %s488 = sphi 0, %s474
      %s492 = sphi 0, %s492
      %s494 = sphi 0, %s492
      %s495 = sphi 0, %s494
      %s509 = sphi 0, %s495
      %s513 = sphi 0, %s513
      %s515 = sphi 0, %s513
      %s516 = sphi 0, %s515
      %s530 = sphi 0, %s516
      %s534 = sphi 0, %s534
      %s536 = sphi 0, %s534
      %s537 = sphi 0, %s536
      %s551 = sphi 0, %s537
      %s555 = sphi 0, %s555
      %s557 = sphi 0, %s555
      %s558 = sphi 0, %s557
      %s572 = sphi 0, %s558
      %s576 = sphi 0, %s576
      %s578 = sphi 0, %s576
      %s579 = sphi 0, %s578
      %s593 = sphi 0, %s579
      %s597 = sphi 0, %s597
      %s599 = sphi 0, %s597
      %s600 = sphi 0, %s599
      %s614 = sphi 0, %s600
      %s618 = sphi 0, %s618
      %s620 = sphi 0, %s618
      %s621 = sphi 0, %s620
      %s635 = sphi 0, %s621
      %s639 = sphi 0, %s639
      %s641 = sphi 0, %s639
      %s642 = sphi 0, %s641
      %s656 = sphi 0, %s642
      %s660 = sphi 0, %s660
      %s662 = sphi 0, %s660
      %s663 = sphi 0, %s662
      %s677 = sphi 0, %s663
      %s681 = sphi 0, %s681
      %s683 = sphi 0, %s681
      %s684 = sphi 0, %s683
      %s698 = sphi 0, %s684
      %s702 = sphi 0, %s702
      %s704 = sphi 0, %s702
      %s705 = sphi 0, %s704
      %s719 = sphi 0, %s705
      %s723 = sphi 0, %s723
      %s725 = sphi 0, %s723
      %s726 = sphi 0, %s725
      %s740 = sphi 0, %s726
      %s746 = sphi 0, %s748
      %s749 = sphi 0, %s746
      %s750 = sphi 0, %s749
      %s766 = sphi 0, %s750
    $region4: #{forward.1} parent=1 // loop_header_branch
      %83 = sbr.rel (%p81) target = $region8
    $region5: #{forward.1} parent=1 // loop_body
      %s85 = ssub.s32 %s80, 1
      %s86 = ssub.s32 %s80, 2
      %s87 = sadd.s32 %s80, 1
      %s88 = ssub.s32 %s80, %s87
      %p89 = scmp.eq.s32.totalorder %s88, 0
      %s91 = sadd.s32 %s90, 1
      %s92 = scalar_select %p89, %s90, %s91
      %p95 = pneg %p89
      %p96 = scmp.eq.s32.totalorder %s80, 1
      %p97 = por %p95, %p96
      %p98 = scmp.ne.s32.totalorder %s90, %s93
      %p99 = scmp.eq.s32.totalorder %s80, 0
      %p100 = por %p98, %p99
      %p101 = scmp.ne.s32.totalorder %s90, %s93
      %p102 = scmp.eq.s32.totalorder %s85, 1
      %p103 = por %p101, %p102
      %p104 = scmp.ne.s32.totalorder %s93, %s94
      %p105 = scmp.eq.s32.totalorder %s85, 0
      %p106 = por %p104, %p105
      %p107 = scmp.ne.s32.totalorder %s93, %s94
      %p108 = scmp.eq.s32.totalorder %s86, 1
      %p109 = por %p107, %p108
      %p111 = scmp.ne.s32.totalorder %s94, %s110
      %p112 = scmp.eq.s32.totalorder %s86, 0
      %p113 = por %p111, %p112
      %s115 = sadd.s32 %s114, 1
      %p118 = scmp.eq.s32.totalorder %s80, 1
      %p119 = scmp.ne.s32.totalorder %s114, %s116
      %p120 = scmp.eq.s32.totalorder %s80, 0
      %p121 = por %p119, %p120
      %p122 = scmp.ne.s32.totalorder %s114, %s116
      %p123 = scmp.eq.s32.totalorder %s85, 1
      %p124 = por %p122, %p123
      %p125 = scmp.ne.s32.totalorder %s116, %s117
      %p126 = scmp.eq.s32.totalorder %s85, 0
      %p127 = por %p125, %p126
      %p128 = scmp.ne.s32.totalorder %s116, %s117
      %p129 = scmp.eq.s32.totalorder %s86, 1
      %p130 = por %p128, %p129
      %p132 = scmp.ne.s32.totalorder %s117, %s131
      %p133 = scmp.eq.s32.totalorder %s86, 0
      %p134 = por %p132, %p133
      %s136 = sadd.s32 %s135, 1
      %p139 = scmp.eq.s32.totalorder %s80, 1
      %p140 = scmp.ne.s32.totalorder %s135, %s137
      %p141 = scmp.eq.s32.totalorder %s80, 0
      %p142 = por %p140, %p141
      %p143 = scmp.ne.s32.totalorder %s135, %s137
      %p144 = scmp.eq.s32.totalorder %s85, 1
      %p145 = por %p143, %p144
      %p146 = scmp.ne.s32.totalorder %s137, %s138
      %p147 = scmp.eq.s32.totalorder %s85, 0
      %p148 = por %p146, %p147
      %p149 = scmp.ne.s32.totalorder %s137, %s138
      %p150 = scmp.eq.s32.totalorder %s86, 1
      %p151 = por %p149, %p150
      %p153 = scmp.ne.s32.totalorder %s138, %s152
      %p154 = scmp.eq.s32.totalorder %s86, 0
      %p155 = por %p153, %p154
      %s157 = sadd.s32 %s156, 1
      %p160 = scmp.eq.s32.totalorder %s80, 1
      %p161 = scmp.ne.s32.totalorder %s156, %s158
      %p162 = scmp.eq.s32.totalorder %s80, 0
      %p163 = por %p161, %p162
      %p164 = scmp.ne.s32.totalorder %s156, %s158
      %p165 = scmp.eq.s32.totalorder %s85, 1
      %p166 = por %p164, %p165
      %p167 = scmp.ne.s32.totalorder %s158, %s159
      %p168 = scmp.eq.s32.totalorder %s85, 0
      %p169 = por %p167, %p168
      %p170 = scmp.ne.s32.totalorder %s158, %s159
      %p171 = scmp.eq.s32.totalorder %s86, 1
      %p172 = por %p170, %p171
      %p174 = scmp.ne.s32.totalorder %s159, %s173
      %p175 = scmp.eq.s32.totalorder %s86, 0
      %p176 = por %p174, %p175
      %s178 = sadd.s32 %s177, 1
      %p181 = scmp.eq.s32.totalorder %s80, 1
      %p182 = scmp.ne.s32.totalorder %s177, %s179
      %p183 = scmp.eq.s32.totalorder %s80, 0
      %p184 = por %p182, %p183
      %p185 = scmp.ne.s32.totalorder %s177, %s179
      %p186 = scmp.eq.s32.totalorder %s85, 1
      %p187 = por %p185, %p186
      %p188 = scmp.ne.s32.totalorder %s179, %s180
      %p189 = scmp.eq.s32.totalorder %s85, 0
      %p190 = por %p188, %p189
      %p191 = scmp.ne.s32.totalorder %s179, %s180
      %p192 = scmp.eq.s32.totalorder %s86, 1
      %p193 = por %p191, %p192
      %p195 = scmp.ne.s32.totalorder %s180, %s194
      %p196 = scmp.eq.s32.totalorder %s86, 0
      %p197 = por %p195, %p196
      %s199 = sadd.s32 %s198, 1
      %p202 = scmp.eq.s32.totalorder %s80, 1
      %p203 = scmp.ne.s32.totalorder %s198, %s200
      %p204 = scmp.eq.s32.totalorder %s80, 0
      %p205 = por %p203, %p204
      %p206 = scmp.ne.s32.totalorder %s198, %s200
      %p207 = scmp.eq.s32.totalorder %s85, 1
      %p208 = por %p206, %p207
      %p209 = scmp.ne.s32.totalorder %s200, %s201
      %p210 = scmp.eq.s32.totalorder %s85, 0
      %p211 = por %p209, %p210
      %p212 = scmp.ne.s32.totalorder %s200, %s201
      %p213 = scmp.eq.s32.totalorder %s86, 1
      %p214 = por %p212, %p213
      %p216 = scmp.ne.s32.totalorder %s201, %s215
      %p217 = scmp.eq.s32.totalorder %s86, 0
      %p218 = por %p216, %p217
      %s220 = sadd.s32 %s219, 1
      %p223 = scmp.eq.s32.totalorder %s80, 1
      %p224 = scmp.ne.s32.totalorder %s219, %s221
      %p225 = scmp.eq.s32.totalorder %s80, 0
      %p226 = por %p224, %p225
      %p227 = scmp.ne.s32.totalorder %s219, %s221
      %p228 = scmp.eq.s32.totalorder %s85, 1
      %p229 = por %p227, %p228
      %p230 = scmp.ne.s32.totalorder %s221, %s222
      %p231 = scmp.eq.s32.totalorder %s85, 0
      %p232 = por %p230, %p231
      %p233 = scmp.ne.s32.totalorder %s221, %s222
      %p234 = scmp.eq.s32.totalorder %s86, 1
      %p235 = por %p233, %p234
      %p237 = scmp.ne.s32.totalorder %s222, %s236
      %p238 = scmp.eq.s32.totalorder %s86, 0
      %p239 = por %p237, %p238
      %s241 = sadd.s32 %s240, 1
      %p244 = scmp.eq.s32.totalorder %s80, 1
      %p245 = scmp.ne.s32.totalorder %s240, %s242
      %p246 = scmp.eq.s32.totalorder %s80, 0
      %p247 = por %p245, %p246
      %p248 = scmp.ne.s32.totalorder %s240, %s242
      %p249 = scmp.eq.s32.totalorder %s85, 1
      %p250 = por %p248, %p249
      %p251 = scmp.ne.s32.totalorder %s242, %s243
      %p252 = scmp.eq.s32.totalorder %s85, 0
      %p253 = por %p251, %p252
      %p254 = scmp.ne.s32.totalorder %s242, %s243
      %p255 = scmp.eq.s32.totalorder %s86, 1
      %p256 = por %p254, %p255
      %p258 = scmp.ne.s32.totalorder %s243, %s257
      %p259 = scmp.eq.s32.totalorder %s86, 0
      %p260 = por %p258, %p259
      %s262 = sadd.s32 %s261, 1
      %p265 = scmp.eq.s32.totalorder %s80, 1
      %p266 = scmp.ne.s32.totalorder %s261, %s263
      %p267 = scmp.eq.s32.totalorder %s80, 0
      %p268 = por %p266, %p267
      %p269 = scmp.ne.s32.totalorder %s261, %s263
      %p270 = scmp.eq.s32.totalorder %s85, 1
      %p271 = por %p269, %p270
      %p272 = scmp.ne.s32.totalorder %s263, %s264
      %p273 = scmp.eq.s32.totalorder %s85, 0
      %p274 = por %p272, %p273
      %p275 = scmp.ne.s32.totalorder %s263, %s264
      %p276 = scmp.eq.s32.totalorder %s86, 1
      %p277 = por %p275, %p276
      %p279 = scmp.ne.s32.totalorder %s264, %s278
      %p280 = scmp.eq.s32.totalorder %s86, 0
      %p281 = por %p279, %p280
      %s283 = sadd.s32 %s282, 1
      %p286 = scmp.eq.s32.totalorder %s80, 1
      %p287 = scmp.ne.s32.totalorder %s282, %s284
      %p288 = scmp.eq.s32.totalorder %s80, 0
      %p289 = por %p287, %p288
      %p290 = scmp.ne.s32.totalorder %s282, %s284
      %p291 = scmp.eq.s32.totalorder %s85, 1
      %p292 = por %p290, %p291
      %p293 = scmp.ne.s32.totalorder %s284, %s285
      %p294 = scmp.eq.s32.totalorder %s85, 0
      %p295 = por %p293, %p294
      %p296 = scmp.ne.s32.totalorder %s284, %s285
      %p297 = scmp.eq.s32.totalorder %s86, 1
      %p298 = por %p296, %p297
      %p300 = scmp.ne.s32.totalorder %s285, %s299
      %p301 = scmp.eq.s32.totalorder %s86, 0
      %p302 = por %p300, %p301
      %s304 = sadd.s32 %s303, 1
      %p307 = scmp.eq.s32.totalorder %s80, 1
      %p308 = scmp.ne.s32.totalorder %s303, %s305
      %p309 = scmp.eq.s32.totalorder %s80, 0
      %p310 = por %p308, %p309
      %p311 = scmp.ne.s32.totalorder %s303, %s305
      %p312 = scmp.eq.s32.totalorder %s85, 1
      %p313 = por %p311, %p312
      %p314 = scmp.ne.s32.totalorder %s305, %s306
      %p315 = scmp.eq.s32.totalorder %s85, 0
      %p316 = por %p314, %p315
      %p317 = scmp.ne.s32.totalorder %s305, %s306
      %p318 = scmp.eq.s32.totalorder %s86, 1
      %p319 = por %p317, %p318
      %p321 = scmp.ne.s32.totalorder %s306, %s320
      %p322 = scmp.eq.s32.totalorder %s86, 0
      %p323 = por %p321, %p322
      %s325 = sadd.s32 %s324, 1
      %p328 = scmp.eq.s32.totalorder %s80, 1
      %p329 = scmp.ne.s32.totalorder %s324, %s326
      %p330 = scmp.eq.s32.totalorder %s80, 0
      %p331 = por %p329, %p330
      %p332 = scmp.ne.s32.totalorder %s324, %s326
      %p333 = scmp.eq.s32.totalorder %s85, 1
      %p334 = por %p332, %p333
      %p335 = scmp.ne.s32.totalorder %s326, %s327
      %p336 = scmp.eq.s32.totalorder %s85, 0
      %p337 = por %p335, %p336
      %p338 = scmp.ne.s32.totalorder %s326, %s327
      %p339 = scmp.eq.s32.totalorder %s86, 1
      %p340 = por %p338, %p339
      %p342 = scmp.ne.s32.totalorder %s327, %s341
      %p343 = scmp.eq.s32.totalorder %s86, 0
      %p344 = por %p342, %p343
      %s346 = sadd.s32 %s345, 1
      %p349 = scmp.eq.s32.totalorder %s80, 1
      %p350 = scmp.ne.s32.totalorder %s345, %s347
      %p351 = scmp.eq.s32.totalorder %s80, 0
      %p352 = por %p350, %p351
      %p353 = scmp.ne.s32.totalorder %s345, %s347
      %p354 = scmp.eq.s32.totalorder %s85, 1
      %p355 = por %p353, %p354
      %p356 = scmp.ne.s32.totalorder %s347, %s348
      %p357 = scmp.eq.s32.totalorder %s85, 0
      %p358 = por %p356, %p357
      %p359 = scmp.ne.s32.totalorder %s347, %s348
      %p360 = scmp.eq.s32.totalorder %s86, 1
      %p361 = por %p359, %p360
      %p363 = scmp.ne.s32.totalorder %s348, %s362
      %p364 = scmp.eq.s32.totalorder %s86, 0
      %p365 = por %p363, %p364
      %s367 = sadd.s32 %s366, 1
      %p370 = scmp.eq.s32.totalorder %s80, 1
      %p371 = scmp.ne.s32.totalorder %s366, %s368
      %p372 = scmp.eq.s32.totalorder %s80, 0
      %p373 = por %p371, %p372
      %p374 = scmp.ne.s32.totalorder %s366, %s368
      %p375 = scmp.eq.s32.totalorder %s85, 1
      %p376 = por %p374, %p375
      %p377 = scmp.ne.s32.totalorder %s368, %s369
      %p378 = scmp.eq.s32.totalorder %s85, 0
      %p379 = por %p377, %p378
      %p380 = scmp.ne.s32.totalorder %s368, %s369
      %p381 = scmp.eq.s32.totalorder %s86, 1
      %p382 = por %p380, %p381
      %p384 = scmp.ne.s32.totalorder %s369, %s383
      %p385 = scmp.eq.s32.totalorder %s86, 0
      %p386 = por %p384, %p385
      %s388 = sadd.s32 %s387, 1
      %p391 = scmp.eq.s32.totalorder %s80, 1
      %p392 = scmp.ne.s32.totalorder %s387, %s389
      %p393 = scmp.eq.s32.totalorder %s80, 0
      %p394 = por %p392, %p393
      %p395 = scmp.ne.s32.totalorder %s387, %s389
      %p396 = scmp.eq.s32.totalorder %s85, 1
      %p397 = por %p395, %p396
      %p398 = scmp.ne.s32.totalorder %s389, %s390
      %p399 = scmp.eq.s32.totalorder %s85, 0
      %p400 = por %p398, %p399
      %p401 = scmp.ne.s32.totalorder %s389, %s390
      %p402 = scmp.eq.s32.totalorder %s86, 1
      %p403 = por %p401, %p402
      %p405 = scmp.ne.s32.totalorder %s390, %s404
      %p406 = scmp.eq.s32.totalorder %s86, 0
      %p407 = por %p405, %p406
      %s409 = sadd.s32 %s408, 1
      %p412 = scmp.eq.s32.totalorder %s80, 1
      %p413 = scmp.ne.s32.totalorder %s408, %s410
      %p414 = scmp.eq.s32.totalorder %s80, 0
      %p415 = por %p413, %p414
      %p416 = scmp.ne.s32.totalorder %s408, %s410
      %p417 = scmp.eq.s32.totalorder %s85, 1
      %p418 = por %p416, %p417
      %p419 = scmp.ne.s32.totalorder %s410, %s411
      %p420 = scmp.eq.s32.totalorder %s85, 0
      %p421 = por %p419, %p420
      %p422 = scmp.ne.s32.totalorder %s410, %s411
      %p423 = scmp.eq.s32.totalorder %s86, 1
      %p424 = por %p422, %p423
      %p426 = scmp.ne.s32.totalorder %s411, %s425
      %p427 = scmp.eq.s32.totalorder %s86, 0
      %p428 = por %p426, %p427
      %s430 = sadd.s32 %s429, 1
      %p433 = scmp.eq.s32.totalorder %s80, 1
      %p434 = scmp.ne.s32.totalorder %s429, %s431
      %p435 = scmp.eq.s32.totalorder %s80, 0
      %p436 = por %p434, %p435
      %p437 = scmp.ne.s32.totalorder %s429, %s431
      %p438 = scmp.eq.s32.totalorder %s85, 1
      %p439 = por %p437, %p438
      %p440 = scmp.ne.s32.totalorder %s431, %s432
      %p441 = scmp.eq.s32.totalorder %s85, 0
      %p442 = por %p440, %p441
      %p443 = scmp.ne.s32.totalorder %s431, %s432
      %p444 = scmp.eq.s32.totalorder %s86, 1
      %p445 = por %p443, %p444
      %p447 = scmp.ne.s32.totalorder %s432, %s446
      %p448 = scmp.eq.s32.totalorder %s86, 0
      %p449 = por %p447, %p448
      %s451 = sadd.s32 %s450, 1
      %p454 = scmp.eq.s32.totalorder %s80, 1
      %p455 = scmp.ne.s32.totalorder %s450, %s452
      %p456 = scmp.eq.s32.totalorder %s80, 0
      %p457 = por %p455, %p456
      %p458 = scmp.ne.s32.totalorder %s450, %s452
      %p459 = scmp.eq.s32.totalorder %s85, 1
      %p460 = por %p458, %p459
      %p461 = scmp.ne.s32.totalorder %s452, %s453
      %p462 = scmp.eq.s32.totalorder %s85, 0
      %p463 = por %p461, %p462
      %p464 = scmp.ne.s32.totalorder %s452, %s453
      %p465 = scmp.eq.s32.totalorder %s86, 1
      %p466 = por %p464, %p465
      %p468 = scmp.ne.s32.totalorder %s453, %s467
      %p469 = scmp.eq.s32.totalorder %s86, 0
      %p470 = por %p468, %p469
      %s472 = sadd.s32 %s471, 1
      %p475 = scmp.eq.s32.totalorder %s80, 1
      %p476 = scmp.ne.s32.totalorder %s471, %s473
      %p477 = scmp.eq.s32.totalorder %s80, 0
      %p478 = por %p476, %p477
      %p479 = scmp.ne.s32.totalorder %s471, %s473
      %p480 = scmp.eq.s32.totalorder %s85, 1
      %p481 = por %p479, %p480
      %p482 = scmp.ne.s32.totalorder %s473, %s474
      %p483 = scmp.eq.s32.totalorder %s85, 0
      %p484 = por %p482, %p483
      %p485 = scmp.ne.s32.totalorder %s473, %s474
      %p486 = scmp.eq.s32.totalorder %s86, 1
      %p487 = por %p485, %p486
      %p489 = scmp.ne.s32.totalorder %s474, %s488
      %p490 = scmp.eq.s32.totalorder %s86, 0
      %p491 = por %p489, %p490
      %s493 = sadd.s32 %s492, 1
      %p496 = scmp.eq.s32.totalorder %s80, 1
      %p497 = scmp.ne.s32.totalorder %s492, %s494
      %p498 = scmp.eq.s32.totalorder %s80, 0
      %p499 = por %p497, %p498
      %p500 = scmp.ne.s32.totalorder %s492, %s494
      %p501 = scmp.eq.s32.totalorder %s85, 1
      %p502 = por %p500, %p501
      %p503 = scmp.ne.s32.totalorder %s494, %s495
      %p504 = scmp.eq.s32.totalorder %s85, 0
      %p505 = por %p503, %p504
      %p506 = scmp.ne.s32.totalorder %s494, %s495
      %p507 = scmp.eq.s32.totalorder %s86, 1
      %p508 = por %p506, %p507
      %p510 = scmp.ne.s32.totalorder %s495, %s509
      %p511 = scmp.eq.s32.totalorder %s86, 0
      %p512 = por %p510, %p511
      %s514 = sadd.s32 %s513, 1
      %p517 = scmp.eq.s32.totalorder %s80, 1
      %p518 = scmp.ne.s32.totalorder %s513, %s515
      %p519 = scmp.eq.s32.totalorder %s80, 0
      %p520 = por %p518, %p519
      %p521 = scmp.ne.s32.totalorder %s513, %s515
      %p522 = scmp.eq.s32.totalorder %s85, 1
      %p523 = por %p521, %p522
      %p524 = scmp.ne.s32.totalorder %s515, %s516
      %p525 = scmp.eq.s32.totalorder %s85, 0
      %p526 = por %p524, %p525
      %p527 = scmp.ne.s32.totalorder %s515, %s516
      %p528 = scmp.eq.s32.totalorder %s86, 1
      %p529 = por %p527, %p528
      %p531 = scmp.ne.s32.totalorder %s516, %s530
      %p532 = scmp.eq.s32.totalorder %s86, 0
      %p533 = por %p531, %p532
      %s535 = sadd.s32 %s534, 1
      %p538 = scmp.eq.s32.totalorder %s80, 1
      %p539 = scmp.ne.s32.totalorder %s534, %s536
      %p540 = scmp.eq.s32.totalorder %s80, 0
      %p541 = por %p539, %p540
      %p542 = scmp.ne.s32.totalorder %s534, %s536
      %p543 = scmp.eq.s32.totalorder %s85, 1
      %p544 = por %p542, %p543
      %p545 = scmp.ne.s32.totalorder %s536, %s537
      %p546 = scmp.eq.s32.totalorder %s85, 0
      %p547 = por %p545, %p546
      %p548 = scmp.ne.s32.totalorder %s536, %s537
      %p549 = scmp.eq.s32.totalorder %s86, 1
      %p550 = por %p548, %p549
      %p552 = scmp.ne.s32.totalorder %s537, %s551
      %p553 = scmp.eq.s32.totalorder %s86, 0
      %p554 = por %p552, %p553
      %s556 = sadd.s32 %s555, 1
      %p559 = scmp.eq.s32.totalorder %s80, 1
      %p560 = scmp.ne.s32.totalorder %s555, %s557
      %p561 = scmp.eq.s32.totalorder %s80, 0
      %p562 = por %p560, %p561
      %p563 = scmp.ne.s32.totalorder %s555, %s557
      %p564 = scmp.eq.s32.totalorder %s85, 1
      %p565 = por %p563, %p564
      %p566 = scmp.ne.s32.totalorder %s557, %s558
      %p567 = scmp.eq.s32.totalorder %s85, 0
      %p568 = por %p566, %p567
      %p569 = scmp.ne.s32.totalorder %s557, %s558
      %p570 = scmp.eq.s32.totalorder %s86, 1
      %p571 = por %p569, %p570
      %p573 = scmp.ne.s32.totalorder %s558, %s572
      %p574 = scmp.eq.s32.totalorder %s86, 0
      %p575 = por %p573, %p574
      %s577 = sadd.s32 %s576, 1
      %p580 = scmp.eq.s32.totalorder %s80, 1
      %p581 = scmp.ne.s32.totalorder %s576, %s578
      %p582 = scmp.eq.s32.totalorder %s80, 0
      %p583 = por %p581, %p582
      %p584 = scmp.ne.s32.totalorder %s576, %s578
      %p585 = scmp.eq.s32.totalorder %s85, 1
      %p586 = por %p584, %p585
      %p587 = scmp.ne.s32.totalorder %s578, %s579
      %p588 = scmp.eq.s32.totalorder %s85, 0
      %p589 = por %p587, %p588
      %p590 = scmp.ne.s32.totalorder %s578, %s579
      %p591 = scmp.eq.s32.totalorder %s86, 1
      %p592 = por %p590, %p591
      %p594 = scmp.ne.s32.totalorder %s579, %s593
      %p595 = scmp.eq.s32.totalorder %s86, 0
      %p596 = por %p594, %p595
      %s598 = sadd.s32 %s597, 1
      %p601 = scmp.eq.s32.totalorder %s80, 1
      %p602 = scmp.ne.s32.totalorder %s597, %s599
      %p603 = scmp.eq.s32.totalorder %s80, 0
      %p604 = por %p602, %p603
      %p605 = scmp.ne.s32.totalorder %s597, %s599
      %p606 = scmp.eq.s32.totalorder %s85, 1
      %p607 = por %p605, %p606
      %p608 = scmp.ne.s32.totalorder %s599, %s600
      %p609 = scmp.eq.s32.totalorder %s85, 0
      %p610 = por %p608, %p609
      %p611 = scmp.ne.s32.totalorder %s599, %s600
      %p612 = scmp.eq.s32.totalorder %s86, 1
      %p613 = por %p611, %p612
      %p615 = scmp.ne.s32.totalorder %s600, %s614
      %p616 = scmp.eq.s32.totalorder %s86, 0
      %p617 = por %p615, %p616
      %s619 = sadd.s32 %s618, 1
      %p622 = scmp.eq.s32.totalorder %s80, 1
      %p623 = scmp.ne.s32.totalorder %s618, %s620
      %p624 = scmp.eq.s32.totalorder %s80, 0
      %p625 = por %p623, %p624
      %p626 = scmp.ne.s32.totalorder %s618, %s620
      %p627 = scmp.eq.s32.totalorder %s85, 1
      %p628 = por %p626, %p627
      %p629 = scmp.ne.s32.totalorder %s620, %s621
      %p630 = scmp.eq.s32.totalorder %s85, 0
      %p631 = por %p629, %p630
      %p632 = scmp.ne.s32.totalorder %s620, %s621
      %p633 = scmp.eq.s32.totalorder %s86, 1
      %p634 = por %p632, %p633
      %p636 = scmp.ne.s32.totalorder %s621, %s635
      %p637 = scmp.eq.s32.totalorder %s86, 0
      %p638 = por %p636, %p637
      %s640 = sadd.s32 %s639, 1
      %p643 = scmp.eq.s32.totalorder %s80, 1
      %p644 = scmp.ne.s32.totalorder %s639, %s641
      %p645 = scmp.eq.s32.totalorder %s80, 0
      %p646 = por %p644, %p645
      %p647 = scmp.ne.s32.totalorder %s639, %s641
      %p648 = scmp.eq.s32.totalorder %s85, 1
      %p649 = por %p647, %p648
      %p650 = scmp.ne.s32.totalorder %s641, %s642
      %p651 = scmp.eq.s32.totalorder %s85, 0
      %p652 = por %p650, %p651
      %p653 = scmp.ne.s32.totalorder %s641, %s642
      %p654 = scmp.eq.s32.totalorder %s86, 1
      %p655 = por %p653, %p654
      %p657 = scmp.ne.s32.totalorder %s642, %s656
      %p658 = scmp.eq.s32.totalorder %s86, 0
      %p659 = por %p657, %p658
      %s661 = sadd.s32 %s660, 1
      %p664 = scmp.eq.s32.totalorder %s80, 1
      %p665 = scmp.ne.s32.totalorder %s660, %s662
      %p666 = scmp.eq.s32.totalorder %s80, 0
      %p667 = por %p665, %p666
      %p668 = scmp.ne.s32.totalorder %s660, %s662
      %p669 = scmp.eq.s32.totalorder %s85, 1
      %p670 = por %p668, %p669
      %p671 = scmp.ne.s32.totalorder %s662, %s663
      %p672 = scmp.eq.s32.totalorder %s85, 0
      %p673 = por %p671, %p672
      %p674 = scmp.ne.s32.totalorder %s662, %s663
      %p675 = scmp.eq.s32.totalorder %s86, 1
      %p676 = por %p674, %p675
      %p678 = scmp.ne.s32.totalorder %s663, %s677
      %p679 = scmp.eq.s32.totalorder %s86, 0
      %p680 = por %p678, %p679
      %s682 = sadd.s32 %s681, 1
      %p685 = scmp.eq.s32.totalorder %s80, 1
      %p686 = scmp.ne.s32.totalorder %s681, %s683
      %p687 = scmp.eq.s32.totalorder %s80, 0
      %p688 = por %p686, %p687
      %p689 = scmp.ne.s32.totalorder %s681, %s683
      %p690 = scmp.eq.s32.totalorder %s85, 1
      %p691 = por %p689, %p690
      %p692 = scmp.ne.s32.totalorder %s683, %s684
      %p693 = scmp.eq.s32.totalorder %s85, 0
      %p694 = por %p692, %p693
      %p695 = scmp.ne.s32.totalorder %s683, %s684
      %p696 = scmp.eq.s32.totalorder %s86, 1
      %p697 = por %p695, %p696
      %p699 = scmp.ne.s32.totalorder %s684, %s698
      %p700 = scmp.eq.s32.totalorder %s86, 0
      %p701 = por %p699, %p700
      %s703 = sadd.s32 %s702, 1
      %p706 = scmp.eq.s32.totalorder %s80, 1
      %p707 = scmp.ne.s32.totalorder %s702, %s704
      %p708 = scmp.eq.s32.totalorder %s80, 0
      %p709 = por %p707, %p708
      %p710 = scmp.ne.s32.totalorder %s702, %s704
      %p711 = scmp.eq.s32.totalorder %s85, 1
      %p712 = por %p710, %p711
      %p713 = scmp.ne.s32.totalorder %s704, %s705
      %p714 = scmp.eq.s32.totalorder %s85, 0
      %p715 = por %p713, %p714
      %p716 = scmp.ne.s32.totalorder %s704, %s705
      %p717 = scmp.eq.s32.totalorder %s86, 1
      %p718 = por %p716, %p717
      %p720 = scmp.ne.s32.totalorder %s705, %s719
      %p721 = scmp.eq.s32.totalorder %s86, 0
      %p722 = por %p720, %p721
      %s724 = sadd.s32 %s723, 1
      %p727 = scmp.eq.s32.totalorder %s80, 1
      %p728 = scmp.ne.s32.totalorder %s723, %s725
      %p729 = scmp.eq.s32.totalorder %s80, 0
      %p730 = por %p728, %p729
      %p731 = scmp.ne.s32.totalorder %s723, %s725
      %p732 = scmp.eq.s32.totalorder %s85, 1
      %p733 = por %p731, %p732
      %p734 = scmp.ne.s32.totalorder %s725, %s726
      %p735 = scmp.eq.s32.totalorder %s85, 0
      %p736 = por %p734, %p735
      %p737 = scmp.ne.s32.totalorder %s725, %s726
      %p738 = scmp.eq.s32.totalorder %s86, 1
      %p739 = por %p737, %p738
      %p741 = scmp.ne.s32.totalorder %s726, %s740
      %p742 = scmp.eq.s32.totalorder %s86, 0
      %p743 = por %p741, %p742
      %s744 = ssub.s32 %s80, %s87
      %p745 = scmp.eq.s32.totalorder %s744, 0
      %s747 = sadd.s32 %s746, 1
      %s748 = scalar_select %p745, %s746, %s747
      %p751 = pneg %p745
      %p752 = scmp.eq.s32.totalorder %s80, 1
      %p753 = por %p751, %p752
      %p754 = scmp.ne.s32.totalorder %s746, %s749
      %p755 = scmp.eq.s32.totalorder %s80, 0
      %p756 = por %p754, %p755
      %p757 = scmp.ne.s32.totalorder %s746, %s749
      %p758 = scmp.eq.s32.totalorder %s85, 1
      %p759 = por %p757, %p758
      %p760 = scmp.ne.s32.totalorder %s749, %s750
      %p761 = scmp.eq.s32.totalorder %s85, 0
      %p762 = por %p760, %p761
      %p763 = scmp.ne.s32.totalorder %s749, %s750
      %p764 = scmp.eq.s32.totalorder %s86, 1
      %p765 = por %p763, %p764
      %p767 = scmp.ne.s32.totalorder %s750, %s766
      %p768 = scmp.eq.s32.totalorder %s86, 0
      %p769 = por %p767, %p768
      %p770 = scmp.le.s32.totalorder 1, %s80
      %p771 = scmp.lt.s32.totalorder %s80, 3
      %p772 = pnand %p770, %p771
      %p773 = pneg %p772
      // Predicated region
      $region9: #{forward.1} parent=5 // pred_check
        _
      $region10: #{forward.1} parent=5 // pred_check_branch
        %775 = sbr.rel (%p772) target = $region12
      $region11: #{forward.1} parent=5 // pred_region
        %s776 = ssub.s32 %s80, 1
        // Predicated region
        $region13: #{forward.1} parent=11 // pred_check
          %p777 = pneg %p127
        $region14: #{forward.1} parent=11 // pred_check_branch
          %779 = sbr.rel (%p777) target = $region16
        $region15: #{forward.1} parent=11 // pred_region
          %s781 = ssub.s32 3072, 3072
          %782 = vsyncadd [#allocation8], %s781
          %s783 = sshll.u32 [#allocation7], 4
          %s784 = int_to_ptr.vmem [resolvable:$true] %s783
          %789 = dma.hbm_to_vmem [thread:$0]  %s3, 3072, %s784, [#allocation8], 128, 128, 8
        $region16: #{forward.1} parent=11 // pred_fallthru
          _
        // Predicated region
        $region17: #{forward.1} parent=11 // pred_check
          %p790 = pneg %p148
        $region18: #{forward.1} parent=11 // pred_check_branch
          %792 = sbr.rel (%p790) target = $region20
        $region19: #{forward.1} parent=11 // pred_region
          %s794 = ssub.s32 16, 16
          %795 = vsyncadd [#allocation10], %s794
          %s797 = sshll.u32 [#allocation9], 4
          %s798 = int_to_ptr.vmem [resolvable:$true] %s797
          %800 = dma.hbm_to_vmem [thread:$0]  %s5, 16, %s798, [#allocation10]
        $region20: #{forward.1} parent=11 // pred_fallthru
          _
        // Predicated region
        $region21: #{forward.1} parent=11 // pred_check
          %p801 = pneg %p169
        $region22: #{forward.1} parent=11 // pred_check_branch
          %803 = sbr.rel (%p801) target = $region24
        $region23: #{forward.1} parent=11 // pred_region
          %s805 = ssub.s32 3072, 3072
          %806 = vsyncadd [#allocation10], %s805
          %s807 = sshll.u32 [#allocation11], 4
          %s808 = int_to_ptr.vmem [resolvable:$true] %s807
          %813 = dma.hbm_to_vmem [thread:$0]  %s7, 3072, %s808, [#allocation10], 128, 128, 8
        $region24: #{forward.1} parent=11 // pred_fallthru
          _
        // Predicated region
        $region25: #{forward.1} parent=11 // pred_check
          %p814 = pneg %p190
        $region26: #{forward.1} parent=11 // pred_check_branch
          %816 = sbr.rel (%p814) target = $region28
        $region27: #{forward.1} parent=11 // pred_region
          %s818 = ssub.s32 16, 16
          %819 = vsyncadd [#allocation13], %s818
          %s821 = sshll.u32 [#allocation12], 4
          %s822 = int_to_ptr.vmem [resolvable:$true] %s821
          %824 = dma.hbm_to_vmem [thread:$0]  %s9, 16, %s822, [#allocation13]
        $region28: #{forward.1} parent=11 // pred_fallthru
          _
        // Predicated region
        $region29: #{forward.1} parent=11 // pred_check
          %p825 = pneg %p211
        $region30: #{forward.1} parent=11 // pred_check_branch
          %827 = sbr.rel (%p825) target = $region32
        $region31: #{forward.1} parent=11 // pred_region
          %s829 = ssub.s32 3072, 3072
          %830 = vsyncadd [#allocation13], %s829
          %s831 = sshll.u32 [#allocation14], 4
          %s832 = int_to_ptr.vmem [resolvable:$true] %s831
          %837 = dma.hbm_to_vmem [thread:$0]  %s11, 3072, %s832, [#allocation13], 128, 128, 8
        $region32: #{forward.1} parent=11 // pred_fallthru
          _
        // Predicated region
        $region33: #{forward.1} parent=11 // pred_check
          %p838 = pneg %p232
        $region34: #{forward.1} parent=11 // pred_check_branch
          %840 = sbr.rel (%p838) target = $region36
        $region35: #{forward.1} parent=11 // pred_region
          %s842 = ssub.s32 16, 16
          %843 = vsyncadd [#allocation16], %s842
          %s845 = sshll.u32 [#allocation15], 4
          %s846 = int_to_ptr.vmem [resolvable:$true] %s845
          %848 = dma.hbm_to_vmem [thread:$0]  %s13, 16, %s846, [#allocation16]
        $region36: #{forward.1} parent=11 // pred_fallthru
          _
        // Predicated region
        $region37: #{forward.1} parent=11 // pred_check
          %p849 = pneg %p253
        $region38: #{forward.1} parent=11 // pred_check_branch
          %851 = sbr.rel (%p849) target = $region40
        $region39: #{forward.1} parent=11 // pred_region
          %s853 = ssub.s32 3072, 3072
          %854 = vsyncadd [#allocation16], %s853
          %s855 = sshll.u32 [#allocation17], 4
          %s856 = int_to_ptr.vmem [resolvable:$true] %s855
          %861 = dma.hbm_to_vmem [thread:$0]  %s15, 3072, %s856, [#allocation16], 128, 128, 8
        $region40: #{forward.1} parent=11 // pred_fallthru
          _
        // Predicated region
        $region41: #{forward.1} parent=11 // pred_check
          %p862 = pneg %p274
        $region42: #{forward.1} parent=11 // pred_check_branch
          %864 = sbr.rel (%p862) target = $region44
        $region43: #{forward.1} parent=11 // pred_region
          %s866 = ssub.s32 16, 16
          %867 = vsyncadd [#allocation19], %s866
          %s869 = sshll.u32 [#allocation18], 4
          %s870 = int_to_ptr.vmem [resolvable:$true] %s869
          %872 = dma.hbm_to_vmem [thread:$0]  %s17, 16, %s870, [#allocation19]
        $region44: #{forward.1} parent=11 // pred_fallthru
          _
        // Predicated region
        $region45: #{forward.1} parent=11 // pred_check
          %p873 = pneg %p295
        $region46: #{forward.1} parent=11 // pred_check_branch
          %875 = sbr.rel (%p873) target = $region48
        $region47: #{forward.1} parent=11 // pred_region
          %s877 = ssub.s32 3072, 3072
          %878 = vsyncadd [#allocation19], %s877
          %s879 = sshll.u32 [#allocation20], 4
          %s880 = int_to_ptr.vmem [resolvable:$true] %s879
          %885 = dma.hbm_to_vmem [thread:$0]  %s19, 3072, %s880, [#allocation19], 128, 128, 8
        $region48: #{forward.1} parent=11 // pred_fallthru
          _
        // Predicated region
        $region49: #{forward.1} parent=11 // pred_check
          %p886 = pneg %p316
        $region50: #{forward.1} parent=11 // pred_check_branch
          %888 = sbr.rel (%p886) target = $region52
        $region51: #{forward.1} parent=11 // pred_region
          %s890 = ssub.s32 16, 16
          %891 = vsyncadd [#allocation22], %s890
          %s893 = sshll.u32 [#allocation21], 4
          %s894 = int_to_ptr.vmem [resolvable:$true] %s893
          %896 = dma.hbm_to_vmem [thread:$0]  %s21, 16, %s894, [#allocation22]
        $region52: #{forward.1} parent=11 // pred_fallthru
          _
        // Predicated region
        $region53: #{forward.1} parent=11 // pred_check
          %p897 = pneg %p337
        $region54: #{forward.1} parent=11 // pred_check_branch
          %899 = sbr.rel (%p897) target = $region56
        $region55: #{forward.1} parent=11 // pred_region
          %s901 = ssub.s32 3072, 3072
          %902 = vsyncadd [#allocation22], %s901
          %s903 = sshll.u32 [#allocation23], 4
          %s904 = int_to_ptr.vmem [resolvable:$true] %s903
          %909 = dma.hbm_to_vmem [thread:$0]  %s23, 3072, %s904, [#allocation22], 128, 128, 8
        $region56: #{forward.1} parent=11 // pred_fallthru
          _
        // Predicated region
        $region57: #{forward.1} parent=11 // pred_check
          %p910 = pneg %p358
        $region58: #{forward.1} parent=11 // pred_check_branch
          %912 = sbr.rel (%p910) target = $region60
        $region59: #{forward.1} parent=11 // pred_region
          %s914 = ssub.s32 16, 16
          %915 = vsyncadd [#allocation25], %s914
          %s917 = sshll.u32 [#allocation24], 4
          %s918 = int_to_ptr.vmem [resolvable:$true] %s917
          %920 = dma.hbm_to_vmem [thread:$0]  %s25, 16, %s918, [#allocation25]
        $region60: #{forward.1} parent=11 // pred_fallthru
          _
        // Predicated region
        $region61: #{forward.1} parent=11 // pred_check
          %p921 = pneg %p379
        $region62: #{forward.1} parent=11 // pred_check_branch
          %923 = sbr.rel (%p921) target = $region64
        $region63: #{forward.1} parent=11 // pred_region
          %s925 = ssub.s32 3072, 3072
          %926 = vsyncadd [#allocation25], %s925
          %s927 = sshll.u32 [#allocation26], 4
          %s928 = int_to_ptr.vmem [resolvable:$true] %s927
          %933 = dma.hbm_to_vmem [thread:$0]  %s27, 3072, %s928, [#allocation25], 128, 128, 8
        $region64: #{forward.1} parent=11 // pred_fallthru
          _
        // Predicated region
        $region65: #{forward.1} parent=11 // pred_check
          %p934 = pneg %p400
        $region66: #{forward.1} parent=11 // pred_check_branch
          %936 = sbr.rel (%p934) target = $region68
        $region67: #{forward.1} parent=11 // pred_region
          %s938 = ssub.s32 16, 16
          %939 = vsyncadd [#allocation28], %s938
          %s941 = sshll.u32 [#allocation27], 4
          %s942 = int_to_ptr.vmem [resolvable:$true] %s941
          %944 = dma.hbm_to_vmem [thread:$0]  %s29, 16, %s942, [#allocation28]
        $region68: #{forward.1} parent=11 // pred_fallthru
          _
        // Predicated region
        $region69: #{forward.1} parent=11 // pred_check
          %p945 = pneg %p421
        $region70: #{forward.1} parent=11 // pred_check_branch
          %947 = sbr.rel (%p945) target = $region72
        $region71: #{forward.1} parent=11 // pred_region
          %s949 = ssub.s32 3072, 3072
          %950 = vsyncadd [#allocation28], %s949
          %s951 = sshll.u32 [#allocation29], 4
          %s952 = int_to_ptr.vmem [resolvable:$true] %s951
          %957 = dma.hbm_to_vmem [thread:$0]  %s31, 3072, %s952, [#allocation28], 128, 128, 8
        $region72: #{forward.1} parent=11 // pred_fallthru
          _
        // Predicated region
        $region73: #{forward.1} parent=11 // pred_check
          %p958 = pneg %p442
        $region74: #{forward.1} parent=11 // pred_check_branch
          %960 = sbr.rel (%p958) target = $region76
        $region75: #{forward.1} parent=11 // pred_region
          %s962 = ssub.s32 16, 16
          %963 = vsyncadd [#allocation31], %s962
          %s965 = sshll.u32 [#allocation30], 4
          %s966 = int_to_ptr.vmem [resolvable:$true] %s965
          %968 = dma.hbm_to_vmem [thread:$0]  %s33, 16, %s966, [#allocation31]
        $region76: #{forward.1} parent=11 // pred_fallthru
          _
        // Predicated region
        $region77: #{forward.1} parent=11 // pred_check
          %p969 = pneg %p463
        $region78: #{forward.1} parent=11 // pred_check_branch
          %971 = sbr.rel (%p969) target = $region80
        $region79: #{forward.1} parent=11 // pred_region
          %s973 = ssub.s32 3072, 3072
          %974 = vsyncadd [#allocation31], %s973
          %s975 = sshll.u32 [#allocation32], 4
          %s976 = int_to_ptr.vmem [resolvable:$true] %s975
          %981 = dma.hbm_to_vmem [thread:$0]  %s35, 3072, %s976, [#allocation31], 128, 128, 8
        $region80: #{forward.1} parent=11 // pred_fallthru
          _
        // Predicated region
        $region81: #{forward.1} parent=11 // pred_check
          %p982 = pneg %p484
        $region82: #{forward.1} parent=11 // pred_check_branch
          %984 = sbr.rel (%p982) target = $region84
        $region83: #{forward.1} parent=11 // pred_region
          %s986 = ssub.s32 16, 16
          %987 = vsyncadd [#allocation34], %s986
          %s989 = sshll.u32 [#allocation33], 4
          %s990 = int_to_ptr.vmem [resolvable:$true] %s989
          %992 = dma.hbm_to_vmem [thread:$0]  %s37, 16, %s990, [#allocation34]
        $region84: #{forward.1} parent=11 // pred_fallthru
          _
        // Predicated region
        $region85: #{forward.1} parent=11 // pred_check
          %p993 = pneg %p505
        $region86: #{forward.1} parent=11 // pred_check_branch
          %995 = sbr.rel (%p993) target = $region88
        $region87: #{forward.1} parent=11 // pred_region
          %s997 = ssub.s32 3072, 3072
          %998 = vsyncadd [#allocation34], %s997
          %s999 = sshll.u32 [#allocation35], 4
          %s1000 = int_to_ptr.vmem [resolvable:$true] %s999
          %1005 = dma.hbm_to_vmem [thread:$0]  %s39, 3072, %s1000, [#allocation34], 128, 128, 8
        $region88: #{forward.1} parent=11 // pred_fallthru
          _
        // Predicated region
        $region89: #{forward.1} parent=11 // pred_check
          %p1006 = pneg %p526
        $region90: #{forward.1} parent=11 // pred_check_branch
          %1008 = sbr.rel (%p1006) target = $region92
        $region91: #{forward.1} parent=11 // pred_region
          _
        $region92: #{forward.1} parent=11 // pred_fallthru
          _
        // Predicated region
        $region93: #{forward.1} parent=11 // pred_check
          %p1009 = pneg %p547
        $region94: #{forward.1} parent=11 // pred_check_branch
          %1011 = sbr.rel (%p1009) target = $region96
        $region95: #{forward.1} parent=11 // pred_region
          _
        $region96: #{forward.1} parent=11 // pred_fallthru
          _
        // Predicated region
        $region97: #{forward.1} parent=11 // pred_check
          %p1012 = pneg %p568
        $region98: #{forward.1} parent=11 // pred_check_branch
          %1014 = sbr.rel (%p1012) target = $region100
        $region99: #{forward.1} parent=11 // pred_region
          _
        $region100: #{forward.1} parent=11 // pred_fallthru
          _
        // Predicated region
        $region101: #{forward.1} parent=11 // pred_check
          %p1015 = pneg %p589
        $region102: #{forward.1} parent=11 // pred_check_branch
          %1017 = sbr.rel (%p1015) target = $region104
        $region103: #{forward.1} parent=11 // pred_region
          %s1019 = ssub.s32 1536, 1536
          %1020 = vsyncadd [#allocation37], %s1019
          %s1021 = sshll.u32 [#allocation36], 4
          %s1022 = int_to_ptr.vmem [resolvable:$true] %s1021
          %1027 = dma.hbm_to_vmem [thread:$0]  %s47, 1536, %s1022, [#allocation37], 128, 128, 8
        $region104: #{forward.1} parent=11 // pred_fallthru
          _
        // Predicated region
        $region105: #{forward.1} parent=11 // pred_check
          %p1028 = pneg %p610
        $region106: #{forward.1} parent=11 // pred_check_branch
          %1030 = sbr.rel (%p1028) target = $region108
        $region107: #{forward.1} parent=11 // pred_region
          _
        $region108: #{forward.1} parent=11 // pred_fallthru
          _
        // Predicated region
        $region109: #{forward.1} parent=11 // pred_check
          %p1031 = pneg %p631
        $region110: #{forward.1} parent=11 // pred_check_branch
          %1033 = sbr.rel (%p1031) target = $region112
        $region111: #{forward.1} parent=11 // pred_region
          _
        $region112: #{forward.1} parent=11 // pred_fallthru
          _
        // Predicated region
        $region113: #{forward.1} parent=11 // pred_check
          %p1034 = pneg %p652
        $region114: #{forward.1} parent=11 // pred_check_branch
          %1036 = sbr.rel (%p1034) target = $region116
        $region115: #{forward.1} parent=11 // pred_region
          _
        $region116: #{forward.1} parent=11 // pred_fallthru
          _
        // Predicated region
        $region117: #{forward.1} parent=11 // pred_check
          %p1037 = pneg %p673
        $region118: #{forward.1} parent=11 // pred_check_branch
          %1039 = sbr.rel (%p1037) target = $region120
        $region119: #{forward.1} parent=11 // pred_region
          _
        $region120: #{forward.1} parent=11 // pred_fallthru
          _
        // Predicated region
        $region121: #{forward.1} parent=11 // pred_check
          %p1040 = pneg %p694
        $region122: #{forward.1} parent=11 // pred_check_branch
          %1042 = sbr.rel (%p1040) target = $region124
        $region123: #{forward.1} parent=11 // pred_region
          %s1044 = ssub.s32 1536, 1536
          %1045 = vsyncadd [#allocation37], %s1044
          %s1046 = sshll.u32 [#allocation38], 4
          %s1047 = int_to_ptr.vmem [resolvable:$true] %s1046
          %1052 = dma.hbm_to_vmem [thread:$0]  %s57, 1536, %s1047, [#allocation37], 128, 128, 8
        $region124: #{forward.1} parent=11 // pred_fallthru
          _
        // Predicated region
        $region125: #{forward.1} parent=11 // pred_check
          %p1053 = pneg %p715
        $region126: #{forward.1} parent=11 // pred_check_branch
          %1055 = sbr.rel (%p1053) target = $region128
        $region127: #{forward.1} parent=11 // pred_region
          _
        $region128: #{forward.1} parent=11 // pred_fallthru
          _
        // Predicated region
        $region129: #{forward.1} parent=11 // pred_check
          %p1056 = pneg %p736
        $region130: #{forward.1} parent=11 // pred_check_branch
          %1058 = sbr.rel (%p1056) target = $region132
        $region131: #{forward.1} parent=11 // pred_region
          _
        $region132: #{forward.1} parent=11 // pred_fallthru
          _
      $region12: #{forward.1} parent=5 // pred_fallthru
        _
      %p1059 = scmp.lt.s32.totalorder %s80, 2
      // Predicated region
      $region133: #{forward.1} parent=5 // pred_check
        %p1060 = pneg %p1059
      $region134: #{forward.1} parent=5 // pred_check_branch
        %1062 = sbr.rel (%p1060) target = $region136
      $region135: #{forward.1} parent=5 // pred_region
        // Predicated region
        $region137: #{forward.1} parent=135 // pred_check
          %p1063 = pneg %p100
        $region138: #{forward.1} parent=135 // pred_check_branch
          %1065 = sbr.rel (%p1063) target = $region140
        $region139: #{forward.1} parent=135 // pred_region
          %p1066 = scmp.lt.s32.totalorder %s80, 1
          %s1067 = scalar_select %p1066, %s80, 1
          %s1068 = smul.addr %s1067, 2
          %s1069 = smul.addr %s1068, 8
          %s1070 = scalar_lea.vmem %s1, %s1069
        $region140: #{forward.1} parent=135 // pred_fallthru
          _
      $region136: #{forward.1} parent=5 // pred_fallthru
        _
      %p1071 = scmp.le.s32.totalorder 1, %s80
      %p1072 = scmp.lt.s32.totalorder %s80, 3
      %p1073 = pnand %p1071, %p1072
      %p1074 = pneg %p1073
      // Predicated region
      $region141: #{forward.1} parent=5 // pred_check
        _
      $region142: #{forward.1} parent=5 // pred_check_branch
        %1076 = sbr.rel (%p1073) target = $region144
      $region143: #{forward.1} parent=5 // pred_region
        %s1077 = ssub.s32 %s80, 1
        // Predicated region
        $region145: #{forward.1} parent=143 // pred_check
          %p1078 = pneg %p127
        $region146: #{forward.1} parent=143 // pred_check_branch
          %1080 = sbr.rel (%p1078) target = $region148
        $region147: #{forward.1} parent=143 // pred_region
          %1081 = dma.done [#allocation8], 3072
        $region148: #{forward.1} parent=143 // pred_fallthru
          _
        // Predicated region
        $region149: #{forward.1} parent=143 // pred_check
          %p1082 = pneg %p148
        $region150: #{forward.1} parent=143 // pred_check_branch
          %1084 = sbr.rel (%p1082) target = $region152
        $region151: #{forward.1} parent=143 // pred_region
          %1085 = dma.done [#allocation10], 16
        $region152: #{forward.1} parent=143 // pred_fallthru
          _
        // Predicated region
        $region153: #{forward.1} parent=143 // pred_check
          %p1086 = pneg %p169
        $region154: #{forward.1} parent=143 // pred_check_branch
          %1088 = sbr.rel (%p1086) target = $region156
        $region155: #{forward.1} parent=143 // pred_region
          %1089 = dma.done [#allocation10], 3072
        $region156: #{forward.1} parent=143 // pred_fallthru
          _
        // Predicated region
        $region157: #{forward.1} parent=143 // pred_check
          %p1090 = pneg %p190
        $region158: #{forward.1} parent=143 // pred_check_branch
          %1092 = sbr.rel (%p1090) target = $region160
        $region159: #{forward.1} parent=143 // pred_region
          %1093 = dma.done [#allocation13], 16
        $region160: #{forward.1} parent=143 // pred_fallthru
          _
        // Predicated region
        $region161: #{forward.1} parent=143 // pred_check
          %p1094 = pneg %p211
        $region162: #{forward.1} parent=143 // pred_check_branch
          %1096 = sbr.rel (%p1094) target = $region164
        $region163: #{forward.1} parent=143 // pred_region
          %1097 = dma.done [#allocation13], 3072
        $region164: #{forward.1} parent=143 // pred_fallthru
          _
        // Predicated region
        $region165: #{forward.1} parent=143 // pred_check
          %p1098 = pneg %p232
        $region166: #{forward.1} parent=143 // pred_check_branch
          %1100 = sbr.rel (%p1098) target = $region168
        $region167: #{forward.1} parent=143 // pred_region
          %1101 = dma.done [#allocation16], 16
        $region168: #{forward.1} parent=143 // pred_fallthru
          _
        // Predicated region
        $region169: #{forward.1} parent=143 // pred_check
          %p1102 = pneg %p253
        $region170: #{forward.1} parent=143 // pred_check_branch
          %1104 = sbr.rel (%p1102) target = $region172
        $region171: #{forward.1} parent=143 // pred_region
          %1105 = dma.done [#allocation16], 3072
        $region172: #{forward.1} parent=143 // pred_fallthru
          _
        // Predicated region
        $region173: #{forward.1} parent=143 // pred_check
          %p1106 = pneg %p274
        $region174: #{forward.1} parent=143 // pred_check_branch
          %1108 = sbr.rel (%p1106) target = $region176
        $region175: #{forward.1} parent=143 // pred_region
          %1109 = dma.done [#allocation19], 16
        $region176: #{forward.1} parent=143 // pred_fallthru
          _
        // Predicated region
        $region177: #{forward.1} parent=143 // pred_check
          %p1110 = pneg %p295
        $region178: #{forward.1} parent=143 // pred_check_branch
          %1112 = sbr.rel (%p1110) target = $region180
        $region179: #{forward.1} parent=143 // pred_region
          %1113 = dma.done [#allocation19], 3072
        $region180: #{forward.1} parent=143 // pred_fallthru
          _
        // Predicated region
        $region181: #{forward.1} parent=143 // pred_check
          %p1114 = pneg %p316
        $region182: #{forward.1} parent=143 // pred_check_branch
          %1116 = sbr.rel (%p1114) target = $region184
        $region183: #{forward.1} parent=143 // pred_region
          %1117 = dma.done [#allocation22], 16
        $region184: #{forward.1} parent=143 // pred_fallthru
          _
        // Predicated region
        $region185: #{forward.1} parent=143 // pred_check
          %p1118 = pneg %p337
        $region186: #{forward.1} parent=143 // pred_check_branch
          %1120 = sbr.rel (%p1118) target = $region188
        $region187: #{forward.1} parent=143 // pred_region
          %1121 = dma.done [#allocation22], 3072
        $region188: #{forward.1} parent=143 // pred_fallthru
          _
        // Predicated region
        $region189: #{forward.1} parent=143 // pred_check
          %p1122 = pneg %p358
        $region190: #{forward.1} parent=143 // pred_check_branch
          %1124 = sbr.rel (%p1122) target = $region192
        $region191: #{forward.1} parent=143 // pred_region
          %1125 = dma.done [#allocation25], 16
        $region192: #{forward.1} parent=143 // pred_fallthru
          _
        // Predicated region
        $region193: #{forward.1} parent=143 // pred_check
          %p1126 = pneg %p379
        $region194: #{forward.1} parent=143 // pred_check_branch
          %1128 = sbr.rel (%p1126) target = $region196
        $region195: #{forward.1} parent=143 // pred_region
          %1129 = dma.done [#allocation25], 3072
        $region196: #{forward.1} parent=143 // pred_fallthru
          _
        // Predicated region
        $region197: #{forward.1} parent=143 // pred_check
          %p1130 = pneg %p400
        $region198: #{forward.1} parent=143 // pred_check_branch
          %1132 = sbr.rel (%p1130) target = $region200
        $region199: #{forward.1} parent=143 // pred_region
          %1133 = dma.done [#allocation28], 16
        $region200: #{forward.1} parent=143 // pred_fallthru
          _
        // Predicated region
        $region201: #{forward.1} parent=143 // pred_check
          %p1134 = pneg %p421
        $region202: #{forward.1} parent=143 // pred_check_branch
          %1136 = sbr.rel (%p1134) target = $region204
        $region203: #{forward.1} parent=143 // pred_region
          %1137 = dma.done [#allocation28], 3072
        $region204: #{forward.1} parent=143 // pred_fallthru
          _
        // Predicated region
        $region205: #{forward.1} parent=143 // pred_check
          %p1138 = pneg %p442
        $region206: #{forward.1} parent=143 // pred_check_branch
          %1140 = sbr.rel (%p1138) target = $region208
        $region207: #{forward.1} parent=143 // pred_region
          %1141 = dma.done [#allocation31], 16
        $region208: #{forward.1} parent=143 // pred_fallthru
          _
        // Predicated region
        $region209: #{forward.1} parent=143 // pred_check
          %p1142 = pneg %p463
        $region210: #{forward.1} parent=143 // pred_check_branch
          %1144 = sbr.rel (%p1142) target = $region212
        $region211: #{forward.1} parent=143 // pred_region
          %1145 = dma.done [#allocation31], 3072
        $region212: #{forward.1} parent=143 // pred_fallthru
          _
        // Predicated region
        $region213: #{forward.1} parent=143 // pred_check
          %p1146 = pneg %p484
        $region214: #{forward.1} parent=143 // pred_check_branch
          %1148 = sbr.rel (%p1146) target = $region216
        $region215: #{forward.1} parent=143 // pred_region
          %1149 = dma.done [#allocation34], 16
        $region216: #{forward.1} parent=143 // pred_fallthru
          _
        // Predicated region
        $region217: #{forward.1} parent=143 // pred_check
          %p1150 = pneg %p505
        $region218: #{forward.1} parent=143 // pred_check_branch
          %1152 = sbr.rel (%p1150) target = $region220
        $region219: #{forward.1} parent=143 // pred_region
          %1153 = dma.done [#allocation34], 3072
        $region220: #{forward.1} parent=143 // pred_fallthru
          _
        // Predicated region
        $region221: #{forward.1} parent=143 // pred_check
          %p1154 = pneg %p589
        $region222: #{forward.1} parent=143 // pred_check_branch
          %1156 = sbr.rel (%p1154) target = $region224
        $region223: #{forward.1} parent=143 // pred_region
          %1157 = dma.done [#allocation37], 1536
        $region224: #{forward.1} parent=143 // pred_fallthru
          _
        // Predicated region
        $region225: #{forward.1} parent=143 // pred_check
          %p1158 = pneg %p694
        $region226: #{forward.1} parent=143 // pred_check_branch
          %1160 = sbr.rel (%p1158) target = $region228
        $region227: #{forward.1} parent=143 // pred_region
          %1161 = dma.done [#allocation37], 1536
        $region228: #{forward.1} parent=143 // pred_fallthru
          _
        %p1162 = scmp.lt.s32.totalorder %s85, 1
        %s1163 = scalar_select %p1162, %s85, 1
        %s1164 = smul.addr %s1163, 2
        %s1165 = smul.addr %s1164, 8
        %s1166 = scalar_lea.vmem %s1, %s1165
        %p1167 = pneg %p106
        %p1168 = pneg %p103
        %p1169 = pneg %p127
        %p1170 = pneg %p124
        %p1171 = pneg %p148
        %p1172 = pneg %p145
        %p1173 = pneg %p169
        %p1174 = pneg %p166
        %p1175 = pneg %p190
        %p1176 = pneg %p187
        %p1177 = pneg %p211
        %p1178 = pneg %p208
        %p1179 = pneg %p232
        %p1180 = pneg %p229
        %p1181 = pneg %p253
        %p1182 = pneg %p250
        %p1183 = pneg %p274
        %p1184 = pneg %p271
        %p1185 = pneg %p295
        %p1186 = pneg %p292
        %p1187 = pneg %p316
        %p1188 = pneg %p313
        %p1189 = pneg %p337
        %p1190 = pneg %p334
        %p1191 = pneg %p358
        %p1192 = pneg %p355
        %p1193 = pneg %p379
        %p1194 = pneg %p376
        %p1195 = pneg %p400
        %p1196 = pneg %p397
        %p1197 = pneg %p421
        %p1198 = pneg %p418
        %p1199 = pneg %p442
        %p1200 = pneg %p439
        %p1201 = pneg %p463
        %p1202 = pneg %p460
        %p1203 = pneg %p484
        %p1204 = pneg %p481
        %p1205 = pneg %p505
        %p1206 = pneg %p502
        %p1207 = pneg %p526
        %p1208 = pneg %p523
        %p1209 = pneg %p547
        %p1210 = pneg %p544
        %p1211 = pneg %p568
        %p1212 = pneg %p565
        %p1213 = pneg %p589
        %p1214 = pneg %p586
        %p1215 = pneg %p610
        %p1216 = pneg %p607
        %p1217 = pneg %p631
        %p1218 = pneg %p628
        %p1219 = pneg %p652
        %p1220 = pneg %p649
        %p1221 = pneg %p673
        %p1222 = pneg %p670
        %p1223 = pneg %p694
        %p1224 = pneg %p691
        %p1225 = pneg %p715
        %p1226 = pneg %p712
        %p1227 = pneg %p736
        %p1228 = pneg %p733
        %p1229 = pneg %p762
        %p1230 = pneg %p759
        %p1231 = scmp.lt.s32.totalorder %s85, 1
        %s1232 = scalar_select %p1231, %s85, 1
        %s1233 = smul.addr %s1232, 2
        %s1234 = smul.addr %s1233, 8
        %s1235 = scalar_lea.vmem %s63, %s1234
        %p1236 = scmp.lt.s32.totalorder %s85, 1
        %s1237 = scalar_select %p1236, %s85, 1
        %s1238 = smul.addr %s1237, 2
        %s1239 = smul.addr %s1238, 8
        %s1240 = scalar_lea.vmem %s1, %s1239
        %p1241 = scmp.lt.s32.totalorder %s85, 1
        %s1242 = scalar_select %p1241, %s85, 1
        %s1243 = smul.addr %s1242, 2
        %s1244 = smul.addr %s1243, 8
        %s1245 = scalar_lea.vmem %s63, %s1244
        %v1246 = vld [vmem:[%s1240] sm:$0xff]
        %v1247 = vld [vmem:[%s1240 + $0x8] sm:$0xff]
        %vm1248 = vcmask 516096
        %1249 = vst.msk [vmem:[#allocation2] sm:$0x1] %vm1248, 0.0
        %1250 = vst.msk [vmem:[#allocation2 + $0x11] sm:$0x1] %vm1248, 0.0
        %vm1251 = vcmask 523264
        %1252 = vst.msk [vmem:[#allocation2 + $0x1] sm:$0xff] %vm1251, %v1246
        %1253 = vst.msk [vmem:[#allocation2 + $0x9] sm:$0xff] %vm1251, %v1247
        %v1254 = vld [vmem:[#allocation2] sm:$0xff]
        %v1255 = vld [vmem:[#allocation2 + $0x8] sm:$0xff]
        %v1256 = vld [vmem:[#allocation7] sm:$0xff]
        %v1257 = vld [vmem:[#allocation7 + $0x8] sm:$0xff]
        %v1258 = vld [vmem:[#allocation7 + $0x10] sm:$0xff]
        %v1259 = vld [vmem:[#allocation7 + $0x18] sm:$0xff]
        %v1260 = vld [vmem:[#allocation7 + $0x20] sm:$0xff]
        %v1261 = vld [vmem:[#allocation7 + $0x28] sm:$0xff]
        %v1262 = vld [vmem:[#allocation7 + $0x30] sm:$0xff]
        %v1263 = vld [vmem:[#allocation7 + $0x38] sm:$0xff]
        %v1264 = vld [vmem:[#allocation2 + $0x1] sm:$0xff]
        %v1265 = vld [vmem:[#allocation2 + $0x9] sm:$0xff]
        %s1266 = scalar_lea.vmem [#allocation7], 64
        %v1267 = vld [vmem:[%s1266] sm:$0xff]
        %v1268 = vld [vmem:[%s1266 + $0x8] sm:$0xff]
        %v1269 = vld [vmem:[%s1266 + $0x10] sm:$0xff]
        %v1270 = vld [vmem:[%s1266 + $0x18] sm:$0xff]
        %v1271 = vld [vmem:[%s1266 + $0x20] sm:$0xff]
        %v1272 = vld [vmem:[%s1266 + $0x28] sm:$0xff]
        %v1273 = vld [vmem:[%s1266 + $0x30] sm:$0xff]
        %v1274 = vld [vmem:[%s1266 + $0x38] sm:$0xff]
        %v1276 = vsel %vm1251, %v1264, 0
        %v1279 = vsel %vm1251, %v1265, 0
        %1281 = vmatprep.subr.mxu0 0.0
        %1282 = vmatpush1.msra.mxu0 0.0
        %1283 = vmatprep.subr.mxu0 0.0
        %1284 = vmatpush1.msra.mxu0 0.0
        %1285 = vmatprep.subr.mxu0 0.0
        %1286 = vmatpush1.msra.mxu0 0.0
        %1287 = vmatprep.subr.mxu0 0.0
        %1288 = vmatpush1.msra.mxu0 0.0
        %1289 = vmatprep.subr.mxu0 0.0
        %1290 = vmatpush1.msra.mxu0 0.0
        %1291 = vmatprep.subr.mxu0 0.0
        %1292 = vmatpush1.msra.mxu0 0.0
        %1293 = vmatprep.subr.mxu0 0.0
        %1294 = vmatpush1.msra.mxu0 0.0
        %1295 = vmatprep.subr.mxu0 0.0
        %1296 = vmatpush1.msra.mxu0 0.0
        %1297 = vmatprep.subr.mxu0 0.0
        %1298 = vmatpush1.msra.mxu0 %v1274
        %1299 = vmatprep.subr.mxu0 0.0
        %1300 = vmatpush1.msra.mxu0 %v1273
        %1301 = vmatprep.subr.mxu0 0.0
        %1302 = vmatpush1.msra.mxu0 %v1272
        %1303 = vmatprep.subr.mxu0 0.0
        %1304 = vmatpush1.msra.mxu0 %v1271
        %1305 = vmatprep.subr.mxu0 0.0
        %1306 = vmatpush1.msra.mxu0 %v1270
        %1307 = vmatprep.subr.mxu0 0.0
        %1308 = vmatpush1.msra.mxu0 %v1269
        %1309 = vmatprep.subr.mxu0 0.0
        %1310 = vmatpush1.msra.mxu0 %v1268
        %1311 = vmatprep.subr.mxu0 0.0
        %1312 = vmatpush1.msra.mxu0 %v1267
        %1313 = vmatprep.subr.mxu0 0.0
        %1314 = vmatpush2.msra.mxu0 0.0
        %1315 = vmatprep.subr.mxu0 0.0
        %1316 = vmatpush2.msra.mxu0 0.0
        %1317 = vmatprep.subr.mxu0 0.0
        %1318 = vmatpush2.msra.mxu0 0.0
        %1319 = vmatprep.subr.mxu0 0.0
        %1320 = vmatpush2.msra.mxu0 0.0
        %1321 = vmatprep.subr.mxu0 0.0
        %1322 = vmatpush2.msra.mxu0 0.0
        %1323 = vmatprep.subr.mxu0 0.0
        %1324 = vmatpush2.msra.mxu0 0.0
        %1325 = vmatprep.subr.mxu0 0.0
        %1326 = vmatpush2.msra.mxu0 0.0
        %1327 = vmatprep.subr.mxu0 0.0
        %1328 = vmatpush2.msra.mxu0 0.0
        %1329 = vmatprep.subr.mxu0 0.0
        %1330 = vmatpush2.msra.mxu0 0.0
        %1331 = vmatprep.subr.mxu0 0.0
        %1332 = vmatpush2.msra.mxu0 0.0
        %1333 = vmatprep.subr.mxu0 0.0
        %1334 = vmatpush2.msra.mxu0 0.0
        %1335 = vmatprep.subr.mxu0 0.0
        %1336 = vmatpush2.msra.mxu0 0.0
        %1337 = vmatprep.subr.mxu0 0.0
        %1338 = vmatpush2.msra.mxu0 0.0
        %1339 = vmatprep.subr.mxu0 0.0
        %1340 = vmatpush2.msra.mxu0 0.0
        %1341 = vmatprep.subr.mxu0 0.0
        %1342 = vmatpush2.msra.mxu0 0.0
        %1343 = vmatprep.subr.mxu0 0.0
        %1344 = vmatpush2.msra.mxu0 0.0
        %1345 = vmatprep.mubr.f32.mxu0 0.0
        %1346 = vmatmul.mubr.f32.gmra.mxu0 %v1276
        %v1347 = vpop.f32.mrf.mxu0
        %v1348 = vadd.f32 0.0, %v1347
        %v1349 = vpop.f32.mrf.mxu0
        %1350 = vmatprep.mubr.f32.mxu0 0.0
        %1351 = vmatmul.mubr.f32.gmra.mxu0 %v1279
        %v1352 = vpop.f32.mrf.mxu0
        %v1353 = vadd.f32 0.0, %v1352
        %v1354 = vpop.f32.mrf.mxu0
        %1355 = vdwg.mxu0
        %v1357 = vsel %vm1251, %v1254, 0
        %v1360 = vsel %vm1251, %v1255, 0
        %1362 = vmatprep.subr.mxu0 0.0
        %1363 = vmatpush1.msra.mxu0 0.0
        %1364 = vmatprep.subr.mxu0 0.0
        %1365 = vmatpush1.msra.mxu0 0.0
        %1366 = vmatprep.subr.mxu0 0.0
        %1367 = vmatpush1.msra.mxu0 0.0
        %1368 = vmatprep.subr.mxu0 0.0
        %1369 = vmatpush1.msra.mxu0 0.0
        %1370 = vmatprep.subr.mxu0 0.0
        %1371 = vmatpush1.msra.mxu0 0.0
        %1372 = vmatprep.subr.mxu0 0.0
        %1373 = vmatpush1.msra.mxu0 0.0
        %1374 = vmatprep.subr.mxu0 0.0
        %1375 = vmatpush1.msra.mxu0 0.0
        %1376 = vmatprep.subr.mxu0 0.0
        %1377 = vmatpush1.msra.mxu0 0.0
        %1378 = vmatprep.subr.mxu0 0.0
        %1379 = vmatpush1.msra.mxu0 %v1263
        %1380 = vmatprep.subr.mxu0 0.0
        %1381 = vmatpush1.msra.mxu0 %v1262
        %1382 = vmatprep.subr.mxu0 0.0
        %1383 = vmatpush1.msra.mxu0 %v1261
        %1384 = vmatprep.subr.mxu0 0.0
        %1385 = vmatpush1.msra.mxu0 %v1260
        %1386 = vmatprep.subr.mxu0 0.0
        %1387 = vmatpush1.msra.mxu0 %v1259
        %1388 = vmatprep.subr.mxu0 0.0
        %1389 = vmatpush1.msra.mxu0 %v1258
        %1390 = vmatprep.subr.mxu0 0.0
        %1391 = vmatpush1.msra.mxu0 %v1257
        %1392 = vmatprep.subr.mxu0 0.0
        %1393 = vmatpush1.msra.mxu0 %v1256
        %1394 = vmatprep.subr.mxu0 0.0
        %1395 = vmatpush2.msra.mxu0 0.0
        %1396 = vmatprep.subr.mxu0 0.0
        %1397 = vmatpush2.msra.mxu0 0.0
        %1398 = vmatprep.subr.mxu0 0.0
        %1399 = vmatpush2.msra.mxu0 0.0
        %1400 = vmatprep.subr.mxu0 0.0
        %1401 = vmatpush2.msra.mxu0 0.0
        %1402 = vmatprep.subr.mxu0 0.0
        %1403 = vmatpush2.msra.mxu0 0.0
        %1404 = vmatprep.subr.mxu0 0.0
        %1405 = vmatpush2.msra.mxu0 0.0
        %1406 = vmatprep.subr.mxu0 0.0
        %1407 = vmatpush2.msra.mxu0 0.0
        %1408 = vmatprep.subr.mxu0 0.0
        %1409 = vmatpush2.msra.mxu0 0.0
        %1410 = vmatprep.subr.mxu0 0.0
        %1411 = vmatpush2.msra.mxu0 0.0
        %1412 = vmatprep.subr.mxu0 0.0
        %1413 = vmatpush2.msra.mxu0 0.0
        %1414 = vmatprep.subr.mxu0 0.0
        %1415 = vmatpush2.msra.mxu0 0.0
        %1416 = vmatprep.subr.mxu0 0.0
        %1417 = vmatpush2.msra.mxu0 0.0
        %1418 = vmatprep.subr.mxu0 0.0
        %1419 = vmatpush2.msra.mxu0 0.0
        %1420 = vmatprep.subr.mxu0 0.0
        %1421 = vmatpush2.msra.mxu0 0.0
        %1422 = vmatprep.subr.mxu0 0.0
        %1423 = vmatpush2.msra.mxu0 0.0
        %1424 = vmatprep.subr.mxu0 0.0
        %1425 = vmatpush2.msra.mxu0 0.0
        %1426 = vmatprep.mubr.f32.mxu0 0.0
        %1427 = vmatmul.mubr.f32.gmra.mxu0 %v1357
        %v1428 = vpop.f32.mrf.mxu0
        %v1429 = vadd.f32 %v1348, %v1428
        %v1430 = vpop.f32.mrf.mxu0
        %1431 = vmatprep.mubr.f32.mxu0 0.0
        %1432 = vmatmul.mubr.f32.gmra.mxu0 %v1360
        %v1433 = vpop.f32.mrf.mxu0
        %v1434 = vadd.f32 %v1353, %v1433
        %v1435 = vpop.f32.mrf.mxu0
        %1436 = vdwg.mxu0
        %v1437 = vld [vmem:[#allocation2 + $0x2] sm:$0xff]
        %v1438 = vld [vmem:[#allocation2 + $0xa] sm:$0xff]
        %s1439 = scalar_lea.vmem [#allocation7], 128
        %v1440 = vld [vmem:[%s1439] sm:$0xff]
        %v1441 = vld [vmem:[%s1439 + $0x8] sm:$0xff]
        %v1442 = vld [vmem:[%s1439 + $0x10] sm:$0xff]
        %v1443 = vld [vmem:[%s1439 + $0x18] sm:$0xff]
        %v1444 = vld [vmem:[%s1439 + $0x20] sm:$0xff]
        %v1445 = vld [vmem:[%s1439 + $0x28] sm:$0xff]
        %v1446 = vld [vmem:[%s1439 + $0x30] sm:$0xff]
        %v1447 = vld [vmem:[%s1439 + $0x38] sm:$0xff]
        %v1449 = vsel %vm1251, %v1437, 0
        %v1452 = vsel %vm1251, %v1438, 0
        %1454 = vmatprep.subr.mxu0 0.0
        %1455 = vmatpush1.msra.mxu0 0.0
        %1456 = vmatprep.subr.mxu0 0.0
        %1457 = vmatpush1.msra.mxu0 0.0
        %1458 = vmatprep.subr.mxu0 0.0
        %1459 = vmatpush1.msra.mxu0 0.0
        %1460 = vmatprep.subr.mxu0 0.0
        %1461 = vmatpush1.msra.mxu0 0.0
        %1462 = vmatprep.subr.mxu0 0.0
        %1463 = vmatpush1.msra.mxu0 0.0
        %1464 = vmatprep.subr.mxu0 0.0
        %1465 = vmatpush1.msra.mxu0 0.0
        %1466 = vmatprep.subr.mxu0 0.0
        %1467 = vmatpush1.msra.mxu0 0.0
        %1468 = vmatprep.subr.mxu0 0.0
        %1469 = vmatpush1.msra.mxu0 0.0
        %1470 = vmatprep.subr.mxu0 0.0
        %1471 = vmatpush1.msra.mxu0 %v1447
        %1472 = vmatprep.subr.mxu0 0.0
        %1473 = vmatpush1.msra.mxu0 %v1446
        %1474 = vmatprep.subr.mxu0 0.0
        %1475 = vmatpush1.msra.mxu0 %v1445
        %1476 = vmatprep.subr.mxu0 0.0
        %1477 = vmatpush1.msra.mxu0 %v1444
        %1478 = vmatprep.subr.mxu0 0.0
        %1479 = vmatpush1.msra.mxu0 %v1443
        %1480 = vmatprep.subr.mxu0 0.0
        %1481 = vmatpush1.msra.mxu0 %v1442
        %1482 = vmatprep.subr.mxu0 0.0
        %1483 = vmatpush1.msra.mxu0 %v1441
        %1484 = vmatprep.subr.mxu0 0.0
        %1485 = vmatpush1.msra.mxu0 %v1440
        %1486 = vmatprep.subr.mxu0 0.0
        %1487 = vmatpush2.msra.mxu0 0.0
        %1488 = vmatprep.subr.mxu0 0.0
        %1489 = vmatpush2.msra.mxu0 0.0
        %1490 = vmatprep.subr.mxu0 0.0
        %1491 = vmatpush2.msra.mxu0 0.0
        %1492 = vmatprep.subr.mxu0 0.0
        %1493 = vmatpush2.msra.mxu0 0.0
        %1494 = vmatprep.subr.mxu0 0.0
        %1495 = vmatpush2.msra.mxu0 0.0
        %1496 = vmatprep.subr.mxu0 0.0
        %1497 = vmatpush2.msra.mxu0 0.0
        %1498 = vmatprep.subr.mxu0 0.0
        %1499 = vmatpush2.msra.mxu0 0.0
        %1500 = vmatprep.subr.mxu0 0.0
        %1501 = vmatpush2.msra.mxu0 0.0
        %1502 = vmatprep.subr.mxu0 0.0
        %1503 = vmatpush2.msra.mxu0 0.0
        %1504 = vmatprep.subr.mxu0 0.0
        %1505 = vmatpush2.msra.mxu0 0.0
        %1506 = vmatprep.subr.mxu0 0.0
        %1507 = vmatpush2.msra.mxu0 0.0
        %1508 = vmatprep.subr.mxu0 0.0
        %1509 = vmatpush2.msra.mxu0 0.0
        %1510 = vmatprep.subr.mxu0 0.0
        %1511 = vmatpush2.msra.mxu0 0.0
        %1512 = vmatprep.subr.mxu0 0.0
        %1513 = vmatpush2.msra.mxu0 0.0
        %1514 = vmatprep.subr.mxu0 0.0
        %1515 = vmatpush2.msra.mxu0 0.0
        %1516 = vmatprep.subr.mxu0 0.0
        %1517 = vmatpush2.msra.mxu0 0.0
        %1518 = vmatprep.mubr.f32.mxu0 0.0
        %1519 = vmatmul.mubr.f32.gmra.mxu0 %v1449
        %v1520 = vpop.f32.mrf.mxu0
        %v1521 = vadd.f32 0.0, %v1520
        %v1522 = vpop.f32.mrf.mxu0
        %1523 = vmatprep.mubr.f32.mxu0 0.0
        %1524 = vmatmul.mubr.f32.gmra.mxu0 %v1452
        %v1525 = vpop.f32.mrf.mxu0
        %v1526 = vadd.f32 0.0, %v1525
        %v1527 = vpop.f32.mrf.mxu0
        %1528 = vdwg.mxu0
        %v1529 = vadd.f32 %v1429, %v1521
        %v1530 = vadd.f32 %v1434, %v1526
        %v1531 = vld [vmem:[#allocation9] sm:$0x1]
        %v1533 = vlaneseq
        %v1534 = vshrl.u32 %v1533, 7
        %v1535 = vsub.s32 0, %v1534
        %v1536 = vrot.slane %v1531, %v1535
        %v1538 = vadd.f32 %v1529, %v1536
        %v1539 = vadd.f32 %v1530, %v1536
        %v1540 = vmax.f32 %v1538, 0.0
        %v1541 = vmax.f32 %v1539, 0.0
        %1542 = vst.msk [vmem:[#allocation2] sm:$0x1] %vm1248, 0.0
        %1543 = vst.msk [vmem:[#allocation2 + $0x11] sm:$0x1] %vm1248, 0.0
        %1544 = vst.msk [vmem:[#allocation2 + $0x1] sm:$0xff] %vm1251, %v1540
        %1545 = vst.msk [vmem:[#allocation2 + $0x9] sm:$0xff] %vm1251, %v1541
        %v1546 = vld [vmem:[#allocation2] sm:$0xff]
        %v1547 = vld [vmem:[#allocation2 + $0x8] sm:$0xff]
        %v1548 = vld [vmem:[#allocation11] sm:$0xff]
        %v1549 = vld [vmem:[#allocation11 + $0x8] sm:$0xff]
        %v1550 = vld [vmem:[#allocation11 + $0x10] sm:$0xff]
        %v1551 = vld [vmem:[#allocation11 + $0x18] sm:$0xff]
        %v1552 = vld [vmem:[#allocation11 + $0x20] sm:$0xff]
        %v1553 = vld [vmem:[#allocation11 + $0x28] sm:$0xff]
        %v1554 = vld [vmem:[#allocation11 + $0x30] sm:$0xff]
        %v1555 = vld [vmem:[#allocation11 + $0x38] sm:$0xff]
        %v1556 = vld [vmem:[#allocation2 + $0x1] sm:$0xff]
        %v1557 = vld [vmem:[#allocation2 + $0x9] sm:$0xff]
        %s1558 = scalar_lea.vmem [#allocation11], 64
        %v1559 = vld [vmem:[%s1558] sm:$0xff]
        %v1560 = vld [vmem:[%s1558 + $0x8] sm:$0xff]
        %v1561 = vld [vmem:[%s1558 + $0x10] sm:$0xff]
        %v1562 = vld [vmem:[%s1558 + $0x18] sm:$0xff]
        %v1563 = vld [vmem:[%s1558 + $0x20] sm:$0xff]
        %v1564 = vld [vmem:[%s1558 + $0x28] sm:$0xff]
        %v1565 = vld [vmem:[%s1558 + $0x30] sm:$0xff]
        %v1566 = vld [vmem:[%s1558 + $0x38] sm:$0xff]
        %v1568 = vsel %vm1251, %v1556, 0
        %v1571 = vsel %vm1251, %v1557, 0
        %1573 = vmatprep.subr.mxu0 0.0
        %1574 = vmatpush1.msra.mxu0 0.0
        %1575 = vmatprep.subr.mxu0 0.0
        %1576 = vmatpush1.msra.mxu0 0.0
        %1577 = vmatprep.subr.mxu0 0.0
        %1578 = vmatpush1.msra.mxu0 0.0
        %1579 = vmatprep.subr.mxu0 0.0
        %1580 = vmatpush1.msra.mxu0 0.0
        %1581 = vmatprep.subr.mxu0 0.0
        %1582 = vmatpush1.msra.mxu0 0.0
        %1583 = vmatprep.subr.mxu0 0.0
        %1584 = vmatpush1.msra.mxu0 0.0
        %1585 = vmatprep.subr.mxu0 0.0
        %1586 = vmatpush1.msra.mxu0 0.0
        %1587 = vmatprep.subr.mxu0 0.0
        %1588 = vmatpush1.msra.mxu0 0.0
        %1589 = vmatprep.subr.mxu0 0.0
        %1590 = vmatpush1.msra.mxu0 %v1566
        %1591 = vmatprep.subr.mxu0 0.0
        %1592 = vmatpush1.msra.mxu0 %v1565
        %1593 = vmatprep.subr.mxu0 0.0
        %1594 = vmatpush1.msra.mxu0 %v1564
        %1595 = vmatprep.subr.mxu0 0.0
        %1596 = vmatpush1.msra.mxu0 %v1563
        %1597 = vmatprep.subr.mxu0 0.0
        %1598 = vmatpush1.msra.mxu0 %v1562
        %1599 = vmatprep.subr.mxu0 0.0
        %1600 = vmatpush1.msra.mxu0 %v1561
        %1601 = vmatprep.subr.mxu0 0.0
        %1602 = vmatpush1.msra.mxu0 %v1560
        %1603 = vmatprep.subr.mxu0 0.0
        %1604 = vmatpush1.msra.mxu0 %v1559
        %1605 = vmatprep.subr.mxu0 0.0
        %1606 = vmatpush2.msra.mxu0 0.0
        %1607 = vmatprep.subr.mxu0 0.0
        %1608 = vmatpush2.msra.mxu0 0.0
        %1609 = vmatprep.subr.mxu0 0.0
        %1610 = vmatpush2.msra.mxu0 0.0
        %1611 = vmatprep.subr.mxu0 0.0
        %1612 = vmatpush2.msra.mxu0 0.0
        %1613 = vmatprep.subr.mxu0 0.0
        %1614 = vmatpush2.msra.mxu0 0.0
        %1615 = vmatprep.subr.mxu0 0.0
        %1616 = vmatpush2.msra.mxu0 0.0
        %1617 = vmatprep.subr.mxu0 0.0
        %1618 = vmatpush2.msra.mxu0 0.0
        %1619 = vmatprep.subr.mxu0 0.0
        %1620 = vmatpush2.msra.mxu0 0.0
        %1621 = vmatprep.subr.mxu0 0.0
        %1622 = vmatpush2.msra.mxu0 0.0
        %1623 = vmatprep.subr.mxu0 0.0
        %1624 = vmatpush2.msra.mxu0 0.0
        %1625 = vmatprep.subr.mxu0 0.0
        %1626 = vmatpush2.msra.mxu0 0.0
        %1627 = vmatprep.subr.mxu0 0.0
        %1628 = vmatpush2.msra.mxu0 0.0
        %1629 = vmatprep.subr.mxu0 0.0
        %1630 = vmatpush2.msra.mxu0 0.0
        %1631 = vmatprep.subr.mxu0 0.0
        %1632 = vmatpush2.msra.mxu0 0.0
        %1633 = vmatprep.subr.mxu0 0.0
        %1634 = vmatpush2.msra.mxu0 0.0
        %1635 = vmatprep.subr.mxu0 0.0
        %1636 = vmatpush2.msra.mxu0 0.0
        %1637 = vmatprep.mubr.f32.mxu0 0.0
        %1638 = vmatmul.mubr.f32.gmra.mxu0 %v1568
        %v1639 = vpop.f32.mrf.mxu0
        %v1640 = vadd.f32 0.0, %v1639
        %v1641 = vpop.f32.mrf.mxu0
        %1642 = vmatprep.mubr.f32.mxu0 0.0
        %1643 = vmatmul.mubr.f32.gmra.mxu0 %v1571
        %v1644 = vpop.f32.mrf.mxu0
        %v1645 = vadd.f32 0.0, %v1644
        %v1646 = vpop.f32.mrf.mxu0
        %1647 = vdwg.mxu0
        %v1649 = vsel %vm1251, %v1546, 0
        %v1652 = vsel %vm1251, %v1547, 0
        %1654 = vmatprep.subr.mxu0 0.0
        %1655 = vmatpush1.msra.mxu0 0.0
        %1656 = vmatprep.subr.mxu0 0.0
        %1657 = vmatpush1.msra.mxu0 0.0
        %1658 = vmatprep.subr.mxu0 0.0
        %1659 = vmatpush1.msra.mxu0 0.0
        %1660 = vmatprep.subr.mxu0 0.0
        %1661 = vmatpush1.msra.mxu0 0.0
        %1662 = vmatprep.subr.mxu0 0.0
        %1663 = vmatpush1.msra.mxu0 0.0
        %1664 = vmatprep.subr.mxu0 0.0
        %1665 = vmatpush1.msra.mxu0 0.0
        %1666 = vmatprep.subr.mxu0 0.0
        %1667 = vmatpush1.msra.mxu0 0.0
        %1668 = vmatprep.subr.mxu0 0.0
        %1669 = vmatpush1.msra.mxu0 0.0
        %1670 = vmatprep.subr.mxu0 0.0
        %1671 = vmatpush1.msra.mxu0 %v1555
        %1672 = vmatprep.subr.mxu0 0.0
        %1673 = vmatpush1.msra.mxu0 %v1554
        %1674 = vmatprep.subr.mxu0 0.0
        %1675 = vmatpush1.msra.mxu0 %v1553
        %1676 = vmatprep.subr.mxu0 0.0
        %1677 = vmatpush1.msra.mxu0 %v1552
        %1678 = vmatprep.subr.mxu0 0.0
        %1679 = vmatpush1.msra.mxu0 %v1551
        %1680 = vmatprep.subr.mxu0 0.0
        %1681 = vmatpush1.msra.mxu0 %v1550
        %1682 = vmatprep.subr.mxu0 0.0
        %1683 = vmatpush1.msra.mxu0 %v1549
        %1684 = vmatprep.subr.mxu0 0.0
        %1685 = vmatpush1.msra.mxu0 %v1548
        %1686 = vmatprep.subr.mxu0 0.0
        %1687 = vmatpush2.msra.mxu0 0.0
        %1688 = vmatprep.subr.mxu0 0.0
        %1689 = vmatpush2.msra.mxu0 0.0
        %1690 = vmatprep.subr.mxu0 0.0
        %1691 = vmatpush2.msra.mxu0 0.0
        %1692 = vmatprep.subr.mxu0 0.0
        %1693 = vmatpush2.msra.mxu0 0.0
        %1694 = vmatprep.subr.mxu0 0.0
        %1695 = vmatpush2.msra.mxu0 0.0
        %1696 = vmatprep.subr.mxu0 0.0
        %1697 = vmatpush2.msra.mxu0 0.0
        %1698 = vmatprep.subr.mxu0 0.0
        %1699 = vmatpush2.msra.mxu0 0.0
        %1700 = vmatprep.subr.mxu0 0.0
        %1701 = vmatpush2.msra.mxu0 0.0
        %1702 = vmatprep.subr.mxu0 0.0
        %1703 = vmatpush2.msra.mxu0 0.0
        %1704 = vmatprep.subr.mxu0 0.0
        %1705 = vmatpush2.msra.mxu0 0.0
        %1706 = vmatprep.subr.mxu0 0.0
        %1707 = vmatpush2.msra.mxu0 0.0
        %1708 = vmatprep.subr.mxu0 0.0
        %1709 = vmatpush2.msra.mxu0 0.0
        %1710 = vmatprep.subr.mxu0 0.0
        %1711 = vmatpush2.msra.mxu0 0.0
        %1712 = vmatprep.subr.mxu0 0.0
        %1713 = vmatpush2.msra.mxu0 0.0
        %1714 = vmatprep.subr.mxu0 0.0
        %1715 = vmatpush2.msra.mxu0 0.0
        %1716 = vmatprep.subr.mxu0 0.0
        %1717 = vmatpush2.msra.mxu0 0.0
        %1718 = vmatprep.mubr.f32.mxu0 0.0
        %1719 = vmatmul.mubr.f32.gmra.mxu0 %v1649
        %v1720 = vpop.f32.mrf.mxu0
        %v1721 = vadd.f32 %v1640, %v1720
        %v1722 = vpop.f32.mrf.mxu0
        %1723 = vmatprep.mubr.f32.mxu0 0.0
        %1724 = vmatmul.mubr.f32.gmra.mxu0 %v1652
        %v1725 = vpop.f32.mrf.mxu0
        %v1726 = vadd.f32 %v1645, %v1725
        %v1727 = vpop.f32.mrf.mxu0
        %1728 = vdwg.mxu0
        %v1729 = vld [vmem:[#allocation2 + $0x2] sm:$0xff]
        %v1730 = vld [vmem:[#allocation2 + $0xa] sm:$0xff]
        %s1731 = scalar_lea.vmem [#allocation11], 128
        %v1732 = vld [vmem:[%s1731] sm:$0xff]
        %v1733 = vld [vmem:[%s1731 + $0x8] sm:$0xff]
        %v1734 = vld [vmem:[%s1731 + $0x10] sm:$0xff]
        %v1735 = vld [vmem:[%s1731 + $0x18] sm:$0xff]
        %v1736 = vld [vmem:[%s1731 + $0x20] sm:$0xff]
        %v1737 = vld [vmem:[%s1731 + $0x28] sm:$0xff]
        %v1738 = vld [vmem:[%s1731 + $0x30] sm:$0xff]
        %v1739 = vld [vmem:[%s1731 + $0x38] sm:$0xff]
        %v1741 = vsel %vm1251, %v1729, 0
        %v1744 = vsel %vm1251, %v1730, 0
        %1746 = vmatprep.subr.mxu0 0.0
        %1747 = vmatpush1.msra.mxu0 0.0
        %1748 = vmatprep.subr.mxu0 0.0
        %1749 = vmatpush1.msra.mxu0 0.0
        %1750 = vmatprep.subr.mxu0 0.0
        %1751 = vmatpush1.msra.mxu0 0.0
        %1752 = vmatprep.subr.mxu0 0.0
        %1753 = vmatpush1.msra.mxu0 0.0
        %1754 = vmatprep.subr.mxu0 0.0
        %1755 = vmatpush1.msra.mxu0 0.0
        %1756 = vmatprep.subr.mxu0 0.0
        %1757 = vmatpush1.msra.mxu0 0.0
        %1758 = vmatprep.subr.mxu0 0.0
        %1759 = vmatpush1.msra.mxu0 0.0
        %1760 = vmatprep.subr.mxu0 0.0
        %1761 = vmatpush1.msra.mxu0 0.0
        %1762 = vmatprep.subr.mxu0 0.0
        %1763 = vmatpush1.msra.mxu0 %v1739
        %1764 = vmatprep.subr.mxu0 0.0
        %1765 = vmatpush1.msra.mxu0 %v1738
        %1766 = vmatprep.subr.mxu0 0.0
        %1767 = vmatpush1.msra.mxu0 %v1737
        %1768 = vmatprep.subr.mxu0 0.0
        %1769 = vmatpush1.msra.mxu0 %v1736
        %1770 = vmatprep.subr.mxu0 0.0
        %1771 = vmatpush1.msra.mxu0 %v1735
        %1772 = vmatprep.subr.mxu0 0.0
        %1773 = vmatpush1.msra.mxu0 %v1734
        %1774 = vmatprep.subr.mxu0 0.0
        %1775 = vmatpush1.msra.mxu0 %v1733
        %1776 = vmatprep.subr.mxu0 0.0
        %1777 = vmatpush1.msra.mxu0 %v1732
        %1778 = vmatprep.subr.mxu0 0.0
        %1779 = vmatpush2.msra.mxu0 0.0
        %1780 = vmatprep.subr.mxu0 0.0
        %1781 = vmatpush2.msra.mxu0 0.0
        %1782 = vmatprep.subr.mxu0 0.0
        %1783 = vmatpush2.msra.mxu0 0.0
        %1784 = vmatprep.subr.mxu0 0.0
        %1785 = vmatpush2.msra.mxu0 0.0
        %1786 = vmatprep.subr.mxu0 0.0
        %1787 = vmatpush2.msra.mxu0 0.0
        %1788 = vmatprep.subr.mxu0 0.0
        %1789 = vmatpush2.msra.mxu0 0.0
        %1790 = vmatprep.subr.mxu0 0.0
        %1791 = vmatpush2.msra.mxu0 0.0
        %1792 = vmatprep.subr.mxu0 0.0
        %1793 = vmatpush2.msra.mxu0 0.0
        %1794 = vmatprep.subr.mxu0 0.0
        %1795 = vmatpush2.msra.mxu0 0.0
        %1796 = vmatprep.subr.mxu0 0.0
        %1797 = vmatpush2.msra.mxu0 0.0
        %1798 = vmatprep.subr.mxu0 0.0
        %1799 = vmatpush2.msra.mxu0 0.0
        %1800 = vmatprep.subr.mxu0 0.0
        %1801 = vmatpush2.msra.mxu0 0.0
        %1802 = vmatprep.subr.mxu0 0.0
        %1803 = vmatpush2.msra.mxu0 0.0
        %1804 = vmatprep.subr.mxu0 0.0
        %1805 = vmatpush2.msra.mxu0 0.0
        %1806 = vmatprep.subr.mxu0 0.0
        %1807 = vmatpush2.msra.mxu0 0.0
        %1808 = vmatprep.subr.mxu0 0.0
        %1809 = vmatpush2.msra.mxu0 0.0
        %1810 = vmatprep.mubr.f32.mxu0 0.0
        %1811 = vmatmul.mubr.f32.gmra.mxu0 %v1741
        %v1812 = vpop.f32.mrf.mxu0
        %v1813 = vadd.f32 0.0, %v1812
        %v1814 = vpop.f32.mrf.mxu0
        %1815 = vmatprep.mubr.f32.mxu0 0.0
        %1816 = vmatmul.mubr.f32.gmra.mxu0 %v1744
        %v1817 = vpop.f32.mrf.mxu0
        %v1818 = vadd.f32 0.0, %v1817
        %v1819 = vpop.f32.mrf.mxu0
        %1820 = vdwg.mxu0
        %v1821 = vadd.f32 %v1721, %v1813
        %v1822 = vadd.f32 %v1726, %v1818
        %v1823 = vld [vmem:[#allocation12] sm:$0x1]
        %v1825 = vlaneseq
        %v1826 = vshrl.u32 %v1825, 7
        %v1827 = vsub.s32 0, %v1826
        %v1828 = vrot.slane %v1823, %v1827
        %v1830 = vadd.f32 %v1821, %v1828
        %v1831 = vadd.f32 %v1822, %v1828
        %v1832 = vadd.f32 %v1830, %v1246
        %v1833 = vadd.f32 %v1831, %v1247
        %v1834 = vmax.f32 %v1832, 0.0
        %v1835 = vmax.f32 %v1833, 0.0
        %1836 = vst.msk [vmem:[#allocation2] sm:$0x1] %vm1248, 0.0
        %1837 = vst.msk [vmem:[#allocation2 + $0x11] sm:$0x1] %vm1248, 0.0
        %1838 = vst.msk [vmem:[#allocation2 + $0x1] sm:$0xff] %vm1251, %v1246
        %1839 = vst.msk [vmem:[#allocation2 + $0x9] sm:$0xff] %vm1251, %v1247
        %v1840 = vld [vmem:[#allocation2] ss:$2 sm:$0xff]
        %v1841 = vld [vmem:[#allocation14] sm:$0xff]
        %v1842 = vld [vmem:[#allocation14 + $0x8] sm:$0xff]
        %v1843 = vld [vmem:[#allocation14 + $0x10] sm:$0xff]
        %v1844 = vld [vmem:[#allocation14 + $0x18] sm:$0xff]
        %v1845 = vld [vmem:[#allocation14 + $0x20] sm:$0xff]
        %v1846 = vld [vmem:[#allocation14 + $0x28] sm:$0xff]
        %v1847 = vld [vmem:[#allocation14 + $0x30] sm:$0xff]
        %v1848 = vld [vmem:[#allocation14 + $0x38] sm:$0xff]
        %s1849 = scalar_lea.vmem [#allocation2], 1
        %v1850 = vld [vmem:[%s1849] ss:$2 sm:$0xff]
        %s1851 = scalar_lea.vmem [#allocation14], 64
        %v1852 = vld [vmem:[%s1851] sm:$0xff]
        %v1853 = vld [vmem:[%s1851 + $0x8] sm:$0xff]
        %v1854 = vld [vmem:[%s1851 + $0x10] sm:$0xff]
        %v1855 = vld [vmem:[%s1851 + $0x18] sm:$0xff]
        %v1856 = vld [vmem:[%s1851 + $0x20] sm:$0xff]
        %v1857 = vld [vmem:[%s1851 + $0x28] sm:$0xff]
        %v1858 = vld [vmem:[%s1851 + $0x30] sm:$0xff]
        %v1859 = vld [vmem:[%s1851 + $0x38] sm:$0xff]
        %v1861 = vsel %vm1251, %v1850, 0
        %1863 = vmatprep.subr.mxu0 0.0
        %1864 = vmatpush1.msra.mxu0 0.0
        %1865 = vmatprep.subr.mxu0 0.0
        %1866 = vmatpush1.msra.mxu0 0.0
        %1867 = vmatprep.subr.mxu0 0.0
        %1868 = vmatpush1.msra.mxu0 0.0
        %1869 = vmatprep.subr.mxu0 0.0
        %1870 = vmatpush1.msra.mxu0 0.0
        %1871 = vmatprep.subr.mxu0 0.0
        %1872 = vmatpush1.msra.mxu0 0.0
        %1873 = vmatprep.subr.mxu0 0.0
        %1874 = vmatpush1.msra.mxu0 0.0
        %1875 = vmatprep.subr.mxu0 0.0
        %1876 = vmatpush1.msra.mxu0 0.0
        %1877 = vmatprep.subr.mxu0 0.0
        %1878 = vmatpush1.msra.mxu0 0.0
        %1879 = vmatprep.subr.mxu0 0.0
        %1880 = vmatpush1.msra.mxu0 %v1859
        %1881 = vmatprep.subr.mxu0 0.0
        %1882 = vmatpush1.msra.mxu0 %v1858
        %1883 = vmatprep.subr.mxu0 0.0
        %1884 = vmatpush1.msra.mxu0 %v1857
        %1885 = vmatprep.subr.mxu0 0.0
        %1886 = vmatpush1.msra.mxu0 %v1856
        %1887 = vmatprep.subr.mxu0 0.0
        %1888 = vmatpush1.msra.mxu0 %v1855
        %1889 = vmatprep.subr.mxu0 0.0
        %1890 = vmatpush1.msra.mxu0 %v1854
        %1891 = vmatprep.subr.mxu0 0.0
        %1892 = vmatpush1.msra.mxu0 %v1853
        %1893 = vmatprep.subr.mxu0 0.0
        %1894 = vmatpush1.msra.mxu0 %v1852
        %1895 = vmatprep.subr.mxu0 0.0
        %1896 = vmatpush2.msra.mxu0 0.0
        %1897 = vmatprep.subr.mxu0 0.0
        %1898 = vmatpush2.msra.mxu0 0.0
        %1899 = vmatprep.subr.mxu0 0.0
        %1900 = vmatpush2.msra.mxu0 0.0
        %1901 = vmatprep.subr.mxu0 0.0
        %1902 = vmatpush2.msra.mxu0 0.0
        %1903 = vmatprep.subr.mxu0 0.0
        %1904 = vmatpush2.msra.mxu0 0.0
        %1905 = vmatprep.subr.mxu0 0.0
        %1906 = vmatpush2.msra.mxu0 0.0
        %1907 = vmatprep.subr.mxu0 0.0
        %1908 = vmatpush2.msra.mxu0 0.0
        %1909 = vmatprep.subr.mxu0 0.0
        %1910 = vmatpush2.msra.mxu0 0.0
        %1911 = vmatprep.subr.mxu0 0.0
        %1912 = vmatpush2.msra.mxu0 0.0
        %1913 = vmatprep.subr.mxu0 0.0
        %1914 = vmatpush2.msra.mxu0 0.0
        %1915 = vmatprep.subr.mxu0 0.0
        %1916 = vmatpush2.msra.mxu0 0.0
        %1917 = vmatprep.subr.mxu0 0.0
        %1918 = vmatpush2.msra.mxu0 0.0
        %1919 = vmatprep.subr.mxu0 0.0
        %1920 = vmatpush2.msra.mxu0 0.0
        %1921 = vmatprep.subr.mxu0 0.0
        %1922 = vmatpush2.msra.mxu0 0.0
        %1923 = vmatprep.subr.mxu0 0.0
        %1924 = vmatpush2.msra.mxu0 0.0
        %1925 = vmatprep.subr.mxu0 0.0
        %1926 = vmatpush2.msra.mxu0 0.0
        %1927 = vmatprep.mubr.f32.mxu0 0.0
        %1928 = vmatmul.mubr.f32.gmra.mxu0 %v1861
        %v1929 = vpop.f32.mrf.mxu0
        %v1930 = vadd.f32 0.0, %v1929
        %v1931 = vpop.f32.mrf.mxu0
        %1932 = vdwg.mxu0
        %v1934 = vsel %vm1251, %v1840, 0
        %1936 = vmatprep.subr.mxu0 0.0
        %1937 = vmatpush1.msra.mxu0 0.0
        %1938 = vmatprep.subr.mxu0 0.0
        %1939 = vmatpush1.msra.mxu0 0.0
        %1940 = vmatprep.subr.mxu0 0.0
        %1941 = vmatpush1.msra.mxu0 0.0
        %1942 = vmatprep.subr.mxu0 0.0
        %1943 = vmatpush1.msra.mxu0 0.0
        %1944 = vmatprep.subr.mxu0 0.0
        %1945 = vmatpush1.msra.mxu0 0.0
        %1946 = vmatprep.subr.mxu0 0.0
        %1947 = vmatpush1.msra.mxu0 0.0
        %1948 = vmatprep.subr.mxu0 0.0
        %1949 = vmatpush1.msra.mxu0 0.0
        %1950 = vmatprep.subr.mxu0 0.0
        %1951 = vmatpush1.msra.mxu0 0.0
        %1952 = vmatprep.subr.mxu0 0.0
        %1953 = vmatpush1.msra.mxu0 %v1848
        %1954 = vmatprep.subr.mxu0 0.0
        %1955 = vmatpush1.msra.mxu0 %v1847
        %1956 = vmatprep.subr.mxu0 0.0
        %1957 = vmatpush1.msra.mxu0 %v1846
        %1958 = vmatprep.subr.mxu0 0.0
        %1959 = vmatpush1.msra.mxu0 %v1845
        %1960 = vmatprep.subr.mxu0 0.0
        %1961 = vmatpush1.msra.mxu0 %v1844
        %1962 = vmatprep.subr.mxu0 0.0
        %1963 = vmatpush1.msra.mxu0 %v1843
        %1964 = vmatprep.subr.mxu0 0.0
        %1965 = vmatpush1.msra.mxu0 %v1842
        %1966 = vmatprep.subr.mxu0 0.0
        %1967 = vmatpush1.msra.mxu0 %v1841
        %1968 = vmatprep.subr.mxu0 0.0
        %1969 = vmatpush2.msra.mxu0 0.0
        %1970 = vmatprep.subr.mxu0 0.0
        %1971 = vmatpush2.msra.mxu0 0.0
        %1972 = vmatprep.subr.mxu0 0.0
        %1973 = vmatpush2.msra.mxu0 0.0
        %1974 = vmatprep.subr.mxu0 0.0
        %1975 = vmatpush2.msra.mxu0 0.0
        %1976 = vmatprep.subr.mxu0 0.0
        %1977 = vmatpush2.msra.mxu0 0.0
        %1978 = vmatprep.subr.mxu0 0.0
        %1979 = vmatpush2.msra.mxu0 0.0
        %1980 = vmatprep.subr.mxu0 0.0
        %1981 = vmatpush2.msra.mxu0 0.0
        %1982 = vmatprep.subr.mxu0 0.0
        %1983 = vmatpush2.msra.mxu0 0.0
        %1984 = vmatprep.subr.mxu0 0.0
        %1985 = vmatpush2.msra.mxu0 0.0
        %1986 = vmatprep.subr.mxu0 0.0
        %1987 = vmatpush2.msra.mxu0 0.0
        %1988 = vmatprep.subr.mxu0 0.0
        %1989 = vmatpush2.msra.mxu0 0.0
        %1990 = vmatprep.subr.mxu0 0.0
        %1991 = vmatpush2.msra.mxu0 0.0
        %1992 = vmatprep.subr.mxu0 0.0
        %1993 = vmatpush2.msra.mxu0 0.0
        %1994 = vmatprep.subr.mxu0 0.0
        %1995 = vmatpush2.msra.mxu0 0.0
        %1996 = vmatprep.subr.mxu0 0.0
        %1997 = vmatpush2.msra.mxu0 0.0
        %1998 = vmatprep.subr.mxu0 0.0
        %1999 = vmatpush2.msra.mxu0 0.0
        %2000 = vmatprep.mubr.f32.mxu0 0.0
        %2001 = vmatmul.mubr.f32.gmra.mxu0 %v1934
        %v2002 = vpop.f32.mrf.mxu0
        %v2003 = vadd.f32 %v1930, %v2002
        %v2004 = vpop.f32.mrf.mxu0
        %2005 = vdwg.mxu0
        %s2006 = scalar_lea.vmem [#allocation2], 2
        %v2007 = vld [vmem:[%s2006] ss:$2 sm:$0xff]
        %s2008 = scalar_lea.vmem [#allocation14], 128
        %v2009 = vld [vmem:[%s2008] sm:$0xff]
        %v2010 = vld [vmem:[%s2008 + $0x8] sm:$0xff]
        %v2011 = vld [vmem:[%s2008 + $0x10] sm:$0xff]
        %v2012 = vld [vmem:[%s2008 + $0x18] sm:$0xff]
        %v2013 = vld [vmem:[%s2008 + $0x20] sm:$0xff]
        %v2014 = vld [vmem:[%s2008 + $0x28] sm:$0xff]
        %v2015 = vld [vmem:[%s2008 + $0x30] sm:$0xff]
        %v2016 = vld [vmem:[%s2008 + $0x38] sm:$0xff]
        %v2018 = vsel %vm1251, %v2007, 0
        %2020 = vmatprep.subr.mxu0 0.0
        %2021 = vmatpush1.msra.mxu0 0.0
        %2022 = vmatprep.subr.mxu0 0.0
        %2023 = vmatpush1.msra.mxu0 0.0
        %2024 = vmatprep.subr.mxu0 0.0
        %2025 = vmatpush1.msra.mxu0 0.0
        %2026 = vmatprep.subr.mxu0 0.0
        %2027 = vmatpush1.msra.mxu0 0.0
        %2028 = vmatprep.subr.mxu0 0.0
        %2029 = vmatpush1.msra.mxu0 0.0
        %2030 = vmatprep.subr.mxu0 0.0
        %2031 = vmatpush1.msra.mxu0 0.0
        %2032 = vmatprep.subr.mxu0 0.0
        %2033 = vmatpush1.msra.mxu0 0.0
        %2034 = vmatprep.subr.mxu0 0.0
        %2035 = vmatpush1.msra.mxu0 0.0
        %2036 = vmatprep.subr.mxu0 0.0
        %2037 = vmatpush1.msra.mxu0 %v2016
        %2038 = vmatprep.subr.mxu0 0.0
        %2039 = vmatpush1.msra.mxu0 %v2015
        %2040 = vmatprep.subr.mxu0 0.0
        %2041 = vmatpush1.msra.mxu0 %v2014
        %2042 = vmatprep.subr.mxu0 0.0
        %2043 = vmatpush1.msra.mxu0 %v2013
        %2044 = vmatprep.subr.mxu0 0.0
        %2045 = vmatpush1.msra.mxu0 %v2012
        %2046 = vmatprep.subr.mxu0 0.0
        %2047 = vmatpush1.msra.mxu0 %v2011
        %2048 = vmatprep.subr.mxu0 0.0
        %2049 = vmatpush1.msra.mxu0 %v2010
        %2050 = vmatprep.subr.mxu0 0.0
        %2051 = vmatpush1.msra.mxu0 %v2009
        %2052 = vmatprep.subr.mxu0 0.0
        %2053 = vmatpush2.msra.mxu0 0.0
        %2054 = vmatprep.subr.mxu0 0.0
        %2055 = vmatpush2.msra.mxu0 0.0
        %2056 = vmatprep.subr.mxu0 0.0
        %2057 = vmatpush2.msra.mxu0 0.0
        %2058 = vmatprep.subr.mxu0 0.0
        %2059 = vmatpush2.msra.mxu0 0.0
        %2060 = vmatprep.subr.mxu0 0.0
        %2061 = vmatpush2.msra.mxu0 0.0
        %2062 = vmatprep.subr.mxu0 0.0
        %2063 = vmatpush2.msra.mxu0 0.0
        %2064 = vmatprep.subr.mxu0 0.0
        %2065 = vmatpush2.msra.mxu0 0.0
        %2066 = vmatprep.subr.mxu0 0.0
        %2067 = vmatpush2.msra.mxu0 0.0
        %2068 = vmatprep.subr.mxu0 0.0
        %2069 = vmatpush2.msra.mxu0 0.0
        %2070 = vmatprep.subr.mxu0 0.0
        %2071 = vmatpush2.msra.mxu0 0.0
        %2072 = vmatprep.subr.mxu0 0.0
        %2073 = vmatpush2.msra.mxu0 0.0
        %2074 = vmatprep.subr.mxu0 0.0
        %2075 = vmatpush2.msra.mxu0 0.0
        %2076 = vmatprep.subr.mxu0 0.0
        %2077 = vmatpush2.msra.mxu0 0.0
        %2078 = vmatprep.subr.mxu0 0.0
        %2079 = vmatpush2.msra.mxu0 0.0
        %2080 = vmatprep.subr.mxu0 0.0
        %2081 = vmatpush2.msra.mxu0 0.0
        %2082 = vmatprep.subr.mxu0 0.0
        %2083 = vmatpush2.msra.mxu0 0.0
        %2084 = vmatprep.mubr.f32.mxu0 0.0
        %2085 = vmatmul.mubr.f32.gmra.mxu0 %v2018
        %v2086 = vpop.f32.mrf.mxu0
        %v2087 = vadd.f32 0.0, %v2086
        %v2088 = vpop.f32.mrf.mxu0
        %2089 = vdwg.mxu0
        %v2090 = vadd.f32 %v2003, %v2087
        %v2091 = vld [vmem:[#allocation15] sm:$0x1]
        %v2093 = vlaneseq
        %v2094 = vshrl.u32 %v2093, 7
        %v2095 = vsub.s32 0, %v2094
        %v2096 = vrot.slane %v2091, %v2095
        %v2098 = vadd.f32 %v2090, %v2096
        %v2099 = vmax.f32 %v2098, 0.0
        %2100 = vst.msk [vmem:[#allocation3] sm:$0x1] %vm1248, 0.0
        %2101 = vst.msk [vmem:[#allocation3 + $0x9] sm:$0x1] %vm1248, 0.0
        %2102 = vst.msk [vmem:[#allocation3 + $0x1] sm:$0xff] %vm1251, %v2099
        %v2103 = vld [vmem:[#allocation3] sm:$0xff]
        %v2104 = vld [vmem:[#allocation17] sm:$0xff]
        %v2105 = vld [vmem:[#allocation17 + $0x8] sm:$0xff]
        %v2106 = vld [vmem:[#allocation17 + $0x10] sm:$0xff]
        %v2107 = vld [vmem:[#allocation17 + $0x18] sm:$0xff]
        %v2108 = vld [vmem:[#allocation17 + $0x20] sm:$0xff]
        %v2109 = vld [vmem:[#allocation17 + $0x28] sm:$0xff]
        %v2110 = vld [vmem:[#allocation17 + $0x30] sm:$0xff]
        %v2111 = vld [vmem:[#allocation17 + $0x38] sm:$0xff]
        %v2112 = vld [vmem:[#allocation3 + $0x1] sm:$0xff]
        %s2113 = scalar_lea.vmem [#allocation17], 64
        %v2114 = vld [vmem:[%s2113] sm:$0xff]
        %v2115 = vld [vmem:[%s2113 + $0x8] sm:$0xff]
        %v2116 = vld [vmem:[%s2113 + $0x10] sm:$0xff]
        %v2117 = vld [vmem:[%s2113 + $0x18] sm:$0xff]
        %v2118 = vld [vmem:[%s2113 + $0x20] sm:$0xff]
        %v2119 = vld [vmem:[%s2113 + $0x28] sm:$0xff]
        %v2120 = vld [vmem:[%s2113 + $0x30] sm:$0xff]
        %v2121 = vld [vmem:[%s2113 + $0x38] sm:$0xff]
        %v2123 = vsel %vm1251, %v2112, 0
        %2125 = vmatprep.subr.mxu0 0.0
        %2126 = vmatpush1.msra.mxu0 0.0
        %2127 = vmatprep.subr.mxu0 0.0
        %2128 = vmatpush1.msra.mxu0 0.0
        %2129 = vmatprep.subr.mxu0 0.0
        %2130 = vmatpush1.msra.mxu0 0.0
        %2131 = vmatprep.subr.mxu0 0.0
        %2132 = vmatpush1.msra.mxu0 0.0
        %2133 = vmatprep.subr.mxu0 0.0
        %2134 = vmatpush1.msra.mxu0 0.0
        %2135 = vmatprep.subr.mxu0 0.0
        %2136 = vmatpush1.msra.mxu0 0.0
        %2137 = vmatprep.subr.mxu0 0.0
        %2138 = vmatpush1.msra.mxu0 0.0
        %2139 = vmatprep.subr.mxu0 0.0
        %2140 = vmatpush1.msra.mxu0 0.0
        %2141 = vmatprep.subr.mxu0 0.0
        %2142 = vmatpush1.msra.mxu0 %v2121
        %2143 = vmatprep.subr.mxu0 0.0
        %2144 = vmatpush1.msra.mxu0 %v2120
        %2145 = vmatprep.subr.mxu0 0.0
        %2146 = vmatpush1.msra.mxu0 %v2119
        %2147 = vmatprep.subr.mxu0 0.0
        %2148 = vmatpush1.msra.mxu0 %v2118
        %2149 = vmatprep.subr.mxu0 0.0
        %2150 = vmatpush1.msra.mxu0 %v2117
        %2151 = vmatprep.subr.mxu0 0.0
        %2152 = vmatpush1.msra.mxu0 %v2116
        %2153 = vmatprep.subr.mxu0 0.0
        %2154 = vmatpush1.msra.mxu0 %v2115
        %2155 = vmatprep.subr.mxu0 0.0
        %2156 = vmatpush1.msra.mxu0 %v2114
        %2157 = vmatprep.subr.mxu0 0.0
        %2158 = vmatpush2.msra.mxu0 0.0
        %2159 = vmatprep.subr.mxu0 0.0
        %2160 = vmatpush2.msra.mxu0 0.0
        %2161 = vmatprep.subr.mxu0 0.0
        %2162 = vmatpush2.msra.mxu0 0.0
        %2163 = vmatprep.subr.mxu0 0.0
        %2164 = vmatpush2.msra.mxu0 0.0
        %2165 = vmatprep.subr.mxu0 0.0
        %2166 = vmatpush2.msra.mxu0 0.0
        %2167 = vmatprep.subr.mxu0 0.0
        %2168 = vmatpush2.msra.mxu0 0.0
        %2169 = vmatprep.subr.mxu0 0.0
        %2170 = vmatpush2.msra.mxu0 0.0
        %2171 = vmatprep.subr.mxu0 0.0
        %2172 = vmatpush2.msra.mxu0 0.0
        %2173 = vmatprep.subr.mxu0 0.0
        %2174 = vmatpush2.msra.mxu0 0.0
        %2175 = vmatprep.subr.mxu0 0.0
        %2176 = vmatpush2.msra.mxu0 0.0
        %2177 = vmatprep.subr.mxu0 0.0
        %2178 = vmatpush2.msra.mxu0 0.0
        %2179 = vmatprep.subr.mxu0 0.0
        %2180 = vmatpush2.msra.mxu0 0.0
        %2181 = vmatprep.subr.mxu0 0.0
        %2182 = vmatpush2.msra.mxu0 0.0
        %2183 = vmatprep.subr.mxu0 0.0
        %2184 = vmatpush2.msra.mxu0 0.0
        %2185 = vmatprep.subr.mxu0 0.0
        %2186 = vmatpush2.msra.mxu0 0.0
        %2187 = vmatprep.subr.mxu0 0.0
        %2188 = vmatpush2.msra.mxu0 0.0
        %2189 = vmatprep.mubr.f32.mxu0 0.0
        %2190 = vmatmul.mubr.f32.gmra.mxu0 %v2123
        %v2191 = vpop.f32.mrf.mxu0
        %v2192 = vadd.f32 0.0, %v2191
        %v2193 = vpop.f32.mrf.mxu0
        %2194 = vdwg.mxu0
        %v2196 = vsel %vm1251, %v2103, 0
        %2198 = vmatprep.subr.mxu0 0.0
        %2199 = vmatpush1.msra.mxu0 0.0
        %2200 = vmatprep.subr.mxu0 0.0
        %2201 = vmatpush1.msra.mxu0 0.0
        %2202 = vmatprep.subr.mxu0 0.0
        %2203 = vmatpush1.msra.mxu0 0.0
        %2204 = vmatprep.subr.mxu0 0.0
        %2205 = vmatpush1.msra.mxu0 0.0
        %2206 = vmatprep.subr.mxu0 0.0
        %2207 = vmatpush1.msra.mxu0 0.0
        %2208 = vmatprep.subr.mxu0 0.0
        %2209 = vmatpush1.msra.mxu0 0.0
        %2210 = vmatprep.subr.mxu0 0.0
        %2211 = vmatpush1.msra.mxu0 0.0
        %2212 = vmatprep.subr.mxu0 0.0
        %2213 = vmatpush1.msra.mxu0 0.0
        %2214 = vmatprep.subr.mxu0 0.0
        %2215 = vmatpush1.msra.mxu0 %v2111
        %2216 = vmatprep.subr.mxu0 0.0
        %2217 = vmatpush1.msra.mxu0 %v2110
        %2218 = vmatprep.subr.mxu0 0.0
        %2219 = vmatpush1.msra.mxu0 %v2109
        %2220 = vmatprep.subr.mxu0 0.0
        %2221 = vmatpush1.msra.mxu0 %v2108
        %2222 = vmatprep.subr.mxu0 0.0
        %2223 = vmatpush1.msra.mxu0 %v2107
        %2224 = vmatprep.subr.mxu0 0.0
        %2225 = vmatpush1.msra.mxu0 %v2106
        %2226 = vmatprep.subr.mxu0 0.0
        %2227 = vmatpush1.msra.mxu0 %v2105
        %2228 = vmatprep.subr.mxu0 0.0
        %2229 = vmatpush1.msra.mxu0 %v2104
        %2230 = vmatprep.subr.mxu0 0.0
        %2231 = vmatpush2.msra.mxu0 0.0
        %2232 = vmatprep.subr.mxu0 0.0
        %2233 = vmatpush2.msra.mxu0 0.0
        %2234 = vmatprep.subr.mxu0 0.0
        %2235 = vmatpush2.msra.mxu0 0.0
        %2236 = vmatprep.subr.mxu0 0.0
        %2237 = vmatpush2.msra.mxu0 0.0
        %2238 = vmatprep.subr.mxu0 0.0
        %2239 = vmatpush2.msra.mxu0 0.0
        %2240 = vmatprep.subr.mxu0 0.0
        %2241 = vmatpush2.msra.mxu0 0.0
        %2242 = vmatprep.subr.mxu0 0.0
        %2243 = vmatpush2.msra.mxu0 0.0
        %2244 = vmatprep.subr.mxu0 0.0
        %2245 = vmatpush2.msra.mxu0 0.0
        %2246 = vmatprep.subr.mxu0 0.0
        %2247 = vmatpush2.msra.mxu0 0.0
        %2248 = vmatprep.subr.mxu0 0.0
        %2249 = vmatpush2.msra.mxu0 0.0
        %2250 = vmatprep.subr.mxu0 0.0
        %2251 = vmatpush2.msra.mxu0 0.0
        %2252 = vmatprep.subr.mxu0 0.0
        %2253 = vmatpush2.msra.mxu0 0.0
        %2254 = vmatprep.subr.mxu0 0.0
        %2255 = vmatpush2.msra.mxu0 0.0
        %2256 = vmatprep.subr.mxu0 0.0
        %2257 = vmatpush2.msra.mxu0 0.0
        %2258 = vmatprep.subr.mxu0 0.0
        %2259 = vmatpush2.msra.mxu0 0.0
        %2260 = vmatprep.subr.mxu0 0.0
        %2261 = vmatpush2.msra.mxu0 0.0
        %2262 = vmatprep.mubr.f32.mxu0 0.0
        %2263 = vmatmul.mubr.f32.gmra.mxu0 %v2196
        %v2264 = vpop.f32.mrf.mxu0
        %v2265 = vadd.f32 %v2192, %v2264
        %v2266 = vpop.f32.mrf.mxu0
        %2267 = vdwg.mxu0
        %v2268 = vld [vmem:[#allocation3 + $0x2] sm:$0xff]
        %s2269 = scalar_lea.vmem [#allocation17], 128
        %v2270 = vld [vmem:[%s2269] sm:$0xff]
        %v2271 = vld [vmem:[%s2269 + $0x8] sm:$0xff]
        %v2272 = vld [vmem:[%s2269 + $0x10] sm:$0xff]
        %v2273 = vld [vmem:[%s2269 + $0x18] sm:$0xff]
        %v2274 = vld [vmem:[%s2269 + $0x20] sm:$0xff]
        %v2275 = vld [vmem:[%s2269 + $0x28] sm:$0xff]
        %v2276 = vld [vmem:[%s2269 + $0x30] sm:$0xff]
        %v2277 = vld [vmem:[%s2269 + $0x38] sm:$0xff]
        %v2279 = vsel %vm1251, %v2268, 0
        %2281 = vmatprep.subr.mxu0 0.0
        %2282 = vmatpush1.msra.mxu0 0.0
        %2283 = vmatprep.subr.mxu0 0.0
        %2284 = vmatpush1.msra.mxu0 0.0
        %2285 = vmatprep.subr.mxu0 0.0
        %2286 = vmatpush1.msra.mxu0 0.0
        %2287 = vmatprep.subr.mxu0 0.0
        %2288 = vmatpush1.msra.mxu0 0.0
        %2289 = vmatprep.subr.mxu0 0.0
        %2290 = vmatpush1.msra.mxu0 0.0
        %2291 = vmatprep.subr.mxu0 0.0
        %2292 = vmatpush1.msra.mxu0 0.0
        %2293 = vmatprep.subr.mxu0 0.0
        %2294 = vmatpush1.msra.mxu0 0.0
        %2295 = vmatprep.subr.mxu0 0.0
        %2296 = vmatpush1.msra.mxu0 0.0
        %2297 = vmatprep.subr.mxu0 0.0
        %2298 = vmatpush1.msra.mxu0 %v2277
        %2299 = vmatprep.subr.mxu0 0.0
        %2300 = vmatpush1.msra.mxu0 %v2276
        %2301 = vmatprep.subr.mxu0 0.0
        %2302 = vmatpush1.msra.mxu0 %v2275
        %2303 = vmatprep.subr.mxu0 0.0
        %2304 = vmatpush1.msra.mxu0 %v2274
        %2305 = vmatprep.subr.mxu0 0.0
        %2306 = vmatpush1.msra.mxu0 %v2273
        %2307 = vmatprep.subr.mxu0 0.0
        %2308 = vmatpush1.msra.mxu0 %v2272
        %2309 = vmatprep.subr.mxu0 0.0
        %2310 = vmatpush1.msra.mxu0 %v2271
        %2311 = vmatprep.subr.mxu0 0.0
        %2312 = vmatpush1.msra.mxu0 %v2270
        %2313 = vmatprep.subr.mxu0 0.0
        %2314 = vmatpush2.msra.mxu0 0.0
        %2315 = vmatprep.subr.mxu0 0.0
        %2316 = vmatpush2.msra.mxu0 0.0
        %2317 = vmatprep.subr.mxu0 0.0
        %2318 = vmatpush2.msra.mxu0 0.0
        %2319 = vmatprep.subr.mxu0 0.0
        %2320 = vmatpush2.msra.mxu0 0.0
        %2321 = vmatprep.subr.mxu0 0.0
        %2322 = vmatpush2.msra.mxu0 0.0
        %2323 = vmatprep.subr.mxu0 0.0
        %2324 = vmatpush2.msra.mxu0 0.0
        %2325 = vmatprep.subr.mxu0 0.0
        %2326 = vmatpush2.msra.mxu0 0.0
        %2327 = vmatprep.subr.mxu0 0.0
        %2328 = vmatpush2.msra.mxu0 0.0
        %2329 = vmatprep.subr.mxu0 0.0
        %2330 = vmatpush2.msra.mxu0 0.0
        %2331 = vmatprep.subr.mxu0 0.0
        %2332 = vmatpush2.msra.mxu0 0.0
        %2333 = vmatprep.subr.mxu0 0.0
        %2334 = vmatpush2.msra.mxu0 0.0
        %2335 = vmatprep.subr.mxu0 0.0
        %2336 = vmatpush2.msra.mxu0 0.0
        %2337 = vmatprep.subr.mxu0 0.0
        %2338 = vmatpush2.msra.mxu0 0.0
        %2339 = vmatprep.subr.mxu0 0.0
        %2340 = vmatpush2.msra.mxu0 0.0
        %2341 = vmatprep.subr.mxu0 0.0
        %2342 = vmatpush2.msra.mxu0 0.0
        %2343 = vmatprep.subr.mxu0 0.0
        %2344 = vmatpush2.msra.mxu0 0.0
        %2345 = vmatprep.mubr.f32.mxu0 0.0
        %2346 = vmatmul.mubr.f32.gmra.mxu0 %v2279
        %v2347 = vpop.f32.mrf.mxu0
        %v2348 = vadd.f32 0.0, %v2347
        %v2349 = vpop.f32.mrf.mxu0
        %2350 = vdwg.mxu0
        %v2351 = vadd.f32 %v2265, %v2348
        %v2352 = vld [vmem:[#allocation18] sm:$0x1]
        %v2354 = vlaneseq
        %v2355 = vshrl.u32 %v2354, 7
        %v2356 = vsub.s32 0, %v2355
        %v2357 = vrot.slane %v2352, %v2356
        %v2359 = vadd.f32 %v2351, %v2357
        %2361 = vrot.lane.b32.xlu0 %v2098, 64
        %v2362 = vpop.permute.xlu0 %2361
        %v2364 = vadd.f32 %v2359, %v2362
        %v2365 = vmax.f32 %v2364, 0.0
        %2366 = vst.msk [vmem:[#allocation3] sm:$0x1] %vm1248, 0.0
        %2367 = vst.msk [vmem:[#allocation3 + $0x9] sm:$0x1] %vm1248, 0.0
        %2368 = vst.msk [vmem:[#allocation3 + $0x1] sm:$0xff] %vm1251, %v2365
        %v2369 = vld [vmem:[#allocation3] sm:$0xff]
        %v2370 = vld [vmem:[#allocation20] sm:$0xff]
        %v2371 = vld [vmem:[#allocation20 + $0x8] sm:$0xff]
        %v2372 = vld [vmem:[#allocation20 + $0x10] sm:$0xff]
        %v2373 = vld [vmem:[#allocation20 + $0x18] sm:$0xff]
        %v2374 = vld [vmem:[#allocation20 + $0x20] sm:$0xff]
        %v2375 = vld [vmem:[#allocation20 + $0x28] sm:$0xff]
        %v2376 = vld [vmem:[#allocation20 + $0x30] sm:$0xff]
        %v2377 = vld [vmem:[#allocation20 + $0x38] sm:$0xff]
        %v2378 = vld [vmem:[#allocation3 + $0x1] sm:$0xff]
        %s2379 = scalar_lea.vmem [#allocation20], 64
        %v2380 = vld [vmem:[%s2379] sm:$0xff]
        %v2381 = vld [vmem:[%s2379 + $0x8] sm:$0xff]
        %v2382 = vld [vmem:[%s2379 + $0x10] sm:$0xff]
        %v2383 = vld [vmem:[%s2379 + $0x18] sm:$0xff]
        %v2384 = vld [vmem:[%s2379 + $0x20] sm:$0xff]
        %v2385 = vld [vmem:[%s2379 + $0x28] sm:$0xff]
        %v2386 = vld [vmem:[%s2379 + $0x30] sm:$0xff]
        %v2387 = vld [vmem:[%s2379 + $0x38] sm:$0xff]
        %v2389 = vsel %vm1251, %v2378, 0
        %2391 = vmatprep.subr.mxu0 0.0
        %2392 = vmatpush1.msra.mxu0 0.0
        %2393 = vmatprep.subr.mxu0 0.0
        %2394 = vmatpush1.msra.mxu0 0.0
        %2395 = vmatprep.subr.mxu0 0.0
        %2396 = vmatpush1.msra.mxu0 0.0
        %2397 = vmatprep.subr.mxu0 0.0
        %2398 = vmatpush1.msra.mxu0 0.0
        %2399 = vmatprep.subr.mxu0 0.0
        %2400 = vmatpush1.msra.mxu0 0.0
        %2401 = vmatprep.subr.mxu0 0.0
        %2402 = vmatpush1.msra.mxu0 0.0
        %2403 = vmatprep.subr.mxu0 0.0
        %2404 = vmatpush1.msra.mxu0 0.0
        %2405 = vmatprep.subr.mxu0 0.0
        %2406 = vmatpush1.msra.mxu0 0.0
        %2407 = vmatprep.subr.mxu0 0.0
        %2408 = vmatpush1.msra.mxu0 %v2387
        %2409 = vmatprep.subr.mxu0 0.0
        %2410 = vmatpush1.msra.mxu0 %v2386
        %2411 = vmatprep.subr.mxu0 0.0
        %2412 = vmatpush1.msra.mxu0 %v2385
        %2413 = vmatprep.subr.mxu0 0.0
        %2414 = vmatpush1.msra.mxu0 %v2384
        %2415 = vmatprep.subr.mxu0 0.0
        %2416 = vmatpush1.msra.mxu0 %v2383
        %2417 = vmatprep.subr.mxu0 0.0
        %2418 = vmatpush1.msra.mxu0 %v2382
        %2419 = vmatprep.subr.mxu0 0.0
        %2420 = vmatpush1.msra.mxu0 %v2381
        %2421 = vmatprep.subr.mxu0 0.0
        %2422 = vmatpush1.msra.mxu0 %v2380
        %2423 = vmatprep.subr.mxu0 0.0
        %2424 = vmatpush2.msra.mxu0 0.0
        %2425 = vmatprep.subr.mxu0 0.0
        %2426 = vmatpush2.msra.mxu0 0.0
        %2427 = vmatprep.subr.mxu0 0.0
        %2428 = vmatpush2.msra.mxu0 0.0
        %2429 = vmatprep.subr.mxu0 0.0
        %2430 = vmatpush2.msra.mxu0 0.0
        %2431 = vmatprep.subr.mxu0 0.0
        %2432 = vmatpush2.msra.mxu0 0.0
        %2433 = vmatprep.subr.mxu0 0.0
        %2434 = vmatpush2.msra.mxu0 0.0
        %2435 = vmatprep.subr.mxu0 0.0
        %2436 = vmatpush2.msra.mxu0 0.0
        %2437 = vmatprep.subr.mxu0 0.0
        %2438 = vmatpush2.msra.mxu0 0.0
        %2439 = vmatprep.subr.mxu0 0.0
        %2440 = vmatpush2.msra.mxu0 0.0
        %2441 = vmatprep.subr.mxu0 0.0
        %2442 = vmatpush2.msra.mxu0 0.0
        %2443 = vmatprep.subr.mxu0 0.0
        %2444 = vmatpush2.msra.mxu0 0.0
        %2445 = vmatprep.subr.mxu0 0.0
        %2446 = vmatpush2.msra.mxu0 0.0
        %2447 = vmatprep.subr.mxu0 0.0
        %2448 = vmatpush2.msra.mxu0 0.0
        %2449 = vmatprep.subr.mxu0 0.0
        %2450 = vmatpush2.msra.mxu0 0.0
        %2451 = vmatprep.subr.mxu0 0.0
        %2452 = vmatpush2.msra.mxu0 0.0
        %2453 = vmatprep.subr.mxu0 0.0
        %2454 = vmatpush2.msra.mxu0 0.0
        %2455 = vmatprep.mubr.f32.mxu0 0.0
        %2456 = vmatmul.mubr.f32.gmra.mxu0 %v2389
        %v2457 = vpop.f32.mrf.mxu0
        %v2458 = vadd.f32 0.0, %v2457
        %v2459 = vpop.f32.mrf.mxu0
        %2460 = vdwg.mxu0
        %v2462 = vsel %vm1251, %v2369, 0
        %2464 = vmatprep.subr.mxu0 0.0
        %2465 = vmatpush1.msra.mxu0 0.0
        %2466 = vmatprep.subr.mxu0 0.0
        %2467 = vmatpush1.msra.mxu0 0.0
        %2468 = vmatprep.subr.mxu0 0.0
        %2469 = vmatpush1.msra.mxu0 0.0
        %2470 = vmatprep.subr.mxu0 0.0
        %2471 = vmatpush1.msra.mxu0 0.0
        %2472 = vmatprep.subr.mxu0 0.0
        %2473 = vmatpush1.msra.mxu0 0.0
        %2474 = vmatprep.subr.mxu0 0.0
        %2475 = vmatpush1.msra.mxu0 0.0
        %2476 = vmatprep.subr.mxu0 0.0
        %2477 = vmatpush1.msra.mxu0 0.0
        %2478 = vmatprep.subr.mxu0 0.0
        %2479 = vmatpush1.msra.mxu0 0.0
        %2480 = vmatprep.subr.mxu0 0.0
        %2481 = vmatpush1.msra.mxu0 %v2377
        %2482 = vmatprep.subr.mxu0 0.0
        %2483 = vmatpush1.msra.mxu0 %v2376
        %2484 = vmatprep.subr.mxu0 0.0
        %2485 = vmatpush1.msra.mxu0 %v2375
        %2486 = vmatprep.subr.mxu0 0.0
        %2487 = vmatpush1.msra.mxu0 %v2374
        %2488 = vmatprep.subr.mxu0 0.0
        %2489 = vmatpush1.msra.mxu0 %v2373
        %2490 = vmatprep.subr.mxu0 0.0
        %2491 = vmatpush1.msra.mxu0 %v2372
        %2492 = vmatprep.subr.mxu0 0.0
        %2493 = vmatpush1.msra.mxu0 %v2371
        %2494 = vmatprep.subr.mxu0 0.0
        %2495 = vmatpush1.msra.mxu0 %v2370
        %2496 = vmatprep.subr.mxu0 0.0
        %2497 = vmatpush2.msra.mxu0 0.0
        %2498 = vmatprep.subr.mxu0 0.0
        %2499 = vmatpush2.msra.mxu0 0.0
        %2500 = vmatprep.subr.mxu0 0.0
        %2501 = vmatpush2.msra.mxu0 0.0
        %2502 = vmatprep.subr.mxu0 0.0
        %2503 = vmatpush2.msra.mxu0 0.0
        %2504 = vmatprep.subr.mxu0 0.0
        %2505 = vmatpush2.msra.mxu0 0.0
        %2506 = vmatprep.subr.mxu0 0.0
        %2507 = vmatpush2.msra.mxu0 0.0
        %2508 = vmatprep.subr.mxu0 0.0
        %2509 = vmatpush2.msra.mxu0 0.0
        %2510 = vmatprep.subr.mxu0 0.0
        %2511 = vmatpush2.msra.mxu0 0.0
        %2512 = vmatprep.subr.mxu0 0.0
        %2513 = vmatpush2.msra.mxu0 0.0
        %2514 = vmatprep.subr.mxu0 0.0
        %2515 = vmatpush2.msra.mxu0 0.0
        %2516 = vmatprep.subr.mxu0 0.0
        %2517 = vmatpush2.msra.mxu0 0.0
        %2518 = vmatprep.subr.mxu0 0.0
        %2519 = vmatpush2.msra.mxu0 0.0
        %2520 = vmatprep.subr.mxu0 0.0
        %2521 = vmatpush2.msra.mxu0 0.0
        %2522 = vmatprep.subr.mxu0 0.0
        %2523 = vmatpush2.msra.mxu0 0.0
        %2524 = vmatprep.subr.mxu0 0.0
        %2525 = vmatpush2.msra.mxu0 0.0
        %2526 = vmatprep.subr.mxu0 0.0
        %2527 = vmatpush2.msra.mxu0 0.0
        %2528 = vmatprep.mubr.f32.mxu0 0.0
        %2529 = vmatmul.mubr.f32.gmra.mxu0 %v2462
        %v2530 = vpop.f32.mrf.mxu0
        %v2531 = vadd.f32 %v2458, %v2530
        %v2532 = vpop.f32.mrf.mxu0
        %2533 = vdwg.mxu0
        %v2534 = vld [vmem:[#allocation3 + $0x2] sm:$0xff]
        %s2535 = scalar_lea.vmem [#allocation20], 128
        %v2536 = vld [vmem:[%s2535] sm:$0xff]
        %v2537 = vld [vmem:[%s2535 + $0x8] sm:$0xff]
        %v2538 = vld [vmem:[%s2535 + $0x10] sm:$0xff]
        %v2539 = vld [vmem:[%s2535 + $0x18] sm:$0xff]
        %v2540 = vld [vmem:[%s2535 + $0x20] sm:$0xff]
        %v2541 = vld [vmem:[%s2535 + $0x28] sm:$0xff]
        %v2542 = vld [vmem:[%s2535 + $0x30] sm:$0xff]
        %v2543 = vld [vmem:[%s2535 + $0x38] sm:$0xff]
        %v2545 = vsel %vm1251, %v2534, 0
        %2547 = vmatprep.subr.mxu0 0.0
        %2548 = vmatpush1.msra.mxu0 0.0
        %2549 = vmatprep.subr.mxu0 0.0
        %2550 = vmatpush1.msra.mxu0 0.0
        %2551 = vmatprep.subr.mxu0 0.0
        %2552 = vmatpush1.msra.mxu0 0.0
        %2553 = vmatprep.subr.mxu0 0.0
        %2554 = vmatpush1.msra.mxu0 0.0
        %2555 = vmatprep.subr.mxu0 0.0
        %2556 = vmatpush1.msra.mxu0 0.0
        %2557 = vmatprep.subr.mxu0 0.0
        %2558 = vmatpush1.msra.mxu0 0.0
        %2559 = vmatprep.subr.mxu0 0.0
        %2560 = vmatpush1.msra.mxu0 0.0
        %2561 = vmatprep.subr.mxu0 0.0
        %2562 = vmatpush1.msra.mxu0 0.0
        %2563 = vmatprep.subr.mxu0 0.0
        %2564 = vmatpush1.msra.mxu0 %v2543
        %2565 = vmatprep.subr.mxu0 0.0
        %2566 = vmatpush1.msra.mxu0 %v2542
        %2567 = vmatprep.subr.mxu0 0.0
        %2568 = vmatpush1.msra.mxu0 %v2541
        %2569 = vmatprep.subr.mxu0 0.0
        %2570 = vmatpush1.msra.mxu0 %v2540
        %2571 = vmatprep.subr.mxu0 0.0
        %2572 = vmatpush1.msra.mxu0 %v2539
        %2573 = vmatprep.subr.mxu0 0.0
        %2574 = vmatpush1.msra.mxu0 %v2538
        %2575 = vmatprep.subr.mxu0 0.0
        %2576 = vmatpush1.msra.mxu0 %v2537
        %2577 = vmatprep.subr.mxu0 0.0
        %2578 = vmatpush1.msra.mxu0 %v2536
        %2579 = vmatprep.subr.mxu0 0.0
        %2580 = vmatpush2.msra.mxu0 0.0
        %2581 = vmatprep.subr.mxu0 0.0
        %2582 = vmatpush2.msra.mxu0 0.0
        %2583 = vmatprep.subr.mxu0 0.0
        %2584 = vmatpush2.msra.mxu0 0.0
        %2585 = vmatprep.subr.mxu0 0.0
        %2586 = vmatpush2.msra.mxu0 0.0
        %2587 = vmatprep.subr.mxu0 0.0
        %2588 = vmatpush2.msra.mxu0 0.0
        %2589 = vmatprep.subr.mxu0 0.0
        %2590 = vmatpush2.msra.mxu0 0.0
        %2591 = vmatprep.subr.mxu0 0.0
        %2592 = vmatpush2.msra.mxu0 0.0
        %2593 = vmatprep.subr.mxu0 0.0
        %2594 = vmatpush2.msra.mxu0 0.0
        %2595 = vmatprep.subr.mxu0 0.0
        %2596 = vmatpush2.msra.mxu0 0.0
        %2597 = vmatprep.subr.mxu0 0.0
        %2598 = vmatpush2.msra.mxu0 0.0
        %2599 = vmatprep.subr.mxu0 0.0
        %2600 = vmatpush2.msra.mxu0 0.0
        %2601 = vmatprep.subr.mxu0 0.0
        %2602 = vmatpush2.msra.mxu0 0.0
        %2603 = vmatprep.subr.mxu0 0.0
        %2604 = vmatpush2.msra.mxu0 0.0
        %2605 = vmatprep.subr.mxu0 0.0
        %2606 = vmatpush2.msra.mxu0 0.0
        %2607 = vmatprep.subr.mxu0 0.0
        %2608 = vmatpush2.msra.mxu0 0.0
        %2609 = vmatprep.subr.mxu0 0.0
        %2610 = vmatpush2.msra.mxu0 0.0
        %2611 = vmatprep.mubr.f32.mxu0 0.0
        %2612 = vmatmul.mubr.f32.gmra.mxu0 %v2545
        %v2613 = vpop.f32.mrf.mxu0
        %v2614 = vadd.f32 0.0, %v2613
        %v2615 = vpop.f32.mrf.mxu0
        %2616 = vdwg.mxu0
        %v2617 = vadd.f32 %v2531, %v2614
        %v2618 = vld [vmem:[#allocation21] sm:$0x1]
        %v2620 = vlaneseq
        %v2621 = vshrl.u32 %v2620, 7
        %v2622 = vsub.s32 0, %v2621
        %v2623 = vrot.slane %v2618, %v2622
        %v2625 = vadd.f32 %v2617, %v2623
        %v2626 = vmax.f32 %v2625, 0.0
        %2627 = vst.msk [vmem:[#allocation3] sm:$0x1] %vm1248, 0.0
        %2628 = vst.msk [vmem:[#allocation3 + $0x9] sm:$0x1] %vm1248, 0.0
        %2629 = vst.msk [vmem:[#allocation3 + $0x1] sm:$0xff] %vm1251, %v2626
        %v2630 = vld [vmem:[#allocation3] sm:$0xff]
        %v2631 = vld [vmem:[#allocation23] sm:$0xff]
        %v2632 = vld [vmem:[#allocation23 + $0x8] sm:$0xff]
        %v2633 = vld [vmem:[#allocation23 + $0x10] sm:$0xff]
        %v2634 = vld [vmem:[#allocation23 + $0x18] sm:$0xff]
        %v2635 = vld [vmem:[#allocation23 + $0x20] sm:$0xff]
        %v2636 = vld [vmem:[#allocation23 + $0x28] sm:$0xff]
        %v2637 = vld [vmem:[#allocation23 + $0x30] sm:$0xff]
        %v2638 = vld [vmem:[#allocation23 + $0x38] sm:$0xff]
        %v2639 = vld [vmem:[#allocation3 + $0x1] sm:$0xff]
        %s2640 = scalar_lea.vmem [#allocation23], 64
        %v2641 = vld [vmem:[%s2640] sm:$0xff]
        %v2642 = vld [vmem:[%s2640 + $0x8] sm:$0xff]
        %v2643 = vld [vmem:[%s2640 + $0x10] sm:$0xff]
        %v2644 = vld [vmem:[%s2640 + $0x18] sm:$0xff]
        %v2645 = vld [vmem:[%s2640 + $0x20] sm:$0xff]
        %v2646 = vld [vmem:[%s2640 + $0x28] sm:$0xff]
        %v2647 = vld [vmem:[%s2640 + $0x30] sm:$0xff]
        %v2648 = vld [vmem:[%s2640 + $0x38] sm:$0xff]
        %v2650 = vsel %vm1251, %v2639, 0
        %2652 = vmatprep.subr.mxu0 0.0
        %2653 = vmatpush1.msra.mxu0 0.0
        %2654 = vmatprep.subr.mxu0 0.0
        %2655 = vmatpush1.msra.mxu0 0.0
        %2656 = vmatprep.subr.mxu0 0.0
        %2657 = vmatpush1.msra.mxu0 0.0
        %2658 = vmatprep.subr.mxu0 0.0
        %2659 = vmatpush1.msra.mxu0 0.0
        %2660 = vmatprep.subr.mxu0 0.0
        %2661 = vmatpush1.msra.mxu0 0.0
        %2662 = vmatprep.subr.mxu0 0.0
        %2663 = vmatpush1.msra.mxu0 0.0
        %2664 = vmatprep.subr.mxu0 0.0
        %2665 = vmatpush1.msra.mxu0 0.0
        %2666 = vmatprep.subr.mxu0 0.0
        %2667 = vmatpush1.msra.mxu0 0.0
        %2668 = vmatprep.subr.mxu0 0.0
        %2669 = vmatpush1.msra.mxu0 %v2648
        %2670 = vmatprep.subr.mxu0 0.0
        %2671 = vmatpush1.msra.mxu0 %v2647
        %2672 = vmatprep.subr.mxu0 0.0
        %2673 = vmatpush1.msra.mxu0 %v2646
        %2674 = vmatprep.subr.mxu0 0.0
        %2675 = vmatpush1.msra.mxu0 %v2645
        %2676 = vmatprep.subr.mxu0 0.0
        %2677 = vmatpush1.msra.mxu0 %v2644
        %2678 = vmatprep.subr.mxu0 0.0
        %2679 = vmatpush1.msra.mxu0 %v2643
        %2680 = vmatprep.subr.mxu0 0.0
        %2681 = vmatpush1.msra.mxu0 %v2642
        %2682 = vmatprep.subr.mxu0 0.0
        %2683 = vmatpush1.msra.mxu0 %v2641
        %2684 = vmatprep.subr.mxu0 0.0
        %2685 = vmatpush2.msra.mxu0 0.0
        %2686 = vmatprep.subr.mxu0 0.0
        %2687 = vmatpush2.msra.mxu0 0.0
        %2688 = vmatprep.subr.mxu0 0.0
        %2689 = vmatpush2.msra.mxu0 0.0
        %2690 = vmatprep.subr.mxu0 0.0
        %2691 = vmatpush2.msra.mxu0 0.0
        %2692 = vmatprep.subr.mxu0 0.0
        %2693 = vmatpush2.msra.mxu0 0.0
        %2694 = vmatprep.subr.mxu0 0.0
        %2695 = vmatpush2.msra.mxu0 0.0
        %2696 = vmatprep.subr.mxu0 0.0
        %2697 = vmatpush2.msra.mxu0 0.0
        %2698 = vmatprep.subr.mxu0 0.0
        %2699 = vmatpush2.msra.mxu0 0.0
        %2700 = vmatprep.subr.mxu0 0.0
        %2701 = vmatpush2.msra.mxu0 0.0
        %2702 = vmatprep.subr.mxu0 0.0
        %2703 = vmatpush2.msra.mxu0 0.0
        %2704 = vmatprep.subr.mxu0 0.0
        %2705 = vmatpush2.msra.mxu0 0.0
        %2706 = vmatprep.subr.mxu0 0.0
        %2707 = vmatpush2.msra.mxu0 0.0
        %2708 = vmatprep.subr.mxu0 0.0
        %2709 = vmatpush2.msra.mxu0 0.0
        %2710 = vmatprep.subr.mxu0 0.0
        %2711 = vmatpush2.msra.mxu0 0.0
        %2712 = vmatprep.subr.mxu0 0.0
        %2713 = vmatpush2.msra.mxu0 0.0
        %2714 = vmatprep.subr.mxu0 0.0
        %2715 = vmatpush2.msra.mxu0 0.0
        %2716 = vmatprep.mubr.f32.mxu0 0.0
        %2717 = vmatmul.mubr.f32.gmra.mxu0 %v2650
        %v2718 = vpop.f32.mrf.mxu0
        %v2719 = vadd.f32 0.0, %v2718
        %v2720 = vpop.f32.mrf.mxu0
        %2721 = vdwg.mxu0
        %v2723 = vsel %vm1251, %v2630, 0
        %2725 = vmatprep.subr.mxu0 0.0
        %2726 = vmatpush1.msra.mxu0 0.0
        %2727 = vmatprep.subr.mxu0 0.0
        %2728 = vmatpush1.msra.mxu0 0.0
        %2729 = vmatprep.subr.mxu0 0.0
        %2730 = vmatpush1.msra.mxu0 0.0
        %2731 = vmatprep.subr.mxu0 0.0
        %2732 = vmatpush1.msra.mxu0 0.0
        %2733 = vmatprep.subr.mxu0 0.0
        %2734 = vmatpush1.msra.mxu0 0.0
        %2735 = vmatprep.subr.mxu0 0.0
        %2736 = vmatpush1.msra.mxu0 0.0
        %2737 = vmatprep.subr.mxu0 0.0
        %2738 = vmatpush1.msra.mxu0 0.0
        %2739 = vmatprep.subr.mxu0 0.0
        %2740 = vmatpush1.msra.mxu0 0.0
        %2741 = vmatprep.subr.mxu0 0.0
        %2742 = vmatpush1.msra.mxu0 %v2638
        %2743 = vmatprep.subr.mxu0 0.0
        %2744 = vmatpush1.msra.mxu0 %v2637
        %2745 = vmatprep.subr.mxu0 0.0
        %2746 = vmatpush1.msra.mxu0 %v2636
        %2747 = vmatprep.subr.mxu0 0.0
        %2748 = vmatpush1.msra.mxu0 %v2635
        %2749 = vmatprep.subr.mxu0 0.0
        %2750 = vmatpush1.msra.mxu0 %v2634
        %2751 = vmatprep.subr.mxu0 0.0
        %2752 = vmatpush1.msra.mxu0 %v2633
        %2753 = vmatprep.subr.mxu0 0.0
        %2754 = vmatpush1.msra.mxu0 %v2632
        %2755 = vmatprep.subr.mxu0 0.0
        %2756 = vmatpush1.msra.mxu0 %v2631
        %2757 = vmatprep.subr.mxu0 0.0
        %2758 = vmatpush2.msra.mxu0 0.0
        %2759 = vmatprep.subr.mxu0 0.0
        %2760 = vmatpush2.msra.mxu0 0.0
        %2761 = vmatprep.subr.mxu0 0.0
        %2762 = vmatpush2.msra.mxu0 0.0
        %2763 = vmatprep.subr.mxu0 0.0
        %2764 = vmatpush2.msra.mxu0 0.0
        %2765 = vmatprep.subr.mxu0 0.0
        %2766 = vmatpush2.msra.mxu0 0.0
        %2767 = vmatprep.subr.mxu0 0.0
        %2768 = vmatpush2.msra.mxu0 0.0
        %2769 = vmatprep.subr.mxu0 0.0
        %2770 = vmatpush2.msra.mxu0 0.0
        %2771 = vmatprep.subr.mxu0 0.0
        %2772 = vmatpush2.msra.mxu0 0.0
        %2773 = vmatprep.subr.mxu0 0.0
        %2774 = vmatpush2.msra.mxu0 0.0
        %2775 = vmatprep.subr.mxu0 0.0
        %2776 = vmatpush2.msra.mxu0 0.0
        %2777 = vmatprep.subr.mxu0 0.0
        %2778 = vmatpush2.msra.mxu0 0.0
        %2779 = vmatprep.subr.mxu0 0.0
        %2780 = vmatpush2.msra.mxu0 0.0
        %2781 = vmatprep.subr.mxu0 0.0
        %2782 = vmatpush2.msra.mxu0 0.0
        %2783 = vmatprep.subr.mxu0 0.0
        %2784 = vmatpush2.msra.mxu0 0.0
        %2785 = vmatprep.subr.mxu0 0.0
        %2786 = vmatpush2.msra.mxu0 0.0
        %2787 = vmatprep.subr.mxu0 0.0
        %2788 = vmatpush2.msra.mxu0 0.0
        %2789 = vmatprep.mubr.f32.mxu0 0.0
        %2790 = vmatmul.mubr.f32.gmra.mxu0 %v2723
        %v2791 = vpop.f32.mrf.mxu0
        %v2792 = vadd.f32 %v2719, %v2791
        %v2793 = vpop.f32.mrf.mxu0
        %2794 = vdwg.mxu0
        %v2795 = vld [vmem:[#allocation3 + $0x2] sm:$0xff]
        %s2796 = scalar_lea.vmem [#allocation23], 128
        %v2797 = vld [vmem:[%s2796] sm:$0xff]
        %v2798 = vld [vmem:[%s2796 + $0x8] sm:$0xff]
        %v2799 = vld [vmem:[%s2796 + $0x10] sm:$0xff]
        %v2800 = vld [vmem:[%s2796 + $0x18] sm:$0xff]
        %v2801 = vld [vmem:[%s2796 + $0x20] sm:$0xff]
        %v2802 = vld [vmem:[%s2796 + $0x28] sm:$0xff]
        %v2803 = vld [vmem:[%s2796 + $0x30] sm:$0xff]
        %v2804 = vld [vmem:[%s2796 + $0x38] sm:$0xff]
        %v2806 = vsel %vm1251, %v2795, 0
        %2808 = vmatprep.subr.mxu0 0.0
        %2809 = vmatpush1.msra.mxu0 0.0
        %2810 = vmatprep.subr.mxu0 0.0
        %2811 = vmatpush1.msra.mxu0 0.0
        %2812 = vmatprep.subr.mxu0 0.0
        %2813 = vmatpush1.msra.mxu0 0.0
        %2814 = vmatprep.subr.mxu0 0.0
        %2815 = vmatpush1.msra.mxu0 0.0
        %2816 = vmatprep.subr.mxu0 0.0
        %2817 = vmatpush1.msra.mxu0 0.0
        %2818 = vmatprep.subr.mxu0 0.0
        %2819 = vmatpush1.msra.mxu0 0.0
        %2820 = vmatprep.subr.mxu0 0.0
        %2821 = vmatpush1.msra.mxu0 0.0
        %2822 = vmatprep.subr.mxu0 0.0
        %2823 = vmatpush1.msra.mxu0 0.0
        %2824 = vmatprep.subr.mxu0 0.0
        %2825 = vmatpush1.msra.mxu0 %v2804
        %2826 = vmatprep.subr.mxu0 0.0
        %2827 = vmatpush1.msra.mxu0 %v2803
        %2828 = vmatprep.subr.mxu0 0.0
        %2829 = vmatpush1.msra.mxu0 %v2802
        %2830 = vmatprep.subr.mxu0 0.0
        %2831 = vmatpush1.msra.mxu0 %v2801
        %2832 = vmatprep.subr.mxu0 0.0
        %2833 = vmatpush1.msra.mxu0 %v2800
        %2834 = vmatprep.subr.mxu0 0.0
        %2835 = vmatpush1.msra.mxu0 %v2799
        %2836 = vmatprep.subr.mxu0 0.0
        %2837 = vmatpush1.msra.mxu0 %v2798
        %2838 = vmatprep.subr.mxu0 0.0
        %2839 = vmatpush1.msra.mxu0 %v2797
        %2840 = vmatprep.subr.mxu0 0.0
        %2841 = vmatpush2.msra.mxu0 0.0
        %2842 = vmatprep.subr.mxu0 0.0
        %2843 = vmatpush2.msra.mxu0 0.0
        %2844 = vmatprep.subr.mxu0 0.0
        %2845 = vmatpush2.msra.mxu0 0.0
        %2846 = vmatprep.subr.mxu0 0.0
        %2847 = vmatpush2.msra.mxu0 0.0
        %2848 = vmatprep.subr.mxu0 0.0
        %2849 = vmatpush2.msra.mxu0 0.0
        %2850 = vmatprep.subr.mxu0 0.0
        %2851 = vmatpush2.msra.mxu0 0.0
        %2852 = vmatprep.subr.mxu0 0.0
        %2853 = vmatpush2.msra.mxu0 0.0
        %2854 = vmatprep.subr.mxu0 0.0
        %2855 = vmatpush2.msra.mxu0 0.0
        %2856 = vmatprep.subr.mxu0 0.0
        %2857 = vmatpush2.msra.mxu0 0.0
        %2858 = vmatprep.subr.mxu0 0.0
        %2859 = vmatpush2.msra.mxu0 0.0
        %2860 = vmatprep.subr.mxu0 0.0
        %2861 = vmatpush2.msra.mxu0 0.0
        %2862 = vmatprep.subr.mxu0 0.0
        %2863 = vmatpush2.msra.mxu0 0.0
        %2864 = vmatprep.subr.mxu0 0.0
        %2865 = vmatpush2.msra.mxu0 0.0
        %2866 = vmatprep.subr.mxu0 0.0
        %2867 = vmatpush2.msra.mxu0 0.0
        %2868 = vmatprep.subr.mxu0 0.0
        %2869 = vmatpush2.msra.mxu0 0.0
        %2870 = vmatprep.subr.mxu0 0.0
        %2871 = vmatpush2.msra.mxu0 0.0
        %2872 = vmatprep.mubr.f32.mxu0 0.0
        %2873 = vmatmul.mubr.f32.gmra.mxu0 %v2806
        %v2874 = vpop.f32.mrf.mxu0
        %v2875 = vadd.f32 0.0, %v2874
        %v2876 = vpop.f32.mrf.mxu0
        %2877 = vdwg.mxu0
        %v2878 = vadd.f32 %v2792, %v2875
        %v2879 = vld [vmem:[#allocation24] sm:$0x1]
        %v2881 = vlaneseq
        %v2882 = vshrl.u32 %v2881, 7
        %v2883 = vsub.s32 0, %v2882
        %v2884 = vrot.slane %v2879, %v2883
        %v2886 = vadd.f32 %v2878, %v2884
        %v2887 = vadd.f32 %v2886, %v2365
        %v2888 = vmax.f32 %v2887, 0.0
        %2889 = vst.msk [vmem:[#allocation3] sm:$0x1] %vm1248, 0.0
        %2890 = vst.msk [vmem:[#allocation3 + $0x9] sm:$0x1] %vm1248, 0.0
        %2891 = vst.msk [vmem:[#allocation3 + $0x1] sm:$0xff] %vm1251, %v2365
        %v2892 = vld [vmem:[#allocation3] ss:$2 sm:$0xf]
        %v2893 = vld [vmem:[#allocation26] sm:$0xff]
        %v2894 = vld [vmem:[#allocation26 + $0x8] sm:$0xff]
        %v2895 = vld [vmem:[#allocation26 + $0x10] sm:$0xff]
        %v2896 = vld [vmem:[#allocation26 + $0x18] sm:$0xff]
        %v2897 = vld [vmem:[#allocation26 + $0x20] sm:$0xff]
        %v2898 = vld [vmem:[#allocation26 + $0x28] sm:$0xff]
        %v2899 = vld [vmem:[#allocation26 + $0x30] sm:$0xff]
        %v2900 = vld [vmem:[#allocation26 + $0x38] sm:$0xff]
        %s2901 = scalar_lea.vmem [#allocation3], 1
        %v2902 = vld [vmem:[%s2901] ss:$2 sm:$0xf]
        %s2903 = scalar_lea.vmem [#allocation26], 64
        %v2904 = vld [vmem:[%s2903] sm:$0xff]
        %v2905 = vld [vmem:[%s2903 + $0x8] sm:$0xff]
        %v2906 = vld [vmem:[%s2903 + $0x10] sm:$0xff]
        %v2907 = vld [vmem:[%s2903 + $0x18] sm:$0xff]
        %v2908 = vld [vmem:[%s2903 + $0x20] sm:$0xff]
        %v2909 = vld [vmem:[%s2903 + $0x28] sm:$0xff]
        %v2910 = vld [vmem:[%s2903 + $0x30] sm:$0xff]
        %v2911 = vld [vmem:[%s2903 + $0x38] sm:$0xff]
        %v2913 = vsel %vm1251, %v2902, 0
        %2915 = vmatprep.subr.mxu0 0.0
        %2916 = vmatpush1.msra.mxu0 0.0
        %2917 = vmatprep.subr.mxu0 0.0
        %2918 = vmatpush1.msra.mxu0 0.0
        %2919 = vmatprep.subr.mxu0 0.0
        %2920 = vmatpush1.msra.mxu0 0.0
        %2921 = vmatprep.subr.mxu0 0.0
        %2922 = vmatpush1.msra.mxu0 0.0
        %2923 = vmatprep.subr.mxu0 0.0
        %2924 = vmatpush1.msra.mxu0 0.0
        %2925 = vmatprep.subr.mxu0 0.0
        %2926 = vmatpush1.msra.mxu0 0.0
        %2927 = vmatprep.subr.mxu0 0.0
        %2928 = vmatpush1.msra.mxu0 0.0
        %2929 = vmatprep.subr.mxu0 0.0
        %2930 = vmatpush1.msra.mxu0 0.0
        %2931 = vmatprep.subr.mxu0 0.0
        %2932 = vmatpush1.msra.mxu0 %v2911
        %2933 = vmatprep.subr.mxu0 0.0
        %2934 = vmatpush1.msra.mxu0 %v2910
        %2935 = vmatprep.subr.mxu0 0.0
        %2936 = vmatpush1.msra.mxu0 %v2909
        %2937 = vmatprep.subr.mxu0 0.0
        %2938 = vmatpush1.msra.mxu0 %v2908
        %2939 = vmatprep.subr.mxu0 0.0
        %2940 = vmatpush1.msra.mxu0 %v2907
        %2941 = vmatprep.subr.mxu0 0.0
        %2942 = vmatpush1.msra.mxu0 %v2906
        %2943 = vmatprep.subr.mxu0 0.0
        %2944 = vmatpush1.msra.mxu0 %v2905
        %2945 = vmatprep.subr.mxu0 0.0
        %2946 = vmatpush1.msra.mxu0 %v2904
        %2947 = vmatprep.subr.mxu0 0.0
        %2948 = vmatpush2.msra.mxu0 0.0
        %2949 = vmatprep.subr.mxu0 0.0
        %2950 = vmatpush2.msra.mxu0 0.0
        %2951 = vmatprep.subr.mxu0 0.0
        %2952 = vmatpush2.msra.mxu0 0.0
        %2953 = vmatprep.subr.mxu0 0.0
        %2954 = vmatpush2.msra.mxu0 0.0
        %2955 = vmatprep.subr.mxu0 0.0
        %2956 = vmatpush2.msra.mxu0 0.0
        %2957 = vmatprep.subr.mxu0 0.0
        %2958 = vmatpush2.msra.mxu0 0.0
        %2959 = vmatprep.subr.mxu0 0.0
        %2960 = vmatpush2.msra.mxu0 0.0
        %2961 = vmatprep.subr.mxu0 0.0
        %2962 = vmatpush2.msra.mxu0 0.0
        %2963 = vmatprep.subr.mxu0 0.0
        %2964 = vmatpush2.msra.mxu0 0.0
        %2965 = vmatprep.subr.mxu0 0.0
        %2966 = vmatpush2.msra.mxu0 0.0
        %2967 = vmatprep.subr.mxu0 0.0
        %2968 = vmatpush2.msra.mxu0 0.0
        %2969 = vmatprep.subr.mxu0 0.0
        %2970 = vmatpush2.msra.mxu0 0.0
        %2971 = vmatprep.subr.mxu0 0.0
        %2972 = vmatpush2.msra.mxu0 0.0
        %2973 = vmatprep.subr.mxu0 0.0
        %2974 = vmatpush2.msra.mxu0 0.0
        %2975 = vmatprep.subr.mxu0 0.0
        %2976 = vmatpush2.msra.mxu0 0.0
        %2977 = vmatprep.subr.mxu0 0.0
        %2978 = vmatpush2.msra.mxu0 0.0
        %2979 = vmatprep.mubr.f32.mxu0 0.0
        %2980 = vmatmul.mubr.f32.gmra.mxu0 %v2913
        %v2981 = vpop.f32.mrf.mxu0
        %v2982 = vadd.f32 0.0, %v2981
        %v2983 = vpop.f32.mrf.mxu0
        %2984 = vdwg.mxu0
        %v2986 = vsel %vm1251, %v2892, 0
        %2988 = vmatprep.subr.mxu0 0.0
        %2989 = vmatpush1.msra.mxu0 0.0
        %2990 = vmatprep.subr.mxu0 0.0
        %2991 = vmatpush1.msra.mxu0 0.0
        %2992 = vmatprep.subr.mxu0 0.0
        %2993 = vmatpush1.msra.mxu0 0.0
        %2994 = vmatprep.subr.mxu0 0.0
        %2995 = vmatpush1.msra.mxu0 0.0
        %2996 = vmatprep.subr.mxu0 0.0
        %2997 = vmatpush1.msra.mxu0 0.0
        %2998 = vmatprep.subr.mxu0 0.0
        %2999 = vmatpush1.msra.mxu0 0.0
        %3000 = vmatprep.subr.mxu0 0.0
        %3001 = vmatpush1.msra.mxu0 0.0
        %3002 = vmatprep.subr.mxu0 0.0
        %3003 = vmatpush1.msra.mxu0 0.0
        %3004 = vmatprep.subr.mxu0 0.0
        %3005 = vmatpush1.msra.mxu0 %v2900
        %3006 = vmatprep.subr.mxu0 0.0
        %3007 = vmatpush1.msra.mxu0 %v2899
        %3008 = vmatprep.subr.mxu0 0.0
        %3009 = vmatpush1.msra.mxu0 %v2898
        %3010 = vmatprep.subr.mxu0 0.0
        %3011 = vmatpush1.msra.mxu0 %v2897
        %3012 = vmatprep.subr.mxu0 0.0
        %3013 = vmatpush1.msra.mxu0 %v2896
        %3014 = vmatprep.subr.mxu0 0.0
        %3015 = vmatpush1.msra.mxu0 %v2895
        %3016 = vmatprep.subr.mxu0 0.0
        %3017 = vmatpush1.msra.mxu0 %v2894
        %3018 = vmatprep.subr.mxu0 0.0
        %3019 = vmatpush1.msra.mxu0 %v2893
        %3020 = vmatprep.subr.mxu0 0.0
        %3021 = vmatpush2.msra.mxu0 0.0
        %3022 = vmatprep.subr.mxu0 0.0
        %3023 = vmatpush2.msra.mxu0 0.0
        %3024 = vmatprep.subr.mxu0 0.0
        %3025 = vmatpush2.msra.mxu0 0.0
        %3026 = vmatprep.subr.mxu0 0.0
        %3027 = vmatpush2.msra.mxu0 0.0
        %3028 = vmatprep.subr.mxu0 0.0
        %3029 = vmatpush2.msra.mxu0 0.0
        %3030 = vmatprep.subr.mxu0 0.0
        %3031 = vmatpush2.msra.mxu0 0.0
        %3032 = vmatprep.subr.mxu0 0.0
        %3033 = vmatpush2.msra.mxu0 0.0
        %3034 = vmatprep.subr.mxu0 0.0
        %3035 = vmatpush2.msra.mxu0 0.0
        %3036 = vmatprep.subr.mxu0 0.0
        %3037 = vmatpush2.msra.mxu0 0.0
        %3038 = vmatprep.subr.mxu0 0.0
        %3039 = vmatpush2.msra.mxu0 0.0
        %3040 = vmatprep.subr.mxu0 0.0
        %3041 = vmatpush2.msra.mxu0 0.0
        %3042 = vmatprep.subr.mxu0 0.0
        %3043 = vmatpush2.msra.mxu0 0.0
        %3044 = vmatprep.subr.mxu0 0.0
        %3045 = vmatpush2.msra.mxu0 0.0
        %3046 = vmatprep.subr.mxu0 0.0
        %3047 = vmatpush2.msra.mxu0 0.0
        %3048 = vmatprep.subr.mxu0 0.0
        %3049 = vmatpush2.msra.mxu0 0.0
        %3050 = vmatprep.subr.mxu0 0.0
        %3051 = vmatpush2.msra.mxu0 0.0
        %3052 = vmatprep.mubr.f32.mxu0 0.0
        %3053 = vmatmul.mubr.f32.gmra.mxu0 %v2986
        %v3054 = vpop.f32.mrf.mxu0
        %v3055 = vadd.f32 %v2982, %v3054
        %v3056 = vpop.f32.mrf.mxu0
        %3057 = vdwg.mxu0
        %s3058 = scalar_lea.vmem [#allocation3], 2
        %v3059 = vld [vmem:[%s3058] ss:$2 sm:$0xf]
        %s3060 = scalar_lea.vmem [#allocation26], 128
        %v3061 = vld [vmem:[%s3060] sm:$0xff]
        %v3062 = vld [vmem:[%s3060 + $0x8] sm:$0xff]
        %v3063 = vld [vmem:[%s3060 + $0x10] sm:$0xff]
        %v3064 = vld [vmem:[%s3060 + $0x18] sm:$0xff]
        %v3065 = vld [vmem:[%s3060 + $0x20] sm:$0xff]
        %v3066 = vld [vmem:[%s3060 + $0x28] sm:$0xff]
        %v3067 = vld [vmem:[%s3060 + $0x30] sm:$0xff]
        %v3068 = vld [vmem:[%s3060 + $0x38] sm:$0xff]
        %v3070 = vsel %vm1251, %v3059, 0
        %3072 = vmatprep.subr.mxu0 0.0
        %3073 = vmatpush1.msra.mxu0 0.0
        %3074 = vmatprep.subr.mxu0 0.0
        %3075 = vmatpush1.msra.mxu0 0.0
        %3076 = vmatprep.subr.mxu0 0.0
        %3077 = vmatpush1.msra.mxu0 0.0
        %3078 = vmatprep.subr.mxu0 0.0
        %3079 = vmatpush1.msra.mxu0 0.0
        %3080 = vmatprep.subr.mxu0 0.0
        %3081 = vmatpush1.msra.mxu0 0.0
        %3082 = vmatprep.subr.mxu0 0.0
        %3083 = vmatpush1.msra.mxu0 0.0
        %3084 = vmatprep.subr.mxu0 0.0
        %3085 = vmatpush1.msra.mxu0 0.0
        %3086 = vmatprep.subr.mxu0 0.0
        %3087 = vmatpush1.msra.mxu0 0.0
        %3088 = vmatprep.subr.mxu0 0.0
        %3089 = vmatpush1.msra.mxu0 %v3068
        %3090 = vmatprep.subr.mxu0 0.0
        %3091 = vmatpush1.msra.mxu0 %v3067
        %3092 = vmatprep.subr.mxu0 0.0
        %3093 = vmatpush1.msra.mxu0 %v3066
        %3094 = vmatprep.subr.mxu0 0.0
        %3095 = vmatpush1.msra.mxu0 %v3065
        %3096 = vmatprep.subr.mxu0 0.0
        %3097 = vmatpush1.msra.mxu0 %v3064
        %3098 = vmatprep.subr.mxu0 0.0
        %3099 = vmatpush1.msra.mxu0 %v3063
        %3100 = vmatprep.subr.mxu0 0.0
        %3101 = vmatpush1.msra.mxu0 %v3062
        %3102 = vmatprep.subr.mxu0 0.0
        %3103 = vmatpush1.msra.mxu0 %v3061
        %3104 = vmatprep.subr.mxu0 0.0
        %3105 = vmatpush2.msra.mxu0 0.0
        %3106 = vmatprep.subr.mxu0 0.0
        %3107 = vmatpush2.msra.mxu0 0.0
        %3108 = vmatprep.subr.mxu0 0.0
        %3109 = vmatpush2.msra.mxu0 0.0
        %3110 = vmatprep.subr.mxu0 0.0
        %3111 = vmatpush2.msra.mxu0 0.0
        %3112 = vmatprep.subr.mxu0 0.0
        %3113 = vmatpush2.msra.mxu0 0.0
        %3114 = vmatprep.subr.mxu0 0.0
        %3115 = vmatpush2.msra.mxu0 0.0
        %3116 = vmatprep.subr.mxu0 0.0
        %3117 = vmatpush2.msra.mxu0 0.0
        %3118 = vmatprep.subr.mxu0 0.0
        %3119 = vmatpush2.msra.mxu0 0.0
        %3120 = vmatprep.subr.mxu0 0.0
        %3121 = vmatpush2.msra.mxu0 0.0
        %3122 = vmatprep.subr.mxu0 0.0
        %3123 = vmatpush2.msra.mxu0 0.0
        %3124 = vmatprep.subr.mxu0 0.0
        %3125 = vmatpush2.msra.mxu0 0.0
        %3126 = vmatprep.subr.mxu0 0.0
        %3127 = vmatpush2.msra.mxu0 0.0
        %3128 = vmatprep.subr.mxu0 0.0
        %3129 = vmatpush2.msra.mxu0 0.0
        %3130 = vmatprep.subr.mxu0 0.0
        %3131 = vmatpush2.msra.mxu0 0.0
        %3132 = vmatprep.subr.mxu0 0.0
        %3133 = vmatpush2.msra.mxu0 0.0
        %3134 = vmatprep.subr.mxu0 0.0
        %3135 = vmatpush2.msra.mxu0 0.0
        %3136 = vmatprep.mubr.f32.mxu0 0.0
        %3137 = vmatmul.mubr.f32.gmra.mxu0 %v3070
        %v3138 = vpop.f32.mrf.mxu0
        %v3139 = vadd.f32 0.0, %v3138
        %v3140 = vpop.f32.mrf.mxu0
        %3141 = vdwg.mxu0
        %v3142 = vadd.f32 %v3055, %v3139
        %v3143 = vld [vmem:[#allocation27] sm:$0x1]
        %v3145 = vlaneseq
        %v3146 = vshrl.u32 %v3145, 7
        %v3147 = vsub.s32 0, %v3146
        %v3148 = vrot.slane %v3143, %v3147
        %v3150 = vadd.f32 %v3142, %v3148
        %v3151 = vmax.f32 %v3150, 0.0
        %3152 = vst.msk [vmem:[#allocation4] sm:$0x1] %vm1248, 0.0
        %3153 = vst.msk [vmem:[#allocation4 + $0x5] sm:$0x1] %vm1248, 0.0
        %vm3154 = vcmask 519168
        %3155 = vst.msk [vmem:[#allocation4 + $0x1] sm:$0xf] %vm3154, %v3151
        %v3156 = vld [vmem:[#allocation4] sm:$0xf]
        %v3157 = vld [vmem:[#allocation29] sm:$0xff]
        %v3158 = vld [vmem:[#allocation29 + $0x8] sm:$0xff]
        %v3159 = vld [vmem:[#allocation29 + $0x10] sm:$0xff]
        %v3160 = vld [vmem:[#allocation29 + $0x18] sm:$0xff]
        %v3161 = vld [vmem:[#allocation29 + $0x20] sm:$0xff]
        %v3162 = vld [vmem:[#allocation29 + $0x28] sm:$0xff]
        %v3163 = vld [vmem:[#allocation29 + $0x30] sm:$0xff]
        %v3164 = vld [vmem:[#allocation29 + $0x38] sm:$0xff]
        %v3165 = vld [vmem:[#allocation4 + $0x1] sm:$0xf]
        %s3166 = scalar_lea.vmem [#allocation29], 64
        %v3167 = vld [vmem:[%s3166] sm:$0xff]
        %v3168 = vld [vmem:[%s3166 + $0x8] sm:$0xff]
        %v3169 = vld [vmem:[%s3166 + $0x10] sm:$0xff]
        %v3170 = vld [vmem:[%s3166 + $0x18] sm:$0xff]
        %v3171 = vld [vmem:[%s3166 + $0x20] sm:$0xff]
        %v3172 = vld [vmem:[%s3166 + $0x28] sm:$0xff]
        %v3173 = vld [vmem:[%s3166 + $0x30] sm:$0xff]
        %v3174 = vld [vmem:[%s3166 + $0x38] sm:$0xff]
        %v3176 = vsel %vm1251, %v3165, 0
        %3178 = vmatprep.subr.mxu0 0.0
        %3179 = vmatpush1.msra.mxu0 0.0
        %3180 = vmatprep.subr.mxu0 0.0
        %3181 = vmatpush1.msra.mxu0 0.0
        %3182 = vmatprep.subr.mxu0 0.0
        %3183 = vmatpush1.msra.mxu0 0.0
        %3184 = vmatprep.subr.mxu0 0.0
        %3185 = vmatpush1.msra.mxu0 0.0
        %3186 = vmatprep.subr.mxu0 0.0
        %3187 = vmatpush1.msra.mxu0 0.0
        %3188 = vmatprep.subr.mxu0 0.0
        %3189 = vmatpush1.msra.mxu0 0.0
        %3190 = vmatprep.subr.mxu0 0.0
        %3191 = vmatpush1.msra.mxu0 0.0
        %3192 = vmatprep.subr.mxu0 0.0
        %3193 = vmatpush1.msra.mxu0 0.0
        %3194 = vmatprep.subr.mxu0 0.0
        %3195 = vmatpush1.msra.mxu0 %v3174
        %3196 = vmatprep.subr.mxu0 0.0
        %3197 = vmatpush1.msra.mxu0 %v3173
        %3198 = vmatprep.subr.mxu0 0.0
        %3199 = vmatpush1.msra.mxu0 %v3172
        %3200 = vmatprep.subr.mxu0 0.0
        %3201 = vmatpush1.msra.mxu0 %v3171
        %3202 = vmatprep.subr.mxu0 0.0
        %3203 = vmatpush1.msra.mxu0 %v3170
        %3204 = vmatprep.subr.mxu0 0.0
        %3205 = vmatpush1.msra.mxu0 %v3169
        %3206 = vmatprep.subr.mxu0 0.0
        %3207 = vmatpush1.msra.mxu0 %v3168
        %3208 = vmatprep.subr.mxu0 0.0
        %3209 = vmatpush1.msra.mxu0 %v3167
        %3210 = vmatprep.subr.mxu0 0.0
        %3211 = vmatpush2.msra.mxu0 0.0
        %3212 = vmatprep.subr.mxu0 0.0
        %3213 = vmatpush2.msra.mxu0 0.0
        %3214 = vmatprep.subr.mxu0 0.0
        %3215 = vmatpush2.msra.mxu0 0.0
        %3216 = vmatprep.subr.mxu0 0.0
        %3217 = vmatpush2.msra.mxu0 0.0
        %3218 = vmatprep.subr.mxu0 0.0
        %3219 = vmatpush2.msra.mxu0 0.0
        %3220 = vmatprep.subr.mxu0 0.0
        %3221 = vmatpush2.msra.mxu0 0.0
        %3222 = vmatprep.subr.mxu0 0.0
        %3223 = vmatpush2.msra.mxu0 0.0
        %3224 = vmatprep.subr.mxu0 0.0
        %3225 = vmatpush2.msra.mxu0 0.0
        %3226 = vmatprep.subr.mxu0 0.0
        %3227 = vmatpush2.msra.mxu0 0.0
        %3228 = vmatprep.subr.mxu0 0.0
        %3229 = vmatpush2.msra.mxu0 0.0
        %3230 = vmatprep.subr.mxu0 0.0
        %3231 = vmatpush2.msra.mxu0 0.0
        %3232 = vmatprep.subr.mxu0 0.0
        %3233 = vmatpush2.msra.mxu0 0.0
        %3234 = vmatprep.subr.mxu0 0.0
        %3235 = vmatpush2.msra.mxu0 0.0
        %3236 = vmatprep.subr.mxu0 0.0
        %3237 = vmatpush2.msra.mxu0 0.0
        %3238 = vmatprep.subr.mxu0 0.0
        %3239 = vmatpush2.msra.mxu0 0.0
        %3240 = vmatprep.subr.mxu0 0.0
        %3241 = vmatpush2.msra.mxu0 0.0
        %3242 = vmatprep.mubr.f32.mxu0 0.0
        %3243 = vmatmul.mubr.f32.gmra.mxu0 %v3176
        %v3244 = vpop.f32.mrf.mxu0
        %v3245 = vadd.f32 0.0, %v3244
        %v3246 = vpop.f32.mrf.mxu0
        %3247 = vdwg.mxu0
        %v3249 = vsel %vm1251, %v3156, 0
        %3251 = vmatprep.subr.mxu0 0.0
        %3252 = vmatpush1.msra.mxu0 0.0
        %3253 = vmatprep.subr.mxu0 0.0
        %3254 = vmatpush1.msra.mxu0 0.0
        %3255 = vmatprep.subr.mxu0 0.0
        %3256 = vmatpush1.msra.mxu0 0.0
        %3257 = vmatprep.subr.mxu0 0.0
        %3258 = vmatpush1.msra.mxu0 0.0
        %3259 = vmatprep.subr.mxu0 0.0
        %3260 = vmatpush1.msra.mxu0 0.0
        %3261 = vmatprep.subr.mxu0 0.0
        %3262 = vmatpush1.msra.mxu0 0.0
        %3263 = vmatprep.subr.mxu0 0.0
        %3264 = vmatpush1.msra.mxu0 0.0
        %3265 = vmatprep.subr.mxu0 0.0
        %3266 = vmatpush1.msra.mxu0 0.0
        %3267 = vmatprep.subr.mxu0 0.0
        %3268 = vmatpush1.msra.mxu0 %v3164
        %3269 = vmatprep.subr.mxu0 0.0
        %3270 = vmatpush1.msra.mxu0 %v3163
        %3271 = vmatprep.subr.mxu0 0.0
        %3272 = vmatpush1.msra.mxu0 %v3162
        %3273 = vmatprep.subr.mxu0 0.0
        %3274 = vmatpush1.msra.mxu0 %v3161
        %3275 = vmatprep.subr.mxu0 0.0
        %3276 = vmatpush1.msra.mxu0 %v3160
        %3277 = vmatprep.subr.mxu0 0.0
        %3278 = vmatpush1.msra.mxu0 %v3159
        %3279 = vmatprep.subr.mxu0 0.0
        %3280 = vmatpush1.msra.mxu0 %v3158
        %3281 = vmatprep.subr.mxu0 0.0
        %3282 = vmatpush1.msra.mxu0 %v3157
        %3283 = vmatprep.subr.mxu0 0.0
        %3284 = vmatpush2.msra.mxu0 0.0
        %3285 = vmatprep.subr.mxu0 0.0
        %3286 = vmatpush2.msra.mxu0 0.0
        %3287 = vmatprep.subr.mxu0 0.0
        %3288 = vmatpush2.msra.mxu0 0.0
        %3289 = vmatprep.subr.mxu0 0.0
        %3290 = vmatpush2.msra.mxu0 0.0
        %3291 = vmatprep.subr.mxu0 0.0
        %3292 = vmatpush2.msra.mxu0 0.0
        %3293 = vmatprep.subr.mxu0 0.0
        %3294 = vmatpush2.msra.mxu0 0.0
        %3295 = vmatprep.subr.mxu0 0.0
        %3296 = vmatpush2.msra.mxu0 0.0
        %3297 = vmatprep.subr.mxu0 0.0
        %3298 = vmatpush2.msra.mxu0 0.0
        %3299 = vmatprep.subr.mxu0 0.0
        %3300 = vmatpush2.msra.mxu0 0.0
        %3301 = vmatprep.subr.mxu0 0.0
        %3302 = vmatpush2.msra.mxu0 0.0
        %3303 = vmatprep.subr.mxu0 0.0
        %3304 = vmatpush2.msra.mxu0 0.0
        %3305 = vmatprep.subr.mxu0 0.0
        %3306 = vmatpush2.msra.mxu0 0.0
        %3307 = vmatprep.subr.mxu0 0.0
        %3308 = vmatpush2.msra.mxu0 0.0
        %3309 = vmatprep.subr.mxu0 0.0
        %3310 = vmatpush2.msra.mxu0 0.0
        %3311 = vmatprep.subr.mxu0 0.0
        %3312 = vmatpush2.msra.mxu0 0.0
        %3313 = vmatprep.subr.mxu0 0.0
        %3314 = vmatpush2.msra.mxu0 0.0
        %3315 = vmatprep.mubr.f32.mxu0 0.0
        %3316 = vmatmul.mubr.f32.gmra.mxu0 %v3249
        %v3317 = vpop.f32.mrf.mxu0
        %v3318 = vadd.f32 %v3245, %v3317
        %v3319 = vpop.f32.mrf.mxu0
        %3320 = vdwg.mxu0
        %v3321 = vld [vmem:[#allocation4 + $0x2] sm:$0xf]
        %s3322 = scalar_lea.vmem [#allocation29], 128
        %v3323 = vld [vmem:[%s3322] sm:$0xff]
        %v3324 = vld [vmem:[%s3322 + $0x8] sm:$0xff]
        %v3325 = vld [vmem:[%s3322 + $0x10] sm:$0xff]
        %v3326 = vld [vmem:[%s3322 + $0x18] sm:$0xff]
        %v3327 = vld [vmem:[%s3322 + $0x20] sm:$0xff]
        %v3328 = vld [vmem:[%s3322 + $0x28] sm:$0xff]
        %v3329 = vld [vmem:[%s3322 + $0x30] sm:$0xff]
        %v3330 = vld [vmem:[%s3322 + $0x38] sm:$0xff]
        %v3332 = vsel %vm1251, %v3321, 0
        %3334 = vmatprep.subr.mxu0 0.0
        %3335 = vmatpush1.msra.mxu0 0.0
        %3336 = vmatprep.subr.mxu0 0.0
        %3337 = vmatpush1.msra.mxu0 0.0
        %3338 = vmatprep.subr.mxu0 0.0
        %3339 = vmatpush1.msra.mxu0 0.0
        %3340 = vmatprep.subr.mxu0 0.0
        %3341 = vmatpush1.msra.mxu0 0.0
        %3342 = vmatprep.subr.mxu0 0.0
        %3343 = vmatpush1.msra.mxu0 0.0
        %3344 = vmatprep.subr.mxu0 0.0
        %3345 = vmatpush1.msra.mxu0 0.0
        %3346 = vmatprep.subr.mxu0 0.0
        %3347 = vmatpush1.msra.mxu0 0.0
        %3348 = vmatprep.subr.mxu0 0.0
        %3349 = vmatpush1.msra.mxu0 0.0
        %3350 = vmatprep.subr.mxu0 0.0
        %3351 = vmatpush1.msra.mxu0 %v3330
        %3352 = vmatprep.subr.mxu0 0.0
        %3353 = vmatpush1.msra.mxu0 %v3329
        %3354 = vmatprep.subr.mxu0 0.0
        %3355 = vmatpush1.msra.mxu0 %v3328
        %3356 = vmatprep.subr.mxu0 0.0
        %3357 = vmatpush1.msra.mxu0 %v3327
        %3358 = vmatprep.subr.mxu0 0.0
        %3359 = vmatpush1.msra.mxu0 %v3326
        %3360 = vmatprep.subr.mxu0 0.0
        %3361 = vmatpush1.msra.mxu0 %v3325
        %3362 = vmatprep.subr.mxu0 0.0
        %3363 = vmatpush1.msra.mxu0 %v3324
        %3364 = vmatprep.subr.mxu0 0.0
        %3365 = vmatpush1.msra.mxu0 %v3323
        %3366 = vmatprep.subr.mxu0 0.0
        %3367 = vmatpush2.msra.mxu0 0.0
        %3368 = vmatprep.subr.mxu0 0.0
        %3369 = vmatpush2.msra.mxu0 0.0
        %3370 = vmatprep.subr.mxu0 0.0
        %3371 = vmatpush2.msra.mxu0 0.0
        %3372 = vmatprep.subr.mxu0 0.0
        %3373 = vmatpush2.msra.mxu0 0.0
        %3374 = vmatprep.subr.mxu0 0.0
        %3375 = vmatpush2.msra.mxu0 0.0
        %3376 = vmatprep.subr.mxu0 0.0
        %3377 = vmatpush2.msra.mxu0 0.0
        %3378 = vmatprep.subr.mxu0 0.0
        %3379 = vmatpush2.msra.mxu0 0.0
        %3380 = vmatprep.subr.mxu0 0.0
        %3381 = vmatpush2.msra.mxu0 0.0
        %3382 = vmatprep.subr.mxu0 0.0
        %3383 = vmatpush2.msra.mxu0 0.0
        %3384 = vmatprep.subr.mxu0 0.0
        %3385 = vmatpush2.msra.mxu0 0.0
        %3386 = vmatprep.subr.mxu0 0.0
        %3387 = vmatpush2.msra.mxu0 0.0
        %3388 = vmatprep.subr.mxu0 0.0
        %3389 = vmatpush2.msra.mxu0 0.0
        %3390 = vmatprep.subr.mxu0 0.0
        %3391 = vmatpush2.msra.mxu0 0.0
        %3392 = vmatprep.subr.mxu0 0.0
        %3393 = vmatpush2.msra.mxu0 0.0
        %3394 = vmatprep.subr.mxu0 0.0
        %3395 = vmatpush2.msra.mxu0 0.0
        %3396 = vmatprep.subr.mxu0 0.0
        %3397 = vmatpush2.msra.mxu0 0.0
        %3398 = vmatprep.mubr.f32.mxu0 0.0
        %3399 = vmatmul.mubr.f32.gmra.mxu0 %v3332
        %v3400 = vpop.f32.mrf.mxu0
        %v3401 = vadd.f32 0.0, %v3400
        %v3402 = vpop.f32.mrf.mxu0
        %3403 = vdwg.mxu0
        %v3404 = vadd.f32 %v3318, %v3401
        %v3405 = vld [vmem:[#allocation30] sm:$0x1]
        %v3407 = vlaneseq
        %v3408 = vshrl.u32 %v3407, 7
        %v3409 = vsub.s32 0, %v3408
        %v3410 = vrot.slane %v3405, %v3409
        %v3412 = vadd.f32 %v3404, %v3410
        %3414 = vrot.lane.b32.xlu0 %v3150, 64
        %v3415 = vpop.permute.xlu0 %3414
        %v3417 = vadd.f32 %v3412, %v3415
        %v3418 = vmax.f32 %v3417, 0.0
        %3419 = vst.msk [vmem:[#allocation4] sm:$0x1] %vm1248, 0.0
        %3420 = vst.msk [vmem:[#allocation4 + $0x5] sm:$0x1] %vm1248, 0.0
        %3421 = vst.msk [vmem:[#allocation4 + $0x1] sm:$0xf] %vm3154, %v3418
        %v3422 = vld [vmem:[#allocation4] sm:$0xf]
        %v3423 = vld [vmem:[#allocation32] sm:$0xff]
        %v3424 = vld [vmem:[#allocation32 + $0x8] sm:$0xff]
        %v3425 = vld [vmem:[#allocation32 + $0x10] sm:$0xff]
        %v3426 = vld [vmem:[#allocation32 + $0x18] sm:$0xff]
        %v3427 = vld [vmem:[#allocation32 + $0x20] sm:$0xff]
        %v3428 = vld [vmem:[#allocation32 + $0x28] sm:$0xff]
        %v3429 = vld [vmem:[#allocation32 + $0x30] sm:$0xff]
        %v3430 = vld [vmem:[#allocation32 + $0x38] sm:$0xff]
        %v3431 = vld [vmem:[#allocation4 + $0x1] sm:$0xf]
        %s3432 = scalar_lea.vmem [#allocation32], 64
        %v3433 = vld [vmem:[%s3432] sm:$0xff]
        %v3434 = vld [vmem:[%s3432 + $0x8] sm:$0xff]
        %v3435 = vld [vmem:[%s3432 + $0x10] sm:$0xff]
        %v3436 = vld [vmem:[%s3432 + $0x18] sm:$0xff]
        %v3437 = vld [vmem:[%s3432 + $0x20] sm:$0xff]
        %v3438 = vld [vmem:[%s3432 + $0x28] sm:$0xff]
        %v3439 = vld [vmem:[%s3432 + $0x30] sm:$0xff]
        %v3440 = vld [vmem:[%s3432 + $0x38] sm:$0xff]
        %v3442 = vsel %vm1251, %v3431, 0
        %3444 = vmatprep.subr.mxu0 0.0
        %3445 = vmatpush1.msra.mxu0 0.0
        %3446 = vmatprep.subr.mxu0 0.0
        %3447 = vmatpush1.msra.mxu0 0.0
        %3448 = vmatprep.subr.mxu0 0.0
        %3449 = vmatpush1.msra.mxu0 0.0
        %3450 = vmatprep.subr.mxu0 0.0
        %3451 = vmatpush1.msra.mxu0 0.0
        %3452 = vmatprep.subr.mxu0 0.0
        %3453 = vmatpush1.msra.mxu0 0.0
        %3454 = vmatprep.subr.mxu0 0.0
        %3455 = vmatpush1.msra.mxu0 0.0
        %3456 = vmatprep.subr.mxu0 0.0
        %3457 = vmatpush1.msra.mxu0 0.0
        %3458 = vmatprep.subr.mxu0 0.0
        %3459 = vmatpush1.msra.mxu0 0.0
        %3460 = vmatprep.subr.mxu0 0.0
        %3461 = vmatpush1.msra.mxu0 %v3440
        %3462 = vmatprep.subr.mxu0 0.0
        %3463 = vmatpush1.msra.mxu0 %v3439
        %3464 = vmatprep.subr.mxu0 0.0
        %3465 = vmatpush1.msra.mxu0 %v3438
        %3466 = vmatprep.subr.mxu0 0.0
        %3467 = vmatpush1.msra.mxu0 %v3437
        %3468 = vmatprep.subr.mxu0 0.0
        %3469 = vmatpush1.msra.mxu0 %v3436
        %3470 = vmatprep.subr.mxu0 0.0
        %3471 = vmatpush1.msra.mxu0 %v3435
        %3472 = vmatprep.subr.mxu0 0.0
        %3473 = vmatpush1.msra.mxu0 %v3434
        %3474 = vmatprep.subr.mxu0 0.0
        %3475 = vmatpush1.msra.mxu0 %v3433
        %3476 = vmatprep.subr.mxu0 0.0
        %3477 = vmatpush2.msra.mxu0 0.0
        %3478 = vmatprep.subr.mxu0 0.0
        %3479 = vmatpush2.msra.mxu0 0.0
        %3480 = vmatprep.subr.mxu0 0.0
        %3481 = vmatpush2.msra.mxu0 0.0
        %3482 = vmatprep.subr.mxu0 0.0
        %3483 = vmatpush2.msra.mxu0 0.0
        %3484 = vmatprep.subr.mxu0 0.0
        %3485 = vmatpush2.msra.mxu0 0.0
        %3486 = vmatprep.subr.mxu0 0.0
        %3487 = vmatpush2.msra.mxu0 0.0
        %3488 = vmatprep.subr.mxu0 0.0
        %3489 = vmatpush2.msra.mxu0 0.0
        %3490 = vmatprep.subr.mxu0 0.0
        %3491 = vmatpush2.msra.mxu0 0.0
        %3492 = vmatprep.subr.mxu0 0.0
        %3493 = vmatpush2.msra.mxu0 0.0
        %3494 = vmatprep.subr.mxu0 0.0
        %3495 = vmatpush2.msra.mxu0 0.0
        %3496 = vmatprep.subr.mxu0 0.0
        %3497 = vmatpush2.msra.mxu0 0.0
        %3498 = vmatprep.subr.mxu0 0.0
        %3499 = vmatpush2.msra.mxu0 0.0
        %3500 = vmatprep.subr.mxu0 0.0
        %3501 = vmatpush2.msra.mxu0 0.0
        %3502 = vmatprep.subr.mxu0 0.0
        %3503 = vmatpush2.msra.mxu0 0.0
        %3504 = vmatprep.subr.mxu0 0.0
        %3505 = vmatpush2.msra.mxu0 0.0
        %3506 = vmatprep.subr.mxu0 0.0
        %3507 = vmatpush2.msra.mxu0 0.0
        %3508 = vmatprep.mubr.f32.mxu0 0.0
        %3509 = vmatmul.mubr.f32.gmra.mxu0 %v3442
        %v3510 = vpop.f32.mrf.mxu0
        %v3511 = vadd.f32 0.0, %v3510
        %v3512 = vpop.f32.mrf.mxu0
        %3513 = vdwg.mxu0
        %v3515 = vsel %vm1251, %v3422, 0
        %3517 = vmatprep.subr.mxu0 0.0
        %3518 = vmatpush1.msra.mxu0 0.0
        %3519 = vmatprep.subr.mxu0 0.0
        %3520 = vmatpush1.msra.mxu0 0.0
        %3521 = vmatprep.subr.mxu0 0.0
        %3522 = vmatpush1.msra.mxu0 0.0
        %3523 = vmatprep.subr.mxu0 0.0
        %3524 = vmatpush1.msra.mxu0 0.0
        %3525 = vmatprep.subr.mxu0 0.0
        %3526 = vmatpush1.msra.mxu0 0.0
        %3527 = vmatprep.subr.mxu0 0.0
        %3528 = vmatpush1.msra.mxu0 0.0
        %3529 = vmatprep.subr.mxu0 0.0
        %3530 = vmatpush1.msra.mxu0 0.0
        %3531 = vmatprep.subr.mxu0 0.0
        %3532 = vmatpush1.msra.mxu0 0.0
        %3533 = vmatprep.subr.mxu0 0.0
        %3534 = vmatpush1.msra.mxu0 %v3430
        %3535 = vmatprep.subr.mxu0 0.0
        %3536 = vmatpush1.msra.mxu0 %v3429
        %3537 = vmatprep.subr.mxu0 0.0
        %3538 = vmatpush1.msra.mxu0 %v3428
        %3539 = vmatprep.subr.mxu0 0.0
        %3540 = vmatpush1.msra.mxu0 %v3427
        %3541 = vmatprep.subr.mxu0 0.0
        %3542 = vmatpush1.msra.mxu0 %v3426
        %3543 = vmatprep.subr.mxu0 0.0
        %3544 = vmatpush1.msra.mxu0 %v3425
        %3545 = vmatprep.subr.mxu0 0.0
        %3546 = vmatpush1.msra.mxu0 %v3424
        %3547 = vmatprep.subr.mxu0 0.0
        %3548 = vmatpush1.msra.mxu0 %v3423
        %3549 = vmatprep.subr.mxu0 0.0
        %3550 = vmatpush2.msra.mxu0 0.0
        %3551 = vmatprep.subr.mxu0 0.0
        %3552 = vmatpush2.msra.mxu0 0.0
        %3553 = vmatprep.subr.mxu0 0.0
        %3554 = vmatpush2.msra.mxu0 0.0
        %3555 = vmatprep.subr.mxu0 0.0
        %3556 = vmatpush2.msra.mxu0 0.0
        %3557 = vmatprep.subr.mxu0 0.0
        %3558 = vmatpush2.msra.mxu0 0.0
        %3559 = vmatprep.subr.mxu0 0.0
        %3560 = vmatpush2.msra.mxu0 0.0
        %3561 = vmatprep.subr.mxu0 0.0
        %3562 = vmatpush2.msra.mxu0 0.0
        %3563 = vmatprep.subr.mxu0 0.0
        %3564 = vmatpush2.msra.mxu0 0.0
        %3565 = vmatprep.subr.mxu0 0.0
        %3566 = vmatpush2.msra.mxu0 0.0
        %3567 = vmatprep.subr.mxu0 0.0
        %3568 = vmatpush2.msra.mxu0 0.0
        %3569 = vmatprep.subr.mxu0 0.0
        %3570 = vmatpush2.msra.mxu0 0.0
        %3571 = vmatprep.subr.mxu0 0.0
        %3572 = vmatpush2.msra.mxu0 0.0
        %3573 = vmatprep.subr.mxu0 0.0
        %3574 = vmatpush2.msra.mxu0 0.0
        %3575 = vmatprep.subr.mxu0 0.0
        %3576 = vmatpush2.msra.mxu0 0.0
        %3577 = vmatprep.subr.mxu0 0.0
        %3578 = vmatpush2.msra.mxu0 0.0
        %3579 = vmatprep.subr.mxu0 0.0
        %3580 = vmatpush2.msra.mxu0 0.0
        %3581 = vmatprep.mubr.f32.mxu0 0.0
        %3582 = vmatmul.mubr.f32.gmra.mxu0 %v3515
        %v3583 = vpop.f32.mrf.mxu0
        %v3584 = vadd.f32 %v3511, %v3583
        %v3585 = vpop.f32.mrf.mxu0
        %3586 = vdwg.mxu0
        %v3587 = vld [vmem:[#allocation4 + $0x2] sm:$0xf]
        %s3588 = scalar_lea.vmem [#allocation32], 128
        %v3589 = vld [vmem:[%s3588] sm:$0xff]
        %v3590 = vld [vmem:[%s3588 + $0x8] sm:$0xff]
        %v3591 = vld [vmem:[%s3588 + $0x10] sm:$0xff]
        %v3592 = vld [vmem:[%s3588 + $0x18] sm:$0xff]
        %v3593 = vld [vmem:[%s3588 + $0x20] sm:$0xff]
        %v3594 = vld [vmem:[%s3588 + $0x28] sm:$0xff]
        %v3595 = vld [vmem:[%s3588 + $0x30] sm:$0xff]
        %v3596 = vld [vmem:[%s3588 + $0x38] sm:$0xff]
        %v3598 = vsel %vm1251, %v3587, 0
        %3600 = vmatprep.subr.mxu0 0.0
        %3601 = vmatpush1.msra.mxu0 0.0
        %3602 = vmatprep.subr.mxu0 0.0
        %3603 = vmatpush1.msra.mxu0 0.0
        %3604 = vmatprep.subr.mxu0 0.0
        %3605 = vmatpush1.msra.mxu0 0.0
        %3606 = vmatprep.subr.mxu0 0.0
        %3607 = vmatpush1.msra.mxu0 0.0
        %3608 = vmatprep.subr.mxu0 0.0
        %3609 = vmatpush1.msra.mxu0 0.0
        %3610 = vmatprep.subr.mxu0 0.0
        %3611 = vmatpush1.msra.mxu0 0.0
        %3612 = vmatprep.subr.mxu0 0.0
        %3613 = vmatpush1.msra.mxu0 0.0
        %3614 = vmatprep.subr.mxu0 0.0
        %3615 = vmatpush1.msra.mxu0 0.0
        %3616 = vmatprep.subr.mxu0 0.0
        %3617 = vmatpush1.msra.mxu0 %v3596
        %3618 = vmatprep.subr.mxu0 0.0
        %3619 = vmatpush1.msra.mxu0 %v3595
        %3620 = vmatprep.subr.mxu0 0.0
        %3621 = vmatpush1.msra.mxu0 %v3594
        %3622 = vmatprep.subr.mxu0 0.0
        %3623 = vmatpush1.msra.mxu0 %v3593
        %3624 = vmatprep.subr.mxu0 0.0
        %3625 = vmatpush1.msra.mxu0 %v3592
        %3626 = vmatprep.subr.mxu0 0.0
        %3627 = vmatpush1.msra.mxu0 %v3591
        %3628 = vmatprep.subr.mxu0 0.0
        %3629 = vmatpush1.msra.mxu0 %v3590
        %3630 = vmatprep.subr.mxu0 0.0
        %3631 = vmatpush1.msra.mxu0 %v3589
        %3632 = vmatprep.subr.mxu0 0.0
        %3633 = vmatpush2.msra.mxu0 0.0
        %3634 = vmatprep.subr.mxu0 0.0
        %3635 = vmatpush2.msra.mxu0 0.0
        %3636 = vmatprep.subr.mxu0 0.0
        %3637 = vmatpush2.msra.mxu0 0.0
        %3638 = vmatprep.subr.mxu0 0.0
        %3639 = vmatpush2.msra.mxu0 0.0
        %3640 = vmatprep.subr.mxu0 0.0
        %3641 = vmatpush2.msra.mxu0 0.0
        %3642 = vmatprep.subr.mxu0 0.0
        %3643 = vmatpush2.msra.mxu0 0.0
        %3644 = vmatprep.subr.mxu0 0.0
        %3645 = vmatpush2.msra.mxu0 0.0
        %3646 = vmatprep.subr.mxu0 0.0
        %3647 = vmatpush2.msra.mxu0 0.0
        %3648 = vmatprep.subr.mxu0 0.0
        %3649 = vmatpush2.msra.mxu0 0.0
        %3650 = vmatprep.subr.mxu0 0.0
        %3651 = vmatpush2.msra.mxu0 0.0
        %3652 = vmatprep.subr.mxu0 0.0
        %3653 = vmatpush2.msra.mxu0 0.0
        %3654 = vmatprep.subr.mxu0 0.0
        %3655 = vmatpush2.msra.mxu0 0.0
        %3656 = vmatprep.subr.mxu0 0.0
        %3657 = vmatpush2.msra.mxu0 0.0
        %3658 = vmatprep.subr.mxu0 0.0
        %3659 = vmatpush2.msra.mxu0 0.0
        %3660 = vmatprep.subr.mxu0 0.0
        %3661 = vmatpush2.msra.mxu0 0.0
        %3662 = vmatprep.subr.mxu0 0.0
        %3663 = vmatpush2.msra.mxu0 0.0
        %3664 = vmatprep.mubr.f32.mxu0 0.0
        %3665 = vmatmul.mubr.f32.gmra.mxu0 %v3598
        %v3666 = vpop.f32.mrf.mxu0
        %v3667 = vadd.f32 0.0, %v3666
        %v3668 = vpop.f32.mrf.mxu0
        %3669 = vdwg.mxu0
        %v3670 = vadd.f32 %v3584, %v3667
        %v3671 = vld [vmem:[#allocation33] sm:$0x1]
        %v3673 = vlaneseq
        %v3674 = vshrl.u32 %v3673, 7
        %v3675 = vsub.s32 0, %v3674
        %v3676 = vrot.slane %v3671, %v3675
        %v3678 = vadd.f32 %v3670, %v3676
        %v3679 = vmax.f32 %v3678, 0.0
        %3680 = vst.msk [vmem:[#allocation4] sm:$0x1] %vm1248, 0.0
        %3681 = vst.msk [vmem:[#allocation4 + $0x5] sm:$0x1] %vm1248, 0.0
        %3682 = vst.msk [vmem:[#allocation4 + $0x1] sm:$0xf] %vm3154, %v3679
        %v3683 = vld [vmem:[#allocation4] sm:$0xf]
        %v3684 = vld [vmem:[#allocation35] sm:$0xff]
        %v3685 = vld [vmem:[#allocation35 + $0x8] sm:$0xff]
        %v3686 = vld [vmem:[#allocation35 + $0x10] sm:$0xff]
        %v3687 = vld [vmem:[#allocation35 + $0x18] sm:$0xff]
        %v3688 = vld [vmem:[#allocation35 + $0x20] sm:$0xff]
        %v3689 = vld [vmem:[#allocation35 + $0x28] sm:$0xff]
        %v3690 = vld [vmem:[#allocation35 + $0x30] sm:$0xff]
        %v3691 = vld [vmem:[#allocation35 + $0x38] sm:$0xff]
        %v3692 = vld [vmem:[#allocation4 + $0x1] sm:$0xf]
        %s3693 = scalar_lea.vmem [#allocation35], 64
        %v3694 = vld [vmem:[%s3693] sm:$0xff]
        %v3695 = vld [vmem:[%s3693 + $0x8] sm:$0xff]
        %v3696 = vld [vmem:[%s3693 + $0x10] sm:$0xff]
        %v3697 = vld [vmem:[%s3693 + $0x18] sm:$0xff]
        %v3698 = vld [vmem:[%s3693 + $0x20] sm:$0xff]
        %v3699 = vld [vmem:[%s3693 + $0x28] sm:$0xff]
        %v3700 = vld [vmem:[%s3693 + $0x30] sm:$0xff]
        %v3701 = vld [vmem:[%s3693 + $0x38] sm:$0xff]
        %v3703 = vsel %vm1251, %v3692, 0
        %3705 = vmatprep.subr.mxu0 0.0
        %3706 = vmatpush1.msra.mxu0 0.0
        %3707 = vmatprep.subr.mxu0 0.0
        %3708 = vmatpush1.msra.mxu0 0.0
        %3709 = vmatprep.subr.mxu0 0.0
        %3710 = vmatpush1.msra.mxu0 0.0
        %3711 = vmatprep.subr.mxu0 0.0
        %3712 = vmatpush1.msra.mxu0 0.0
        %3713 = vmatprep.subr.mxu0 0.0
        %3714 = vmatpush1.msra.mxu0 0.0
        %3715 = vmatprep.subr.mxu0 0.0
        %3716 = vmatpush1.msra.mxu0 0.0
        %3717 = vmatprep.subr.mxu0 0.0
        %3718 = vmatpush1.msra.mxu0 0.0
        %3719 = vmatprep.subr.mxu0 0.0
        %3720 = vmatpush1.msra.mxu0 0.0
        %3721 = vmatprep.subr.mxu0 0.0
        %3722 = vmatpush1.msra.mxu0 %v3701
        %3723 = vmatprep.subr.mxu0 0.0
        %3724 = vmatpush1.msra.mxu0 %v3700
        %3725 = vmatprep.subr.mxu0 0.0
        %3726 = vmatpush1.msra.mxu0 %v3699
        %3727 = vmatprep.subr.mxu0 0.0
        %3728 = vmatpush1.msra.mxu0 %v3698
        %3729 = vmatprep.subr.mxu0 0.0
        %3730 = vmatpush1.msra.mxu0 %v3697
        %3731 = vmatprep.subr.mxu0 0.0
        %3732 = vmatpush1.msra.mxu0 %v3696
        %3733 = vmatprep.subr.mxu0 0.0
        %3734 = vmatpush1.msra.mxu0 %v3695
        %3735 = vmatprep.subr.mxu0 0.0
        %3736 = vmatpush1.msra.mxu0 %v3694
        %3737 = vmatprep.subr.mxu0 0.0
        %3738 = vmatpush2.msra.mxu0 0.0
        %3739 = vmatprep.subr.mxu0 0.0
        %3740 = vmatpush2.msra.mxu0 0.0
        %3741 = vmatprep.subr.mxu0 0.0
        %3742 = vmatpush2.msra.mxu0 0.0
        %3743 = vmatprep.subr.mxu0 0.0
        %3744 = vmatpush2.msra.mxu0 0.0
        %3745 = vmatprep.subr.mxu0 0.0
        %3746 = vmatpush2.msra.mxu0 0.0
        %3747 = vmatprep.subr.mxu0 0.0
        %3748 = vmatpush2.msra.mxu0 0.0
        %3749 = vmatprep.subr.mxu0 0.0
        %3750 = vmatpush2.msra.mxu0 0.0
        %3751 = vmatprep.subr.mxu0 0.0
        %3752 = vmatpush2.msra.mxu0 0.0
        %3753 = vmatprep.subr.mxu0 0.0
        %3754 = vmatpush2.msra.mxu0 0.0
        %3755 = vmatprep.subr.mxu0 0.0
        %3756 = vmatpush2.msra.mxu0 0.0
        %3757 = vmatprep.subr.mxu0 0.0
        %3758 = vmatpush2.msra.mxu0 0.0
        %3759 = vmatprep.subr.mxu0 0.0
        %3760 = vmatpush2.msra.mxu0 0.0
        %3761 = vmatprep.subr.mxu0 0.0
        %3762 = vmatpush2.msra.mxu0 0.0
        %3763 = vmatprep.subr.mxu0 0.0
        %3764 = vmatpush2.msra.mxu0 0.0
        %3765 = vmatprep.subr.mxu0 0.0
        %3766 = vmatpush2.msra.mxu0 0.0
        %3767 = vmatprep.subr.mxu0 0.0
        %3768 = vmatpush2.msra.mxu0 0.0
        %3769 = vmatprep.mubr.f32.mxu0 0.0
        %3770 = vmatmul.mubr.f32.gmra.mxu0 %v3703
        %v3771 = vpop.f32.mrf.mxu0
        %v3772 = vadd.f32 0.0, %v3771
        %v3773 = vpop.f32.mrf.mxu0
        %3774 = vdwg.mxu0
        %v3776 = vsel %vm1251, %v3683, 0
        %3778 = vmatprep.subr.mxu0 0.0
        %3779 = vmatpush1.msra.mxu0 0.0
        %3780 = vmatprep.subr.mxu0 0.0
        %3781 = vmatpush1.msra.mxu0 0.0
        %3782 = vmatprep.subr.mxu0 0.0
        %3783 = vmatpush1.msra.mxu0 0.0
        %3784 = vmatprep.subr.mxu0 0.0
        %3785 = vmatpush1.msra.mxu0 0.0
        %3786 = vmatprep.subr.mxu0 0.0
        %3787 = vmatpush1.msra.mxu0 0.0
        %3788 = vmatprep.subr.mxu0 0.0
        %3789 = vmatpush1.msra.mxu0 0.0
        %3790 = vmatprep.subr.mxu0 0.0
        %3791 = vmatpush1.msra.mxu0 0.0
        %3792 = vmatprep.subr.mxu0 0.0
        %3793 = vmatpush1.msra.mxu0 0.0
        %3794 = vmatprep.subr.mxu0 0.0
        %3795 = vmatpush1.msra.mxu0 %v3691
        %3796 = vmatprep.subr.mxu0 0.0
        %3797 = vmatpush1.msra.mxu0 %v3690
        %3798 = vmatprep.subr.mxu0 0.0
        %3799 = vmatpush1.msra.mxu0 %v3689
        %3800 = vmatprep.subr.mxu0 0.0
        %3801 = vmatpush1.msra.mxu0 %v3688
        %3802 = vmatprep.subr.mxu0 0.0
        %3803 = vmatpush1.msra.mxu0 %v3687
        %3804 = vmatprep.subr.mxu0 0.0
        %3805 = vmatpush1.msra.mxu0 %v3686
        %3806 = vmatprep.subr.mxu0 0.0
        %3807 = vmatpush1.msra.mxu0 %v3685
        %3808 = vmatprep.subr.mxu0 0.0
        %3809 = vmatpush1.msra.mxu0 %v3684
        %3810 = vmatprep.subr.mxu0 0.0
        %3811 = vmatpush2.msra.mxu0 0.0
        %3812 = vmatprep.subr.mxu0 0.0
        %3813 = vmatpush2.msra.mxu0 0.0
        %3814 = vmatprep.subr.mxu0 0.0
        %3815 = vmatpush2.msra.mxu0 0.0
        %3816 = vmatprep.subr.mxu0 0.0
        %3817 = vmatpush2.msra.mxu0 0.0
        %3818 = vmatprep.subr.mxu0 0.0
        %3819 = vmatpush2.msra.mxu0 0.0
        %3820 = vmatprep.subr.mxu0 0.0
        %3821 = vmatpush2.msra.mxu0 0.0
        %3822 = vmatprep.subr.mxu0 0.0
        %3823 = vmatpush2.msra.mxu0 0.0
        %3824 = vmatprep.subr.mxu0 0.0
        %3825 = vmatpush2.msra.mxu0 0.0
        %3826 = vmatprep.subr.mxu0 0.0
        %3827 = vmatpush2.msra.mxu0 0.0
        %3828 = vmatprep.subr.mxu0 0.0
        %3829 = vmatpush2.msra.mxu0 0.0
        %3830 = vmatprep.subr.mxu0 0.0
        %3831 = vmatpush2.msra.mxu0 0.0
        %3832 = vmatprep.subr.mxu0 0.0
        %3833 = vmatpush2.msra.mxu0 0.0
        %3834 = vmatprep.subr.mxu0 0.0
        %3835 = vmatpush2.msra.mxu0 0.0
        %3836 = vmatprep.subr.mxu0 0.0
        %3837 = vmatpush2.msra.mxu0 0.0
        %3838 = vmatprep.subr.mxu0 0.0
        %3839 = vmatpush2.msra.mxu0 0.0
        %3840 = vmatprep.subr.mxu0 0.0
        %3841 = vmatpush2.msra.mxu0 0.0
        %3842 = vmatprep.mubr.f32.mxu0 0.0
        %3843 = vmatmul.mubr.f32.gmra.mxu0 %v3776
        %v3844 = vpop.f32.mrf.mxu0
        %v3845 = vadd.f32 %v3772, %v3844
        %v3846 = vpop.f32.mrf.mxu0
        %3847 = vdwg.mxu0
        %v3848 = vld [vmem:[#allocation4 + $0x2] sm:$0xf]
        %s3849 = scalar_lea.vmem [#allocation35], 128
        %v3850 = vld [vmem:[%s3849] sm:$0xff]
        %v3851 = vld [vmem:[%s3849 + $0x8] sm:$0xff]
        %v3852 = vld [vmem:[%s3849 + $0x10] sm:$0xff]
        %v3853 = vld [vmem:[%s3849 + $0x18] sm:$0xff]
        %v3854 = vld [vmem:[%s3849 + $0x20] sm:$0xff]
        %v3855 = vld [vmem:[%s3849 + $0x28] sm:$0xff]
        %v3856 = vld [vmem:[%s3849 + $0x30] sm:$0xff]
        %v3857 = vld [vmem:[%s3849 + $0x38] sm:$0xff]
        %v3859 = vsel %vm1251, %v3848, 0
        %3861 = vmatprep.subr.mxu0 0.0
        %3862 = vmatpush1.msra.mxu0 0.0
        %3863 = vmatprep.subr.mxu0 0.0
        %3864 = vmatpush1.msra.mxu0 0.0
        %3865 = vmatprep.subr.mxu0 0.0
        %3866 = vmatpush1.msra.mxu0 0.0
        %3867 = vmatprep.subr.mxu0 0.0
        %3868 = vmatpush1.msra.mxu0 0.0
        %3869 = vmatprep.subr.mxu0 0.0
        %3870 = vmatpush1.msra.mxu0 0.0
        %3871 = vmatprep.subr.mxu0 0.0
        %3872 = vmatpush1.msra.mxu0 0.0
        %3873 = vmatprep.subr.mxu0 0.0
        %3874 = vmatpush1.msra.mxu0 0.0
        %3875 = vmatprep.subr.mxu0 0.0
        %3876 = vmatpush1.msra.mxu0 0.0
        %3877 = vmatprep.subr.mxu0 0.0
        %3878 = vmatpush1.msra.mxu0 %v3857
        %3879 = vmatprep.subr.mxu0 0.0
        %3880 = vmatpush1.msra.mxu0 %v3856
        %3881 = vmatprep.subr.mxu0 0.0
        %3882 = vmatpush1.msra.mxu0 %v3855
        %3883 = vmatprep.subr.mxu0 0.0
        %3884 = vmatpush1.msra.mxu0 %v3854
        %3885 = vmatprep.subr.mxu0 0.0
        %3886 = vmatpush1.msra.mxu0 %v3853
        %3887 = vmatprep.subr.mxu0 0.0
        %3888 = vmatpush1.msra.mxu0 %v3852
        %3889 = vmatprep.subr.mxu0 0.0
        %3890 = vmatpush1.msra.mxu0 %v3851
        %3891 = vmatprep.subr.mxu0 0.0
        %3892 = vmatpush1.msra.mxu0 %v3850
        %3893 = vmatprep.subr.mxu0 0.0
        %3894 = vmatpush2.msra.mxu0 0.0
        %3895 = vmatprep.subr.mxu0 0.0
        %3896 = vmatpush2.msra.mxu0 0.0
        %3897 = vmatprep.subr.mxu0 0.0
        %3898 = vmatpush2.msra.mxu0 0.0
        %3899 = vmatprep.subr.mxu0 0.0
        %3900 = vmatpush2.msra.mxu0 0.0
        %3901 = vmatprep.subr.mxu0 0.0
        %3902 = vmatpush2.msra.mxu0 0.0
        %3903 = vmatprep.subr.mxu0 0.0
        %3904 = vmatpush2.msra.mxu0 0.0
        %3905 = vmatprep.subr.mxu0 0.0
        %3906 = vmatpush2.msra.mxu0 0.0
        %3907 = vmatprep.subr.mxu0 0.0
        %3908 = vmatpush2.msra.mxu0 0.0
        %3909 = vmatprep.subr.mxu0 0.0
        %3910 = vmatpush2.msra.mxu0 0.0
        %3911 = vmatprep.subr.mxu0 0.0
        %3912 = vmatpush2.msra.mxu0 0.0
        %3913 = vmatprep.subr.mxu0 0.0
        %3914 = vmatpush2.msra.mxu0 0.0
        %3915 = vmatprep.subr.mxu0 0.0
        %3916 = vmatpush2.msra.mxu0 0.0
        %3917 = vmatprep.subr.mxu0 0.0
        %3918 = vmatpush2.msra.mxu0 0.0
        %3919 = vmatprep.subr.mxu0 0.0
        %3920 = vmatpush2.msra.mxu0 0.0
        %3921 = vmatprep.subr.mxu0 0.0
        %3922 = vmatpush2.msra.mxu0 0.0
        %3923 = vmatprep.subr.mxu0 0.0
        %3924 = vmatpush2.msra.mxu0 0.0
        %3925 = vmatprep.mubr.f32.mxu0 0.0
        %3926 = vmatmul.mubr.f32.gmra.mxu0 %v3859
        %v3927 = vpop.f32.mrf.mxu0
        %v3928 = vadd.f32 0.0, %v3927
        %v3929 = vpop.f32.mrf.mxu0
        %3930 = vdwg.mxu0
        %v3931 = vadd.f32 %v3845, %v3928
        %v3932 = vld [vmem:[%s41] sm:$0x1]
        %v3934 = vlaneseq
        %v3935 = vshrl.u32 %v3934, 7
        %v3936 = vsub.s32 0, %v3935
        %v3937 = vrot.slane %v3932, %v3936
        %v3939 = vadd.f32 %v3931, %v3937
        %v3940 = vadd.f32 %v3939, %v3418
        %v3941 = vmax.f32 %v3940, 0.0
        %3942 = vst.msk [vmem:[#allocation4] sm:$0x1] %vm1248, 0.0
        %3943 = vst.msk [vmem:[#allocation4 + $0x5] sm:$0x1] %vm1248, 0.0
        %3944 = vst.msk [vmem:[#allocation4 + $0x1] sm:$0xf] %vm3154, %v3941
        %v3945 = vld [vmem:[#allocation4] sm:$0xf]
        %v3946 = vld [vmem:[%s43] sm:$0xff]
        %v3947 = vld [vmem:[%s43 + $0x8] sm:$0xff]
        %v3948 = vld [vmem:[%s43 + $0x10] sm:$0xff]
        %v3949 = vld [vmem:[%s43 + $0x18] sm:$0xff]
        %v3950 = vld [vmem:[%s43 + $0x20] sm:$0xff]
        %v3951 = vld [vmem:[%s43 + $0x28] sm:$0xff]
        %v3952 = vld [vmem:[%s43 + $0x30] sm:$0xff]
        %v3953 = vld [vmem:[%s43 + $0x38] sm:$0xff]
        %v3954 = vld [vmem:[#allocation4 + $0x1] sm:$0xf]
        %s3955 = scalar_lea.vmem %s43, 64
        %v3956 = vld [vmem:[%s3955] sm:$0xff]
        %v3957 = vld [vmem:[%s3955 + $0x8] sm:$0xff]
        %v3958 = vld [vmem:[%s3955 + $0x10] sm:$0xff]
        %v3959 = vld [vmem:[%s3955 + $0x18] sm:$0xff]
        %v3960 = vld [vmem:[%s3955 + $0x20] sm:$0xff]
        %v3961 = vld [vmem:[%s3955 + $0x28] sm:$0xff]
        %v3962 = vld [vmem:[%s3955 + $0x30] sm:$0xff]
        %v3963 = vld [vmem:[%s3955 + $0x38] sm:$0xff]
        %v3965 = vsel %vm1251, %v3954, 0
        %3967 = vmatprep.subr.mxu0 0.0
        %3968 = vmatpush1.msra.mxu0 0.0
        %3969 = vmatprep.subr.mxu0 0.0
        %3970 = vmatpush1.msra.mxu0 0.0
        %3971 = vmatprep.subr.mxu0 0.0
        %3972 = vmatpush1.msra.mxu0 0.0
        %3973 = vmatprep.subr.mxu0 0.0
        %3974 = vmatpush1.msra.mxu0 0.0
        %3975 = vmatprep.subr.mxu0 0.0
        %3976 = vmatpush1.msra.mxu0 0.0
        %3977 = vmatprep.subr.mxu0 0.0
        %3978 = vmatpush1.msra.mxu0 0.0
        %3979 = vmatprep.subr.mxu0 0.0
        %3980 = vmatpush1.msra.mxu0 0.0
        %3981 = vmatprep.subr.mxu0 0.0
        %3982 = vmatpush1.msra.mxu0 0.0
        %3983 = vmatprep.subr.mxu0 0.0
        %3984 = vmatpush1.msra.mxu0 %v3963
        %3985 = vmatprep.subr.mxu0 0.0
        %3986 = vmatpush1.msra.mxu0 %v3962
        %3987 = vmatprep.subr.mxu0 0.0
        %3988 = vmatpush1.msra.mxu0 %v3961
        %3989 = vmatprep.subr.mxu0 0.0
        %3990 = vmatpush1.msra.mxu0 %v3960
        %3991 = vmatprep.subr.mxu0 0.0
        %3992 = vmatpush1.msra.mxu0 %v3959
        %3993 = vmatprep.subr.mxu0 0.0
        %3994 = vmatpush1.msra.mxu0 %v3958
        %3995 = vmatprep.subr.mxu0 0.0
        %3996 = vmatpush1.msra.mxu0 %v3957
        %3997 = vmatprep.subr.mxu0 0.0
        %3998 = vmatpush1.msra.mxu0 %v3956
        %3999 = vmatprep.subr.mxu0 0.0
        %4000 = vmatpush2.msra.mxu0 0.0
        %4001 = vmatprep.subr.mxu0 0.0
        %4002 = vmatpush2.msra.mxu0 0.0
        %4003 = vmatprep.subr.mxu0 0.0
        %4004 = vmatpush2.msra.mxu0 0.0
        %4005 = vmatprep.subr.mxu0 0.0
        %4006 = vmatpush2.msra.mxu0 0.0
        %4007 = vmatprep.subr.mxu0 0.0
        %4008 = vmatpush2.msra.mxu0 0.0
        %4009 = vmatprep.subr.mxu0 0.0
        %4010 = vmatpush2.msra.mxu0 0.0
        %4011 = vmatprep.subr.mxu0 0.0
        %4012 = vmatpush2.msra.mxu0 0.0
        %4013 = vmatprep.subr.mxu0 0.0
        %4014 = vmatpush2.msra.mxu0 0.0
        %4015 = vmatprep.subr.mxu0 0.0
        %4016 = vmatpush2.msra.mxu0 0.0
        %4017 = vmatprep.subr.mxu0 0.0
        %4018 = vmatpush2.msra.mxu0 0.0
        %4019 = vmatprep.subr.mxu0 0.0
        %4020 = vmatpush2.msra.mxu0 0.0
        %4021 = vmatprep.subr.mxu0 0.0
        %4022 = vmatpush2.msra.mxu0 0.0
        %4023 = vmatprep.subr.mxu0 0.0
        %4024 = vmatpush2.msra.mxu0 0.0
        %4025 = vmatprep.subr.mxu0 0.0
        %4026 = vmatpush2.msra.mxu0 0.0
        %4027 = vmatprep.subr.mxu0 0.0
        %4028 = vmatpush2.msra.mxu0 0.0
        %4029 = vmatprep.subr.mxu0 0.0
        %4030 = vmatpush2.msra.mxu0 0.0
        %4031 = vmatprep.mubr.f32.mxu0 0.0
        %4032 = vmatmul.mubr.f32.gmra.mxu0 %v3965
        %v4033 = vpop.f32.mrf.mxu0
        %v4034 = vadd.f32 0.0, %v4033
        %v4035 = vpop.f32.mrf.mxu0
        %4036 = vdwg.mxu0
        %v4038 = vsel %vm1251, %v3945, 0
        %4040 = vmatprep.subr.mxu0 0.0
        %4041 = vmatpush1.msra.mxu0 0.0
        %4042 = vmatprep.subr.mxu0 0.0
        %4043 = vmatpush1.msra.mxu0 0.0
        %4044 = vmatprep.subr.mxu0 0.0
        %4045 = vmatpush1.msra.mxu0 0.0
        %4046 = vmatprep.subr.mxu0 0.0
        %4047 = vmatpush1.msra.mxu0 0.0
        %4048 = vmatprep.subr.mxu0 0.0
        %4049 = vmatpush1.msra.mxu0 0.0
        %4050 = vmatprep.subr.mxu0 0.0
        %4051 = vmatpush1.msra.mxu0 0.0
        %4052 = vmatprep.subr.mxu0 0.0
        %4053 = vmatpush1.msra.mxu0 0.0
        %4054 = vmatprep.subr.mxu0 0.0
        %4055 = vmatpush1.msra.mxu0 0.0
        %4056 = vmatprep.subr.mxu0 0.0
        %4057 = vmatpush1.msra.mxu0 %v3953
        %4058 = vmatprep.subr.mxu0 0.0
        %4059 = vmatpush1.msra.mxu0 %v3952
        %4060 = vmatprep.subr.mxu0 0.0
        %4061 = vmatpush1.msra.mxu0 %v3951
        %4062 = vmatprep.subr.mxu0 0.0
        %4063 = vmatpush1.msra.mxu0 %v3950
        %4064 = vmatprep.subr.mxu0 0.0
        %4065 = vmatpush1.msra.mxu0 %v3949
        %4066 = vmatprep.subr.mxu0 0.0
        %4067 = vmatpush1.msra.mxu0 %v3948
        %4068 = vmatprep.subr.mxu0 0.0
        %4069 = vmatpush1.msra.mxu0 %v3947
        %4070 = vmatprep.subr.mxu0 0.0
        %4071 = vmatpush1.msra.mxu0 %v3946
        %4072 = vmatprep.subr.mxu0 0.0
        %4073 = vmatpush2.msra.mxu0 0.0
        %4074 = vmatprep.subr.mxu0 0.0
        %4075 = vmatpush2.msra.mxu0 0.0
        %4076 = vmatprep.subr.mxu0 0.0
        %4077 = vmatpush2.msra.mxu0 0.0
        %4078 = vmatprep.subr.mxu0 0.0
        %4079 = vmatpush2.msra.mxu0 0.0
        %4080 = vmatprep.subr.mxu0 0.0
        %4081 = vmatpush2.msra.mxu0 0.0
        %4082 = vmatprep.subr.mxu0 0.0
        %4083 = vmatpush2.msra.mxu0 0.0
        %4084 = vmatprep.subr.mxu0 0.0
        %4085 = vmatpush2.msra.mxu0 0.0
        %4086 = vmatprep.subr.mxu0 0.0
        %4087 = vmatpush2.msra.mxu0 0.0
        %4088 = vmatprep.subr.mxu0 0.0
        %4089 = vmatpush2.msra.mxu0 0.0
        %4090 = vmatprep.subr.mxu0 0.0
        %4091 = vmatpush2.msra.mxu0 0.0
        %4092 = vmatprep.subr.mxu0 0.0
        %4093 = vmatpush2.msra.mxu0 0.0
        %4094 = vmatprep.subr.mxu0 0.0
        %4095 = vmatpush2.msra.mxu0 0.0
        %4096 = vmatprep.subr.mxu0 0.0
        %4097 = vmatpush2.msra.mxu0 0.0
        %4098 = vmatprep.subr.mxu0 0.0
        %4099 = vmatpush2.msra.mxu0 0.0
        %4100 = vmatprep.subr.mxu0 0.0
        %4101 = vmatpush2.msra.mxu0 0.0
        %4102 = vmatprep.subr.mxu0 0.0
        %4103 = vmatpush2.msra.mxu0 0.0
        %4104 = vmatprep.mubr.f32.mxu0 0.0
        %4105 = vmatmul.mubr.f32.gmra.mxu0 %v4038
        %v4106 = vpop.f32.mrf.mxu0
        %v4107 = vadd.f32 %v4034, %v4106
        %v4108 = vpop.f32.mrf.mxu0
        %4109 = vdwg.mxu0
        %v4110 = vld [vmem:[#allocation4 + $0x2] sm:$0xf]
        %s4111 = scalar_lea.vmem %s43, 128
        %v4112 = vld [vmem:[%s4111] sm:$0xff]
        %v4113 = vld [vmem:[%s4111 + $0x8] sm:$0xff]
        %v4114 = vld [vmem:[%s4111 + $0x10] sm:$0xff]
        %v4115 = vld [vmem:[%s4111 + $0x18] sm:$0xff]
        %v4116 = vld [vmem:[%s4111 + $0x20] sm:$0xff]
        %v4117 = vld [vmem:[%s4111 + $0x28] sm:$0xff]
        %v4118 = vld [vmem:[%s4111 + $0x30] sm:$0xff]
        %v4119 = vld [vmem:[%s4111 + $0x38] sm:$0xff]
        %v4121 = vsel %vm1251, %v4110, 0
        %4123 = vmatprep.subr.mxu0 0.0
        %4124 = vmatpush1.msra.mxu0 0.0
        %4125 = vmatprep.subr.mxu0 0.0
        %4126 = vmatpush1.msra.mxu0 0.0
        %4127 = vmatprep.subr.mxu0 0.0
        %4128 = vmatpush1.msra.mxu0 0.0
        %4129 = vmatprep.subr.mxu0 0.0
        %4130 = vmatpush1.msra.mxu0 0.0
        %4131 = vmatprep.subr.mxu0 0.0
        %4132 = vmatpush1.msra.mxu0 0.0
        %4133 = vmatprep.subr.mxu0 0.0
        %4134 = vmatpush1.msra.mxu0 0.0
        %4135 = vmatprep.subr.mxu0 0.0
        %4136 = vmatpush1.msra.mxu0 0.0
        %4137 = vmatprep.subr.mxu0 0.0
        %4138 = vmatpush1.msra.mxu0 0.0
        %4139 = vmatprep.subr.mxu0 0.0
        %4140 = vmatpush1.msra.mxu0 %v4119
        %4141 = vmatprep.subr.mxu0 0.0
        %4142 = vmatpush1.msra.mxu0 %v4118
        %4143 = vmatprep.subr.mxu0 0.0
        %4144 = vmatpush1.msra.mxu0 %v4117
        %4145 = vmatprep.subr.mxu0 0.0
        %4146 = vmatpush1.msra.mxu0 %v4116
        %4147 = vmatprep.subr.mxu0 0.0
        %4148 = vmatpush1.msra.mxu0 %v4115
        %4149 = vmatprep.subr.mxu0 0.0
        %4150 = vmatpush1.msra.mxu0 %v4114
        %4151 = vmatprep.subr.mxu0 0.0
        %4152 = vmatpush1.msra.mxu0 %v4113
        %4153 = vmatprep.subr.mxu0 0.0
        %4154 = vmatpush1.msra.mxu0 %v4112
        %4155 = vmatprep.subr.mxu0 0.0
        %4156 = vmatpush2.msra.mxu0 0.0
        %4157 = vmatprep.subr.mxu0 0.0
        %4158 = vmatpush2.msra.mxu0 0.0
        %4159 = vmatprep.subr.mxu0 0.0
        %4160 = vmatpush2.msra.mxu0 0.0
        %4161 = vmatprep.subr.mxu0 0.0
        %4162 = vmatpush2.msra.mxu0 0.0
        %4163 = vmatprep.subr.mxu0 0.0
        %4164 = vmatpush2.msra.mxu0 0.0
        %4165 = vmatprep.subr.mxu0 0.0
        %4166 = vmatpush2.msra.mxu0 0.0
        %4167 = vmatprep.subr.mxu0 0.0
        %4168 = vmatpush2.msra.mxu0 0.0
        %4169 = vmatprep.subr.mxu0 0.0
        %4170 = vmatpush2.msra.mxu0 0.0
        %4171 = vmatprep.subr.mxu0 0.0
        %4172 = vmatpush2.msra.mxu0 0.0
        %4173 = vmatprep.subr.mxu0 0.0
        %4174 = vmatpush2.msra.mxu0 0.0
        %4175 = vmatprep.subr.mxu0 0.0
        %4176 = vmatpush2.msra.mxu0 0.0
        %4177 = vmatprep.subr.mxu0 0.0
        %4178 = vmatpush2.msra.mxu0 0.0
        %4179 = vmatprep.subr.mxu0 0.0
        %4180 = vmatpush2.msra.mxu0 0.0
        %4181 = vmatprep.subr.mxu0 0.0
        %4182 = vmatpush2.msra.mxu0 0.0
        %4183 = vmatprep.subr.mxu0 0.0
        %4184 = vmatpush2.msra.mxu0 0.0
        %4185 = vmatprep.subr.mxu0 0.0
        %4186 = vmatpush2.msra.mxu0 0.0
        %4187 = vmatprep.mubr.f32.mxu0 0.0
        %4188 = vmatmul.mubr.f32.gmra.mxu0 %v4121
        %v4189 = vpop.f32.mrf.mxu0
        %v4190 = vadd.f32 0.0, %v4189
        %v4191 = vpop.f32.mrf.mxu0
        %4192 = vdwg.mxu0
        %v4193 = vadd.f32 %v4107, %v4190
        %v4194 = vld [vmem:[%s45] sm:$0x1]
        %v4196 = vlaneseq
        %v4197 = vshrl.u32 %v4196, 7
        %v4198 = vsub.s32 0, %v4197
        %v4199 = vrot.slane %v4194, %v4198
        %v4201 = vadd.f32 %v4193, %v4199
        %v4202 = vmax.f32 %v4201, 0.0
        %vm4203 = vcmask 253952
        %4204 = vst.msk [vmem:[#allocation5] sm:$0x1] %vm4203, 0.0
        %4205 = vst.msk [vmem:[#allocation5 + $0x5] sm:$0x1] %vm4203, 0.0
        %vm4206 = vcmask 257024
        %4207 = vst.msk [vmem:[#allocation5 + $0x1] sm:$0xf] %vm4206, %v4202
        %v4208 = vld [vmem:[#allocation5] sm:$0xf]
        %v4209 = vld [vmem:[#allocation36] sm:$0xff]
        %v4210 = vld [vmem:[#allocation36 + $0x8] sm:$0xff]
        %v4211 = vld [vmem:[#allocation36 + $0x10] sm:$0xff]
        %v4212 = vld [vmem:[#allocation36 + $0x18] sm:$0xff]
        %v4213 = vld [vmem:[#allocation5 + $0x1] sm:$0xf]
        %s4214 = scalar_lea.vmem [#allocation36], 32
        %v4215 = vld [vmem:[%s4214] sm:$0xff]
        %v4216 = vld [vmem:[%s4214 + $0x8] sm:$0xff]
        %v4217 = vld [vmem:[%s4214 + $0x10] sm:$0xff]
        %v4218 = vld [vmem:[%s4214 + $0x18] sm:$0xff]
        %vm4219 = vcmask 261120
        %v4221 = vsel %vm4219, %v4213, 0
        %4223 = vmatprep.subr.mxu0 0.0
        %4224 = vmatpush1.msra.mxu0 0.0
        %4225 = vmatprep.subr.mxu0 0.0
        %4226 = vmatpush1.msra.mxu0 0.0
        %4227 = vmatprep.subr.mxu0 0.0
        %4228 = vmatpush1.msra.mxu0 0.0
        %4229 = vmatprep.subr.mxu0 0.0
        %4230 = vmatpush1.msra.mxu0 0.0
        %4231 = vmatprep.subr.mxu0 0.0
        %4232 = vmatpush1.msra.mxu0 0.0
        %4233 = vmatprep.subr.mxu0 0.0
        %4234 = vmatpush1.msra.mxu0 0.0
        %4235 = vmatprep.subr.mxu0 0.0
        %4236 = vmatpush1.msra.mxu0 0.0
        %4237 = vmatprep.subr.mxu0 0.0
        %4238 = vmatpush1.msra.mxu0 0.0
        %4239 = vmatprep.subr.mxu0 0.0
        %4240 = vmatpush1.msra.mxu0 0.0
        %4241 = vmatprep.subr.mxu0 0.0
        %4242 = vmatpush1.msra.mxu0 0.0
        %4243 = vmatprep.subr.mxu0 0.0
        %4244 = vmatpush1.msra.mxu0 0.0
        %4245 = vmatprep.subr.mxu0 0.0
        %4246 = vmatpush1.msra.mxu0 0.0
        %4247 = vmatprep.subr.mxu0 0.0
        %4248 = vmatpush1.msra.mxu0 %v4218
        %4249 = vmatprep.subr.mxu0 0.0
        %4250 = vmatpush1.msra.mxu0 %v4217
        %4251 = vmatprep.subr.mxu0 0.0
        %4252 = vmatpush1.msra.mxu0 %v4216
        %4253 = vmatprep.subr.mxu0 0.0
        %4254 = vmatpush1.msra.mxu0 %v4215
        %4255 = vmatprep.subr.mxu0 0.0
        %4256 = vmatpush2.msra.mxu0 0.0
        %4257 = vmatprep.subr.mxu0 0.0
        %4258 = vmatpush2.msra.mxu0 0.0
        %4259 = vmatprep.subr.mxu0 0.0
        %4260 = vmatpush2.msra.mxu0 0.0
        %4261 = vmatprep.subr.mxu0 0.0
        %4262 = vmatpush2.msra.mxu0 0.0
        %4263 = vmatprep.subr.mxu0 0.0
        %4264 = vmatpush2.msra.mxu0 0.0
        %4265 = vmatprep.subr.mxu0 0.0
        %4266 = vmatpush2.msra.mxu0 0.0
        %4267 = vmatprep.subr.mxu0 0.0
        %4268 = vmatpush2.msra.mxu0 0.0
        %4269 = vmatprep.subr.mxu0 0.0
        %4270 = vmatpush2.msra.mxu0 0.0
        %4271 = vmatprep.subr.mxu0 0.0
        %4272 = vmatpush2.msra.mxu0 0.0
        %4273 = vmatprep.subr.mxu0 0.0
        %4274 = vmatpush2.msra.mxu0 0.0
        %4275 = vmatprep.subr.mxu0 0.0
        %4276 = vmatpush2.msra.mxu0 0.0
        %4277 = vmatprep.subr.mxu0 0.0
        %4278 = vmatpush2.msra.mxu0 0.0
        %4279 = vmatprep.subr.mxu0 0.0
        %4280 = vmatpush2.msra.mxu0 0.0
        %4281 = vmatprep.subr.mxu0 0.0
        %4282 = vmatpush2.msra.mxu0 0.0
        %4283 = vmatprep.subr.mxu0 0.0
        %4284 = vmatpush2.msra.mxu0 0.0
        %4285 = vmatprep.subr.mxu0 0.0
        %4286 = vmatpush2.msra.mxu0 0.0
        %4287 = vmatprep.mubr.f32.mxu0 0.0
        %4288 = vmatmul.mubr.f32.gmra.mxu0 %v4221
        %v4289 = vpop.f32.mrf.mxu0
        %v4290 = vadd.f32 0.0, %v4289
        %v4291 = vpop.f32.mrf.mxu0
        %4292 = vdwg.mxu0
        %v4294 = vsel %vm4219, %v4208, 0
        %4296 = vmatprep.subr.mxu0 0.0
        %4297 = vmatpush1.msra.mxu0 0.0
        %4298 = vmatprep.subr.mxu0 0.0
        %4299 = vmatpush1.msra.mxu0 0.0
        %4300 = vmatprep.subr.mxu0 0.0
        %4301 = vmatpush1.msra.mxu0 0.0
        %4302 = vmatprep.subr.mxu0 0.0
        %4303 = vmatpush1.msra.mxu0 0.0
        %4304 = vmatprep.subr.mxu0 0.0
        %4305 = vmatpush1.msra.mxu0 0.0
        %4306 = vmatprep.subr.mxu0 0.0
        %4307 = vmatpush1.msra.mxu0 0.0
        %4308 = vmatprep.subr.mxu0 0.0
        %4309 = vmatpush1.msra.mxu0 0.0
        %4310 = vmatprep.subr.mxu0 0.0
        %4311 = vmatpush1.msra.mxu0 0.0
        %4312 = vmatprep.subr.mxu0 0.0
        %4313 = vmatpush1.msra.mxu0 0.0
        %4314 = vmatprep.subr.mxu0 0.0
        %4315 = vmatpush1.msra.mxu0 0.0
        %4316 = vmatprep.subr.mxu0 0.0
        %4317 = vmatpush1.msra.mxu0 0.0
        %4318 = vmatprep.subr.mxu0 0.0
        %4319 = vmatpush1.msra.mxu0 0.0
        %4320 = vmatprep.subr.mxu0 0.0
        %4321 = vmatpush1.msra.mxu0 %v4212
        %4322 = vmatprep.subr.mxu0 0.0
        %4323 = vmatpush1.msra.mxu0 %v4211
        %4324 = vmatprep.subr.mxu0 0.0
        %4325 = vmatpush1.msra.mxu0 %v4210
        %4326 = vmatprep.subr.mxu0 0.0
        %4327 = vmatpush1.msra.mxu0 %v4209
        %4328 = vmatprep.subr.mxu0 0.0
        %4329 = vmatpush2.msra.mxu0 0.0
        %4330 = vmatprep.subr.mxu0 0.0
        %4331 = vmatpush2.msra.mxu0 0.0
        %4332 = vmatprep.subr.mxu0 0.0
        %4333 = vmatpush2.msra.mxu0 0.0
        %4334 = vmatprep.subr.mxu0 0.0
        %4335 = vmatpush2.msra.mxu0 0.0
        %4336 = vmatprep.subr.mxu0 0.0
        %4337 = vmatpush2.msra.mxu0 0.0
        %4338 = vmatprep.subr.mxu0 0.0
        %4339 = vmatpush2.msra.mxu0 0.0
        %4340 = vmatprep.subr.mxu0 0.0
        %4341 = vmatpush2.msra.mxu0 0.0
        %4342 = vmatprep.subr.mxu0 0.0
        %4343 = vmatpush2.msra.mxu0 0.0
        %4344 = vmatprep.subr.mxu0 0.0
        %4345 = vmatpush2.msra.mxu0 0.0
        %4346 = vmatprep.subr.mxu0 0.0
        %4347 = vmatpush2.msra.mxu0 0.0
        %4348 = vmatprep.subr.mxu0 0.0
        %4349 = vmatpush2.msra.mxu0 0.0
        %4350 = vmatprep.subr.mxu0 0.0
        %4351 = vmatpush2.msra.mxu0 0.0
        %4352 = vmatprep.subr.mxu0 0.0
        %4353 = vmatpush2.msra.mxu0 0.0
        %4354 = vmatprep.subr.mxu0 0.0
        %4355 = vmatpush2.msra.mxu0 0.0
        %4356 = vmatprep.subr.mxu0 0.0
        %4357 = vmatpush2.msra.mxu0 0.0
        %4358 = vmatprep.subr.mxu0 0.0
        %4359 = vmatpush2.msra.mxu0 0.0
        %4360 = vmatprep.mubr.f32.mxu0 0.0
        %4361 = vmatmul.mubr.f32.gmra.mxu0 %v4294
        %v4362 = vpop.f32.mrf.mxu0
        %v4363 = vadd.f32 %v4290, %v4362
        %v4364 = vpop.f32.mrf.mxu0
        %4365 = vdwg.mxu0
        %v4366 = vld [vmem:[#allocation5 + $0x2] sm:$0xf]
        %s4367 = scalar_lea.vmem [#allocation36], 64
        %v4368 = vld [vmem:[%s4367] sm:$0xff]
        %v4369 = vld [vmem:[%s4367 + $0x8] sm:$0xff]
        %v4370 = vld [vmem:[%s4367 + $0x10] sm:$0xff]
        %v4371 = vld [vmem:[%s4367 + $0x18] sm:$0xff]
        %v4373 = vsel %vm4219, %v4366, 0
        %4375 = vmatprep.subr.mxu0 0.0
        %4376 = vmatpush1.msra.mxu0 0.0
        %4377 = vmatprep.subr.mxu0 0.0
        %4378 = vmatpush1.msra.mxu0 0.0
        %4379 = vmatprep.subr.mxu0 0.0
        %4380 = vmatpush1.msra.mxu0 0.0
        %4381 = vmatprep.subr.mxu0 0.0
        %4382 = vmatpush1.msra.mxu0 0.0
        %4383 = vmatprep.subr.mxu0 0.0
        %4384 = vmatpush1.msra.mxu0 0.0
        %4385 = vmatprep.subr.mxu0 0.0
        %4386 = vmatpush1.msra.mxu0 0.0
        %4387 = vmatprep.subr.mxu0 0.0
        %4388 = vmatpush1.msra.mxu0 0.0
        %4389 = vmatprep.subr.mxu0 0.0
        %4390 = vmatpush1.msra.mxu0 0.0
        %4391 = vmatprep.subr.mxu0 0.0
        %4392 = vmatpush1.msra.mxu0 0.0
        %4393 = vmatprep.subr.mxu0 0.0
        %4394 = vmatpush1.msra.mxu0 0.0
        %4395 = vmatprep.subr.mxu0 0.0
        %4396 = vmatpush1.msra.mxu0 0.0
        %4397 = vmatprep.subr.mxu0 0.0
        %4398 = vmatpush1.msra.mxu0 0.0
        %4399 = vmatprep.subr.mxu0 0.0
        %4400 = vmatpush1.msra.mxu0 %v4371
        %4401 = vmatprep.subr.mxu0 0.0
        %4402 = vmatpush1.msra.mxu0 %v4370
        %4403 = vmatprep.subr.mxu0 0.0
        %4404 = vmatpush1.msra.mxu0 %v4369
        %4405 = vmatprep.subr.mxu0 0.0
        %4406 = vmatpush1.msra.mxu0 %v4368
        %4407 = vmatprep.subr.mxu0 0.0
        %4408 = vmatpush2.msra.mxu0 0.0
        %4409 = vmatprep.subr.mxu0 0.0
        %4410 = vmatpush2.msra.mxu0 0.0
        %4411 = vmatprep.subr.mxu0 0.0
        %4412 = vmatpush2.msra.mxu0 0.0
        %4413 = vmatprep.subr.mxu0 0.0
        %4414 = vmatpush2.msra.mxu0 0.0
        %4415 = vmatprep.subr.mxu0 0.0
        %4416 = vmatpush2.msra.mxu0 0.0
        %4417 = vmatprep.subr.mxu0 0.0
        %4418 = vmatpush2.msra.mxu0 0.0
        %4419 = vmatprep.subr.mxu0 0.0
        %4420 = vmatpush2.msra.mxu0 0.0
        %4421 = vmatprep.subr.mxu0 0.0
        %4422 = vmatpush2.msra.mxu0 0.0
        %4423 = vmatprep.subr.mxu0 0.0
        %4424 = vmatpush2.msra.mxu0 0.0
        %4425 = vmatprep.subr.mxu0 0.0
        %4426 = vmatpush2.msra.mxu0 0.0
        %4427 = vmatprep.subr.mxu0 0.0
        %4428 = vmatpush2.msra.mxu0 0.0
        %4429 = vmatprep.subr.mxu0 0.0
        %4430 = vmatpush2.msra.mxu0 0.0
        %4431 = vmatprep.subr.mxu0 0.0
        %4432 = vmatpush2.msra.mxu0 0.0
        %4433 = vmatprep.subr.mxu0 0.0
        %4434 = vmatpush2.msra.mxu0 0.0
        %4435 = vmatprep.subr.mxu0 0.0
        %4436 = vmatpush2.msra.mxu0 0.0
        %4437 = vmatprep.subr.mxu0 0.0
        %4438 = vmatpush2.msra.mxu0 0.0
        %4439 = vmatprep.mubr.f32.mxu0 0.0
        %4440 = vmatmul.mubr.f32.gmra.mxu0 %v4373
        %v4441 = vpop.f32.mrf.mxu0
        %v4442 = vadd.f32 0.0, %v4441
        %v4443 = vpop.f32.mrf.mxu0
        %4444 = vdwg.mxu0
        %v4445 = vadd.f32 %v4363, %v4442
        %v4446 = vld [vmem:[%s49] sm:$0x1]
        %v4448 = vlaneseq
        %v4449 = vshrl.u32 %v4448, 7
        %v4450 = vsub.s32 0, %v4449
        %v4451 = vrot.slane %v4446, %v4450
        %v4453 = vadd.f32 %v4445, %v4451
        %4455 = vrot.lane.b32.xlu0 %v4201, 96
        %v4456 = vpop.permute.xlu0 %4455
        %v4458 = vadd.f32 %v4453, %v4456
        %v4459 = vmax.f32 %v4458, 0.0
        %v4460 = vld [vmem:[%s51] sm:$0xff]
        %v4461 = vld [vmem:[%s51 + $0x8] sm:$0xff]
        %v4462 = vld [vmem:[%s51 + $0x10] sm:$0xff]
        %v4463 = vld [vmem:[%s51 + $0x18] sm:$0xff]
        %v4465 = vsel %vm4219, %v4459, 0
        %4467 = vmatprep.subr.mxu0 0.0
        %4468 = vmatpush1.msra.mxu0 0.0
        %4469 = vmatprep.subr.mxu0 0.0
        %4470 = vmatpush1.msra.mxu0 0.0
        %4471 = vmatprep.subr.mxu0 0.0
        %4472 = vmatpush1.msra.mxu0 0.0
        %4473 = vmatprep.subr.mxu0 0.0
        %4474 = vmatpush1.msra.mxu0 0.0
        %4475 = vmatprep.subr.mxu0 0.0
        %4476 = vmatpush1.msra.mxu0 0.0
        %4477 = vmatprep.subr.mxu0 0.0
        %4478 = vmatpush1.msra.mxu0 0.0
        %4479 = vmatprep.subr.mxu0 0.0
        %4480 = vmatpush1.msra.mxu0 0.0
        %4481 = vmatprep.subr.mxu0 0.0
        %4482 = vmatpush1.msra.mxu0 0.0
        %4483 = vmatprep.subr.mxu0 0.0
        %4484 = vmatpush1.msra.mxu0 0.0
        %4485 = vmatprep.subr.mxu0 0.0
        %4486 = vmatpush1.msra.mxu0 0.0
        %4487 = vmatprep.subr.mxu0 0.0
        %4488 = vmatpush1.msra.mxu0 0.0
        %4489 = vmatprep.subr.mxu0 0.0
        %4490 = vmatpush1.msra.mxu0 0.0
        %4491 = vmatprep.subr.mxu0 0.0
        %4492 = vmatpush1.msra.mxu0 %v4463
        %4493 = vmatprep.subr.mxu0 0.0
        %4494 = vmatpush1.msra.mxu0 %v4462
        %4495 = vmatprep.subr.mxu0 0.0
        %4496 = vmatpush1.msra.mxu0 %v4461
        %4497 = vmatprep.subr.mxu0 0.0
        %4498 = vmatpush1.msra.mxu0 %v4460
        %4499 = vmatprep.subr.mxu0 0.0
        %4500 = vmatpush2.msra.mxu0 0.0
        %4501 = vmatprep.subr.mxu0 0.0
        %4502 = vmatpush2.msra.mxu0 0.0
        %4503 = vmatprep.subr.mxu0 0.0
        %4504 = vmatpush2.msra.mxu0 0.0
        %4505 = vmatprep.subr.mxu0 0.0
        %4506 = vmatpush2.msra.mxu0 0.0
        %4507 = vmatprep.subr.mxu0 0.0
        %4508 = vmatpush2.msra.mxu0 0.0
        %4509 = vmatprep.subr.mxu0 0.0
        %4510 = vmatpush2.msra.mxu0 0.0
        %4511 = vmatprep.subr.mxu0 0.0
        %4512 = vmatpush2.msra.mxu0 0.0
        %4513 = vmatprep.subr.mxu0 0.0
        %4514 = vmatpush2.msra.mxu0 0.0
        %4515 = vmatprep.subr.mxu0 0.0
        %4516 = vmatpush2.msra.mxu0 0.0
        %4517 = vmatprep.subr.mxu0 0.0
        %4518 = vmatpush2.msra.mxu0 0.0
        %4519 = vmatprep.subr.mxu0 0.0
        %4520 = vmatpush2.msra.mxu0 0.0
        %4521 = vmatprep.subr.mxu0 0.0
        %4522 = vmatpush2.msra.mxu0 0.0
        %4523 = vmatprep.subr.mxu0 0.0
        %4524 = vmatpush2.msra.mxu0 0.0
        %4525 = vmatprep.subr.mxu0 0.0
        %4526 = vmatpush2.msra.mxu0 0.0
        %4527 = vmatprep.subr.mxu0 0.0
        %4528 = vmatpush2.msra.mxu0 0.0
        %4529 = vmatprep.subr.mxu0 0.0
        %4530 = vmatpush2.msra.mxu0 0.0
        %4531 = vmatprep.mubr.f32.mxu0 0.0
        %4532 = vmatmul.mubr.f32.gmra.mxu0 %v4465
        %v4533 = vpop.f32.mrf.mxu0
        %v4534 = vadd.f32 0.0, %v4533
        %v4535 = vpop.f32.mrf.mxu0
        %4536 = vdwg.mxu0
        %v4539 = vunpack.c.l.s4 1966171168
        %v4540 = vunpack.c.0.s8 %v4539
        %v4541 = vlaneseq
        %v4542 = vshrl.u32 %v4541, 7
        %v4543 = vsub.s32 %v4540, %v4542
        %v4544 = vrot.slane %v4534, %v4543
        %v4545 = vcombine.high %v4544, %v4544
        %v4547 = vunpack.c.l.s4 1966171168
        %v4548 = vunpack.c.0.s8 %v4547
        %v4549 = vlaneseq
        %v4550 = vshrl.u32 %v4549, 7
        %v4551 = vsub.s32 %v4548, %v4550
        %v4552 = vrot.slane %v4544, %v4551
        %v4554 = vunpack.c.l.s4 1966171168
        %v4555 = vunpack.c.0.s8 %v4554
        %v4556 = vlaneseq
        %v4557 = vshrl.u32 %v4556, 7
        %v4558 = vsub.s32 %v4555, %v4557
        %v4559 = vrot.slane %v4545, %v4558
        %v4560 = vcombine.high %v4552, %v4552
        %v4561 = vcombine.high %v4559, %v4559
        %v4562 = vlaneseq
        %v4563 = vshrl.u32 %v4562, 7
        %v4564 = vsub.s32 0, %v4563
        %v4565 = vrot.slane %v4552, %v4564
        %v4566 = vlaneseq
        %v4567 = vshrl.u32 %v4566, 7
        %v4568 = vsub.s32 0, %v4567
        %v4569 = vrot.slane %v4559, %v4568
        %v4570 = vlaneseq
        %v4571 = vshrl.u32 %v4570, 7
        %v4572 = vsub.s32 0, %v4571
        %v4573 = vrot.slane %v4560, %v4572
        %v4574 = vlaneseq
        %v4575 = vshrl.u32 %v4574, 7
        %v4576 = vsub.s32 0, %v4575
        %v4577 = vrot.slane %v4561, %v4576
        %v4578 = vcombine.low %v4565, %v4569
        %v4579 = vcombine.low %v4573, %v4577
        %v4581 = vunpack.c.l.s4 1983009808
        %v4582 = vunpack.c.0.s8 %v4581
        %v4583 = vlaneseq
        %v4584 = vshrl.u32 %v4583, 7
        %v4585 = vsub.s32 %v4582, %v4584
        %v4586 = vrot.slane %v4578, %v4585
        %v4588 = vunpack.c.l.s4 1983009808
        %v4589 = vunpack.c.0.s8 %v4588
        %v4590 = vlaneseq
        %v4591 = vshrl.u32 %v4590, 7
        %v4592 = vsub.s32 %v4589, %v4591
        %v4593 = vrot.slane %v4579, %v4592
        %v4594 = vcombine.low %v4586, %v4593
        %v4596 = vadd.f32 %v2888, %v4594
        %4597 = vst.msk [vmem:[#allocation3] sm:$0x1] %vm1248, 0.0
        %4598 = vst.msk [vmem:[#allocation3 + $0x9] sm:$0x1] %vm1248, 0.0
        %4599 = vst.msk [vmem:[#allocation3 + $0x1] sm:$0xff] %vm1251, %v4596
        %v4600 = vld [vmem:[#allocation3] sm:$0xff]
        %v4601 = vld [vmem:[%s53] sm:$0xff]
        %v4602 = vld [vmem:[%s53 + $0x8] sm:$0xff]
        %v4603 = vld [vmem:[%s53 + $0x10] sm:$0xff]
        %v4604 = vld [vmem:[%s53 + $0x18] sm:$0xff]
        %v4605 = vld [vmem:[%s53 + $0x20] sm:$0xff]
        %v4606 = vld [vmem:[%s53 + $0x28] sm:$0xff]
        %v4607 = vld [vmem:[%s53 + $0x30] sm:$0xff]
        %v4608 = vld [vmem:[%s53 + $0x38] sm:$0xff]
        %v4609 = vld [vmem:[#allocation3 + $0x1] sm:$0xff]
        %s4610 = scalar_lea.vmem %s53, 64
        %v4611 = vld [vmem:[%s4610] sm:$0xff]
        %v4612 = vld [vmem:[%s4610 + $0x8] sm:$0xff]
        %v4613 = vld [vmem:[%s4610 + $0x10] sm:$0xff]
        %v4614 = vld [vmem:[%s4610 + $0x18] sm:$0xff]
        %v4615 = vld [vmem:[%s4610 + $0x20] sm:$0xff]
        %v4616 = vld [vmem:[%s4610 + $0x28] sm:$0xff]
        %v4617 = vld [vmem:[%s4610 + $0x30] sm:$0xff]
        %v4618 = vld [vmem:[%s4610 + $0x38] sm:$0xff]
        %v4620 = vsel %vm1251, %v4609, 0
        %4622 = vmatprep.subr.mxu0 0.0
        %4623 = vmatpush1.msra.mxu0 0.0
        %4624 = vmatprep.subr.mxu0 0.0
        %4625 = vmatpush1.msra.mxu0 0.0
        %4626 = vmatprep.subr.mxu0 0.0
        %4627 = vmatpush1.msra.mxu0 0.0
        %4628 = vmatprep.subr.mxu0 0.0
        %4629 = vmatpush1.msra.mxu0 0.0
        %4630 = vmatprep.subr.mxu0 0.0
        %4631 = vmatpush1.msra.mxu0 0.0
        %4632 = vmatprep.subr.mxu0 0.0
        %4633 = vmatpush1.msra.mxu0 0.0
        %4634 = vmatprep.subr.mxu0 0.0
        %4635 = vmatpush1.msra.mxu0 0.0
        %4636 = vmatprep.subr.mxu0 0.0
        %4637 = vmatpush1.msra.mxu0 0.0
        %4638 = vmatprep.subr.mxu0 0.0
        %4639 = vmatpush1.msra.mxu0 %v4618
        %4640 = vmatprep.subr.mxu0 0.0
        %4641 = vmatpush1.msra.mxu0 %v4617
        %4642 = vmatprep.subr.mxu0 0.0
        %4643 = vmatpush1.msra.mxu0 %v4616
        %4644 = vmatprep.subr.mxu0 0.0
        %4645 = vmatpush1.msra.mxu0 %v4615
        %4646 = vmatprep.subr.mxu0 0.0
        %4647 = vmatpush1.msra.mxu0 %v4614
        %4648 = vmatprep.subr.mxu0 0.0
        %4649 = vmatpush1.msra.mxu0 %v4613
        %4650 = vmatprep.subr.mxu0 0.0
        %4651 = vmatpush1.msra.mxu0 %v4612
        %4652 = vmatprep.subr.mxu0 0.0
        %4653 = vmatpush1.msra.mxu0 %v4611
        %4654 = vmatprep.subr.mxu0 0.0
        %4655 = vmatpush2.msra.mxu0 0.0
        %4656 = vmatprep.subr.mxu0 0.0
        %4657 = vmatpush2.msra.mxu0 0.0
        %4658 = vmatprep.subr.mxu0 0.0
        %4659 = vmatpush2.msra.mxu0 0.0
        %4660 = vmatprep.subr.mxu0 0.0
        %4661 = vmatpush2.msra.mxu0 0.0
        %4662 = vmatprep.subr.mxu0 0.0
        %4663 = vmatpush2.msra.mxu0 0.0
        %4664 = vmatprep.subr.mxu0 0.0
        %4665 = vmatpush2.msra.mxu0 0.0
        %4666 = vmatprep.subr.mxu0 0.0
        %4667 = vmatpush2.msra.mxu0 0.0
        %4668 = vmatprep.subr.mxu0 0.0
        %4669 = vmatpush2.msra.mxu0 0.0
        %4670 = vmatprep.subr.mxu0 0.0
        %4671 = vmatpush2.msra.mxu0 0.0
        %4672 = vmatprep.subr.mxu0 0.0
        %4673 = vmatpush2.msra.mxu0 0.0
        %4674 = vmatprep.subr.mxu0 0.0
        %4675 = vmatpush2.msra.mxu0 0.0
        %4676 = vmatprep.subr.mxu0 0.0
        %4677 = vmatpush2.msra.mxu0 0.0
        %4678 = vmatprep.subr.mxu0 0.0
        %4679 = vmatpush2.msra.mxu0 0.0
        %4680 = vmatprep.subr.mxu0 0.0
        %4681 = vmatpush2.msra.mxu0 0.0
        %4682 = vmatprep.subr.mxu0 0.0
        %4683 = vmatpush2.msra.mxu0 0.0
        %4684 = vmatprep.subr.mxu0 0.0
        %4685 = vmatpush2.msra.mxu0 0.0
        %4686 = vmatprep.mubr.f32.mxu0 0.0
        %4687 = vmatmul.mubr.f32.gmra.mxu0 %v4620
        %v4688 = vpop.f32.mrf.mxu0
        %v4689 = vadd.f32 0.0, %v4688
        %v4690 = vpop.f32.mrf.mxu0
        %4691 = vdwg.mxu0
        %v4693 = vsel %vm1251, %v4600, 0
        %4695 = vmatprep.subr.mxu0 0.0
        %4696 = vmatpush1.msra.mxu0 0.0
        %4697 = vmatprep.subr.mxu0 0.0
        %4698 = vmatpush1.msra.mxu0 0.0
        %4699 = vmatprep.subr.mxu0 0.0
        %4700 = vmatpush1.msra.mxu0 0.0
        %4701 = vmatprep.subr.mxu0 0.0
        %4702 = vmatpush1.msra.mxu0 0.0
        %4703 = vmatprep.subr.mxu0 0.0
        %4704 = vmatpush1.msra.mxu0 0.0
        %4705 = vmatprep.subr.mxu0 0.0
        %4706 = vmatpush1.msra.mxu0 0.0
        %4707 = vmatprep.subr.mxu0 0.0
        %4708 = vmatpush1.msra.mxu0 0.0
        %4709 = vmatprep.subr.mxu0 0.0
        %4710 = vmatpush1.msra.mxu0 0.0
        %4711 = vmatprep.subr.mxu0 0.0
        %4712 = vmatpush1.msra.mxu0 %v4608
        %4713 = vmatprep.subr.mxu0 0.0
        %4714 = vmatpush1.msra.mxu0 %v4607
        %4715 = vmatprep.subr.mxu0 0.0
        %4716 = vmatpush1.msra.mxu0 %v4606
        %4717 = vmatprep.subr.mxu0 0.0
        %4718 = vmatpush1.msra.mxu0 %v4605
        %4719 = vmatprep.subr.mxu0 0.0
        %4720 = vmatpush1.msra.mxu0 %v4604
        %4721 = vmatprep.subr.mxu0 0.0
        %4722 = vmatpush1.msra.mxu0 %v4603
        %4723 = vmatprep.subr.mxu0 0.0
        %4724 = vmatpush1.msra.mxu0 %v4602
        %4725 = vmatprep.subr.mxu0 0.0
        %4726 = vmatpush1.msra.mxu0 %v4601
        %4727 = vmatprep.subr.mxu0 0.0
        %4728 = vmatpush2.msra.mxu0 0.0
        %4729 = vmatprep.subr.mxu0 0.0
        %4730 = vmatpush2.msra.mxu0 0.0
        %4731 = vmatprep.subr.mxu0 0.0
        %4732 = vmatpush2.msra.mxu0 0.0
        %4733 = vmatprep.subr.mxu0 0.0
        %4734 = vmatpush2.msra.mxu0 0.0
        %4735 = vmatprep.subr.mxu0 0.0
        %4736 = vmatpush2.msra.mxu0 0.0
        %4737 = vmatprep.subr.mxu0 0.0
        %4738 = vmatpush2.msra.mxu0 0.0
        %4739 = vmatprep.subr.mxu0 0.0
        %4740 = vmatpush2.msra.mxu0 0.0
        %4741 = vmatprep.subr.mxu0 0.0
        %4742 = vmatpush2.msra.mxu0 0.0
        %4743 = vmatprep.subr.mxu0 0.0
        %4744 = vmatpush2.msra.mxu0 0.0
        %4745 = vmatprep.subr.mxu0 0.0
        %4746 = vmatpush2.msra.mxu0 0.0
        %4747 = vmatprep.subr.mxu0 0.0
        %4748 = vmatpush2.msra.mxu0 0.0
        %4749 = vmatprep.subr.mxu0 0.0
        %4750 = vmatpush2.msra.mxu0 0.0
        %4751 = vmatprep.subr.mxu0 0.0
        %4752 = vmatpush2.msra.mxu0 0.0
        %4753 = vmatprep.subr.mxu0 0.0
        %4754 = vmatpush2.msra.mxu0 0.0
        %4755 = vmatprep.subr.mxu0 0.0
        %4756 = vmatpush2.msra.mxu0 0.0
        %4757 = vmatprep.subr.mxu0 0.0
        %4758 = vmatpush2.msra.mxu0 0.0
        %4759 = vmatprep.mubr.f32.mxu0 0.0
        %4760 = vmatmul.mubr.f32.gmra.mxu0 %v4693
        %v4761 = vpop.f32.mrf.mxu0
        %v4762 = vadd.f32 %v4689, %v4761
        %v4763 = vpop.f32.mrf.mxu0
        %4764 = vdwg.mxu0
        %v4765 = vld [vmem:[#allocation3 + $0x2] sm:$0xff]
        %s4766 = scalar_lea.vmem %s53, 128
        %v4767 = vld [vmem:[%s4766] sm:$0xff]
        %v4768 = vld [vmem:[%s4766 + $0x8] sm:$0xff]
        %v4769 = vld [vmem:[%s4766 + $0x10] sm:$0xff]
        %v4770 = vld [vmem:[%s4766 + $0x18] sm:$0xff]
        %v4771 = vld [vmem:[%s4766 + $0x20] sm:$0xff]
        %v4772 = vld [vmem:[%s4766 + $0x28] sm:$0xff]
        %v4773 = vld [vmem:[%s4766 + $0x30] sm:$0xff]
        %v4774 = vld [vmem:[%s4766 + $0x38] sm:$0xff]
        %v4776 = vsel %vm1251, %v4765, 0
        %4778 = vmatprep.subr.mxu0 0.0
        %4779 = vmatpush1.msra.mxu0 0.0
        %4780 = vmatprep.subr.mxu0 0.0
        %4781 = vmatpush1.msra.mxu0 0.0
        %4782 = vmatprep.subr.mxu0 0.0
        %4783 = vmatpush1.msra.mxu0 0.0
        %4784 = vmatprep.subr.mxu0 0.0
        %4785 = vmatpush1.msra.mxu0 0.0
        %4786 = vmatprep.subr.mxu0 0.0
        %4787 = vmatpush1.msra.mxu0 0.0
        %4788 = vmatprep.subr.mxu0 0.0
        %4789 = vmatpush1.msra.mxu0 0.0
        %4790 = vmatprep.subr.mxu0 0.0
        %4791 = vmatpush1.msra.mxu0 0.0
        %4792 = vmatprep.subr.mxu0 0.0
        %4793 = vmatpush1.msra.mxu0 0.0
        %4794 = vmatprep.subr.mxu0 0.0
        %4795 = vmatpush1.msra.mxu0 %v4774
        %4796 = vmatprep.subr.mxu0 0.0
        %4797 = vmatpush1.msra.mxu0 %v4773
        %4798 = vmatprep.subr.mxu0 0.0
        %4799 = vmatpush1.msra.mxu0 %v4772
        %4800 = vmatprep.subr.mxu0 0.0
        %4801 = vmatpush1.msra.mxu0 %v4771
        %4802 = vmatprep.subr.mxu0 0.0
        %4803 = vmatpush1.msra.mxu0 %v4770
        %4804 = vmatprep.subr.mxu0 0.0
        %4805 = vmatpush1.msra.mxu0 %v4769
        %4806 = vmatprep.subr.mxu0 0.0
        %4807 = vmatpush1.msra.mxu0 %v4768
        %4808 = vmatprep.subr.mxu0 0.0
        %4809 = vmatpush1.msra.mxu0 %v4767
        %4810 = vmatprep.subr.mxu0 0.0
        %4811 = vmatpush2.msra.mxu0 0.0
        %4812 = vmatprep.subr.mxu0 0.0
        %4813 = vmatpush2.msra.mxu0 0.0
        %4814 = vmatprep.subr.mxu0 0.0
        %4815 = vmatpush2.msra.mxu0 0.0
        %4816 = vmatprep.subr.mxu0 0.0
        %4817 = vmatpush2.msra.mxu0 0.0
        %4818 = vmatprep.subr.mxu0 0.0
        %4819 = vmatpush2.msra.mxu0 0.0
        %4820 = vmatprep.subr.mxu0 0.0
        %4821 = vmatpush2.msra.mxu0 0.0
        %4822 = vmatprep.subr.mxu0 0.0
        %4823 = vmatpush2.msra.mxu0 0.0
        %4824 = vmatprep.subr.mxu0 0.0
        %4825 = vmatpush2.msra.mxu0 0.0
        %4826 = vmatprep.subr.mxu0 0.0
        %4827 = vmatpush2.msra.mxu0 0.0
        %4828 = vmatprep.subr.mxu0 0.0
        %4829 = vmatpush2.msra.mxu0 0.0
        %4830 = vmatprep.subr.mxu0 0.0
        %4831 = vmatpush2.msra.mxu0 0.0
        %4832 = vmatprep.subr.mxu0 0.0
        %4833 = vmatpush2.msra.mxu0 0.0
        %4834 = vmatprep.subr.mxu0 0.0
        %4835 = vmatpush2.msra.mxu0 0.0
        %4836 = vmatprep.subr.mxu0 0.0
        %4837 = vmatpush2.msra.mxu0 0.0
        %4838 = vmatprep.subr.mxu0 0.0
        %4839 = vmatpush2.msra.mxu0 0.0
        %4840 = vmatprep.subr.mxu0 0.0
        %4841 = vmatpush2.msra.mxu0 0.0
        %4842 = vmatprep.mubr.f32.mxu0 0.0
        %4843 = vmatmul.mubr.f32.gmra.mxu0 %v4776
        %v4844 = vpop.f32.mrf.mxu0
        %v4845 = vadd.f32 0.0, %v4844
        %v4846 = vpop.f32.mrf.mxu0
        %4847 = vdwg.mxu0
        %v4848 = vadd.f32 %v4762, %v4845
        %v4849 = vld [vmem:[%s55] sm:$0x1]
        %v4851 = vlaneseq
        %v4852 = vshrl.u32 %v4851, 7
        %v4853 = vsub.s32 0, %v4852
        %v4854 = vrot.slane %v4849, %v4853
        %v4856 = vadd.f32 %v4848, %v4854
        %v4857 = vmax.f32 %v4856, 0.0
        %4858 = vst.msk [vmem:[#allocation6] sm:$0x1] %vm4203, 0.0
        %4859 = vst.msk [vmem:[#allocation6 + $0x9] sm:$0x1] %vm4203, 0.0
        %4860 = vst.msk [vmem:[#allocation6 + $0x1] sm:$0xff] %vm4219, %v4857
        %v4861 = vld [vmem:[#allocation6] sm:$0xff]
        %v4862 = vld [vmem:[#allocation38] sm:$0xff]
        %v4863 = vld [vmem:[#allocation38 + $0x8] sm:$0xff]
        %v4864 = vld [vmem:[#allocation38 + $0x10] sm:$0xff]
        %v4865 = vld [vmem:[#allocation38 + $0x18] sm:$0xff]
        %v4866 = vld [vmem:[#allocation6 + $0x1] sm:$0xff]
        %s4867 = scalar_lea.vmem [#allocation38], 32
        %v4868 = vld [vmem:[%s4867] sm:$0xff]
        %v4869 = vld [vmem:[%s4867 + $0x8] sm:$0xff]
        %v4870 = vld [vmem:[%s4867 + $0x10] sm:$0xff]
        %v4871 = vld [vmem:[%s4867 + $0x18] sm:$0xff]
        %v4873 = vsel %vm4219, %v4866, 0
        %4875 = vmatprep.subr.mxu0 0.0
        %4876 = vmatpush1.msra.mxu0 0.0
        %4877 = vmatprep.subr.mxu0 0.0
        %4878 = vmatpush1.msra.mxu0 0.0
        %4879 = vmatprep.subr.mxu0 0.0
        %4880 = vmatpush1.msra.mxu0 0.0
        %4881 = vmatprep.subr.mxu0 0.0
        %4882 = vmatpush1.msra.mxu0 0.0
        %4883 = vmatprep.subr.mxu0 0.0
        %4884 = vmatpush1.msra.mxu0 0.0
        %4885 = vmatprep.subr.mxu0 0.0
        %4886 = vmatpush1.msra.mxu0 0.0
        %4887 = vmatprep.subr.mxu0 0.0
        %4888 = vmatpush1.msra.mxu0 0.0
        %4889 = vmatprep.subr.mxu0 0.0
        %4890 = vmatpush1.msra.mxu0 0.0
        %4891 = vmatprep.subr.mxu0 0.0
        %4892 = vmatpush1.msra.mxu0 0.0
        %4893 = vmatprep.subr.mxu0 0.0
        %4894 = vmatpush1.msra.mxu0 0.0
        %4895 = vmatprep.subr.mxu0 0.0
        %4896 = vmatpush1.msra.mxu0 0.0
        %4897 = vmatprep.subr.mxu0 0.0
        %4898 = vmatpush1.msra.mxu0 0.0
        %4899 = vmatprep.subr.mxu0 0.0
        %4900 = vmatpush1.msra.mxu0 %v4871
        %4901 = vmatprep.subr.mxu0 0.0
        %4902 = vmatpush1.msra.mxu0 %v4870
        %4903 = vmatprep.subr.mxu0 0.0
        %4904 = vmatpush1.msra.mxu0 %v4869
        %4905 = vmatprep.subr.mxu0 0.0
        %4906 = vmatpush1.msra.mxu0 %v4868
        %4907 = vmatprep.subr.mxu0 0.0
        %4908 = vmatpush2.msra.mxu0 0.0
        %4909 = vmatprep.subr.mxu0 0.0
        %4910 = vmatpush2.msra.mxu0 0.0
        %4911 = vmatprep.subr.mxu0 0.0
        %4912 = vmatpush2.msra.mxu0 0.0
        %4913 = vmatprep.subr.mxu0 0.0
        %4914 = vmatpush2.msra.mxu0 0.0
        %4915 = vmatprep.subr.mxu0 0.0
        %4916 = vmatpush2.msra.mxu0 0.0
        %4917 = vmatprep.subr.mxu0 0.0
        %4918 = vmatpush2.msra.mxu0 0.0
        %4919 = vmatprep.subr.mxu0 0.0
        %4920 = vmatpush2.msra.mxu0 0.0
        %4921 = vmatprep.subr.mxu0 0.0
        %4922 = vmatpush2.msra.mxu0 0.0
        %4923 = vmatprep.subr.mxu0 0.0
        %4924 = vmatpush2.msra.mxu0 0.0
        %4925 = vmatprep.subr.mxu0 0.0
        %4926 = vmatpush2.msra.mxu0 0.0
        %4927 = vmatprep.subr.mxu0 0.0
        %4928 = vmatpush2.msra.mxu0 0.0
        %4929 = vmatprep.subr.mxu0 0.0
        %4930 = vmatpush2.msra.mxu0 0.0
        %4931 = vmatprep.subr.mxu0 0.0
        %4932 = vmatpush2.msra.mxu0 0.0
        %4933 = vmatprep.subr.mxu0 0.0
        %4934 = vmatpush2.msra.mxu0 0.0
        %4935 = vmatprep.subr.mxu0 0.0
        %4936 = vmatpush2.msra.mxu0 0.0
        %4937 = vmatprep.subr.mxu0 0.0
        %4938 = vmatpush2.msra.mxu0 0.0
        %4939 = vmatprep.mubr.f32.mxu0 0.0
        %4940 = vmatmul.mubr.f32.gmra.mxu0 %v4873
        %v4941 = vpop.f32.mrf.mxu0
        %v4942 = vadd.f32 0.0, %v4941
        %v4943 = vpop.f32.mrf.mxu0
        %4944 = vdwg.mxu0
        %v4946 = vsel %vm4219, %v4861, 0
        %4948 = vmatprep.subr.mxu0 0.0
        %4949 = vmatpush1.msra.mxu0 0.0
        %4950 = vmatprep.subr.mxu0 0.0
        %4951 = vmatpush1.msra.mxu0 0.0
        %4952 = vmatprep.subr.mxu0 0.0
        %4953 = vmatpush1.msra.mxu0 0.0
        %4954 = vmatprep.subr.mxu0 0.0
        %4955 = vmatpush1.msra.mxu0 0.0
        %4956 = vmatprep.subr.mxu0 0.0
        %4957 = vmatpush1.msra.mxu0 0.0
        %4958 = vmatprep.subr.mxu0 0.0
        %4959 = vmatpush1.msra.mxu0 0.0
        %4960 = vmatprep.subr.mxu0 0.0
        %4961 = vmatpush1.msra.mxu0 0.0
        %4962 = vmatprep.subr.mxu0 0.0
        %4963 = vmatpush1.msra.mxu0 0.0
        %4964 = vmatprep.subr.mxu0 0.0
        %4965 = vmatpush1.msra.mxu0 0.0
        %4966 = vmatprep.subr.mxu0 0.0
        %4967 = vmatpush1.msra.mxu0 0.0
        %4968 = vmatprep.subr.mxu0 0.0
        %4969 = vmatpush1.msra.mxu0 0.0
        %4970 = vmatprep.subr.mxu0 0.0
        %4971 = vmatpush1.msra.mxu0 0.0
        %4972 = vmatprep.subr.mxu0 0.0
        %4973 = vmatpush1.msra.mxu0 %v4865
        %4974 = vmatprep.subr.mxu0 0.0
        %4975 = vmatpush1.msra.mxu0 %v4864
        %4976 = vmatprep.subr.mxu0 0.0
        %4977 = vmatpush1.msra.mxu0 %v4863
        %4978 = vmatprep.subr.mxu0 0.0
        %4979 = vmatpush1.msra.mxu0 %v4862
        %4980 = vmatprep.subr.mxu0 0.0
        %4981 = vmatpush2.msra.mxu0 0.0
        %4982 = vmatprep.subr.mxu0 0.0
        %4983 = vmatpush2.msra.mxu0 0.0
        %4984 = vmatprep.subr.mxu0 0.0
        %4985 = vmatpush2.msra.mxu0 0.0
        %4986 = vmatprep.subr.mxu0 0.0
        %4987 = vmatpush2.msra.mxu0 0.0
        %4988 = vmatprep.subr.mxu0 0.0
        %4989 = vmatpush2.msra.mxu0 0.0
        %4990 = vmatprep.subr.mxu0 0.0
        %4991 = vmatpush2.msra.mxu0 0.0
        %4992 = vmatprep.subr.mxu0 0.0
        %4993 = vmatpush2.msra.mxu0 0.0
        %4994 = vmatprep.subr.mxu0 0.0
        %4995 = vmatpush2.msra.mxu0 0.0
        %4996 = vmatprep.subr.mxu0 0.0
        %4997 = vmatpush2.msra.mxu0 0.0
        %4998 = vmatprep.subr.mxu0 0.0
        %4999 = vmatpush2.msra.mxu0 0.0
        %5000 = vmatprep.subr.mxu0 0.0
        %5001 = vmatpush2.msra.mxu0 0.0
        %5002 = vmatprep.subr.mxu0 0.0
        %5003 = vmatpush2.msra.mxu0 0.0
        %5004 = vmatprep.subr.mxu0 0.0
        %5005 = vmatpush2.msra.mxu0 0.0
        %5006 = vmatprep.subr.mxu0 0.0
        %5007 = vmatpush2.msra.mxu0 0.0
        %5008 = vmatprep.subr.mxu0 0.0
        %5009 = vmatpush2.msra.mxu0 0.0
        %5010 = vmatprep.subr.mxu0 0.0
        %5011 = vmatpush2.msra.mxu0 0.0
        %5012 = vmatprep.mubr.f32.mxu0 0.0
        %5013 = vmatmul.mubr.f32.gmra.mxu0 %v4946
        %v5014 = vpop.f32.mrf.mxu0
        %v5015 = vadd.f32 %v4942, %v5014
        %v5016 = vpop.f32.mrf.mxu0
        %5017 = vdwg.mxu0
        %v5018 = vld [vmem:[#allocation6 + $0x2] sm:$0xff]
        %s5019 = scalar_lea.vmem [#allocation38], 64
        %v5020 = vld [vmem:[%s5019] sm:$0xff]
        %v5021 = vld [vmem:[%s5019 + $0x8] sm:$0xff]
        %v5022 = vld [vmem:[%s5019 + $0x10] sm:$0xff]
        %v5023 = vld [vmem:[%s5019 + $0x18] sm:$0xff]
        %v5025 = vsel %vm4219, %v5018, 0
        %5027 = vmatprep.subr.mxu0 0.0
        %5028 = vmatpush1.msra.mxu0 0.0
        %5029 = vmatprep.subr.mxu0 0.0
        %5030 = vmatpush1.msra.mxu0 0.0
        %5031 = vmatprep.subr.mxu0 0.0
        %5032 = vmatpush1.msra.mxu0 0.0
        %5033 = vmatprep.subr.mxu0 0.0
        %5034 = vmatpush1.msra.mxu0 0.0
        %5035 = vmatprep.subr.mxu0 0.0
        %5036 = vmatpush1.msra.mxu0 0.0
        %5037 = vmatprep.subr.mxu0 0.0
        %5038 = vmatpush1.msra.mxu0 0.0
        %5039 = vmatprep.subr.mxu0 0.0
        %5040 = vmatpush1.msra.mxu0 0.0
        %5041 = vmatprep.subr.mxu0 0.0
        %5042 = vmatpush1.msra.mxu0 0.0
        %5043 = vmatprep.subr.mxu0 0.0
        %5044 = vmatpush1.msra.mxu0 0.0
        %5045 = vmatprep.subr.mxu0 0.0
        %5046 = vmatpush1.msra.mxu0 0.0
        %5047 = vmatprep.subr.mxu0 0.0
        %5048 = vmatpush1.msra.mxu0 0.0
        %5049 = vmatprep.subr.mxu0 0.0
        %5050 = vmatpush1.msra.mxu0 0.0
        %5051 = vmatprep.subr.mxu0 0.0
        %5052 = vmatpush1.msra.mxu0 %v5023
        %5053 = vmatprep.subr.mxu0 0.0
        %5054 = vmatpush1.msra.mxu0 %v5022
        %5055 = vmatprep.subr.mxu0 0.0
        %5056 = vmatpush1.msra.mxu0 %v5021
        %5057 = vmatprep.subr.mxu0 0.0
        %5058 = vmatpush1.msra.mxu0 %v5020
        %5059 = vmatprep.subr.mxu0 0.0
        %5060 = vmatpush2.msra.mxu0 0.0
        %5061 = vmatprep.subr.mxu0 0.0
        %5062 = vmatpush2.msra.mxu0 0.0
        %5063 = vmatprep.subr.mxu0 0.0
        %5064 = vmatpush2.msra.mxu0 0.0
        %5065 = vmatprep.subr.mxu0 0.0
        %5066 = vmatpush2.msra.mxu0 0.0
        %5067 = vmatprep.subr.mxu0 0.0
        %5068 = vmatpush2.msra.mxu0 0.0
        %5069 = vmatprep.subr.mxu0 0.0
        %5070 = vmatpush2.msra.mxu0 0.0
        %5071 = vmatprep.subr.mxu0 0.0
        %5072 = vmatpush2.msra.mxu0 0.0
        %5073 = vmatprep.subr.mxu0 0.0
        %5074 = vmatpush2.msra.mxu0 0.0
        %5075 = vmatprep.subr.mxu0 0.0
        %5076 = vmatpush2.msra.mxu0 0.0
        %5077 = vmatprep.subr.mxu0 0.0
        %5078 = vmatpush2.msra.mxu0 0.0
        %5079 = vmatprep.subr.mxu0 0.0
        %5080 = vmatpush2.msra.mxu0 0.0
        %5081 = vmatprep.subr.mxu0 0.0
        %5082 = vmatpush2.msra.mxu0 0.0
        %5083 = vmatprep.subr.mxu0 0.0
        %5084 = vmatpush2.msra.mxu0 0.0
        %5085 = vmatprep.subr.mxu0 0.0
        %5086 = vmatpush2.msra.mxu0 0.0
        %5087 = vmatprep.subr.mxu0 0.0
        %5088 = vmatpush2.msra.mxu0 0.0
        %5089 = vmatprep.subr.mxu0 0.0
        %5090 = vmatpush2.msra.mxu0 0.0
        %5091 = vmatprep.mubr.f32.mxu0 0.0
        %5092 = vmatmul.mubr.f32.gmra.mxu0 %v5025
        %v5093 = vpop.f32.mrf.mxu0
        %v5094 = vadd.f32 0.0, %v5093
        %v5095 = vpop.f32.mrf.mxu0
        %5096 = vdwg.mxu0
        %v5097 = vadd.f32 %v5015, %v5094
        %v5098 = vld [vmem:[%s59] sm:$0x1]
        %v5100 = vlaneseq
        %v5101 = vshrl.u32 %v5100, 7
        %v5102 = vsub.s32 0, %v5101
        %v5103 = vrot.slane %v5098, %v5102
        %v5105 = vadd.f32 %v5097, %v5103
        %5107 = vrot.lane.b32.xlu0 %v4856, 96
        %v5108 = vpop.permute.xlu0 %5107
        %v5110 = vadd.f32 %v5105, %v5108
        %v5111 = vmax.f32 %v5110, 0.0
        %v5112 = vld [vmem:[%s61] sm:$0xff]
        %v5113 = vld [vmem:[%s61 + $0x8] sm:$0xff]
        %v5114 = vld [vmem:[%s61 + $0x10] sm:$0xff]
        %v5115 = vld [vmem:[%s61 + $0x18] sm:$0xff]
        %v5117 = vsel %vm4219, %v5111, 0
        %5119 = vmatprep.subr.mxu0 0.0
        %5120 = vmatpush1.msra.mxu0 0.0
        %5121 = vmatprep.subr.mxu0 0.0
        %5122 = vmatpush1.msra.mxu0 0.0
        %5123 = vmatprep.subr.mxu0 0.0
        %5124 = vmatpush1.msra.mxu0 0.0
        %5125 = vmatprep.subr.mxu0 0.0
        %5126 = vmatpush1.msra.mxu0 0.0
        %5127 = vmatprep.subr.mxu0 0.0
        %5128 = vmatpush1.msra.mxu0 0.0
        %5129 = vmatprep.subr.mxu0 0.0
        %5130 = vmatpush1.msra.mxu0 0.0
        %5131 = vmatprep.subr.mxu0 0.0
        %5132 = vmatpush1.msra.mxu0 0.0
        %5133 = vmatprep.subr.mxu0 0.0
        %5134 = vmatpush1.msra.mxu0 0.0
        %5135 = vmatprep.subr.mxu0 0.0
        %5136 = vmatpush1.msra.mxu0 0.0
        %5137 = vmatprep.subr.mxu0 0.0
        %5138 = vmatpush1.msra.mxu0 0.0
        %5139 = vmatprep.subr.mxu0 0.0
        %5140 = vmatpush1.msra.mxu0 0.0
        %5141 = vmatprep.subr.mxu0 0.0
        %5142 = vmatpush1.msra.mxu0 0.0
        %5143 = vmatprep.subr.mxu0 0.0
        %5144 = vmatpush1.msra.mxu0 %v5115
        %5145 = vmatprep.subr.mxu0 0.0
        %5146 = vmatpush1.msra.mxu0 %v5114
        %5147 = vmatprep.subr.mxu0 0.0
        %5148 = vmatpush1.msra.mxu0 %v5113
        %5149 = vmatprep.subr.mxu0 0.0
        %5150 = vmatpush1.msra.mxu0 %v5112
        %5151 = vmatprep.subr.mxu0 0.0
        %5152 = vmatpush2.msra.mxu0 0.0
        %5153 = vmatprep.subr.mxu0 0.0
        %5154 = vmatpush2.msra.mxu0 0.0
        %5155 = vmatprep.subr.mxu0 0.0
        %5156 = vmatpush2.msra.mxu0 0.0
        %5157 = vmatprep.subr.mxu0 0.0
        %5158 = vmatpush2.msra.mxu0 0.0
        %5159 = vmatprep.subr.mxu0 0.0
        %5160 = vmatpush2.msra.mxu0 0.0
        %5161 = vmatprep.subr.mxu0 0.0
        %5162 = vmatpush2.msra.mxu0 0.0
        %5163 = vmatprep.subr.mxu0 0.0
        %5164 = vmatpush2.msra.mxu0 0.0
        %5165 = vmatprep.subr.mxu0 0.0
        %5166 = vmatpush2.msra.mxu0 0.0
        %5167 = vmatprep.subr.mxu0 0.0
        %5168 = vmatpush2.msra.mxu0 0.0
        %5169 = vmatprep.subr.mxu0 0.0
        %5170 = vmatpush2.msra.mxu0 0.0
        %5171 = vmatprep.subr.mxu0 0.0
        %5172 = vmatpush2.msra.mxu0 0.0
        %5173 = vmatprep.subr.mxu0 0.0
        %5174 = vmatpush2.msra.mxu0 0.0
        %5175 = vmatprep.subr.mxu0 0.0
        %5176 = vmatpush2.msra.mxu0 0.0
        %5177 = vmatprep.subr.mxu0 0.0
        %5178 = vmatpush2.msra.mxu0 0.0
        %5179 = vmatprep.subr.mxu0 0.0
        %5180 = vmatpush2.msra.mxu0 0.0
        %5181 = vmatprep.subr.mxu0 0.0
        %5182 = vmatpush2.msra.mxu0 0.0
        %5183 = vmatprep.mubr.f32.mxu0 0.0
        %5184 = vmatmul.mubr.f32.gmra.mxu0 %v5117
        %v5185 = vpop.f32.mrf.mxu0
        %v5186 = vadd.f32 0.0, %v5185
        %v5187 = vpop.f32.mrf.mxu0
        %5188 = vdwg.mxu0
        %v5190 = vcombine.high %v5186, %v5186
        %v5192 = vunpack.c.l.s4 1966171168
        %v5193 = vunpack.c.0.s8 %v5192
        %v5194 = vlaneseq
        %v5195 = vshrl.u32 %v5194, 7
        %v5196 = vsub.s32 %v5193, %v5195
        %v5197 = vrot.slane %v5186, %v5196
        %v5199 = vunpack.c.l.s4 1966171168
        %v5200 = vunpack.c.0.s8 %v5199
        %v5201 = vlaneseq
        %v5202 = vshrl.u32 %v5201, 7
        %v5203 = vsub.s32 %v5200, %v5202
        %v5204 = vrot.slane %v5190, %v5203
        %v5205 = vcombine.high %v5197, %v5197
        %v5206 = vcombine.high %v5204, %v5204
        %v5208 = vunpack.c.l.s4 1966171168
        %v5209 = vunpack.c.0.s8 %v5208
        %v5210 = vlaneseq
        %v5211 = vshrl.u32 %v5210, 7
        %v5212 = vsub.s32 %v5209, %v5211
        %v5213 = vrot.slane %v5197, %v5212
        %v5215 = vunpack.c.l.s4 1966171168
        %v5216 = vunpack.c.0.s8 %v5215
        %v5217 = vlaneseq
        %v5218 = vshrl.u32 %v5217, 7
        %v5219 = vsub.s32 %v5216, %v5218
        %v5220 = vrot.slane %v5204, %v5219
        %v5222 = vunpack.c.l.s4 1966171168
        %v5223 = vunpack.c.0.s8 %v5222
        %v5224 = vlaneseq
        %v5225 = vshrl.u32 %v5224, 7
        %v5226 = vsub.s32 %v5223, %v5225
        %v5227 = vrot.slane %v5205, %v5226
        %v5229 = vunpack.c.l.s4 1966171168
        %v5230 = vunpack.c.0.s8 %v5229
        %v5231 = vlaneseq
        %v5232 = vshrl.u32 %v5231, 7
        %v5233 = vsub.s32 %v5230, %v5232
        %v5234 = vrot.slane %v5206, %v5233
        %v5235 = vcombine.high %v5213, %v5213
        %v5236 = vcombine.high %v5220, %v5220
        %v5237 = vcombine.high %v5227, %v5227
        %v5238 = vcombine.high %v5234, %v5234
        %v5239 = vlaneseq
        %v5240 = vshrl.u32 %v5239, 7
        %v5241 = vsub.s32 0, %v5240
        %v5242 = vrot.slane %v5213, %v5241
        %v5243 = vlaneseq
        %v5244 = vshrl.u32 %v5243, 7
        %v5245 = vsub.s32 0, %v5244
        %v5246 = vrot.slane %v5227, %v5245
        %v5247 = vlaneseq
        %v5248 = vshrl.u32 %v5247, 7
        %v5249 = vsub.s32 0, %v5248
        %v5250 = vrot.slane %v5235, %v5249
        %v5251 = vlaneseq
        %v5252 = vshrl.u32 %v5251, 7
        %v5253 = vsub.s32 0, %v5252
        %v5254 = vrot.slane %v5237, %v5253
        %v5255 = vlaneseq
        %v5256 = vshrl.u32 %v5255, 7
        %v5257 = vsub.s32 0, %v5256
        %v5258 = vrot.slane %v5220, %v5257
        %v5259 = vlaneseq
        %v5260 = vshrl.u32 %v5259, 7
        %v5261 = vsub.s32 0, %v5260
        %v5262 = vrot.slane %v5234, %v5261
        %v5263 = vlaneseq
        %v5264 = vshrl.u32 %v5263, 7
        %v5265 = vsub.s32 0, %v5264
        %v5266 = vrot.slane %v5236, %v5265
        %v5267 = vlaneseq
        %v5268 = vshrl.u32 %v5267, 7
        %v5269 = vsub.s32 0, %v5268
        %v5270 = vrot.slane %v5238, %v5269
        %v5271 = vcombine.low %v5242, %v5246
        %v5272 = vcombine.low %v5250, %v5254
        %v5274 = vunpack.c.l.s4 1983009808
        %v5275 = vunpack.c.0.s8 %v5274
        %v5276 = vlaneseq
        %v5277 = vshrl.u32 %v5276, 7
        %v5278 = vsub.s32 %v5275, %v5277
        %v5279 = vrot.slane %v5271, %v5278
        %v5281 = vunpack.c.l.s4 1983009808
        %v5282 = vunpack.c.0.s8 %v5281
        %v5283 = vlaneseq
        %v5284 = vshrl.u32 %v5283, 7
        %v5285 = vsub.s32 %v5282, %v5284
        %v5286 = vrot.slane %v5272, %v5285
        %v5287 = vcombine.low %v5279, %v5286
        %v5288 = vcombine.low %v5258, %v5262
        %v5289 = vcombine.low %v5266, %v5270
        %v5291 = vunpack.c.l.s4 1983009808
        %v5292 = vunpack.c.0.s8 %v5291
        %v5293 = vlaneseq
        %v5294 = vshrl.u32 %v5293, 7
        %v5295 = vsub.s32 %v5292, %v5294
        %v5296 = vrot.slane %v5288, %v5295
        %v5298 = vunpack.c.l.s4 1983009808
        %v5299 = vunpack.c.0.s8 %v5298
        %v5300 = vlaneseq
        %v5301 = vshrl.u32 %v5300, 7
        %v5302 = vsub.s32 %v5299, %v5301
        %v5303 = vrot.slane %v5289, %v5302
        %v5304 = vcombine.low %v5296, %v5303
        %v5307 = vadd.f32 %v1834, %v5287
        %v5308 = vadd.f32 %v1835, %v5304
        %5309 = vst.msk [vmem:[%s1245] sm:$0xff] %vm1251, %v5307
        %5310 = vst.msk [vmem:[%s1245 + $0x8] sm:$0xff] %vm1251, %v5308
        %p5311 = scmp.lt.s32.totalorder %s85, 1
        %s5312 = scalar_select %p5311, %s85, 1
        %s5313 = smul.addr %s5312, 2
        %s5314 = smul.addr %s5313, 8
        %s5315 = scalar_lea.vmem %s63, %s5314
        // Predicated region
        $region229: #{forward.1} parent=143 // pred_check
          %p5316 = pneg %p759
        $region230: #{forward.1} parent=143 // pred_check_branch
          %5318 = sbr.rel (%p5316) target = $region232
        $region231: #{forward.1} parent=143 // pred_region
          _
        $region232: #{forward.1} parent=143 // pred_fallthru
          _
      $region144: #{forward.1} parent=5 // pred_fallthru
        _
      %p5319 = scmp.le.s32.totalorder 2, %s80
      // Predicated region
      $region233: #{forward.1} parent=5 // pred_check
        %p5320 = pneg %p5319
      $region234: #{forward.1} parent=5 // pred_check_branch
        %5322 = sbr.rel (%p5320) target = $region236
      $region235: #{forward.1} parent=5 // pred_region
        %s5323 = ssub.s32 %s80, 2
        // Predicated region
        $region237: #{forward.1} parent=235 // pred_check
          %p5324 = pneg %p765
        $region238: #{forward.1} parent=235 // pred_check_branch
          %5326 = sbr.rel (%p5324) target = $region240
        $region239: #{forward.1} parent=235 // pred_region
          %p5327 = scmp.lt.s32.totalorder %s86, 1
          %s5328 = scalar_select %p5327, %s86, 1
          %s5329 = smul.addr %s5328, 2
          %s5330 = smul.addr %s5329, 8
          %s5331 = scalar_lea.vmem %s63, %s5330
        $region240: #{forward.1} parent=235 // pred_fallthru
          _
      $region236: #{forward.1} parent=5 // pred_fallthru
        _
    $region6: #{forward.1} parent=1 // loop_footer
      %s84 = sadd.s32 1, %s80
    $region7: #{forward.1} parent=1 // loop_footer_branch
      %79 = sbr.rel target = $region3
    $region8: #{forward.1} parent=1 // loop_exit
      _
    %5332 = vsyncpa [#allocation8], 1
    %s5333 = scalar_lea.sflag [#allocation8], 1
    %5334 = vsyncpa %s5333, 1
    %5335 = vsyncpa [#allocation10], 1
    %5336 = vsyncpa [#allocation13], 1
    %5337 = vsyncpa [#allocation16], 1
    %5338 = vsyncpa [#allocation19], 1
    %5339 = vsyncpa [#allocation22], 1
    %5340 = vsyncpa [#allocation25], 1
    %5341 = vsyncpa [#allocation28], 1
    %5342 = vsyncpa [#allocation31], 1
    %5343 = vsyncpa [#allocation34], 1
    %5344 = vsyncpa [#allocation37], 1

</llo_original>
